<compile_context>
chip_gen: v5e
topology: v5e:2x2
jax: 0.10.0
libtpu: 0.0.40
codegen_flags: <defaults>
</compile_context>

<pallas_src>
from typing import NamedTuple

import jax
import jax.numpy as jnp
from jax.experimental import pallas as pl
from jax.experimental.pallas import tpu as pltpu


def _round_up(n, m):
    return ((n + m - 1) // m) * m


# --------------------------------------------------------------------------- #
# Kernel
# --------------------------------------------------------------------------- #
def actor_mlp_kernel(x_ref, w1_ref, b1_ref, w2_ref, b2_ref, w3_ref, b3_ref,
                     out_ref):
    """Fused fc1->relu->fc2->relu->fc3->softmax for one batch tile.

    Matmul operands are bf16 (MXU native); accumulation and all elementwise
    math are f32.  x arrives as f32 and is cast to bf16 here (VPU cast is
    hidden under the tile DMA; avoids a wrapper-side cast pass over x).
    """
    x = x_ref[...].astype(jnp.bfloat16)

    # fc1 + relu (f32 accumulate, f32 elementwise)
    h1 = jnp.dot(x, w1_ref[...], preferred_element_type=jnp.float32)
    h1 = jnp.maximum(h1 + b1_ref[...], 0.0)

    # fc2 + relu
    h2 = jnp.dot(h1.astype(jnp.bfloat16), w2_ref[...],
                 preferred_element_type=jnp.float32)
    h2 = jnp.maximum(h2 + b2_ref[...], 0.0)

    # fc3 (padded action lanes carry bias -1e30 -> exp underflows to 0)
    logits = jnp.dot(h2.astype(jnp.bfloat16), w3_ref[...],
                     preferred_element_type=jnp.float32)
    logits = logits + b3_ref[...]

    # numerically-stable softmax over the (lane-dense, padded) last dim
    m = jnp.max(logits, axis=-1, keepdims=True)
    e = jnp.exp(logits - m)
    denom = jnp.sum(e, axis=-1, keepdims=True)
    out_ref[...] = (e * pl.reciprocal(denom, approx=True)).astype(out_ref.dtype)


# --------------------------------------------------------------------------- #
# Parameter preparation (do ONCE, not per forward call)
# --------------------------------------------------------------------------- #
class PreparedActorParams(NamedTuple):
    w1: jax.Array   # [input_dim, hidden]  bf16
    b1: jax.Array   # [1, hidden]          f32
    w2: jax.Array   # [hidden, hidden]     bf16
    b2: jax.Array   # [1, hidden]          f32
    w3: jax.Array   # [hidden, a_pad]      bf16 (lane-dense padded)
    b3: jax.Array   # [1, a_pad]           f32  (padded lanes = -1e30)
    action_dim: int


def prepare_actor_params(params):
    """Pre-cast weights to bf16 / biases to f32 and pad fc3 to a lane-dense
    (multiple-of-128) action dim.  Caching this removes per-call cast/pad XLA
    passes over every weight matrix."""
    w1, b1, w2, b2, w3, b3 = params
    action_dim = int(w3.shape[1])
    a_pad = _round_up(action_dim, 128)

    w3b = w3.astype(jnp.bfloat16)
    b3f = b3.astype(jnp.float32)
    if a_pad != action_dim:
        w3b = jnp.pad(w3b, ((0, 0), (0, a_pad - action_dim)))
        # Huge negative bias on padded lanes -> exp() == 0 exactly, so the
        # softmax over the padded block equals the unpadded softmax.
        b3f = jnp.pad(b3f, ((0, 0), (0, a_pad - action_dim)),
                      constant_values=-1e30)

    return PreparedActorParams(
        w1.astype(jnp.bfloat16), b1.astype(jnp.float32),
        w2.astype(jnp.bfloat16), b2.astype(jnp.float32),
        w3b, b3f, action_dim)


# --------------------------------------------------------------------------- #
# VMEM budgeting
# --------------------------------------------------------------------------- #
def _vmem_bytes_estimate(batch_tile, input_dim, hidden_dim, a_pad, weight_bufs):
    weights = 2 * weight_bufs * (input_dim * hidden_dim
                                 + hidden_dim * hidden_dim
                                 + hidden_dim * a_pad)        # bf16 resident
    biases = 4 * weight_bufs * (2 * hidden_dim + a_pad)       # f32
    x_tiles = 2 * batch_tile * input_dim * 4                  # dbl-buf f32 x
    o_tiles = 2 * batch_tile * a_pad * 4                      # dbl-buf f32 out
    # live f32 activations: h1, h2, logits, exp intermediate + bf16 copies
    acts = batch_tile * (2 * hidden_dim * 4 + 2 * a_pad * 4
                         + (input_dim + 2 * hidden_dim) * 2)
    return weights + biases + x_tiles + o_tiles + acts


def _vmem_limit_bytes(estimate):
    """Generation-aware cap: ~87% of physical VMEM (64 MiB on v7x, 128 MiB on
    v5e/v6e) instead of a hard 64 MiB ceiling."""
    try:
        info = pltpu.get_tpu_info()
        cap = int(getattr(info, "vmem_capacity_bytes", 128 * 1024 * 1024))
    except Exception:  # no hardware query available -> conservative default
        cap = 64 * 1024 * 1024
    cap = int(0.875 * cap)
    want = max(32 * 1024 * 1024, int(1.25 * estimate))
    return int(min(cap, want))


# --------------------------------------------------------------------------- #
# Wrapper
# --------------------------------------------------------------------------- #
def _choose_batch_tile(B):
    """Large tiles (256-512, multiple of 256) to fill the MXU and amortize the
    ~0.35 us/step grid overhead, while keeping >=2 steps for v7x's two TCs
    whenever the batch is big enough to split."""
    b8 = _round_up(B, 8)
    if b8 <= 256:
        return b8
    half = _round_up((b8 + 1) // 2, 256)
    return min(512, half)


def _build_call(batch_tile, input_dim, hidden_dim, a_pad, b_pad, grid,
                single_buffer_weights):
    def _inv_spec(shape):
        # Grid-invariant operand: DMA'd once; single-buffer to halve VMEM use.
        if single_buffer_weights:
            return pl.BlockSpec(shape, lambda i: (0, 0),
                                pipeline_mode=pl.Buffered(1))
        return pl.BlockSpec(shape, lambda i: (0, 0))

    in_specs = [
        pl.BlockSpec((batch_tile, input_dim), lambda i: (i, 0)),  # x (f32)
        _inv_spec((input_dim, hidden_dim)),                       # w1
        _inv_spec((1, hidden_dim)),                               # b1
        _inv_spec((hidden_dim, hidden_dim)),                      # w2
        _inv_spec((1, hidden_dim)),                               # b2
        _inv_spec((hidden_dim, a_pad)),                           # w3
        _inv_spec((1, a_pad)),                                    # b3
    ]
    out_spec = pl.BlockSpec((batch_tile, a_pad), lambda i: (i, 0))

    weight_bufs = 1 if single_buffer_weights else 2
    vmem_limit = _vmem_limit_bytes(
        _vmem_bytes_estimate(batch_tile, input_dim, hidden_dim, a_pad,
                             weight_bufs))

    return pl.pallas_call(
        actor_mlp_kernel,
        out_shape=jax.ShapeDtypeStruct((b_pad, a_pad), jnp.float32),
        grid_spec=pltpu.PrefetchScalarGridSpec(
            num_scalar_prefetch=0,
            grid=grid,
            in_specs=in_specs,
            out_specs=out_spec,
        ),
        compiler_params=pltpu.CompilerParams(
            dimension_semantics=("parallel",),
            vmem_limit_bytes=vmem_limit,
        ),
    )


def actor_forward(x, params, *, batch_tile=None):
    """x: [B, input_dim] float32. Returns action_probs: [B, action_dim] f32.

    `params` may be a raw (w1,b1,w2,b2,w3,b3) tuple or a PreparedActorParams
    (pass the latter to avoid per-call weight cast/pad work)."""
    if not isinstance(params, PreparedActorParams):
        params = prepare_actor_params(params)
    w1, b1, w2, b2, w3, b3, action_dim = params

    B, input_dim = x.shape
    hidden_dim = w1.shape[1]
    a_pad = w3.shape[1]

    # ---- batch tiling (multiple of 8 sublanes) + ragged-batch padding -----
    if batch_tile is None:
        batch_tile = _choose_batch_tile(B)
    batch_tile = _round_up(batch_tile, 8)
    b_pad = _round_up(B, batch_tile)
    if b_pad != B:
        x = jnp.pad(x, ((0, b_pad - B), (0, 0)))
    grid = (b_pad // batch_tile,)

    x = x.astype(jnp.float32)  # kernel casts to bf16 internally

    try:
        call = _build_call(batch_tile, input_dim, hidden_dim, a_pad, b_pad,
                           grid, single_buffer_weights=True)
        out = call(x, w1, b1, w2, b2, w3, b3)
    except Exception:
        # Fallback if this runtime rejects pipeline_mode=pl.Buffered(1);
        # default double-buffering is correct, just uses 2x weight VMEM.
        call = _build_call(batch_tile, input_dim, hidden_dim, a_pad, b_pad,
                           grid, single_buffer_weights=False)
        out = call(x, w1, b1, w2, b2, w3, b3)

    return out[:B, :action_dim]


# --------------------------------------------------------------------------- #
# Init + reference + checks
# --------------------------------------------------------------------------- #
def init_actor_params(key, input_dim, hidden_dim, action_dim):
    """Deterministic init mimicking nn.Linear default (uniform +-1/sqrt(fan_in)).
    Weights stored as [in, out] (transposed vs. PyTorch's [out, in])."""
    ks = jax.random.split(key, 6)

    def linear(kw, kb, fan_in, fan_out):
        bound = 1.0 / jnp.sqrt(fan_in)
        w = jax.random.uniform(kw, (fan_in, fan_out), jnp.float32, -bound, bound)
        b = jax.random.uniform(kb, (1, fan_out), jnp.float32, -bound, bound)
        return w, b

    w1, b1 = linear(ks[0], ks[1], input_dim, hidden_dim)
    w2, b2 = linear(ks[2], ks[3], hidden_dim, hidden_dim)
    w3, b3 = linear(ks[4], ks[5], hidden_dim, action_dim)
    return (w1, b1, w2, b2, w3, b3)


def actor_forward_ref(x, params):
    """Pure-JAX reference with the same bf16-operand / f32-accumulate matmuls."""
    w1, b1, w2, b2, w3, b3 = params
    bf = jnp.bfloat16
    h1 = jax.nn.relu(
        jnp.dot(x.astype(bf), w1.astype(bf),
                preferred_element_type=jnp.float32) + b1)
    h2 = jax.nn.relu(
        jnp.dot(h1.astype(bf), w2.astype(bf),
                preferred_element_type=jnp.float32) + b2)
    logits = jnp.dot(h2.astype(bf), w3.astype(bf),
                     preferred_element_type=jnp.float32) + b3
    return jax.nn.softmax(logits, axis=-1)


def _check(B, input_dim, hidden_dim, action_dim, batch_tile, seed):
    key = jax.random.PRNGKey(seed)
    k_params, k_x = jax.random.split(key)
    params = init_actor_params(k_params, input_dim, hidden_dim, action_dim)
    x = jax.random.normal(k_x, (B, input_dim), jnp.float32)

    prepared = prepare_actor_params(params)   # hoisted weight prep (once)
    probs = actor_forward(x, prepared, batch_tile=batch_tile)
    probs = jax.block_until_ready(probs)

    ref = actor_forward_ref(x, params)
    assert probs.shape == (B, action_dim), probs.shape
    assert bool(jnp.all(jnp.isfinite(probs)))
    assert jnp.allclose(jnp.sum(probs, axis=-1), 1.0, atol=5e-3)
    assert jnp.allclose(probs, ref, atol=5e-3, rtol=5e-3)


if __name__ == "__main__":
    # 1) Module-default dims (input=512, hidden=256, action=256). Default tile
    #    selection gives batch_tile=256 -> grid=(2,): full MXU M on v6e/v7x
    #    and two parallel steps for v7x's two TensorCores.
    _check(B=512, input_dim=512, hidden_dim=256, action_dim=256,
           batch_tile=None, seed=0)

    # 2) Ragged batch + non-128-multiple action dim (exercises batch padding
    #    and the lane-padded softmax masking path).
    _check(B=37, input_dim=64, hidden_dim=32, action_dim=10,
           batch_tile=None, seed=0)

    print("KERNEL_OK")
</pallas_src>

<mosaic_0001>
module attributes {stable_mosaic.version = 11 : i64} {
  func.func @actor_mlp_kernel(%arg0: i32, %arg1: memref<256x512xf32, #tpu.memory_space<vmem>>, %arg2: memref<512x256xbf16, #tpu.memory_space<vmem>>, %arg3: memref<1x256xf32, #tpu.memory_space<vmem>>, %arg4: memref<256x256xbf16, #tpu.memory_space<vmem>>, %arg5: memref<1x256xf32, #tpu.memory_space<vmem>>, %arg6: memref<256x256xbf16, #tpu.memory_space<vmem>>, %arg7: memref<1x256xf32, #tpu.memory_space<vmem>>, %arg8: memref<256x256xf32, #tpu.memory_space<vmem>>) attributes {dimension_semantics = [#tpu.dimension_semantics<parallel>], iteration_bounds = array<i64: 2>, scalar_prefetch = 0 : i64, scratch_operands = 0 : i64, tpu.core_type = #tpu.core_type<tc>, window_params = [{transform_indices = @transform_0, window_bounds = array<i64: 256, 512>}, {pipeline_mode = #tpu.pipeline_mode<synchronous>, transform_indices = @transform_1, window_bounds = array<i64: 512, 256>}, {pipeline_mode = #tpu.pipeline_mode<synchronous>, transform_indices = @transform_2, window_bounds = array<i64: 1, 256>}, {pipeline_mode = #tpu.pipeline_mode<synchronous>, transform_indices = @transform_3, window_bounds = array<i64: 256, 256>}, {pipeline_mode = #tpu.pipeline_mode<synchronous>, transform_indices = @transform_4, window_bounds = array<i64: 1, 256>}, {pipeline_mode = #tpu.pipeline_mode<synchronous>, transform_indices = @transform_5, window_bounds = array<i64: 256, 256>}, {pipeline_mode = #tpu.pipeline_mode<synchronous>, transform_indices = @transform_6, window_bounds = array<i64: 1, 256>}, {transform_indices = @transform_7, window_bounds = array<i64: 256, 256>}]} {
    %c0 = arith.constant 0 : index
    %c0_0 = arith.constant 0 : index
    %0 = vector.load %arg1[%c0, %c0_0] : memref<256x512xf32, #tpu.memory_space<vmem>>, vector<256x512xf32>
    %1 = arith.truncf %0 : vector<256x512xf32> to vector<256x512xbf16>
    %c0_1 = arith.constant 0 : index
    %c0_2 = arith.constant 0 : index
    %2 = vector.load %arg2[%c0_1, %c0_2] : memref<512x256xbf16, #tpu.memory_space<vmem>>, vector<512x256xbf16>
    %cst = arith.constant dense<0.000000e+00> : vector<256x256xf32>
    %3 = tpu.matmul %1, %2, %cst {dimension_numbers = #tpu.dot_dimension_numbers<[1], [0], [0], [1], [0, 0, 1, 1], [], []>} : vector<256x512xbf16>, vector<512x256xbf16>, vector<256x256xf32> -> vector<256x256xf32>
    %c0_3 = arith.constant 0 : index
    %c0_4 = arith.constant 0 : index
    %4 = vector.load %arg3[%c0_3, %c0_4] : memref<1x256xf32, #tpu.memory_space<vmem>>, vector<1x256xf32>
    %5 = vector.broadcast %4 : vector<1x256xf32> to vector<256x256xf32>
    %6 = arith.addf %3, %5 : vector<256x256xf32>
    %cst_5 = arith.constant 0.000000e+00 : f32
    %7 = vector.broadcast %cst_5 : f32 to vector<256x256xf32>
    %8 = arith.maximumf %6, %7 : vector<256x256xf32>
    %9 = arith.truncf %8 : vector<256x256xf32> to vector<256x256xbf16>
    %c0_6 = arith.constant 0 : index
    %c0_7 = arith.constant 0 : index
    %10 = vector.load %arg4[%c0_6, %c0_7] : memref<256x256xbf16, #tpu.memory_space<vmem>>, vector<256x256xbf16>
    %cst_8 = arith.constant dense<0.000000e+00> : vector<256x256xf32>
    %11 = tpu.matmul %9, %10, %cst_8 {dimension_numbers = #tpu.dot_dimension_numbers<[1], [0], [0], [1], [0, 0, 1, 1], [], []>} : vector<256x256xbf16>, vector<256x256xbf16>, vector<256x256xf32> -> vector<256x256xf32>
    %c0_9 = arith.constant 0 : index
    %c0_10 = arith.constant 0 : index
    %12 = vector.load %arg5[%c0_9, %c0_10] : memref<1x256xf32, #tpu.memory_space<vmem>>, vector<1x256xf32>
    %13 = vector.broadcast %12 : vector<1x256xf32> to vector<256x256xf32>
    %14 = arith.addf %11, %13 : vector<256x256xf32>
    %cst_11 = arith.constant 0.000000e+00 : f32
    %15 = vector.broadcast %cst_11 : f32 to vector<256x256xf32>
    %16 = arith.maximumf %14, %15 : vector<256x256xf32>
    %17 = arith.truncf %16 : vector<256x256xf32> to vector<256x256xbf16>
    %c0_12 = arith.constant 0 : index
    %c0_13 = arith.constant 0 : index
    %18 = vector.load %arg6[%c0_12, %c0_13] : memref<256x256xbf16, #tpu.memory_space<vmem>>, vector<256x256xbf16>
    %cst_14 = arith.constant dense<0.000000e+00> : vector<256x256xf32>
    %19 = tpu.matmul %17, %18, %cst_14 {dimension_numbers = #tpu.dot_dimension_numbers<[1], [0], [0], [1], [0, 0, 1, 1], [], []>} : vector<256x256xbf16>, vector<256x256xbf16>, vector<256x256xf32> -> vector<256x256xf32>
    %c0_15 = arith.constant 0 : index
    %c0_16 = arith.constant 0 : index
    %20 = vector.load %arg7[%c0_15, %c0_16] : memref<1x256xf32, #tpu.memory_space<vmem>>, vector<1x256xf32>
    %21 = vector.broadcast %20 : vector<1x256xf32> to vector<256x256xf32>
    %22 = arith.addf %19, %21 : vector<256x256xf32>
    %cst_17 = arith.constant dense<0xFF800000> : vector<256xf32>
    %23 = vector.multi_reduction <maximumf>, %22, %cst_17 [1] : vector<256x256xf32> to vector<256xf32>
    %24 = vector.shape_cast %23 : vector<256xf32> to vector<256x1xf32>
    %25 = vector.broadcast %24 : vector<256x1xf32> to vector<256x256xf32>
    %26 = arith.subf %22, %25 : vector<256x256xf32>
    %27 = math.exp %26 : vector<256x256xf32>
    %cst_18 = arith.constant dense<0.000000e+00> : vector<256xf32>
    %28 = vector.multi_reduction <add>, %27, %cst_18 [1] : vector<256x256xf32> to vector<256xf32>
    %29 = vector.shape_cast %28 : vector<256xf32> to vector<256x1xf32>
    %30 = tpu.reciprocal %29 {approx = true} : vector<256x1xf32> -> vector<256x1xf32>
    %31 = vector.broadcast %30 : vector<256x1xf32> to vector<256x256xf32>
    %32 = arith.mulf %27, %31 : vector<256x256xf32>
    %c0_19 = arith.constant 0 : index
    %c0_20 = arith.constant 0 : index
    %33 = vector.load %arg8[%c0_19, %c0_20] : memref<256x256xf32, #tpu.memory_space<vmem>>, vector<256x256xf32>
    tpu.vector_store %arg8[%c0_19, %c0_20], %32 {strides = array<i32>} : memref<256x256xf32, #tpu.memory_space<vmem>>, vector<256x256xf32>,
    return
  }
  func.func @transform_0(%arg0: i32) -> (i32, i32) {
    %c0_i32 = arith.constant 0 : i32
    %c0_i32_0 = arith.constant 0 : i32
    return %arg0, %c0_i32 : i32, i32
  }
  func.func @transform_1(%arg0: i32) -> (i32, i32) {
    %c0_i32 = arith.constant 0 : i32
    %c0_i32_0 = arith.constant 0 : i32
    %c0_i32_1 = arith.constant 0 : i32
    return %c0_i32, %c0_i32_0 : i32, i32
  }
  func.func @transform_2(%arg0: i32) -> (i32, i32) {
    %c0_i32 = arith.constant 0 : i32
    %c0_i32_0 = arith.constant 0 : i32
    %c0_i32_1 = arith.constant 0 : i32
    return %c0_i32, %c0_i32_0 : i32, i32
  }
  func.func @transform_3(%arg0: i32) -> (i32, i32) {
    %c0_i32 = arith.constant 0 : i32
    %c0_i32_0 = arith.constant 0 : i32
    %c0_i32_1 = arith.constant 0 : i32
    return %c0_i32, %c0_i32_0 : i32, i32
  }
  func.func @transform_4(%arg0: i32) -> (i32, i32) {
    %c0_i32 = arith.constant 0 : i32
    %c0_i32_0 = arith.constant 0 : i32
    %c0_i32_1 = arith.constant 0 : i32
    return %c0_i32, %c0_i32_0 : i32, i32
  }
  func.func @transform_5(%arg0: i32) -> (i32, i32) {
    %c0_i32 = arith.constant 0 : i32
    %c0_i32_0 = arith.constant 0 : i32
    %c0_i32_1 = arith.constant 0 : i32
    return %c0_i32, %c0_i32_0 : i32, i32
  }
  func.func @transform_6(%arg0: i32) -> (i32, i32) {
    %c0_i32 = arith.constant 0 : i32
    %c0_i32_0 = arith.constant 0 : i32
    %c0_i32_1 = arith.constant 0 : i32
    return %c0_i32, %c0_i32_0 : i32, i32
  }
  func.func @transform_7(%arg0: i32) -> (i32, i32) {
    %c0_i32 = arith.constant 0 : i32
    %c0_i32_0 = arith.constant 0 : i32
    return %arg0, %c0_i32 : i32, i32
  }
}

module attributes {stable_mosaic.version = 11 : i64} {
  func.func @actor_mlp_kernel(%arg0: i32, %arg1: memref<256x512xf32, #tpu.memory_space<vmem>>, %arg2: memref<512x256xbf16, #tpu.memory_space<vmem>>, %arg3: memref<1x256xf32, #tpu.memory_space<vmem>>, %arg4: memref<256x256xbf16, #tpu.memory_space<vmem>>, %arg5: memref<1x256xf32, #tpu.memory_space<vmem>>, %arg6: memref<256x256xbf16, #tpu.memory_space<vmem>>, %arg7: memref<1x256xf32, #tpu.memory_space<vmem>>, %arg8: memref<256x256xf32, #tpu.memory_space<vmem>>) attributes {dimension_semantics = [#tpu.dimension_semantics<parallel>], iteration_bounds = array<i64: 2>, scalar_prefetch = 0 : i64, scratch_operands = 0 : i64, tpu.core_type = #tpu.core_type<tc>, window_params = [{transform_indices = @transform_0, window_bounds = array<i64: 256, 512>}, {pipeline_mode = #tpu.pipeline_mode<synchronous>, transform_indices = @transform_1, window_bounds = array<i64: 512, 256>}, {pipeline_mode = #tpu.pipeline_mode<synchronous>, transform_indices = @transform_2, window_bounds = array<i64: 1, 256>}, {pipeline_mode = #tpu.pipeline_mode<synchronous>, transform_indices = @transform_3, window_bounds = array<i64: 256, 256>}, {pipeline_mode = #tpu.pipeline_mode<synchronous>, transform_indices = @transform_4, window_bounds = array<i64: 1, 256>}, {pipeline_mode = #tpu.pipeline_mode<synchronous>, transform_indices = @transform_5, window_bounds = array<i64: 256, 256>}, {pipeline_mode = #tpu.pipeline_mode<synchronous>, transform_indices = @transform_6, window_bounds = array<i64: 1, 256>}, {transform_indices = @transform_7, window_bounds = array<i64: 256, 256>}]} {
    %c0 = arith.constant 0 : index
    %c0_0 = arith.constant 0 : index
    %0 = vector.load %arg1[%c0, %c0_0] : memref<256x512xf32, #tpu.memory_space<vmem>>, vector<256x512xf32>
    %1 = arith.truncf %0 : vector<256x512xf32> to vector<256x512xbf16>
    %c0_1 = arith.constant 0 : index
    %c0_2 = arith.constant 0 : index
    %2 = vector.load %arg2[%c0_1, %c0_2] : memref<512x256xbf16, #tpu.memory_space<vmem>>, vector<512x256xbf16>
    %cst = arith.constant dense<0.000000e+00> : vector<256x256xf32>
    %3 = tpu.matmul %1, %2, %cst {dimension_numbers = #tpu.dot_dimension_numbers<[1], [0], [0], [1], [0, 0, 1, 1], [], []>} : vector<256x512xbf16>, vector<512x256xbf16>, vector<256x256xf32> -> vector<256x256xf32>
    %c0_3 = arith.constant 0 : index
    %c0_4 = arith.constant 0 : index
    %4 = vector.load %arg3[%c0_3, %c0_4] : memref<1x256xf32, #tpu.memory_space<vmem>>, vector<1x256xf32>
    %5 = vector.broadcast %4 : vector<1x256xf32> to vector<256x256xf32>
    %6 = arith.addf %3, %5 : vector<256x256xf32>
    %cst_5 = arith.constant 0.000000e+00 : f32
    %7 = vector.broadcast %cst_5 : f32 to vector<256x256xf32>
    %8 = arith.maximumf %6, %7 : vector<256x256xf32>
    %9 = arith.truncf %8 : vector<256x256xf32> to vector<256x256xbf16>
    %c0_6 = arith.constant 0 : index
    %c0_7 = arith.constant 0 : index
    %10 = vector.load %arg4[%c0_6, %c0_7] : memref<256x256xbf16, #tpu.memory_space<vmem>>, vector<256x256xbf16>
    %cst_8 = arith.constant dense<0.000000e+00> : vector<256x256xf32>
    %11 = tpu.matmul %9, %10, %cst_8 {dimension_numbers = #tpu.dot_dimension_numbers<[1], [0], [0], [1], [0, 0, 1, 1], [], []>} : vector<256x256xbf16>, vector<256x256xbf16>, vector<256x256xf32> -> vector<256x256xf32>
    %c0_9 = arith.constant 0 : index
    %c0_10 = arith.constant 0 : index
    %12 = vector.load %arg5[%c0_9, %c0_10] : memref<1x256xf32, #tpu.memory_space<vmem>>, vector<1x256xf32>
    %13 = vector.broadcast %12 : vector<1x256xf32> to vector<256x256xf32>
    %14 = arith.addf %11, %13 : vector<256x256xf32>
    %cst_11 = arith.constant 0.000000e+00 : f32
    %15 = vector.broadcast %cst_11 : f32 to vector<256x256xf32>
    %16 = arith.maximumf %14, %15 : vector<256x256xf32>
    %17 = arith.truncf %16 : vector<256x256xf32> to vector<256x256xbf16>
    %c0_12 = arith.constant 0 : index
    %c0_13 = arith.constant 0 : index
    %18 = vector.load %arg6[%c0_12, %c0_13] : memref<256x256xbf16, #tpu.memory_space<vmem>>, vector<256x256xbf16>
    %cst_14 = arith.constant dense<0.000000e+00> : vector<256x256xf32>
    %19 = tpu.matmul %17, %18, %cst_14 {dimension_numbers = #tpu.dot_dimension_numbers<[1], [0], [0], [1], [0, 0, 1, 1], [], []>} : vector<256x256xbf16>, vector<256x256xbf16>, vector<256x256xf32> -> vector<256x256xf32>
    %c0_15 = arith.constant 0 : index
    %c0_16 = arith.constant 0 : index
    %20 = vector.load %arg7[%c0_15, %c0_16] : memref<1x256xf32, #tpu.memory_space<vmem>>, vector<1x256xf32>
    %21 = vector.broadcast %20 : vector<1x256xf32> to vector<256x256xf32>
    %22 = arith.addf %19, %21 : vector<256x256xf32>
    %cst_17 = arith.constant dense<0xFF800000> : vector<256xf32>
    %23 = vector.multi_reduction <maximumf>, %22, %cst_17 [1] : vector<256x256xf32> to vector<256xf32>
    %24 = vector.shape_cast %23 : vector<256xf32> to vector<256x1xf32>
    %25 = vector.broadcast %24 : vector<256x1xf32> to vector<256x256xf32>
    %26 = arith.subf %22, %25 : vector<256x256xf32>
    %27 = math.exp %26 : vector<256x256xf32>
    %cst_18 = arith.constant dense<0.000000e+00> : vector<256xf32>
    %28 = vector.multi_reduction <add>, %27, %cst_18 [1] : vector<256x256xf32> to vector<256xf32>
    %29 = vector.shape_cast %28 : vector<256xf32> to vector<256x1xf32>
    %30 = tpu.reciprocal %29 {approx = true} : vector<256x1xf32> -> vector<256x1xf32>
    %31 = vector.broadcast %30 : vector<256x1xf32> to vector<256x256xf32>
    %32 = arith.mulf %27, %31 : vector<256x256xf32>
    %c0_19 = arith.constant 0 : index
    %c0_20 = arith.constant 0 : index
    %33 = vector.load %arg8[%c0_19, %c0_20] : memref<256x256xf32, #tpu.memory_space<vmem>>, vector<256x256xf32>
    tpu.vector_store %arg8[%c0_19, %c0_20], %32 {strides = array<i32>} : memref<256x256xf32, #tpu.memory_space<vmem>>, vector<256x256xf32>,
    return
  }
  func.func @transform_0(%arg0: i32) -> (i32, i32) {
    %c0_i32 = arith.constant 0 : i32
    %c0_i32_0 = arith.constant 0 : i32
    return %arg0, %c0_i32 : i32, i32
  }
  func.func @transform_1(%arg0: i32) -> (i32, i32) {
    %c0_i32 = arith.constant 0 : i32
    %c0_i32_0 = arith.constant 0 : i32
    %c0_i32_1 = arith.constant 0 : i32
    return %c0_i32, %c0_i32_0 : i32, i32
  }
  func.func @transform_2(%arg0: i32) -> (i32, i32) {
    %c0_i32 = arith.constant 0 : i32
    %c0_i32_0 = arith.constant 0 : i32
    %c0_i32_1 = arith.constant 0 : i32
    return %c0_i32, %c0_i32_0 : i32, i32
  }
  func.func @transform_3(%arg0: i32) -> (i32, i32) {
    %c0_i32 = arith.constant 0 : i32
    %c0_i32_0 = arith.constant 0 : i32
    %c0_i32_1 = arith.constant 0 : i32
    return %c0_i32, %c0_i32_0 : i32, i32
  }
  func.func @transform_4(%arg0: i32) -> (i32, i32) {
    %c0_i32 = arith.constant 0 : i32
    %c0_i32_0 = arith.constant 0 : i32
    %c0_i32_1 = arith.constant 0 : i32
    return %c0_i32, %c0_i32_0 : i32, i32
  }
  func.func @transform_5(%arg0: i32) -> (i32, i32) {
    %c0_i32 = arith.constant 0 : i32
    %c0_i32_0 = arith.constant 0 : i32
    %c0_i32_1 = arith.constant 0 : i32
    return %c0_i32, %c0_i32_0 : i32, i32
  }
  func.func @transform_6(%arg0: i32) -> (i32, i32) {
    %c0_i32 = arith.constant 0 : i32
    %c0_i32_0 = arith.constant 0 : i32
    %c0_i32_1 = arith.constant 0 : i32
    return %c0_i32, %c0_i32_0 : i32, i32
  }
  func.func @transform_7(%arg0: i32) -> (i32, i32) {
    %c0_i32 = arith.constant 0 : i32
    %c0_i32_0 = arith.constant 0 : i32
    return %arg0, %c0_i32 : i32, i32
  }
}

</mosaic_0001>

<llo_original>
// kernel: tpu_custom_call.1
$region0: #{tpu_custom_call.1}
  #allocation0 [shape = 'u32[]', space=smem, size = 0x4, offset = 0x4, fixed_abs, tag = 'smem constant byte address 0x4 - core index']
  #allocation1 [shape = 'u32[72,128]{1,0:T(1,128)}', space=vmem, size = 0x9000, scoped, tag = 'internal scratch']
  %s0 = inlined_call_operand.hbm [shape: f32[512,512], index: 0, kind: input, shape index: {}]
  %s1 = inlined_call_operand.hbm [shape: bf16[512,256], index: 1, kind: input, shape index: {}]
  %s2 = inlined_call_operand.hbm [shape: f32[1,256], index: 2, kind: input, shape index: {}]
  %s3 = inlined_call_operand.hbm [shape: bf16[256,256], index: 3, kind: input, shape index: {}]
  %s4 = inlined_call_operand.vmem [shape: f32[1,256], index: 4, kind: input, shape index: {}]
  %s5 = inlined_call_operand.hbm [shape: bf16[256,256], index: 5, kind: input, shape index: {}]
  %s6 = inlined_call_operand.vmem [shape: f32[1,256], index: 6, kind: input, shape index: {}]
  %s7 = inlined_call_operand.hbm [shape: f32[512,256], index: 7, kind: output, shape index: {}]
  %s8 = sld [smem:[#allocation0]]
  $region81: #{tpu_custom_call.1} parent=0
    _
  %s10 = ssub.s32 1, %s8
  %s11 = scalar_select 0, %s10, %s8
  $region1: #{tpu_custom_call.1} parent=0
    #allocation2 [shape = 'u8[1048576]{0}', space=vmem, size = 0x100000, scoped, tag = 'input window, operand 0']
    #allocation3 [shape = 's32[2]{0}', space=sflag, size = 0x8, scoped, tag = 'scoped memory for tpu_custom_call.1']
    #allocation4 [shape = 's32[2]{0}', space=sflag, size = 0x8, scoped, tag = 'scoped memory for tpu_custom_call.1']
    #allocation5 [shape = 'u8[262144]{0}', space=vmem, size = 0x40000, scoped, tag = 'input window, operand 1, single buffered']
    #allocation6 [shape = 's32[1]{0}', space=sflag, size = 0x4, scoped, tag = 'scoped memory for tpu_custom_call.1']
    #allocation7 [shape = 'u8[1024]{0}', space=vmem, size = 0x400, scoped, tag = 'input window, operand 2, single buffered']
    #allocation8 [shape = 'u8[131072]{0}', space=vmem, size = 0x20000, scoped, tag = 'input window, operand 3, single buffered']
    #allocation9 [shape = 's32[1]{0}', space=sflag, size = 0x4, scoped, tag = 'scoped memory for tpu_custom_call.1']
    #allocation10 [shape = 'u8[131072]{0}', space=vmem, size = 0x20000, scoped, tag = 'input window, operand 5, single buffered']
    #allocation11 [shape = 'u8[524288]{0}', space=vmem, size = 0x80000, scoped, tag = 'output window, operand 0']
    %12 = vsyncpa [#allocation3], 0
    %s13 = scalar_lea.sflag [#allocation3], 1
    %14 = vsyncpa %s13, 0
    %15 = vsyncpa [#allocation6], 0
    %16 = vsyncpa [#allocation9], 0
    %17 = vsyncpa [#allocation4], 0
    %s18 = scalar_lea.sflag [#allocation4], 1
    %19 = vsyncpa %s18, 0
    loop: start=0, step=1, limit=4
    $region2: #{tpu_custom_call.1} parent=1 // loop_pre_header
      _
    $region3: #{tpu_custom_call.1} parent=1 // loop_header
      %s21 = sphi 0, %s25
      %p22 = scmp.ge.s32.totalorder %s21, 4
      %s31 = sphi 0, %s33
      %s34 = sphi 0, %s31
      %s35 = sphi 0, %s34
      %s51 = sphi 0, %s35
      %s55 = sphi 0, %s55
      %s57 = sphi 0, %s55
      %s58 = sphi 0, %s57
      %s72 = sphi 0, %s58
      %s76 = sphi 0, %s76
      %s78 = sphi 0, %s76
      %s79 = sphi 0, %s78
      %s93 = sphi 0, %s79
      %s97 = sphi 0, %s97
      %s99 = sphi 0, %s97
      %s100 = sphi 0, %s99
      %s114 = sphi 0, %s100
      %s118 = sphi 0, %s118
      %s120 = sphi 0, %s118
      %s121 = sphi 0, %s120
      %s135 = sphi 0, %s121
      %s139 = sphi 0, %s139
      %s141 = sphi 0, %s139
      %s142 = sphi 0, %s141
      %s156 = sphi 0, %s142
      %s160 = sphi 0, %s160
      %s162 = sphi 0, %s160
      %s163 = sphi 0, %s162
      %s177 = sphi 0, %s163
      %s183 = sphi 0, %s185
      %s186 = sphi 0, %s183
      %s187 = sphi 0, %s186
      %s203 = sphi 0, %s187
    $region4: #{tpu_custom_call.1} parent=1 // loop_header_branch
      %24 = sbr.rel (%p22) target = $region8
    $region5: #{tpu_custom_call.1} parent=1 // loop_body
      %s26 = ssub.s32 %s21, 1
      %s27 = ssub.s32 %s21, 2
      %s28 = sadd.s32 %s21, 1
      %s29 = ssub.s32 %s21, %s28
      %p30 = scmp.eq.s32.totalorder %s29, 0
      %s32 = sadd.s32 %s31, 1
      %s33 = scalar_select %p30, %s31, %s32
      %p36 = pneg %p30
      %p37 = scmp.eq.s32.totalorder %s21, 1
      %p38 = por %p36, %p37
      %p39 = scmp.ne.s32.totalorder %s31, %s34
      %p40 = scmp.eq.s32.totalorder %s21, 0
      %p41 = por %p39, %p40
      %p42 = scmp.ne.s32.totalorder %s31, %s34
      %p43 = scmp.eq.s32.totalorder %s26, 1
      %p44 = por %p42, %p43
      %p45 = scmp.ne.s32.totalorder %s34, %s35
      %p46 = scmp.eq.s32.totalorder %s26, 0
      %p47 = por %p45, %p46
      %p48 = scmp.ne.s32.totalorder %s34, %s35
      %p49 = scmp.eq.s32.totalorder %s27, 1
      %p50 = por %p48, %p49
      %p52 = scmp.ne.s32.totalorder %s35, %s51
      %p53 = scmp.eq.s32.totalorder %s27, 0
      %p54 = por %p52, %p53
      %s56 = sadd.s32 %s55, 1
      %p59 = scmp.eq.s32.totalorder %s21, 1
      %p60 = scmp.ne.s32.totalorder %s55, %s57
      %p61 = scmp.eq.s32.totalorder %s21, 0
      %p62 = por %p60, %p61
      %p63 = scmp.ne.s32.totalorder %s55, %s57
      %p64 = scmp.eq.s32.totalorder %s26, 1
      %p65 = por %p63, %p64
      %p66 = scmp.ne.s32.totalorder %s57, %s58
      %p67 = scmp.eq.s32.totalorder %s26, 0
      %p68 = por %p66, %p67
      %p69 = scmp.ne.s32.totalorder %s57, %s58
      %p70 = scmp.eq.s32.totalorder %s27, 1
      %p71 = por %p69, %p70
      %p73 = scmp.ne.s32.totalorder %s58, %s72
      %p74 = scmp.eq.s32.totalorder %s27, 0
      %p75 = por %p73, %p74
      %s77 = sadd.s32 %s76, 1
      %p80 = scmp.eq.s32.totalorder %s21, 1
      %p81 = scmp.ne.s32.totalorder %s76, %s78
      %p82 = scmp.eq.s32.totalorder %s21, 0
      %p83 = por %p81, %p82
      %p84 = scmp.ne.s32.totalorder %s76, %s78
      %p85 = scmp.eq.s32.totalorder %s26, 1
      %p86 = por %p84, %p85
      %p87 = scmp.ne.s32.totalorder %s78, %s79
      %p88 = scmp.eq.s32.totalorder %s26, 0
      %p89 = por %p87, %p88
      %p90 = scmp.ne.s32.totalorder %s78, %s79
      %p91 = scmp.eq.s32.totalorder %s27, 1
      %p92 = por %p90, %p91
      %p94 = scmp.ne.s32.totalorder %s79, %s93
      %p95 = scmp.eq.s32.totalorder %s27, 0
      %p96 = por %p94, %p95
      %s98 = sadd.s32 %s97, 1
      %p101 = scmp.eq.s32.totalorder %s21, 1
      %p102 = scmp.ne.s32.totalorder %s97, %s99
      %p103 = scmp.eq.s32.totalorder %s21, 0
      %p104 = por %p102, %p103
      %p105 = scmp.ne.s32.totalorder %s97, %s99
      %p106 = scmp.eq.s32.totalorder %s26, 1
      %p107 = por %p105, %p106
      %p108 = scmp.ne.s32.totalorder %s99, %s100
      %p109 = scmp.eq.s32.totalorder %s26, 0
      %p110 = por %p108, %p109
      %p111 = scmp.ne.s32.totalorder %s99, %s100
      %p112 = scmp.eq.s32.totalorder %s27, 1
      %p113 = por %p111, %p112
      %p115 = scmp.ne.s32.totalorder %s100, %s114
      %p116 = scmp.eq.s32.totalorder %s27, 0
      %p117 = por %p115, %p116
      %s119 = sadd.s32 %s118, 1
      %p122 = scmp.eq.s32.totalorder %s21, 1
      %p123 = scmp.ne.s32.totalorder %s118, %s120
      %p124 = scmp.eq.s32.totalorder %s21, 0
      %p125 = por %p123, %p124
      %p126 = scmp.ne.s32.totalorder %s118, %s120
      %p127 = scmp.eq.s32.totalorder %s26, 1
      %p128 = por %p126, %p127
      %p129 = scmp.ne.s32.totalorder %s120, %s121
      %p130 = scmp.eq.s32.totalorder %s26, 0
      %p131 = por %p129, %p130
      %p132 = scmp.ne.s32.totalorder %s120, %s121
      %p133 = scmp.eq.s32.totalorder %s27, 1
      %p134 = por %p132, %p133
      %p136 = scmp.ne.s32.totalorder %s121, %s135
      %p137 = scmp.eq.s32.totalorder %s27, 0
      %p138 = por %p136, %p137
      %s140 = sadd.s32 %s139, 1
      %p143 = scmp.eq.s32.totalorder %s21, 1
      %p144 = scmp.ne.s32.totalorder %s139, %s141
      %p145 = scmp.eq.s32.totalorder %s21, 0
      %p146 = por %p144, %p145
      %p147 = scmp.ne.s32.totalorder %s139, %s141
      %p148 = scmp.eq.s32.totalorder %s26, 1
      %p149 = por %p147, %p148
      %p150 = scmp.ne.s32.totalorder %s141, %s142
      %p151 = scmp.eq.s32.totalorder %s26, 0
      %p152 = por %p150, %p151
      %p153 = scmp.ne.s32.totalorder %s141, %s142
      %p154 = scmp.eq.s32.totalorder %s27, 1
      %p155 = por %p153, %p154
      %p157 = scmp.ne.s32.totalorder %s142, %s156
      %p158 = scmp.eq.s32.totalorder %s27, 0
      %p159 = por %p157, %p158
      %s161 = sadd.s32 %s160, 1
      %p164 = scmp.eq.s32.totalorder %s21, 1
      %p165 = scmp.ne.s32.totalorder %s160, %s162
      %p166 = scmp.eq.s32.totalorder %s21, 0
      %p167 = por %p165, %p166
      %p168 = scmp.ne.s32.totalorder %s160, %s162
      %p169 = scmp.eq.s32.totalorder %s26, 1
      %p170 = por %p168, %p169
      %p171 = scmp.ne.s32.totalorder %s162, %s163
      %p172 = scmp.eq.s32.totalorder %s26, 0
      %p173 = por %p171, %p172
      %p174 = scmp.ne.s32.totalorder %s162, %s163
      %p175 = scmp.eq.s32.totalorder %s27, 1
      %p176 = por %p174, %p175
      %p178 = scmp.ne.s32.totalorder %s163, %s177
      %p179 = scmp.eq.s32.totalorder %s27, 0
      %p180 = por %p178, %p179
      %s181 = ssub.s32 %s21, %s28
      %p182 = scmp.eq.s32.totalorder %s181, 0
      %s184 = sadd.s32 %s183, 1
      %s185 = scalar_select %p182, %s183, %s184
      %p188 = pneg %p182
      %p189 = scmp.eq.s32.totalorder %s21, 1
      %p190 = por %p188, %p189
      %p191 = scmp.ne.s32.totalorder %s183, %s186
      %p192 = scmp.eq.s32.totalorder %s21, 0
      %p193 = por %p191, %p192
      %p194 = scmp.ne.s32.totalorder %s183, %s186
      %p195 = scmp.eq.s32.totalorder %s26, 1
      %p196 = por %p194, %p195
      %p197 = scmp.ne.s32.totalorder %s186, %s187
      %p198 = scmp.eq.s32.totalorder %s26, 0
      %p199 = por %p197, %p198
      %p200 = scmp.ne.s32.totalorder %s186, %s187
      %p201 = scmp.eq.s32.totalorder %s27, 1
      %p202 = por %p200, %p201
      %p204 = scmp.ne.s32.totalorder %s187, %s203
      %p205 = scmp.eq.s32.totalorder %s27, 0
      %p206 = por %p204, %p205
      %p207 = scmp.le.s32.totalorder 1, %s21
      %p208 = scmp.lt.s32.totalorder %s21, 3
      %p209 = pnand %p207, %p208
      %p210 = pneg %p209
      // Predicated region
      $region9: #{tpu_custom_call.1} parent=5 // pred_check
        _
      $region10: #{tpu_custom_call.1} parent=5 // pred_check_branch
        %212 = sbr.rel (%p209) target = $region12
      $region11: #{tpu_custom_call.1} parent=5 // pred_region
        %s213 = ssub.s32 %s21, 1
        // Predicated region
        $region13: #{tpu_custom_call.1} parent=11 // pred_check
          %p214 = pneg %p68
        $region14: #{tpu_custom_call.1} parent=11 // pred_check_branch
          %216 = sbr.rel (%p214) target = $region16
        $region15: #{tpu_custom_call.1} parent=11 // pred_region
          %218 = vsyncadd [#allocation6], 0
          %s219 = sshll.u32 %s1, 4
          %s220 = int_to_ptr.hbm [resolvable:$true] %s219
          %s221 = sshll.u32 [#allocation5], 4
          %s222 = int_to_ptr.vmem [resolvable:$true] %s221
          %227 = dma.hbm_to_vmem [thread:$0]  %s220, 8192, %s222, [#allocation6], 128, 128, 8
        $region16: #{tpu_custom_call.1} parent=11 // pred_fallthru
          _
        // Predicated region
        $region17: #{tpu_custom_call.1} parent=11 // pred_check
          %p228 = pneg %p89
        $region18: #{tpu_custom_call.1} parent=11 // pred_check_branch
          %230 = sbr.rel (%p228) target = $region20
        $region19: #{tpu_custom_call.1} parent=11 // pred_region
          %232 = vsyncadd [#allocation6], 0
          %s234 = sshll.u32 %s2, 4
          %s235 = int_to_ptr.hbm [resolvable:$true] %s234
          %s236 = sshll.u32 [#allocation7], 4
          %s237 = int_to_ptr.vmem [resolvable:$true] %s236
          %239 = dma.hbm_to_vmem [thread:$0]  %s235, 32, %s237, [#allocation6]
        $region20: #{tpu_custom_call.1} parent=11 // pred_fallthru
          _
        // Predicated region
        $region21: #{tpu_custom_call.1} parent=11 // pred_check
          %p240 = pneg %p110
        $region22: #{tpu_custom_call.1} parent=11 // pred_check_branch
          %242 = sbr.rel (%p240) target = $region24
        $region23: #{tpu_custom_call.1} parent=11 // pred_region
          %244 = vsyncadd [#allocation9], 0
          %s245 = sshll.u32 %s3, 4
          %s246 = int_to_ptr.hbm [resolvable:$true] %s245
          %s247 = sshll.u32 [#allocation8], 4
          %s248 = int_to_ptr.vmem [resolvable:$true] %s247
          %253 = dma.hbm_to_vmem [thread:$0]  %s246, 4096, %s248, [#allocation9], 128, 128, 8
        $region24: #{tpu_custom_call.1} parent=11 // pred_fallthru
          _
        // Predicated region
        $region25: #{tpu_custom_call.1} parent=11 // pred_check
          %p254 = pneg %p131
        $region26: #{tpu_custom_call.1} parent=11 // pred_check_branch
          %256 = sbr.rel (%p254) target = $region28
        $region27: #{tpu_custom_call.1} parent=11 // pred_region
          _
        $region28: #{tpu_custom_call.1} parent=11 // pred_fallthru
          _
        // Predicated region
        $region29: #{tpu_custom_call.1} parent=11 // pred_check
          %p257 = pneg %p152
        $region30: #{tpu_custom_call.1} parent=11 // pred_check_branch
          %259 = sbr.rel (%p257) target = $region32
        $region31: #{tpu_custom_call.1} parent=11 // pred_region
          %261 = vsyncadd [#allocation9], 0
          %s262 = sshll.u32 %s5, 4
          %s263 = int_to_ptr.hbm [resolvable:$true] %s262
          %s264 = sshll.u32 [#allocation10], 4
          %s265 = int_to_ptr.vmem [resolvable:$true] %s264
          %270 = dma.hbm_to_vmem [thread:$0]  %s263, 4096, %s265, [#allocation9], 128, 128, 8
        $region32: #{tpu_custom_call.1} parent=11 // pred_fallthru
          _
        // Predicated region
        $region33: #{tpu_custom_call.1} parent=11 // pred_check
          %p271 = pneg %p173
        $region34: #{tpu_custom_call.1} parent=11 // pred_check_branch
          %273 = sbr.rel (%p271) target = $region36
        $region35: #{tpu_custom_call.1} parent=11 // pred_region
          _
        $region36: #{tpu_custom_call.1} parent=11 // pred_fallthru
          _
      $region12: #{tpu_custom_call.1} parent=5 // pred_fallthru
        _
      %p274 = scmp.lt.s32.totalorder %s21, 2
      // Predicated region
      $region37: #{tpu_custom_call.1} parent=5 // pred_check
        %p275 = pneg %p274
      $region38: #{tpu_custom_call.1} parent=5 // pred_check_branch
        %277 = sbr.rel (%p275) target = $region40
      $region39: #{tpu_custom_call.1} parent=5 // pred_region
        // Predicated region
        $region41: #{tpu_custom_call.1} parent=39 // pred_check
          %p278 = pneg %p41
        $region42: #{tpu_custom_call.1} parent=39 // pred_check_branch
          %280 = sbr.rel (%p278) target = $region44
        $region43: #{tpu_custom_call.1} parent=39 // pred_region
          %s281 = sand.u32 %s31, 1
          %s282 = scalar_lea.sflag [#allocation3], %s281
          %s283 = sand.u32 %s31, 1
          %s284 = smul.addr %s283, 1024
          %s285 = scalar_lea.vmem [#allocation2], %s284
          %s286 = smul.u32 32, %s21
          %288 = vsyncadd %s282, 0
          %s289 = smul.addr %s286, 4
          %s290 = smul.addr %s289, 8
          %s291 = scalar_lea.hbm %s0, %s290
          %s292 = sshll.u32 %s291, 4
          %s293 = int_to_ptr.hbm [resolvable:$true] %s292
          %s294 = sshll.u32 %s285, 4
          %s295 = int_to_ptr.vmem [resolvable:$true] %s294
          %300 = dma.hbm_to_vmem [thread:$0]  %s293, 16384, %s295, %s282, 512, 512, 32
        $region44: #{tpu_custom_call.1} parent=39 // pred_fallthru
          _
      $region40: #{tpu_custom_call.1} parent=5 // pred_fallthru
        _
      %p301 = scmp.le.s32.totalorder 1, %s21
      %p302 = scmp.lt.s32.totalorder %s21, 3
      %p303 = pnand %p301, %p302
      %p304 = pneg %p303
      // Predicated region
      $region45: #{tpu_custom_call.1} parent=5 // pred_check
        _
      $region46: #{tpu_custom_call.1} parent=5 // pred_check_branch
        %306 = sbr.rel (%p303) target = $region48
      $region47: #{tpu_custom_call.1} parent=5 // pred_region
        %s307 = ssub.s32 %s21, 1
        %s308 = sand.u32 %s34, 1
        %s309 = scalar_lea.sflag [#allocation3], %s308
        %s310 = sand.u32 %s34, 1
        %s311 = smul.addr %s310, 1024
        %s312 = scalar_lea.vmem [#allocation2], %s311
        // Predicated region
        $region49: #{tpu_custom_call.1} parent=47 // pred_check
          %p313 = pneg %p47
        $region50: #{tpu_custom_call.1} parent=47 // pred_check_branch
          %315 = sbr.rel (%p313) target = $region52
        $region51: #{tpu_custom_call.1} parent=47 // pred_region
          %317 = dma.done %s309, 16384
        $region52: #{tpu_custom_call.1} parent=47 // pred_fallthru
          _
        // Predicated region
        $region53: #{tpu_custom_call.1} parent=47 // pred_check
          %p318 = pneg %p68
        $region54: #{tpu_custom_call.1} parent=47 // pred_check_branch
          %320 = sbr.rel (%p318) target = $region56
        $region55: #{tpu_custom_call.1} parent=47 // pred_region
          %322 = dma.done [#allocation6], 8192
        $region56: #{tpu_custom_call.1} parent=47 // pred_fallthru
          _
        // Predicated region
        $region57: #{tpu_custom_call.1} parent=47 // pred_check
          %p323 = pneg %p89
        $region58: #{tpu_custom_call.1} parent=47 // pred_check_branch
          %325 = sbr.rel (%p323) target = $region60
        $region59: #{tpu_custom_call.1} parent=47 // pred_region
          %327 = dma.done [#allocation6], 32
        $region60: #{tpu_custom_call.1} parent=47 // pred_fallthru
          _
        // Predicated region
        $region61: #{tpu_custom_call.1} parent=47 // pred_check
          %p328 = pneg %p110
        $region62: #{tpu_custom_call.1} parent=47 // pred_check_branch
          %330 = sbr.rel (%p328) target = $region64
        $region63: #{tpu_custom_call.1} parent=47 // pred_region
          %332 = dma.done [#allocation9], 4096
        $region64: #{tpu_custom_call.1} parent=47 // pred_fallthru
          _
        // Predicated region
        $region65: #{tpu_custom_call.1} parent=47 // pred_check
          %p333 = pneg %p152
        $region66: #{tpu_custom_call.1} parent=47 // pred_check_branch
          %335 = sbr.rel (%p333) target = $region68
        $region67: #{tpu_custom_call.1} parent=47 // pred_region
          %337 = dma.done [#allocation9], 4096
        $region68: #{tpu_custom_call.1} parent=47 // pred_fallthru
          _
        %s338 = sand.u32 %s34, 1
        %s339 = scalar_lea.sflag [#allocation3], %s338
        %s340 = sand.u32 %s34, 1
        %s341 = smul.addr %s340, 1024
        %s342 = scalar_lea.vmem [#allocation2], %s341
        %p343 = pneg %p47
        %p344 = pneg %p44
        %p345 = pneg %p68
        %p346 = pneg %p65
        %p347 = pneg %p89
        %p348 = pneg %p86
        %p349 = pneg %p110
        %p350 = pneg %p107
        %p351 = pneg %p131
        %p352 = pneg %p128
        %p353 = pneg %p152
        %p354 = pneg %p149
        %p355 = pneg %p173
        %p356 = pneg %p170
        %p357 = pneg %p199
        %p358 = pneg %p196
        %s359 = sand.u32 %s186, 1
        %s360 = scalar_lea.sflag [#allocation4], %s359
        %s361 = sand.u32 %s186, 1
        %s362 = smul.addr %s361, 512
        %s363 = scalar_lea.vmem [#allocation11], %s362
        %s364 = smul.u32 32, %s26
        %s365 = smul.u32 32, %s26
        %v366 = vld [vmem:[%s312] sm:$0xff]
        %v367 = vld [vmem:[%s312 + $0x8] sm:$0xff]
        %v368 = vld [vmem:[%s312 + $0x10] sm:$0xff]
        %v369 = vld [vmem:[%s312 + $0x18] sm:$0xff]
        %v370 = vld [vmem:[%s312 + $0x20] sm:$0xff]
        %v371 = vld [vmem:[%s312 + $0x28] sm:$0xff]
        %v372 = vld [vmem:[%s312 + $0x30] sm:$0xff]
        %v373 = vld [vmem:[%s312 + $0x38] sm:$0xff]
        %v374 = vld [vmem:[%s312 + $0x40] sm:$0xff]
        %v375 = vld [vmem:[%s312 + $0x48] sm:$0xff]
        %v376 = vld [vmem:[%s312 + $0x50] sm:$0xff]
        %v377 = vld [vmem:[%s312 + $0x58] sm:$0xff]
        %v378 = vld [vmem:[%s312 + $0x60] sm:$0xff]
        %v379 = vld [vmem:[%s312 + $0x68] sm:$0xff]
        %v380 = vld [vmem:[%s312 + $0x70] sm:$0xff]
        %v381 = vld [vmem:[%s312 + $0x78] sm:$0xff]
        %v382 = vld [vmem:[%s312 + $0x80] sm:$0xff]
        %v383 = vld [vmem:[%s312 + $0x88] sm:$0xff]
        %v384 = vld [vmem:[%s312 + $0x90] sm:$0xff]
        %v385 = vld [vmem:[%s312 + $0x98] sm:$0xff]
        %v386 = vld [vmem:[%s312 + $0xa0] sm:$0xff]
        %v387 = vld [vmem:[%s312 + $0xa8] sm:$0xff]
        %v388 = vld [vmem:[%s312 + $0xb0] sm:$0xff]
        %v389 = vld [vmem:[%s312 + $0xb8] sm:$0xff]
        %v390 = vld [vmem:[%s312 + $0xc0] sm:$0xff]
        %v391 = vld [vmem:[%s312 + $0xc8] sm:$0xff]
        %v392 = vld [vmem:[%s312 + $0xd0] sm:$0xff]
        %v393 = vld [vmem:[%s312 + $0xd8] sm:$0xff]
        %v394 = vld [vmem:[%s312 + $0xe0] sm:$0xff]
        %v395 = vld [vmem:[%s312 + $0xe8] sm:$0xff]
        %v396 = vld [vmem:[%s312 + $0xf0] sm:$0xff]
        %v397 = vld [vmem:[%s312 + $0xf8] sm:$0xff]
        %v398 = vld [vmem:[%s312 + $0x100] sm:$0xff]
        %v399 = vld [vmem:[%s312 + $0x108] sm:$0xff]
        %v400 = vld [vmem:[%s312 + $0x110] sm:$0xff]
        %v401 = vld [vmem:[%s312 + $0x118] sm:$0xff]
        %v402 = vld [vmem:[%s312 + $0x120] sm:$0xff]
        %v403 = vld [vmem:[%s312 + $0x128] sm:$0xff]
        %v404 = vld [vmem:[%s312 + $0x130] sm:$0xff]
        %v405 = vld [vmem:[%s312 + $0x138] sm:$0xff]
        %v406 = vld [vmem:[%s312 + $0x140] sm:$0xff]
        %v407 = vld [vmem:[%s312 + $0x148] sm:$0xff]
        %v408 = vld [vmem:[%s312 + $0x150] sm:$0xff]
        %v409 = vld [vmem:[%s312 + $0x158] sm:$0xff]
        %v410 = vld [vmem:[%s312 + $0x160] sm:$0xff]
        %v411 = vld [vmem:[%s312 + $0x168] sm:$0xff]
        %v412 = vld [vmem:[%s312 + $0x170] sm:$0xff]
        %v413 = vld [vmem:[%s312 + $0x178] sm:$0xff]
        %v414 = vld [vmem:[%s312 + $0x180] sm:$0xff]
        %v415 = vld [vmem:[%s312 + $0x188] sm:$0xff]
        %v416 = vld [vmem:[%s312 + $0x190] sm:$0xff]
        %v417 = vld [vmem:[%s312 + $0x198] sm:$0xff]
        %v418 = vld [vmem:[%s312 + $0x1a0] sm:$0xff]
        %v419 = vld [vmem:[%s312 + $0x1a8] sm:$0xff]
        %v420 = vld [vmem:[%s312 + $0x1b0] sm:$0xff]
        %v421 = vld [vmem:[%s312 + $0x1b8] sm:$0xff]
        %v422 = vld [vmem:[%s312 + $0x1c0] sm:$0xff]
        %v423 = vld [vmem:[%s312 + $0x1c8] sm:$0xff]
        %v424 = vld [vmem:[%s312 + $0x1d0] sm:$0xff]
        %v425 = vld [vmem:[%s312 + $0x1d8] sm:$0xff]
        %v426 = vld [vmem:[%s312 + $0x1e0] sm:$0xff]
        %v427 = vld [vmem:[%s312 + $0x1e8] sm:$0xff]
        %v428 = vld [vmem:[%s312 + $0x1f0] sm:$0xff]
        %v429 = vld [vmem:[%s312 + $0x1f8] sm:$0xff]
        %v430 = vld [vmem:[%s312 + $0x200] sm:$0xff]
        %v431 = vld [vmem:[%s312 + $0x208] sm:$0xff]
        %v432 = vld [vmem:[%s312 + $0x210] sm:$0xff]
        %v433 = vld [vmem:[%s312 + $0x218] sm:$0xff]
        %v434 = vld [vmem:[%s312 + $0x220] sm:$0xff]
        %v435 = vld [vmem:[%s312 + $0x228] sm:$0xff]
        %v436 = vld [vmem:[%s312 + $0x230] sm:$0xff]
        %v437 = vld [vmem:[%s312 + $0x238] sm:$0xff]
        %v438 = vld [vmem:[%s312 + $0x240] sm:$0xff]
        %v439 = vld [vmem:[%s312 + $0x248] sm:$0xff]
        %v440 = vld [vmem:[%s312 + $0x250] sm:$0xff]
        %v441 = vld [vmem:[%s312 + $0x258] sm:$0xff]
        %v442 = vld [vmem:[%s312 + $0x260] sm:$0xff]
        %v443 = vld [vmem:[%s312 + $0x268] sm:$0xff]
        %v444 = vld [vmem:[%s312 + $0x270] sm:$0xff]
        %v445 = vld [vmem:[%s312 + $0x278] sm:$0xff]
        %v446 = vld [vmem:[%s312 + $0x280] sm:$0xff]
        %v447 = vld [vmem:[%s312 + $0x288] sm:$0xff]
        %v448 = vld [vmem:[%s312 + $0x290] sm:$0xff]
        %v449 = vld [vmem:[%s312 + $0x298] sm:$0xff]
        %v450 = vld [vmem:[%s312 + $0x2a0] sm:$0xff]
        %v451 = vld [vmem:[%s312 + $0x2a8] sm:$0xff]
        %v452 = vld [vmem:[%s312 + $0x2b0] sm:$0xff]
        %v453 = vld [vmem:[%s312 + $0x2b8] sm:$0xff]
        %v454 = vld [vmem:[%s312 + $0x2c0] sm:$0xff]
        %v455 = vld [vmem:[%s312 + $0x2c8] sm:$0xff]
        %v456 = vld [vmem:[%s312 + $0x2d0] sm:$0xff]
        %v457 = vld [vmem:[%s312 + $0x2d8] sm:$0xff]
        %v458 = vld [vmem:[%s312 + $0x2e0] sm:$0xff]
        %v459 = vld [vmem:[%s312 + $0x2e8] sm:$0xff]
        %v460 = vld [vmem:[%s312 + $0x2f0] sm:$0xff]
        %v461 = vld [vmem:[%s312 + $0x2f8] sm:$0xff]
        %v462 = vld [vmem:[%s312 + $0x300] sm:$0xff]
        %v463 = vld [vmem:[%s312 + $0x308] sm:$0xff]
        %v464 = vld [vmem:[%s312 + $0x310] sm:$0xff]
        %v465 = vld [vmem:[%s312 + $0x318] sm:$0xff]
        %v466 = vld [vmem:[%s312 + $0x320] sm:$0xff]
        %v467 = vld [vmem:[%s312 + $0x328] sm:$0xff]
        %v468 = vld [vmem:[%s312 + $0x330] sm:$0xff]
        %v469 = vld [vmem:[%s312 + $0x338] sm:$0xff]
        %v470 = vld [vmem:[%s312 + $0x340] sm:$0xff]
        %v471 = vld [vmem:[%s312 + $0x348] sm:$0xff]
        %v472 = vld [vmem:[%s312 + $0x350] sm:$0xff]
        %v473 = vld [vmem:[%s312 + $0x358] sm:$0xff]
        %v474 = vld [vmem:[%s312 + $0x360] sm:$0xff]
        %v475 = vld [vmem:[%s312 + $0x368] sm:$0xff]
        %v476 = vld [vmem:[%s312 + $0x370] sm:$0xff]
        %v477 = vld [vmem:[%s312 + $0x378] sm:$0xff]
        %v478 = vld [vmem:[%s312 + $0x380] sm:$0xff]
        %v479 = vld [vmem:[%s312 + $0x388] sm:$0xff]
        %v480 = vld [vmem:[%s312 + $0x390] sm:$0xff]
        %v481 = vld [vmem:[%s312 + $0x398] sm:$0xff]
        %v482 = vld [vmem:[%s312 + $0x3a0] sm:$0xff]
        %v483 = vld [vmem:[%s312 + $0x3a8] sm:$0xff]
        %v484 = vld [vmem:[%s312 + $0x3b0] sm:$0xff]
        %v485 = vld [vmem:[%s312 + $0x3b8] sm:$0xff]
        %v486 = vld [vmem:[%s312 + $0x3c0] sm:$0xff]
        %v487 = vld [vmem:[%s312 + $0x3c8] sm:$0xff]
        %v488 = vld [vmem:[%s312 + $0x3d0] sm:$0xff]
        %v489 = vld [vmem:[%s312 + $0x3d8] sm:$0xff]
        %v490 = vld [vmem:[%s312 + $0x3e0] sm:$0xff]
        %v491 = vld [vmem:[%s312 + $0x3e8] sm:$0xff]
        %v492 = vld [vmem:[%s312 + $0x3f0] sm:$0xff]
        %v493 = vld [vmem:[%s312 + $0x3f8] sm:$0xff]
        %v494 = vpack.c.bf16 %v370, %v366
        %v495 = vpack.c.bf16 %v371, %v367
        %v496 = vpack.c.bf16 %v372, %v368
        %v497 = vpack.c.bf16 %v373, %v369
        %v498 = vpack.c.bf16 %v378, %v374
        %v499 = vpack.c.bf16 %v379, %v375
        %v500 = vpack.c.bf16 %v380, %v376
        %v501 = vpack.c.bf16 %v381, %v377
        %v502 = vpack.c.bf16 %v386, %v382
        %v503 = vpack.c.bf16 %v387, %v383
        %v504 = vpack.c.bf16 %v388, %v384
        %v505 = vpack.c.bf16 %v389, %v385
        %v506 = vpack.c.bf16 %v394, %v390
        %v507 = vpack.c.bf16 %v395, %v391
        %v508 = vpack.c.bf16 %v396, %v392
        %v509 = vpack.c.bf16 %v397, %v393
        %v510 = vpack.c.bf16 %v402, %v398
        %v511 = vpack.c.bf16 %v403, %v399
        %v512 = vpack.c.bf16 %v404, %v400
        %v513 = vpack.c.bf16 %v405, %v401
        %v514 = vpack.c.bf16 %v410, %v406
        %v515 = vpack.c.bf16 %v411, %v407
        %v516 = vpack.c.bf16 %v412, %v408
        %v517 = vpack.c.bf16 %v413, %v409
        %v518 = vpack.c.bf16 %v418, %v414
        %v519 = vpack.c.bf16 %v419, %v415
        %v520 = vpack.c.bf16 %v420, %v416
        %v521 = vpack.c.bf16 %v421, %v417
        %v522 = vpack.c.bf16 %v426, %v422
        %v523 = vpack.c.bf16 %v427, %v423
        %v524 = vpack.c.bf16 %v428, %v424
        %v525 = vpack.c.bf16 %v429, %v425
        %v526 = vpack.c.bf16 %v434, %v430
        %v527 = vpack.c.bf16 %v435, %v431
        %v528 = vpack.c.bf16 %v436, %v432
        %v529 = vpack.c.bf16 %v437, %v433
        %v530 = vpack.c.bf16 %v442, %v438
        %v531 = vpack.c.bf16 %v443, %v439
        %v532 = vpack.c.bf16 %v444, %v440
        %v533 = vpack.c.bf16 %v445, %v441
        %v534 = vpack.c.bf16 %v450, %v446
        %v535 = vpack.c.bf16 %v451, %v447
        %v536 = vpack.c.bf16 %v452, %v448
        %v537 = vpack.c.bf16 %v453, %v449
        %v538 = vpack.c.bf16 %v458, %v454
        %v539 = vpack.c.bf16 %v459, %v455
        %v540 = vpack.c.bf16 %v460, %v456
        %v541 = vpack.c.bf16 %v461, %v457
        %v542 = vpack.c.bf16 %v466, %v462
        %v543 = vpack.c.bf16 %v467, %v463
        %v544 = vpack.c.bf16 %v468, %v464
        %v545 = vpack.c.bf16 %v469, %v465
        %v546 = vpack.c.bf16 %v474, %v470
        %v547 = vpack.c.bf16 %v475, %v471
        %v548 = vpack.c.bf16 %v476, %v472
        %v549 = vpack.c.bf16 %v477, %v473
        %v550 = vpack.c.bf16 %v482, %v478
        %v551 = vpack.c.bf16 %v483, %v479
        %v552 = vpack.c.bf16 %v484, %v480
        %v553 = vpack.c.bf16 %v485, %v481
        %v554 = vpack.c.bf16 %v490, %v486
        %v555 = vpack.c.bf16 %v491, %v487
        %v556 = vpack.c.bf16 %v492, %v488
        %v557 = vpack.c.bf16 %v493, %v489
        %v558 = vld [vmem:[#allocation5] sm:$0xff]
        %v559 = vld [vmem:[#allocation5 + $0x8] sm:$0xff]
        %v560 = vld [vmem:[#allocation5 + $0x10] sm:$0xff]
        %v561 = vld [vmem:[#allocation5 + $0x18] sm:$0xff]
        %v562 = vld [vmem:[#allocation5 + $0x20] sm:$0xff]
        %v563 = vld [vmem:[#allocation5 + $0x28] sm:$0xff]
        %v564 = vld [vmem:[#allocation5 + $0x30] sm:$0xff]
        %v565 = vld [vmem:[#allocation5 + $0x38] sm:$0xff]
        %v566 = vld [vmem:[#allocation5 + $0x40] sm:$0xff]
        %v567 = vld [vmem:[#allocation5 + $0x48] sm:$0xff]
        %v568 = vld [vmem:[#allocation5 + $0x50] sm:$0xff]
        %v569 = vld [vmem:[#allocation5 + $0x58] sm:$0xff]
        %v570 = vld [vmem:[#allocation5 + $0x60] sm:$0xff]
        %v571 = vld [vmem:[#allocation5 + $0x68] sm:$0xff]
        %v572 = vld [vmem:[#allocation5 + $0x70] sm:$0xff]
        %v573 = vld [vmem:[#allocation5 + $0x78] sm:$0xff]
        %v574 = vld [vmem:[#allocation5 + $0x80] sm:$0xff]
        %v575 = vld [vmem:[#allocation5 + $0x88] sm:$0xff]
        %v576 = vld [vmem:[#allocation5 + $0x90] sm:$0xff]
        %v577 = vld [vmem:[#allocation5 + $0x98] sm:$0xff]
        %v578 = vld [vmem:[#allocation5 + $0xa0] sm:$0xff]
        %v579 = vld [vmem:[#allocation5 + $0xa8] sm:$0xff]
        %v580 = vld [vmem:[#allocation5 + $0xb0] sm:$0xff]
        %v581 = vld [vmem:[#allocation5 + $0xb8] sm:$0xff]
        %v582 = vld [vmem:[#allocation5 + $0xc0] sm:$0xff]
        %v583 = vld [vmem:[#allocation5 + $0xc8] sm:$0xff]
        %v584 = vld [vmem:[#allocation5 + $0xd0] sm:$0xff]
        %v585 = vld [vmem:[#allocation5 + $0xd8] sm:$0xff]
        %v586 = vld [vmem:[#allocation5 + $0xe0] sm:$0xff]
        %v587 = vld [vmem:[#allocation5 + $0xe8] sm:$0xff]
        %v588 = vld [vmem:[#allocation5 + $0xf0] sm:$0xff]
        %v589 = vld [vmem:[#allocation5 + $0xf8] sm:$0xff]
        %v590 = vld [vmem:[#allocation5 + $0x100] sm:$0xff]
        %v591 = vld [vmem:[#allocation5 + $0x108] sm:$0xff]
        %v592 = vld [vmem:[#allocation5 + $0x110] sm:$0xff]
        %v593 = vld [vmem:[#allocation5 + $0x118] sm:$0xff]
        %v594 = vld [vmem:[#allocation5 + $0x120] sm:$0xff]
        %v595 = vld [vmem:[#allocation5 + $0x128] sm:$0xff]
        %v596 = vld [vmem:[#allocation5 + $0x130] sm:$0xff]
        %v597 = vld [vmem:[#allocation5 + $0x138] sm:$0xff]
        %v598 = vld [vmem:[#allocation5 + $0x140] sm:$0xff]
        %v599 = vld [vmem:[#allocation5 + $0x148] sm:$0xff]
        %v600 = vld [vmem:[#allocation5 + $0x150] sm:$0xff]
        %v601 = vld [vmem:[#allocation5 + $0x158] sm:$0xff]
        %v602 = vld [vmem:[#allocation5 + $0x160] sm:$0xff]
        %v603 = vld [vmem:[#allocation5 + $0x168] sm:$0xff]
        %v604 = vld [vmem:[#allocation5 + $0x170] sm:$0xff]
        %v605 = vld [vmem:[#allocation5 + $0x178] sm:$0xff]
        %v606 = vld [vmem:[#allocation5 + $0x180] sm:$0xff]
        %v607 = vld [vmem:[#allocation5 + $0x188] sm:$0xff]
        %v608 = vld [vmem:[#allocation5 + $0x190] sm:$0xff]
        %v609 = vld [vmem:[#allocation5 + $0x198] sm:$0xff]
        %v610 = vld [vmem:[#allocation5 + $0x1a0] sm:$0xff]
        %v611 = vld [vmem:[#allocation5 + $0x1a8] sm:$0xff]
        %v612 = vld [vmem:[#allocation5 + $0x1b0] sm:$0xff]
        %v613 = vld [vmem:[#allocation5 + $0x1b8] sm:$0xff]
        %v614 = vld [vmem:[#allocation5 + $0x1c0] sm:$0xff]
        %v615 = vld [vmem:[#allocation5 + $0x1c8] sm:$0xff]
        %v616 = vld [vmem:[#allocation5 + $0x1d0] sm:$0xff]
        %v617 = vld [vmem:[#allocation5 + $0x1d8] sm:$0xff]
        %v618 = vld [vmem:[#allocation5 + $0x1e0] sm:$0xff]
        %v619 = vld [vmem:[#allocation5 + $0x1e8] sm:$0xff]
        %v620 = vld [vmem:[#allocation5 + $0x1f0] sm:$0xff]
        %v621 = vld [vmem:[#allocation5 + $0x1f8] sm:$0xff]
        %v622 = vld [vmem:[#allocation7] sm:$0x3]
        %v624 = vperm.slane %v622, 0
        %v625 = vperm.slane %v622, 1
        %v692 = vunpack.c.l.b16 %v558
        %v693 = vunpack.c.h.b16 %v558
        %v694 = vunpack.c.l.b16 %v559
        %v695 = vunpack.c.h.b16 %v559
        %v696 = vunpack.c.l.b16 %v560
        %v697 = vunpack.c.h.b16 %v560
        %v698 = vunpack.c.l.b16 %v561
        %v699 = vunpack.c.h.b16 %v561
        %v700 = vunpack.c.l.b16 %v562
        %v701 = vunpack.c.h.b16 %v562
        %v702 = vunpack.c.l.b16 %v563
        %v703 = vunpack.c.h.b16 %v563
        %v704 = vunpack.c.l.b16 %v564
        %v705 = vunpack.c.h.b16 %v564
        %v706 = vunpack.c.l.b16 %v565
        %v707 = vunpack.c.h.b16 %v565
        %v708 = vunpack.c.l.b16 %v566
        %v709 = vunpack.c.h.b16 %v566
        %v710 = vunpack.c.l.b16 %v567
        %v711 = vunpack.c.h.b16 %v567
        %v712 = vunpack.c.l.b16 %v568
        %v713 = vunpack.c.h.b16 %v568
        %v714 = vunpack.c.l.b16 %v569
        %v715 = vunpack.c.h.b16 %v569
        %v716 = vunpack.c.l.b16 %v570
        %v717 = vunpack.c.h.b16 %v570
        %v718 = vunpack.c.l.b16 %v571
        %v719 = vunpack.c.h.b16 %v571
        %v720 = vunpack.c.l.b16 %v572
        %v721 = vunpack.c.h.b16 %v572
        %v722 = vunpack.c.l.b16 %v573
        %v723 = vunpack.c.h.b16 %v573
        %v724 = vunpack.c.l.b16 %v574
        %v725 = vunpack.c.h.b16 %v574
        %v726 = vunpack.c.l.b16 %v575
        %v727 = vunpack.c.h.b16 %v575
        %v728 = vunpack.c.l.b16 %v576
        %v729 = vunpack.c.h.b16 %v576
        %v730 = vunpack.c.l.b16 %v577
        %v731 = vunpack.c.h.b16 %v577
        %v732 = vunpack.c.l.b16 %v578
        %v733 = vunpack.c.h.b16 %v578
        %v734 = vunpack.c.l.b16 %v579
        %v735 = vunpack.c.h.b16 %v579
        %v736 = vunpack.c.l.b16 %v580
        %v737 = vunpack.c.h.b16 %v580
        %v738 = vunpack.c.l.b16 %v581
        %v739 = vunpack.c.h.b16 %v581
        %v740 = vunpack.c.l.b16 %v582
        %v741 = vunpack.c.h.b16 %v582
        %v742 = vunpack.c.l.b16 %v583
        %v743 = vunpack.c.h.b16 %v583
        %v744 = vunpack.c.l.b16 %v584
        %v745 = vunpack.c.h.b16 %v584
        %v746 = vunpack.c.l.b16 %v585
        %v747 = vunpack.c.h.b16 %v585
        %v748 = vunpack.c.l.b16 %v586
        %v749 = vunpack.c.h.b16 %v586
        %v750 = vunpack.c.l.b16 %v587
        %v751 = vunpack.c.h.b16 %v587
        %v752 = vunpack.c.l.b16 %v588
        %v753 = vunpack.c.h.b16 %v588
        %v754 = vunpack.c.l.b16 %v589
        %v755 = vunpack.c.h.b16 %v589
        %v756 = vunpack.c.l.b16 %v590
        %v757 = vunpack.c.h.b16 %v590
        %v758 = vunpack.c.l.b16 %v591
        %v759 = vunpack.c.h.b16 %v591
        %v760 = vunpack.c.l.b16 %v592
        %v761 = vunpack.c.h.b16 %v592
        %v762 = vunpack.c.l.b16 %v593
        %v763 = vunpack.c.h.b16 %v593
        %v764 = vunpack.c.l.b16 %v594
        %v765 = vunpack.c.h.b16 %v594
        %v766 = vunpack.c.l.b16 %v595
        %v767 = vunpack.c.h.b16 %v595
        %v768 = vunpack.c.l.b16 %v596
        %v769 = vunpack.c.h.b16 %v596
        %v770 = vunpack.c.l.b16 %v597
        %v771 = vunpack.c.h.b16 %v597
        %v772 = vunpack.c.l.b16 %v598
        %v773 = vunpack.c.h.b16 %v598
        %v774 = vunpack.c.l.b16 %v599
        %v775 = vunpack.c.h.b16 %v599
        %v776 = vunpack.c.l.b16 %v600
        %v777 = vunpack.c.h.b16 %v600
        %v778 = vunpack.c.l.b16 %v601
        %v779 = vunpack.c.h.b16 %v601
        %v780 = vunpack.c.l.b16 %v602
        %v781 = vunpack.c.h.b16 %v602
        %v782 = vunpack.c.l.b16 %v603
        %v783 = vunpack.c.h.b16 %v603
        %v784 = vunpack.c.l.b16 %v604
        %v785 = vunpack.c.h.b16 %v604
        %v786 = vunpack.c.l.b16 %v605
        %v787 = vunpack.c.h.b16 %v605
        %v788 = vunpack.c.l.b16 %v606
        %v789 = vunpack.c.h.b16 %v606
        %v790 = vunpack.c.l.b16 %v607
        %v791 = vunpack.c.h.b16 %v607
        %v792 = vunpack.c.l.b16 %v608
        %v793 = vunpack.c.h.b16 %v608
        %v794 = vunpack.c.l.b16 %v609
        %v795 = vunpack.c.h.b16 %v609
        %v796 = vunpack.c.l.b16 %v610
        %v797 = vunpack.c.h.b16 %v610
        %v798 = vunpack.c.l.b16 %v611
        %v799 = vunpack.c.h.b16 %v611
        %v800 = vunpack.c.l.b16 %v612
        %v801 = vunpack.c.h.b16 %v612
        %v802 = vunpack.c.l.b16 %v613
        %v803 = vunpack.c.h.b16 %v613
        %v804 = vunpack.c.l.b16 %v614
        %v805 = vunpack.c.h.b16 %v614
        %v806 = vunpack.c.l.b16 %v615
        %v807 = vunpack.c.h.b16 %v615
        %v808 = vunpack.c.l.b16 %v616
        %v809 = vunpack.c.h.b16 %v616
        %v810 = vunpack.c.l.b16 %v617
        %v811 = vunpack.c.h.b16 %v617
        %v812 = vunpack.c.l.b16 %v618
        %v813 = vunpack.c.h.b16 %v618
        %v814 = vunpack.c.l.b16 %v619
        %v815 = vunpack.c.h.b16 %v619
        %v816 = vunpack.c.l.b16 %v620
        %v817 = vunpack.c.h.b16 %v620
        %v818 = vunpack.c.l.b16 %v621
        %v819 = vunpack.c.h.b16 %v621
        %v820 = vpack.c.b16 %v694, %v692
        %v821 = vpack.c.b16 %v695, %v693
        %v822 = vpack.c.b16 %v698, %v696
        %v823 = vpack.c.b16 %v699, %v697
        %v824 = vpack.c.b16 %v702, %v700
        %v825 = vpack.c.b16 %v703, %v701
        %v826 = vpack.c.b16 %v706, %v704
        %v827 = vpack.c.b16 %v707, %v705
        %v828 = vpack.c.b16 %v710, %v708
        %v829 = vpack.c.b16 %v711, %v709
        %v830 = vpack.c.b16 %v714, %v712
        %v831 = vpack.c.b16 %v715, %v713
        %v832 = vpack.c.b16 %v718, %v716
        %v833 = vpack.c.b16 %v719, %v717
        %v834 = vpack.c.b16 %v722, %v720
        %v835 = vpack.c.b16 %v723, %v721
        %v836 = vpack.c.b16 %v726, %v724
        %v837 = vpack.c.b16 %v727, %v725
        %v838 = vpack.c.b16 %v730, %v728
        %v839 = vpack.c.b16 %v731, %v729
        %v840 = vpack.c.b16 %v734, %v732
        %v841 = vpack.c.b16 %v735, %v733
        %v842 = vpack.c.b16 %v738, %v736
        %v843 = vpack.c.b16 %v739, %v737
        %v844 = vpack.c.b16 %v742, %v740
        %v845 = vpack.c.b16 %v743, %v741
        %v846 = vpack.c.b16 %v746, %v744
        %v847 = vpack.c.b16 %v747, %v745
        %v848 = vpack.c.b16 %v750, %v748
        %v849 = vpack.c.b16 %v751, %v749
        %v850 = vpack.c.b16 %v754, %v752
        %v851 = vpack.c.b16 %v755, %v753
        %v852 = vpack.c.b16 %v758, %v756
        %v853 = vpack.c.b16 %v759, %v757
        %v854 = vpack.c.b16 %v762, %v760
        %v855 = vpack.c.b16 %v763, %v761
        %v856 = vpack.c.b16 %v766, %v764
        %v857 = vpack.c.b16 %v767, %v765
        %v858 = vpack.c.b16 %v770, %v768
        %v859 = vpack.c.b16 %v771, %v769
        %v860 = vpack.c.b16 %v774, %v772
        %v861 = vpack.c.b16 %v775, %v773
        %v862 = vpack.c.b16 %v778, %v776
        %v863 = vpack.c.b16 %v779, %v777
        %v864 = vpack.c.b16 %v782, %v780
        %v865 = vpack.c.b16 %v783, %v781
        %v866 = vpack.c.b16 %v786, %v784
        %v867 = vpack.c.b16 %v787, %v785
        %v868 = vpack.c.b16 %v790, %v788
        %v869 = vpack.c.b16 %v791, %v789
        %v870 = vpack.c.b16 %v794, %v792
        %v871 = vpack.c.b16 %v795, %v793
        %v872 = vpack.c.b16 %v798, %v796
        %v873 = vpack.c.b16 %v799, %v797
        %v874 = vpack.c.b16 %v802, %v800
        %v875 = vpack.c.b16 %v803, %v801
        %v876 = vpack.c.b16 %v806, %v804
        %v877 = vpack.c.b16 %v807, %v805
        %v878 = vpack.c.b16 %v810, %v808
        %v879 = vpack.c.b16 %v811, %v809
        %v880 = vpack.c.b16 %v814, %v812
        %v881 = vpack.c.b16 %v815, %v813
        %v882 = vpack.c.b16 %v818, %v816
        %v883 = vpack.c.b16 %v819, %v817
        %948 = vmatpush.bf16.msra.mxu0 %v834
        %949 = vmatpush.bf16.msra.mxu0 %v832
        %950 = vmatpush.bf16.msra.mxu0 %v830
        %951 = vmatpush.bf16.msra.mxu0 %v828
        %952 = vmatpush.bf16.msra.mxu0 %v826
        %953 = vmatpush.bf16.msra.mxu0 %v824
        %954 = vmatpush.bf16.msra.mxu0 %v822
        %955 = vmatpush.bf16.msra.mxu0 %v820
        %956 = vmatmul.bf16.gmra.mxu0 %v494
        %v957 = vpop.f32.mrf.mxu0
        %v958 = vadd.f32 %v624, %v957
        %v959 = vpop.f32.mrf.mxu0
        %v960 = vadd.f32 %v624, %v959
        %961 = vmatmul.bf16.gmra.mxu0 %v498
        %v962 = vpop.f32.mrf.mxu0
        %v963 = vadd.f32 %v624, %v962
        %v964 = vpop.f32.mrf.mxu0
        %v965 = vadd.f32 %v624, %v964
        %966 = vmatmul.bf16.gmra.mxu0 %v502
        %v967 = vpop.f32.mrf.mxu0
        %v968 = vadd.f32 %v624, %v967
        %v969 = vpop.f32.mrf.mxu0
        %v970 = vadd.f32 %v624, %v969
        %971 = vmatmul.bf16.gmra.mxu0 %v506
        %v972 = vpop.f32.mrf.mxu0
        %v973 = vadd.f32 %v624, %v972
        %v974 = vpop.f32.mrf.mxu0
        %v975 = vadd.f32 %v624, %v974
        %976 = vmatmul.bf16.gmra.mxu0 %v510
        %v977 = vpop.f32.mrf.mxu0
        %v978 = vadd.f32 %v624, %v977
        %v979 = vpop.f32.mrf.mxu0
        %v980 = vadd.f32 %v624, %v979
        %981 = vmatmul.bf16.gmra.mxu0 %v514
        %v982 = vpop.f32.mrf.mxu0
        %v983 = vadd.f32 %v624, %v982
        %v984 = vpop.f32.mrf.mxu0
        %v985 = vadd.f32 %v624, %v984
        %986 = vmatmul.bf16.gmra.mxu0 %v518
        %v987 = vpop.f32.mrf.mxu0
        %v988 = vadd.f32 %v624, %v987
        %v989 = vpop.f32.mrf.mxu0
        %v990 = vadd.f32 %v624, %v989
        %991 = vmatmul.bf16.gmra.mxu0 %v522
        %v992 = vpop.f32.mrf.mxu0
        %v993 = vadd.f32 %v624, %v992
        %v994 = vpop.f32.mrf.mxu0
        %v995 = vadd.f32 %v624, %v994
        %996 = vmatmul.bf16.gmra.mxu0 %v526
        %v997 = vpop.f32.mrf.mxu0
        %v998 = vadd.f32 %v624, %v997
        %v999 = vpop.f32.mrf.mxu0
        %v1000 = vadd.f32 %v624, %v999
        %1001 = vmatmul.bf16.gmra.mxu0 %v530
        %v1002 = vpop.f32.mrf.mxu0
        %v1003 = vadd.f32 %v624, %v1002
        %v1004 = vpop.f32.mrf.mxu0
        %v1005 = vadd.f32 %v624, %v1004
        %1006 = vmatmul.bf16.gmra.mxu0 %v534
        %v1007 = vpop.f32.mrf.mxu0
        %v1008 = vadd.f32 %v624, %v1007
        %v1009 = vpop.f32.mrf.mxu0
        %v1010 = vadd.f32 %v624, %v1009
        %1011 = vmatmul.bf16.gmra.mxu0 %v538
        %v1012 = vpop.f32.mrf.mxu0
        %v1013 = vadd.f32 %v624, %v1012
        %v1014 = vpop.f32.mrf.mxu0
        %v1015 = vadd.f32 %v624, %v1014
        %1016 = vmatmul.bf16.gmra.mxu0 %v542
        %v1017 = vpop.f32.mrf.mxu0
        %v1018 = vadd.f32 %v624, %v1017
        %v1019 = vpop.f32.mrf.mxu0
        %v1020 = vadd.f32 %v624, %v1019
        %1021 = vmatmul.bf16.gmra.mxu0 %v546
        %v1022 = vpop.f32.mrf.mxu0
        %v1023 = vadd.f32 %v624, %v1022
        %v1024 = vpop.f32.mrf.mxu0
        %v1025 = vadd.f32 %v624, %v1024
        %1026 = vmatmul.bf16.gmra.mxu0 %v550
        %v1027 = vpop.f32.mrf.mxu0
        %v1028 = vadd.f32 %v624, %v1027
        %v1029 = vpop.f32.mrf.mxu0
        %v1030 = vadd.f32 %v624, %v1029
        %1031 = vmatmul.bf16.gmra.mxu0 %v554
        %v1032 = vpop.f32.mrf.mxu0
        %v1033 = vadd.f32 %v624, %v1032
        %v1034 = vpop.f32.mrf.mxu0
        %v1035 = vadd.f32 %v624, %v1034
        %1036 = vdwg.mxu0
        %1037 = vmatpush.bf16.msra.mxu0 %v850
        %1038 = vmatpush.bf16.msra.mxu0 %v848
        %1039 = vmatpush.bf16.msra.mxu0 %v846
        %1040 = vmatpush.bf16.msra.mxu0 %v844
        %1041 = vmatpush.bf16.msra.mxu0 %v842
        %1042 = vmatpush.bf16.msra.mxu0 %v840
        %1043 = vmatpush.bf16.msra.mxu0 %v838
        %1044 = vmatpush.bf16.msra.mxu0 %v836
        %1045 = vmatmul.bf16.gmra.mxu0 %v495
        %v1046 = vpop.f32.mrf.mxu0
        %v1047 = vadd.f32 %v958, %v1046
        %v1048 = vpop.f32.mrf.mxu0
        %v1049 = vadd.f32 %v960, %v1048
        %1050 = vmatmul.bf16.gmra.mxu0 %v499
        %v1051 = vpop.f32.mrf.mxu0
        %v1052 = vadd.f32 %v963, %v1051
        %v1053 = vpop.f32.mrf.mxu0
        %v1054 = vadd.f32 %v965, %v1053
        %1055 = vmatmul.bf16.gmra.mxu0 %v503
        %v1056 = vpop.f32.mrf.mxu0
        %v1057 = vadd.f32 %v968, %v1056
        %v1058 = vpop.f32.mrf.mxu0
        %v1059 = vadd.f32 %v970, %v1058
        %1060 = vmatmul.bf16.gmra.mxu0 %v507
        %v1061 = vpop.f32.mrf.mxu0
        %v1062 = vadd.f32 %v973, %v1061
        %v1063 = vpop.f32.mrf.mxu0
        %v1064 = vadd.f32 %v975, %v1063
        %1065 = vmatmul.bf16.gmra.mxu0 %v511
        %v1066 = vpop.f32.mrf.mxu0
        %v1067 = vadd.f32 %v978, %v1066
        %v1068 = vpop.f32.mrf.mxu0
        %v1069 = vadd.f32 %v980, %v1068
        %1070 = vmatmul.bf16.gmra.mxu0 %v515
        %v1071 = vpop.f32.mrf.mxu0
        %v1072 = vadd.f32 %v983, %v1071
        %v1073 = vpop.f32.mrf.mxu0
        %v1074 = vadd.f32 %v985, %v1073
        %1075 = vmatmul.bf16.gmra.mxu0 %v519
        %v1076 = vpop.f32.mrf.mxu0
        %v1077 = vadd.f32 %v988, %v1076
        %v1078 = vpop.f32.mrf.mxu0
        %v1079 = vadd.f32 %v990, %v1078
        %1080 = vmatmul.bf16.gmra.mxu0 %v523
        %v1081 = vpop.f32.mrf.mxu0
        %v1082 = vadd.f32 %v993, %v1081
        %v1083 = vpop.f32.mrf.mxu0
        %v1084 = vadd.f32 %v995, %v1083
        %1085 = vmatmul.bf16.gmra.mxu0 %v527
        %v1086 = vpop.f32.mrf.mxu0
        %v1087 = vadd.f32 %v998, %v1086
        %v1088 = vpop.f32.mrf.mxu0
        %v1089 = vadd.f32 %v1000, %v1088
        %1090 = vmatmul.bf16.gmra.mxu0 %v531
        %v1091 = vpop.f32.mrf.mxu0
        %v1092 = vadd.f32 %v1003, %v1091
        %v1093 = vpop.f32.mrf.mxu0
        %v1094 = vadd.f32 %v1005, %v1093
        %1095 = vmatmul.bf16.gmra.mxu0 %v535
        %v1096 = vpop.f32.mrf.mxu0
        %v1097 = vadd.f32 %v1008, %v1096
        %v1098 = vpop.f32.mrf.mxu0
        %v1099 = vadd.f32 %v1010, %v1098
        %1100 = vmatmul.bf16.gmra.mxu0 %v539
        %v1101 = vpop.f32.mrf.mxu0
        %v1102 = vadd.f32 %v1013, %v1101
        %v1103 = vpop.f32.mrf.mxu0
        %v1104 = vadd.f32 %v1015, %v1103
        %1105 = vmatmul.bf16.gmra.mxu0 %v543
        %v1106 = vpop.f32.mrf.mxu0
        %v1107 = vadd.f32 %v1018, %v1106
        %v1108 = vpop.f32.mrf.mxu0
        %v1109 = vadd.f32 %v1020, %v1108
        %1110 = vmatmul.bf16.gmra.mxu0 %v547
        %v1111 = vpop.f32.mrf.mxu0
        %v1112 = vadd.f32 %v1023, %v1111
        %v1113 = vpop.f32.mrf.mxu0
        %v1114 = vadd.f32 %v1025, %v1113
        %1115 = vmatmul.bf16.gmra.mxu0 %v551
        %v1116 = vpop.f32.mrf.mxu0
        %v1117 = vadd.f32 %v1028, %v1116
        %v1118 = vpop.f32.mrf.mxu0
        %v1119 = vadd.f32 %v1030, %v1118
        %1120 = vmatmul.bf16.gmra.mxu0 %v555
        %v1121 = vpop.f32.mrf.mxu0
        %v1122 = vadd.f32 %v1033, %v1121
        %v1123 = vpop.f32.mrf.mxu0
        %v1124 = vadd.f32 %v1035, %v1123
        %1125 = vdwg.mxu0
        %1126 = vmatpush.bf16.msra.mxu0 %v866
        %1127 = vmatpush.bf16.msra.mxu0 %v864
        %1128 = vmatpush.bf16.msra.mxu0 %v862
        %1129 = vmatpush.bf16.msra.mxu0 %v860
        %1130 = vmatpush.bf16.msra.mxu0 %v858
        %1131 = vmatpush.bf16.msra.mxu0 %v856
        %1132 = vmatpush.bf16.msra.mxu0 %v854
        %1133 = vmatpush.bf16.msra.mxu0 %v852
        %1134 = vmatmul.bf16.gmra.mxu0 %v496
        %v1135 = vpop.f32.mrf.mxu0
        %v1136 = vadd.f32 %v1047, %v1135
        %v1137 = vpop.f32.mrf.mxu0
        %v1138 = vadd.f32 %v1049, %v1137
        %1139 = vmatmul.bf16.gmra.mxu0 %v500
        %v1140 = vpop.f32.mrf.mxu0
        %v1141 = vadd.f32 %v1052, %v1140
        %v1142 = vpop.f32.mrf.mxu0
        %v1143 = vadd.f32 %v1054, %v1142
        %1144 = vmatmul.bf16.gmra.mxu0 %v504
        %v1145 = vpop.f32.mrf.mxu0
        %v1146 = vadd.f32 %v1057, %v1145
        %v1147 = vpop.f32.mrf.mxu0
        %v1148 = vadd.f32 %v1059, %v1147
        %1149 = vmatmul.bf16.gmra.mxu0 %v508
        %v1150 = vpop.f32.mrf.mxu0
        %v1151 = vadd.f32 %v1062, %v1150
        %v1152 = vpop.f32.mrf.mxu0
        %v1153 = vadd.f32 %v1064, %v1152
        %1154 = vmatmul.bf16.gmra.mxu0 %v512
        %v1155 = vpop.f32.mrf.mxu0
        %v1156 = vadd.f32 %v1067, %v1155
        %v1157 = vpop.f32.mrf.mxu0
        %v1158 = vadd.f32 %v1069, %v1157
        %1159 = vmatmul.bf16.gmra.mxu0 %v516
        %v1160 = vpop.f32.mrf.mxu0
        %v1161 = vadd.f32 %v1072, %v1160
        %v1162 = vpop.f32.mrf.mxu0
        %v1163 = vadd.f32 %v1074, %v1162
        %1164 = vmatmul.bf16.gmra.mxu0 %v520
        %v1165 = vpop.f32.mrf.mxu0
        %v1166 = vadd.f32 %v1077, %v1165
        %v1167 = vpop.f32.mrf.mxu0
        %v1168 = vadd.f32 %v1079, %v1167
        %1169 = vmatmul.bf16.gmra.mxu0 %v524
        %v1170 = vpop.f32.mrf.mxu0
        %v1171 = vadd.f32 %v1082, %v1170
        %v1172 = vpop.f32.mrf.mxu0
        %v1173 = vadd.f32 %v1084, %v1172
        %1174 = vmatmul.bf16.gmra.mxu0 %v528
        %v1175 = vpop.f32.mrf.mxu0
        %v1176 = vadd.f32 %v1087, %v1175
        %v1177 = vpop.f32.mrf.mxu0
        %v1178 = vadd.f32 %v1089, %v1177
        %1179 = vmatmul.bf16.gmra.mxu0 %v532
        %v1180 = vpop.f32.mrf.mxu0
        %v1181 = vadd.f32 %v1092, %v1180
        %v1182 = vpop.f32.mrf.mxu0
        %v1183 = vadd.f32 %v1094, %v1182
        %1184 = vmatmul.bf16.gmra.mxu0 %v536
        %v1185 = vpop.f32.mrf.mxu0
        %v1186 = vadd.f32 %v1097, %v1185
        %v1187 = vpop.f32.mrf.mxu0
        %v1188 = vadd.f32 %v1099, %v1187
        %1189 = vmatmul.bf16.gmra.mxu0 %v540
        %v1190 = vpop.f32.mrf.mxu0
        %v1191 = vadd.f32 %v1102, %v1190
        %v1192 = vpop.f32.mrf.mxu0
        %v1193 = vadd.f32 %v1104, %v1192
        %1194 = vmatmul.bf16.gmra.mxu0 %v544
        %v1195 = vpop.f32.mrf.mxu0
        %v1196 = vadd.f32 %v1107, %v1195
        %v1197 = vpop.f32.mrf.mxu0
        %v1198 = vadd.f32 %v1109, %v1197
        %1199 = vmatmul.bf16.gmra.mxu0 %v548
        %v1200 = vpop.f32.mrf.mxu0
        %v1201 = vadd.f32 %v1112, %v1200
        %v1202 = vpop.f32.mrf.mxu0
        %v1203 = vadd.f32 %v1114, %v1202
        %1204 = vmatmul.bf16.gmra.mxu0 %v552
        %v1205 = vpop.f32.mrf.mxu0
        %v1206 = vadd.f32 %v1117, %v1205
        %v1207 = vpop.f32.mrf.mxu0
        %v1208 = vadd.f32 %v1119, %v1207
        %1209 = vmatmul.bf16.gmra.mxu0 %v556
        %v1210 = vpop.f32.mrf.mxu0
        %v1211 = vadd.f32 %v1122, %v1210
        %v1212 = vpop.f32.mrf.mxu0
        %v1213 = vadd.f32 %v1124, %v1212
        %1214 = vdwg.mxu0
        %1215 = vmatpush.bf16.msra.mxu0 %v882
        %1216 = vmatpush.bf16.msra.mxu0 %v880
        %1217 = vmatpush.bf16.msra.mxu0 %v878
        %1218 = vmatpush.bf16.msra.mxu0 %v876
        %1219 = vmatpush.bf16.msra.mxu0 %v874
        %1220 = vmatpush.bf16.msra.mxu0 %v872
        %1221 = vmatpush.bf16.msra.mxu0 %v870
        %1222 = vmatpush.bf16.msra.mxu0 %v868
        %1223 = vmatmul.bf16.gmra.mxu0 %v497
        %v1224 = vpop.f32.mrf.mxu0
        %v1225 = vadd.f32 %v1136, %v1224
        %v1226 = vpop.f32.mrf.mxu0
        %v1227 = vadd.f32 %v1138, %v1226
        %1228 = vmatmul.bf16.gmra.mxu0 %v501
        %v1229 = vpop.f32.mrf.mxu0
        %v1230 = vadd.f32 %v1141, %v1229
        %v1231 = vpop.f32.mrf.mxu0
        %v1232 = vadd.f32 %v1143, %v1231
        %1233 = vmatmul.bf16.gmra.mxu0 %v505
        %v1234 = vpop.f32.mrf.mxu0
        %v1235 = vadd.f32 %v1146, %v1234
        %v1236 = vpop.f32.mrf.mxu0
        %v1237 = vadd.f32 %v1148, %v1236
        %1238 = vmatmul.bf16.gmra.mxu0 %v509
        %v1239 = vpop.f32.mrf.mxu0
        %v1240 = vadd.f32 %v1151, %v1239
        %v1241 = vpop.f32.mrf.mxu0
        %v1242 = vadd.f32 %v1153, %v1241
        %1243 = vmatmul.bf16.gmra.mxu0 %v513
        %v1244 = vpop.f32.mrf.mxu0
        %v1245 = vadd.f32 %v1156, %v1244
        %v1246 = vpop.f32.mrf.mxu0
        %v1247 = vadd.f32 %v1158, %v1246
        %1248 = vmatmul.bf16.gmra.mxu0 %v517
        %v1249 = vpop.f32.mrf.mxu0
        %v1250 = vadd.f32 %v1161, %v1249
        %v1251 = vpop.f32.mrf.mxu0
        %v1252 = vadd.f32 %v1163, %v1251
        %1253 = vmatmul.bf16.gmra.mxu0 %v521
        %v1254 = vpop.f32.mrf.mxu0
        %v1255 = vadd.f32 %v1166, %v1254
        %v1256 = vpop.f32.mrf.mxu0
        %v1257 = vadd.f32 %v1168, %v1256
        %1258 = vmatmul.bf16.gmra.mxu0 %v525
        %v1259 = vpop.f32.mrf.mxu0
        %v1260 = vadd.f32 %v1171, %v1259
        %v1261 = vpop.f32.mrf.mxu0
        %v1262 = vadd.f32 %v1173, %v1261
        %1263 = vmatmul.bf16.gmra.mxu0 %v529
        %v1264 = vpop.f32.mrf.mxu0
        %v1265 = vadd.f32 %v1176, %v1264
        %v1266 = vpop.f32.mrf.mxu0
        %v1267 = vadd.f32 %v1178, %v1266
        %1268 = vmatmul.bf16.gmra.mxu0 %v533
        %v1269 = vpop.f32.mrf.mxu0
        %v1270 = vadd.f32 %v1181, %v1269
        %v1271 = vpop.f32.mrf.mxu0
        %v1272 = vadd.f32 %v1183, %v1271
        %1273 = vmatmul.bf16.gmra.mxu0 %v537
        %v1274 = vpop.f32.mrf.mxu0
        %v1275 = vadd.f32 %v1186, %v1274
        %v1276 = vpop.f32.mrf.mxu0
        %v1277 = vadd.f32 %v1188, %v1276
        %1278 = vmatmul.bf16.gmra.mxu0 %v541
        %v1279 = vpop.f32.mrf.mxu0
        %v1280 = vadd.f32 %v1191, %v1279
        %v1281 = vpop.f32.mrf.mxu0
        %v1282 = vadd.f32 %v1193, %v1281
        %1283 = vmatmul.bf16.gmra.mxu0 %v545
        %v1284 = vpop.f32.mrf.mxu0
        %v1285 = vadd.f32 %v1196, %v1284
        %v1286 = vpop.f32.mrf.mxu0
        %v1287 = vadd.f32 %v1198, %v1286
        %1288 = vmatmul.bf16.gmra.mxu0 %v549
        %v1289 = vpop.f32.mrf.mxu0
        %v1290 = vadd.f32 %v1201, %v1289
        %v1291 = vpop.f32.mrf.mxu0
        %v1292 = vadd.f32 %v1203, %v1291
        %1293 = vmatmul.bf16.gmra.mxu0 %v553
        %v1294 = vpop.f32.mrf.mxu0
        %v1295 = vadd.f32 %v1206, %v1294
        %v1296 = vpop.f32.mrf.mxu0
        %v1297 = vadd.f32 %v1208, %v1296
        %1298 = vmatmul.bf16.gmra.mxu0 %v557
        %v1299 = vpop.f32.mrf.mxu0
        %v1300 = vadd.f32 %v1211, %v1299
        %v1301 = vpop.f32.mrf.mxu0
        %v1302 = vadd.f32 %v1213, %v1301
        %1303 = vdwg.mxu0
        %1304 = vmatpush.bf16.msra.mxu0 %v835
        %1305 = vmatpush.bf16.msra.mxu0 %v833
        %1306 = vmatpush.bf16.msra.mxu0 %v831
        %1307 = vmatpush.bf16.msra.mxu0 %v829
        %1308 = vmatpush.bf16.msra.mxu0 %v827
        %1309 = vmatpush.bf16.msra.mxu0 %v825
        %1310 = vmatpush.bf16.msra.mxu0 %v823
        %1311 = vmatpush.bf16.msra.mxu0 %v821
        %1312 = vmatmul.bf16.gmra.mxu0 %v494
        %v1313 = vpop.f32.mrf.mxu0
        %v1314 = vadd.f32 %v625, %v1313
        %v1315 = vpop.f32.mrf.mxu0
        %v1316 = vadd.f32 %v625, %v1315
        %1317 = vmatmul.bf16.gmra.mxu0 %v498
        %v1318 = vpop.f32.mrf.mxu0
        %v1319 = vadd.f32 %v625, %v1318
        %v1320 = vpop.f32.mrf.mxu0
        %v1321 = vadd.f32 %v625, %v1320
        %1322 = vmatmul.bf16.gmra.mxu0 %v502
        %v1323 = vpop.f32.mrf.mxu0
        %v1324 = vadd.f32 %v625, %v1323
        %v1325 = vpop.f32.mrf.mxu0
        %v1326 = vadd.f32 %v625, %v1325
        %1327 = vmatmul.bf16.gmra.mxu0 %v506
        %v1328 = vpop.f32.mrf.mxu0
        %v1329 = vadd.f32 %v625, %v1328
        %v1330 = vpop.f32.mrf.mxu0
        %v1331 = vadd.f32 %v625, %v1330
        %1332 = vmatmul.bf16.gmra.mxu0 %v510
        %v1333 = vpop.f32.mrf.mxu0
        %v1334 = vadd.f32 %v625, %v1333
        %v1335 = vpop.f32.mrf.mxu0
        %v1336 = vadd.f32 %v625, %v1335
        %1337 = vmatmul.bf16.gmra.mxu0 %v514
        %v1338 = vpop.f32.mrf.mxu0
        %v1339 = vadd.f32 %v625, %v1338
        %v1340 = vpop.f32.mrf.mxu0
        %v1341 = vadd.f32 %v625, %v1340
        %1342 = vmatmul.bf16.gmra.mxu0 %v518
        %v1343 = vpop.f32.mrf.mxu0
        %v1344 = vadd.f32 %v625, %v1343
        %v1345 = vpop.f32.mrf.mxu0
        %v1346 = vadd.f32 %v625, %v1345
        %1347 = vmatmul.bf16.gmra.mxu0 %v522
        %v1348 = vpop.f32.mrf.mxu0
        %v1349 = vadd.f32 %v625, %v1348
        %v1350 = vpop.f32.mrf.mxu0
        %v1351 = vadd.f32 %v625, %v1350
        %1352 = vmatmul.bf16.gmra.mxu0 %v526
        %v1353 = vpop.f32.mrf.mxu0
        %v1354 = vadd.f32 %v625, %v1353
        %v1355 = vpop.f32.mrf.mxu0
        %v1356 = vadd.f32 %v625, %v1355
        %1357 = vmatmul.bf16.gmra.mxu0 %v530
        %v1358 = vpop.f32.mrf.mxu0
        %v1359 = vadd.f32 %v625, %v1358
        %v1360 = vpop.f32.mrf.mxu0
        %v1361 = vadd.f32 %v625, %v1360
        %1362 = vmatmul.bf16.gmra.mxu0 %v534
        %v1363 = vpop.f32.mrf.mxu0
        %v1364 = vadd.f32 %v625, %v1363
        %v1365 = vpop.f32.mrf.mxu0
        %v1366 = vadd.f32 %v625, %v1365
        %1367 = vmatmul.bf16.gmra.mxu0 %v538
        %v1368 = vpop.f32.mrf.mxu0
        %v1369 = vadd.f32 %v625, %v1368
        %v1370 = vpop.f32.mrf.mxu0
        %v1371 = vadd.f32 %v625, %v1370
        %1372 = vmatmul.bf16.gmra.mxu0 %v542
        %v1373 = vpop.f32.mrf.mxu0
        %v1374 = vadd.f32 %v625, %v1373
        %v1375 = vpop.f32.mrf.mxu0
        %v1376 = vadd.f32 %v625, %v1375
        %1377 = vmatmul.bf16.gmra.mxu0 %v546
        %v1378 = vpop.f32.mrf.mxu0
        %v1379 = vadd.f32 %v625, %v1378
        %v1380 = vpop.f32.mrf.mxu0
        %v1381 = vadd.f32 %v625, %v1380
        %1382 = vmatmul.bf16.gmra.mxu0 %v550
        %v1383 = vpop.f32.mrf.mxu0
        %v1384 = vadd.f32 %v625, %v1383
        %v1385 = vpop.f32.mrf.mxu0
        %v1386 = vadd.f32 %v625, %v1385
        %1387 = vmatmul.bf16.gmra.mxu0 %v554
        %v1388 = vpop.f32.mrf.mxu0
        %v1389 = vadd.f32 %v625, %v1388
        %v1390 = vpop.f32.mrf.mxu0
        %v1391 = vadd.f32 %v625, %v1390
        %1392 = vdwg.mxu0
        %1393 = vmatpush.bf16.msra.mxu0 %v851
        %1394 = vmatpush.bf16.msra.mxu0 %v849
        %1395 = vmatpush.bf16.msra.mxu0 %v847
        %1396 = vmatpush.bf16.msra.mxu0 %v845
        %1397 = vmatpush.bf16.msra.mxu0 %v843
        %1398 = vmatpush.bf16.msra.mxu0 %v841
        %1399 = vmatpush.bf16.msra.mxu0 %v839
        %1400 = vmatpush.bf16.msra.mxu0 %v837
        %1401 = vmatmul.bf16.gmra.mxu0 %v495
        %v1402 = vpop.f32.mrf.mxu0
        %v1403 = vadd.f32 %v1314, %v1402
        %v1404 = vpop.f32.mrf.mxu0
        %v1405 = vadd.f32 %v1316, %v1404
        %1406 = vmatmul.bf16.gmra.mxu0 %v499
        %v1407 = vpop.f32.mrf.mxu0
        %v1408 = vadd.f32 %v1319, %v1407
        %v1409 = vpop.f32.mrf.mxu0
        %v1410 = vadd.f32 %v1321, %v1409
        %1411 = vmatmul.bf16.gmra.mxu0 %v503
        %v1412 = vpop.f32.mrf.mxu0
        %v1413 = vadd.f32 %v1324, %v1412
        %v1414 = vpop.f32.mrf.mxu0
        %v1415 = vadd.f32 %v1326, %v1414
        %1416 = vmatmul.bf16.gmra.mxu0 %v507
        %v1417 = vpop.f32.mrf.mxu0
        %v1418 = vadd.f32 %v1329, %v1417
        %v1419 = vpop.f32.mrf.mxu0
        %v1420 = vadd.f32 %v1331, %v1419
        %1421 = vmatmul.bf16.gmra.mxu0 %v511
        %v1422 = vpop.f32.mrf.mxu0
        %v1423 = vadd.f32 %v1334, %v1422
        %v1424 = vpop.f32.mrf.mxu0
        %v1425 = vadd.f32 %v1336, %v1424
        %1426 = vmatmul.bf16.gmra.mxu0 %v515
        %v1427 = vpop.f32.mrf.mxu0
        %v1428 = vadd.f32 %v1339, %v1427
        %v1429 = vpop.f32.mrf.mxu0
        %v1430 = vadd.f32 %v1341, %v1429
        %1431 = vmatmul.bf16.gmra.mxu0 %v519
        %v1432 = vpop.f32.mrf.mxu0
        %v1433 = vadd.f32 %v1344, %v1432
        %v1434 = vpop.f32.mrf.mxu0
        %v1435 = vadd.f32 %v1346, %v1434
        %1436 = vmatmul.bf16.gmra.mxu0 %v523
        %v1437 = vpop.f32.mrf.mxu0
        %v1438 = vadd.f32 %v1349, %v1437
        %v1439 = vpop.f32.mrf.mxu0
        %v1440 = vadd.f32 %v1351, %v1439
        %1441 = vmatmul.bf16.gmra.mxu0 %v527
        %v1442 = vpop.f32.mrf.mxu0
        %v1443 = vadd.f32 %v1354, %v1442
        %v1444 = vpop.f32.mrf.mxu0
        %v1445 = vadd.f32 %v1356, %v1444
        %1446 = vmatmul.bf16.gmra.mxu0 %v531
        %v1447 = vpop.f32.mrf.mxu0
        %v1448 = vadd.f32 %v1359, %v1447
        %v1449 = vpop.f32.mrf.mxu0
        %v1450 = vadd.f32 %v1361, %v1449
        %1451 = vmatmul.bf16.gmra.mxu0 %v535
        %v1452 = vpop.f32.mrf.mxu0
        %v1453 = vadd.f32 %v1364, %v1452
        %v1454 = vpop.f32.mrf.mxu0
        %v1455 = vadd.f32 %v1366, %v1454
        %1456 = vmatmul.bf16.gmra.mxu0 %v539
        %v1457 = vpop.f32.mrf.mxu0
        %v1458 = vadd.f32 %v1369, %v1457
        %v1459 = vpop.f32.mrf.mxu0
        %v1460 = vadd.f32 %v1371, %v1459
        %1461 = vmatmul.bf16.gmra.mxu0 %v543
        %v1462 = vpop.f32.mrf.mxu0
        %v1463 = vadd.f32 %v1374, %v1462
        %v1464 = vpop.f32.mrf.mxu0
        %v1465 = vadd.f32 %v1376, %v1464
        %1466 = vmatmul.bf16.gmra.mxu0 %v547
        %v1467 = vpop.f32.mrf.mxu0
        %v1468 = vadd.f32 %v1379, %v1467
        %v1469 = vpop.f32.mrf.mxu0
        %v1470 = vadd.f32 %v1381, %v1469
        %1471 = vmatmul.bf16.gmra.mxu0 %v551
        %v1472 = vpop.f32.mrf.mxu0
        %v1473 = vadd.f32 %v1384, %v1472
        %v1474 = vpop.f32.mrf.mxu0
        %v1475 = vadd.f32 %v1386, %v1474
        %1476 = vmatmul.bf16.gmra.mxu0 %v555
        %v1477 = vpop.f32.mrf.mxu0
        %v1478 = vadd.f32 %v1389, %v1477
        %v1479 = vpop.f32.mrf.mxu0
        %v1480 = vadd.f32 %v1391, %v1479
        %1481 = vdwg.mxu0
        %1482 = vmatpush.bf16.msra.mxu0 %v867
        %1483 = vmatpush.bf16.msra.mxu0 %v865
        %1484 = vmatpush.bf16.msra.mxu0 %v863
        %1485 = vmatpush.bf16.msra.mxu0 %v861
        %1486 = vmatpush.bf16.msra.mxu0 %v859
        %1487 = vmatpush.bf16.msra.mxu0 %v857
        %1488 = vmatpush.bf16.msra.mxu0 %v855
        %1489 = vmatpush.bf16.msra.mxu0 %v853
        %1490 = vmatmul.bf16.gmra.mxu0 %v496
        %v1491 = vpop.f32.mrf.mxu0
        %v1492 = vadd.f32 %v1403, %v1491
        %v1493 = vpop.f32.mrf.mxu0
        %v1494 = vadd.f32 %v1405, %v1493
        %1495 = vmatmul.bf16.gmra.mxu0 %v500
        %v1496 = vpop.f32.mrf.mxu0
        %v1497 = vadd.f32 %v1408, %v1496
        %v1498 = vpop.f32.mrf.mxu0
        %v1499 = vadd.f32 %v1410, %v1498
        %1500 = vmatmul.bf16.gmra.mxu0 %v504
        %v1501 = vpop.f32.mrf.mxu0
        %v1502 = vadd.f32 %v1413, %v1501
        %v1503 = vpop.f32.mrf.mxu0
        %v1504 = vadd.f32 %v1415, %v1503
        %1505 = vmatmul.bf16.gmra.mxu0 %v508
        %v1506 = vpop.f32.mrf.mxu0
        %v1507 = vadd.f32 %v1418, %v1506
        %v1508 = vpop.f32.mrf.mxu0
        %v1509 = vadd.f32 %v1420, %v1508
        %1510 = vmatmul.bf16.gmra.mxu0 %v512
        %v1511 = vpop.f32.mrf.mxu0
        %v1512 = vadd.f32 %v1423, %v1511
        %v1513 = vpop.f32.mrf.mxu0
        %v1514 = vadd.f32 %v1425, %v1513
        %1515 = vmatmul.bf16.gmra.mxu0 %v516
        %v1516 = vpop.f32.mrf.mxu0
        %v1517 = vadd.f32 %v1428, %v1516
        %v1518 = vpop.f32.mrf.mxu0
        %v1519 = vadd.f32 %v1430, %v1518
        %1520 = vmatmul.bf16.gmra.mxu0 %v520
        %v1521 = vpop.f32.mrf.mxu0
        %v1522 = vadd.f32 %v1433, %v1521
        %v1523 = vpop.f32.mrf.mxu0
        %v1524 = vadd.f32 %v1435, %v1523
        %1525 = vmatmul.bf16.gmra.mxu0 %v524
        %v1526 = vpop.f32.mrf.mxu0
        %v1527 = vadd.f32 %v1438, %v1526
        %v1528 = vpop.f32.mrf.mxu0
        %v1529 = vadd.f32 %v1440, %v1528
        %1530 = vmatmul.bf16.gmra.mxu0 %v528
        %v1531 = vpop.f32.mrf.mxu0
        %v1532 = vadd.f32 %v1443, %v1531
        %v1533 = vpop.f32.mrf.mxu0
        %v1534 = vadd.f32 %v1445, %v1533
        %1535 = vmatmul.bf16.gmra.mxu0 %v532
        %v1536 = vpop.f32.mrf.mxu0
        %v1537 = vadd.f32 %v1448, %v1536
        %v1538 = vpop.f32.mrf.mxu0
        %v1539 = vadd.f32 %v1450, %v1538
        %1540 = vmatmul.bf16.gmra.mxu0 %v536
        %v1541 = vpop.f32.mrf.mxu0
        %v1542 = vadd.f32 %v1453, %v1541
        %v1543 = vpop.f32.mrf.mxu0
        %v1544 = vadd.f32 %v1455, %v1543
        %1545 = vmatmul.bf16.gmra.mxu0 %v540
        %v1546 = vpop.f32.mrf.mxu0
        %v1547 = vadd.f32 %v1458, %v1546
        %v1548 = vpop.f32.mrf.mxu0
        %v1549 = vadd.f32 %v1460, %v1548
        %1550 = vmatmul.bf16.gmra.mxu0 %v544
        %v1551 = vpop.f32.mrf.mxu0
        %v1552 = vadd.f32 %v1463, %v1551
        %v1553 = vpop.f32.mrf.mxu0
        %v1554 = vadd.f32 %v1465, %v1553
        %1555 = vmatmul.bf16.gmra.mxu0 %v548
        %v1556 = vpop.f32.mrf.mxu0
        %v1557 = vadd.f32 %v1468, %v1556
        %v1558 = vpop.f32.mrf.mxu0
        %v1559 = vadd.f32 %v1470, %v1558
        %1560 = vmatmul.bf16.gmra.mxu0 %v552
        %v1561 = vpop.f32.mrf.mxu0
        %v1562 = vadd.f32 %v1473, %v1561
        %v1563 = vpop.f32.mrf.mxu0
        %v1564 = vadd.f32 %v1475, %v1563
        %1565 = vmatmul.bf16.gmra.mxu0 %v556
        %v1566 = vpop.f32.mrf.mxu0
        %v1567 = vadd.f32 %v1478, %v1566
        %v1568 = vpop.f32.mrf.mxu0
        %v1569 = vadd.f32 %v1480, %v1568
        %1570 = vdwg.mxu0
        %1571 = vmatpush.bf16.msra.mxu0 %v883
        %1572 = vmatpush.bf16.msra.mxu0 %v881
        %1573 = vmatpush.bf16.msra.mxu0 %v879
        %1574 = vmatpush.bf16.msra.mxu0 %v877
        %1575 = vmatpush.bf16.msra.mxu0 %v875
        %1576 = vmatpush.bf16.msra.mxu0 %v873
        %1577 = vmatpush.bf16.msra.mxu0 %v871
        %1578 = vmatpush.bf16.msra.mxu0 %v869
        %1579 = vmatmul.bf16.gmra.mxu0 %v497
        %v1580 = vpop.f32.mrf.mxu0
        %v1581 = vadd.f32 %v1492, %v1580
        %v1582 = vpop.f32.mrf.mxu0
        %v1583 = vadd.f32 %v1494, %v1582
        %1584 = vmatmul.bf16.gmra.mxu0 %v501
        %v1585 = vpop.f32.mrf.mxu0
        %v1586 = vadd.f32 %v1497, %v1585
        %v1587 = vpop.f32.mrf.mxu0
        %v1588 = vadd.f32 %v1499, %v1587
        %1589 = vmatmul.bf16.gmra.mxu0 %v505
        %v1590 = vpop.f32.mrf.mxu0
        %v1591 = vadd.f32 %v1502, %v1590
        %v1592 = vpop.f32.mrf.mxu0
        %v1593 = vadd.f32 %v1504, %v1592
        %1594 = vmatmul.bf16.gmra.mxu0 %v509
        %v1595 = vpop.f32.mrf.mxu0
        %v1596 = vadd.f32 %v1507, %v1595
        %v1597 = vpop.f32.mrf.mxu0
        %v1598 = vadd.f32 %v1509, %v1597
        %1599 = vmatmul.bf16.gmra.mxu0 %v513
        %v1600 = vpop.f32.mrf.mxu0
        %v1601 = vadd.f32 %v1512, %v1600
        %v1602 = vpop.f32.mrf.mxu0
        %v1603 = vadd.f32 %v1514, %v1602
        %1604 = vmatmul.bf16.gmra.mxu0 %v517
        %v1605 = vpop.f32.mrf.mxu0
        %v1606 = vadd.f32 %v1517, %v1605
        %v1607 = vpop.f32.mrf.mxu0
        %v1608 = vadd.f32 %v1519, %v1607
        %1609 = vmatmul.bf16.gmra.mxu0 %v521
        %v1610 = vpop.f32.mrf.mxu0
        %v1611 = vadd.f32 %v1522, %v1610
        %v1612 = vpop.f32.mrf.mxu0
        %v1613 = vadd.f32 %v1524, %v1612
        %1614 = vmatmul.bf16.gmra.mxu0 %v525
        %v1615 = vpop.f32.mrf.mxu0
        %v1616 = vadd.f32 %v1527, %v1615
        %v1617 = vpop.f32.mrf.mxu0
        %v1618 = vadd.f32 %v1529, %v1617
        %1619 = vmatmul.bf16.gmra.mxu0 %v529
        %v1620 = vpop.f32.mrf.mxu0
        %v1621 = vadd.f32 %v1532, %v1620
        %v1622 = vpop.f32.mrf.mxu0
        %v1623 = vadd.f32 %v1534, %v1622
        %1624 = vmatmul.bf16.gmra.mxu0 %v533
        %v1625 = vpop.f32.mrf.mxu0
        %v1626 = vadd.f32 %v1537, %v1625
        %v1627 = vpop.f32.mrf.mxu0
        %v1628 = vadd.f32 %v1539, %v1627
        %1629 = vmatmul.bf16.gmra.mxu0 %v537
        %v1630 = vpop.f32.mrf.mxu0
        %v1631 = vadd.f32 %v1542, %v1630
        %v1632 = vpop.f32.mrf.mxu0
        %v1633 = vadd.f32 %v1544, %v1632
        %1634 = vmatmul.bf16.gmra.mxu0 %v541
        %v1635 = vpop.f32.mrf.mxu0
        %v1636 = vadd.f32 %v1547, %v1635
        %v1637 = vpop.f32.mrf.mxu0
        %v1638 = vadd.f32 %v1549, %v1637
        %1639 = vmatmul.bf16.gmra.mxu0 %v545
        %v1640 = vpop.f32.mrf.mxu0
        %v1641 = vadd.f32 %v1552, %v1640
        %v1642 = vpop.f32.mrf.mxu0
        %v1643 = vadd.f32 %v1554, %v1642
        %1644 = vmatmul.bf16.gmra.mxu0 %v549
        %v1645 = vpop.f32.mrf.mxu0
        %v1646 = vadd.f32 %v1557, %v1645
        %v1647 = vpop.f32.mrf.mxu0
        %v1648 = vadd.f32 %v1559, %v1647
        %1649 = vmatmul.bf16.gmra.mxu0 %v553
        %v1650 = vpop.f32.mrf.mxu0
        %v1651 = vadd.f32 %v1562, %v1650
        %v1652 = vpop.f32.mrf.mxu0
        %v1653 = vadd.f32 %v1564, %v1652
        %1654 = vmatmul.bf16.gmra.mxu0 %v557
        %v1655 = vpop.f32.mrf.mxu0
        %v1656 = vadd.f32 %v1567, %v1655
        %v1657 = vpop.f32.mrf.mxu0
        %v1658 = vadd.f32 %v1569, %v1657
        %1659 = vdwg.mxu0
        %v1660 = vmax.f32 %v1225, 0.0
        %v1661 = vmax.f32 %v1581, 0.0
        %v1662 = vmax.f32 %v1227, 0.0
        %v1663 = vmax.f32 %v1583, 0.0
        %v1664 = vmax.f32 %v1230, 0.0
        %v1665 = vmax.f32 %v1586, 0.0
        %v1666 = vmax.f32 %v1232, 0.0
        %v1667 = vmax.f32 %v1588, 0.0
        %v1668 = vmax.f32 %v1235, 0.0
        %v1669 = vmax.f32 %v1591, 0.0
        %v1670 = vmax.f32 %v1237, 0.0
        %v1671 = vmax.f32 %v1593, 0.0
        %v1672 = vmax.f32 %v1240, 0.0
        %v1673 = vmax.f32 %v1596, 0.0
        %v1674 = vmax.f32 %v1242, 0.0
        %v1675 = vmax.f32 %v1598, 0.0
        %v1676 = vmax.f32 %v1245, 0.0
        %v1677 = vmax.f32 %v1601, 0.0
        %v1678 = vmax.f32 %v1247, 0.0
        %v1679 = vmax.f32 %v1603, 0.0
        %v1680 = vmax.f32 %v1250, 0.0
        %v1681 = vmax.f32 %v1606, 0.0
        %v1682 = vmax.f32 %v1252, 0.0
        %v1683 = vmax.f32 %v1608, 0.0
        %v1684 = vmax.f32 %v1255, 0.0
        %v1685 = vmax.f32 %v1611, 0.0
        %v1686 = vmax.f32 %v1257, 0.0
        %v1687 = vmax.f32 %v1613, 0.0
        %v1688 = vmax.f32 %v1260, 0.0
        %v1689 = vmax.f32 %v1616, 0.0
        %v1690 = vmax.f32 %v1262, 0.0
        %v1691 = vmax.f32 %v1618, 0.0
        %v1692 = vmax.f32 %v1265, 0.0
        %v1693 = vmax.f32 %v1621, 0.0
        %v1694 = vmax.f32 %v1267, 0.0
        %v1695 = vmax.f32 %v1623, 0.0
        %v1696 = vmax.f32 %v1270, 0.0
        %v1697 = vmax.f32 %v1626, 0.0
        %v1698 = vmax.f32 %v1272, 0.0
        %v1699 = vmax.f32 %v1628, 0.0
        %v1700 = vmax.f32 %v1275, 0.0
        %v1701 = vmax.f32 %v1631, 0.0
        %v1702 = vmax.f32 %v1277, 0.0
        %v1703 = vmax.f32 %v1633, 0.0
        %v1704 = vmax.f32 %v1280, 0.0
        %v1705 = vmax.f32 %v1636, 0.0
        %v1706 = vmax.f32 %v1282, 0.0
        %v1707 = vmax.f32 %v1638, 0.0
        %v1708 = vmax.f32 %v1285, 0.0
        %v1709 = vmax.f32 %v1641, 0.0
        %v1710 = vmax.f32 %v1287, 0.0
        %v1711 = vmax.f32 %v1643, 0.0
        %v1712 = vmax.f32 %v1290, 0.0
        %v1713 = vmax.f32 %v1646, 0.0
        %v1714 = vmax.f32 %v1292, 0.0
        %v1715 = vmax.f32 %v1648, 0.0
        %v1716 = vmax.f32 %v1295, 0.0
        %v1717 = vmax.f32 %v1651, 0.0
        %v1718 = vmax.f32 %v1297, 0.0
        %v1719 = vmax.f32 %v1653, 0.0
        %v1720 = vmax.f32 %v1300, 0.0
        %v1721 = vmax.f32 %v1656, 0.0
        %v1722 = vmax.f32 %v1302, 0.0
        %v1723 = vmax.f32 %v1658, 0.0
        %v1724 = vpack.c.bf16 %v1662, %v1660
        %v1725 = vpack.c.bf16 %v1663, %v1661
        %v1726 = vpack.c.bf16 %v1666, %v1664
        %v1727 = vpack.c.bf16 %v1667, %v1665
        %v1728 = vpack.c.bf16 %v1670, %v1668
        %v1729 = vpack.c.bf16 %v1671, %v1669
        %v1730 = vpack.c.bf16 %v1674, %v1672
        %v1731 = vpack.c.bf16 %v1675, %v1673
        %v1732 = vpack.c.bf16 %v1678, %v1676
        %v1733 = vpack.c.bf16 %v1679, %v1677
        %v1734 = vpack.c.bf16 %v1682, %v1680
        %v1735 = vpack.c.bf16 %v1683, %v1681
        %v1736 = vpack.c.bf16 %v1686, %v1684
        %v1737 = vpack.c.bf16 %v1687, %v1685
        %v1738 = vpack.c.bf16 %v1690, %v1688
        %v1739 = vpack.c.bf16 %v1691, %v1689
        %v1740 = vpack.c.bf16 %v1694, %v1692
        %v1741 = vpack.c.bf16 %v1695, %v1693
        %v1742 = vpack.c.bf16 %v1698, %v1696
        %v1743 = vpack.c.bf16 %v1699, %v1697
        %v1744 = vpack.c.bf16 %v1702, %v1700
        %v1745 = vpack.c.bf16 %v1703, %v1701
        %v1746 = vpack.c.bf16 %v1706, %v1704
        %v1747 = vpack.c.bf16 %v1707, %v1705
        %v1748 = vpack.c.bf16 %v1710, %v1708
        %v1749 = vpack.c.bf16 %v1711, %v1709
        %v1750 = vpack.c.bf16 %v1714, %v1712
        %v1751 = vpack.c.bf16 %v1715, %v1713
        %v1752 = vpack.c.bf16 %v1718, %v1716
        %v1753 = vpack.c.bf16 %v1719, %v1717
        %v1754 = vpack.c.bf16 %v1722, %v1720
        %v1755 = vpack.c.bf16 %v1723, %v1721
        %v1756 = vld [vmem:[#allocation8] sm:$0xff]
        %v1757 = vld [vmem:[#allocation8 + $0x8] sm:$0xff]
        %v1758 = vld [vmem:[#allocation8 + $0x10] sm:$0xff]
        %v1759 = vld [vmem:[#allocation8 + $0x18] sm:$0xff]
        %v1760 = vld [vmem:[#allocation8 + $0x20] sm:$0xff]
        %v1761 = vld [vmem:[#allocation8 + $0x28] sm:$0xff]
        %v1762 = vld [vmem:[#allocation8 + $0x30] sm:$0xff]
        %v1763 = vld [vmem:[#allocation8 + $0x38] sm:$0xff]
        %v1764 = vld [vmem:[#allocation8 + $0x40] sm:$0xff]
        %v1765 = vld [vmem:[#allocation8 + $0x48] sm:$0xff]
        %v1766 = vld [vmem:[#allocation8 + $0x50] sm:$0xff]
        %v1767 = vld [vmem:[#allocation8 + $0x58] sm:$0xff]
        %v1768 = vld [vmem:[#allocation8 + $0x60] sm:$0xff]
        %v1769 = vld [vmem:[#allocation8 + $0x68] sm:$0xff]
        %v1770 = vld [vmem:[#allocation8 + $0x70] sm:$0xff]
        %v1771 = vld [vmem:[#allocation8 + $0x78] sm:$0xff]
        %v1772 = vld [vmem:[#allocation8 + $0x80] sm:$0xff]
        %v1773 = vld [vmem:[#allocation8 + $0x88] sm:$0xff]
        %v1774 = vld [vmem:[#allocation8 + $0x90] sm:$0xff]
        %v1775 = vld [vmem:[#allocation8 + $0x98] sm:$0xff]
        %v1776 = vld [vmem:[#allocation8 + $0xa0] sm:$0xff]
        %v1777 = vld [vmem:[#allocation8 + $0xa8] sm:$0xff]
        %v1778 = vld [vmem:[#allocation8 + $0xb0] sm:$0xff]
        %v1779 = vld [vmem:[#allocation8 + $0xb8] sm:$0xff]
        %v1780 = vld [vmem:[#allocation8 + $0xc0] sm:$0xff]
        %v1781 = vld [vmem:[#allocation8 + $0xc8] sm:$0xff]
        %v1782 = vld [vmem:[#allocation8 + $0xd0] sm:$0xff]
        %v1783 = vld [vmem:[#allocation8 + $0xd8] sm:$0xff]
        %v1784 = vld [vmem:[#allocation8 + $0xe0] sm:$0xff]
        %v1785 = vld [vmem:[#allocation8 + $0xe8] sm:$0xff]
        %v1786 = vld [vmem:[#allocation8 + $0xf0] sm:$0xff]
        %v1787 = vld [vmem:[#allocation8 + $0xf8] sm:$0xff]
        %v1788 = vld [vmem:[%s4] sm:$0x3]
        %v1790 = vperm.slane %v1788, 0
        %v1791 = vperm.slane %v1788, 1
        %v1826 = vunpack.c.l.b16 %v1756
        %v1827 = vunpack.c.h.b16 %v1756
        %v1828 = vunpack.c.l.b16 %v1757
        %v1829 = vunpack.c.h.b16 %v1757
        %v1830 = vunpack.c.l.b16 %v1758
        %v1831 = vunpack.c.h.b16 %v1758
        %v1832 = vunpack.c.l.b16 %v1759
        %v1833 = vunpack.c.h.b16 %v1759
        %v1834 = vunpack.c.l.b16 %v1760
        %v1835 = vunpack.c.h.b16 %v1760
        %v1836 = vunpack.c.l.b16 %v1761
        %v1837 = vunpack.c.h.b16 %v1761
        %v1838 = vunpack.c.l.b16 %v1762
        %v1839 = vunpack.c.h.b16 %v1762
        %v1840 = vunpack.c.l.b16 %v1763
        %v1841 = vunpack.c.h.b16 %v1763
        %v1842 = vunpack.c.l.b16 %v1764
        %v1843 = vunpack.c.h.b16 %v1764
        %v1844 = vunpack.c.l.b16 %v1765
        %v1845 = vunpack.c.h.b16 %v1765
        %v1846 = vunpack.c.l.b16 %v1766
        %v1847 = vunpack.c.h.b16 %v1766
        %v1848 = vunpack.c.l.b16 %v1767
        %v1849 = vunpack.c.h.b16 %v1767
        %v1850 = vunpack.c.l.b16 %v1768
        %v1851 = vunpack.c.h.b16 %v1768
        %v1852 = vunpack.c.l.b16 %v1769
        %v1853 = vunpack.c.h.b16 %v1769
        %v1854 = vunpack.c.l.b16 %v1770
        %v1855 = vunpack.c.h.b16 %v1770
        %v1856 = vunpack.c.l.b16 %v1771
        %v1857 = vunpack.c.h.b16 %v1771
        %v1858 = vunpack.c.l.b16 %v1772
        %v1859 = vunpack.c.h.b16 %v1772
        %v1860 = vunpack.c.l.b16 %v1773
        %v1861 = vunpack.c.h.b16 %v1773
        %v1862 = vunpack.c.l.b16 %v1774
        %v1863 = vunpack.c.h.b16 %v1774
        %v1864 = vunpack.c.l.b16 %v1775
        %v1865 = vunpack.c.h.b16 %v1775
        %v1866 = vunpack.c.l.b16 %v1776
        %v1867 = vunpack.c.h.b16 %v1776
        %v1868 = vunpack.c.l.b16 %v1777
        %v1869 = vunpack.c.h.b16 %v1777
        %v1870 = vunpack.c.l.b16 %v1778
        %v1871 = vunpack.c.h.b16 %v1778
        %v1872 = vunpack.c.l.b16 %v1779
        %v1873 = vunpack.c.h.b16 %v1779
        %v1874 = vunpack.c.l.b16 %v1780
        %v1875 = vunpack.c.h.b16 %v1780
        %v1876 = vunpack.c.l.b16 %v1781
        %v1877 = vunpack.c.h.b16 %v1781
        %v1878 = vunpack.c.l.b16 %v1782
        %v1879 = vunpack.c.h.b16 %v1782
        %v1880 = vunpack.c.l.b16 %v1783
        %v1881 = vunpack.c.h.b16 %v1783
        %v1882 = vunpack.c.l.b16 %v1784
        %v1883 = vunpack.c.h.b16 %v1784
        %v1884 = vunpack.c.l.b16 %v1785
        %v1885 = vunpack.c.h.b16 %v1785
        %v1886 = vunpack.c.l.b16 %v1786
        %v1887 = vunpack.c.h.b16 %v1786
        %v1888 = vunpack.c.l.b16 %v1787
        %v1889 = vunpack.c.h.b16 %v1787
        %v1890 = vpack.c.b16 %v1828, %v1826
        %v1891 = vpack.c.b16 %v1829, %v1827
        %v1892 = vpack.c.b16 %v1832, %v1830
        %v1893 = vpack.c.b16 %v1833, %v1831
        %v1894 = vpack.c.b16 %v1836, %v1834
        %v1895 = vpack.c.b16 %v1837, %v1835
        %v1896 = vpack.c.b16 %v1840, %v1838
        %v1897 = vpack.c.b16 %v1841, %v1839
        %v1898 = vpack.c.b16 %v1844, %v1842
        %v1899 = vpack.c.b16 %v1845, %v1843
        %v1900 = vpack.c.b16 %v1848, %v1846
        %v1901 = vpack.c.b16 %v1849, %v1847
        %v1902 = vpack.c.b16 %v1852, %v1850
        %v1903 = vpack.c.b16 %v1853, %v1851
        %v1904 = vpack.c.b16 %v1856, %v1854
        %v1905 = vpack.c.b16 %v1857, %v1855
        %v1906 = vpack.c.b16 %v1860, %v1858
        %v1907 = vpack.c.b16 %v1861, %v1859
        %v1908 = vpack.c.b16 %v1864, %v1862
        %v1909 = vpack.c.b16 %v1865, %v1863
        %v1910 = vpack.c.b16 %v1868, %v1866
        %v1911 = vpack.c.b16 %v1869, %v1867
        %v1912 = vpack.c.b16 %v1872, %v1870
        %v1913 = vpack.c.b16 %v1873, %v1871
        %v1914 = vpack.c.b16 %v1876, %v1874
        %v1915 = vpack.c.b16 %v1877, %v1875
        %v1916 = vpack.c.b16 %v1880, %v1878
        %v1917 = vpack.c.b16 %v1881, %v1879
        %v1918 = vpack.c.b16 %v1884, %v1882
        %v1919 = vpack.c.b16 %v1885, %v1883
        %v1920 = vpack.c.b16 %v1888, %v1886
        %v1921 = vpack.c.b16 %v1889, %v1887
        %1954 = vmatpush.bf16.msra.mxu0 %v1904
        %1955 = vmatpush.bf16.msra.mxu0 %v1902
        %1956 = vmatpush.bf16.msra.mxu0 %v1900
        %1957 = vmatpush.bf16.msra.mxu0 %v1898
        %1958 = vmatpush.bf16.msra.mxu0 %v1896
        %1959 = vmatpush.bf16.msra.mxu0 %v1894
        %1960 = vmatpush.bf16.msra.mxu0 %v1892
        %1961 = vmatpush.bf16.msra.mxu0 %v1890
        %1962 = vmatmul.bf16.gmra.mxu0 %v1724
        %v1963 = vpop.f32.mrf.mxu0
        %v1964 = vadd.f32 %v1790, %v1963
        %v1965 = vpop.f32.mrf.mxu0
        %v1966 = vadd.f32 %v1790, %v1965
        %1967 = vmatmul.bf16.gmra.mxu0 %v1726
        %v1968 = vpop.f32.mrf.mxu0
        %v1969 = vadd.f32 %v1790, %v1968
        %v1970 = vpop.f32.mrf.mxu0
        %v1971 = vadd.f32 %v1790, %v1970
        %1972 = vmatmul.bf16.gmra.mxu0 %v1728
        %v1973 = vpop.f32.mrf.mxu0
        %v1974 = vadd.f32 %v1790, %v1973
        %v1975 = vpop.f32.mrf.mxu0
        %v1976 = vadd.f32 %v1790, %v1975
        %1977 = vmatmul.bf16.gmra.mxu0 %v1730
        %v1978 = vpop.f32.mrf.mxu0
        %v1979 = vadd.f32 %v1790, %v1978
        %v1980 = vpop.f32.mrf.mxu0
        %v1981 = vadd.f32 %v1790, %v1980
        %1982 = vmatmul.bf16.gmra.mxu0 %v1732
        %v1983 = vpop.f32.mrf.mxu0
        %v1984 = vadd.f32 %v1790, %v1983
        %v1985 = vpop.f32.mrf.mxu0
        %v1986 = vadd.f32 %v1790, %v1985
        %1987 = vmatmul.bf16.gmra.mxu0 %v1734
        %v1988 = vpop.f32.mrf.mxu0
        %v1989 = vadd.f32 %v1790, %v1988
        %v1990 = vpop.f32.mrf.mxu0
        %v1991 = vadd.f32 %v1790, %v1990
        %1992 = vmatmul.bf16.gmra.mxu0 %v1736
        %v1993 = vpop.f32.mrf.mxu0
        %v1994 = vadd.f32 %v1790, %v1993
        %v1995 = vpop.f32.mrf.mxu0
        %v1996 = vadd.f32 %v1790, %v1995
        %1997 = vmatmul.bf16.gmra.mxu0 %v1738
        %v1998 = vpop.f32.mrf.mxu0
        %v1999 = vadd.f32 %v1790, %v1998
        %v2000 = vpop.f32.mrf.mxu0
        %v2001 = vadd.f32 %v1790, %v2000
        %2002 = vmatmul.bf16.gmra.mxu0 %v1740
        %v2003 = vpop.f32.mrf.mxu0
        %v2004 = vadd.f32 %v1790, %v2003
        %v2005 = vpop.f32.mrf.mxu0
        %v2006 = vadd.f32 %v1790, %v2005
        %2007 = vmatmul.bf16.gmra.mxu0 %v1742
        %v2008 = vpop.f32.mrf.mxu0
        %v2009 = vadd.f32 %v1790, %v2008
        %v2010 = vpop.f32.mrf.mxu0
        %v2011 = vadd.f32 %v1790, %v2010
        %2012 = vmatmul.bf16.gmra.mxu0 %v1744
        %v2013 = vpop.f32.mrf.mxu0
        %v2014 = vadd.f32 %v1790, %v2013
        %v2015 = vpop.f32.mrf.mxu0
        %v2016 = vadd.f32 %v1790, %v2015
        %2017 = vmatmul.bf16.gmra.mxu0 %v1746
        %v2018 = vpop.f32.mrf.mxu0
        %v2019 = vadd.f32 %v1790, %v2018
        %v2020 = vpop.f32.mrf.mxu0
        %v2021 = vadd.f32 %v1790, %v2020
        %2022 = vmatmul.bf16.gmra.mxu0 %v1748
        %v2023 = vpop.f32.mrf.mxu0
        %v2024 = vadd.f32 %v1790, %v2023
        %v2025 = vpop.f32.mrf.mxu0
        %v2026 = vadd.f32 %v1790, %v2025
        %2027 = vmatmul.bf16.gmra.mxu0 %v1750
        %v2028 = vpop.f32.mrf.mxu0
        %v2029 = vadd.f32 %v1790, %v2028
        %v2030 = vpop.f32.mrf.mxu0
        %v2031 = vadd.f32 %v1790, %v2030
        %2032 = vmatmul.bf16.gmra.mxu0 %v1752
        %v2033 = vpop.f32.mrf.mxu0
        %v2034 = vadd.f32 %v1790, %v2033
        %v2035 = vpop.f32.mrf.mxu0
        %v2036 = vadd.f32 %v1790, %v2035
        %2037 = vmatmul.bf16.gmra.mxu0 %v1754
        %v2038 = vpop.f32.mrf.mxu0
        %v2039 = vadd.f32 %v1790, %v2038
        %v2040 = vpop.f32.mrf.mxu0
        %v2041 = vadd.f32 %v1790, %v2040
        %2042 = vdwg.mxu0
        %2043 = vmatpush.bf16.msra.mxu0 %v1920
        %2044 = vmatpush.bf16.msra.mxu0 %v1918
        %2045 = vmatpush.bf16.msra.mxu0 %v1916
        %2046 = vmatpush.bf16.msra.mxu0 %v1914
        %2047 = vmatpush.bf16.msra.mxu0 %v1912
        %2048 = vmatpush.bf16.msra.mxu0 %v1910
        %2049 = vmatpush.bf16.msra.mxu0 %v1908
        %2050 = vmatpush.bf16.msra.mxu0 %v1906
        %2051 = vmatmul.bf16.gmra.mxu0 %v1725
        %v2052 = vpop.f32.mrf.mxu0
        %v2053 = vadd.f32 %v1964, %v2052
        %v2054 = vpop.f32.mrf.mxu0
        %v2055 = vadd.f32 %v1966, %v2054
        %2056 = vmatmul.bf16.gmra.mxu0 %v1727
        %v2057 = vpop.f32.mrf.mxu0
        %v2058 = vadd.f32 %v1969, %v2057
        %v2059 = vpop.f32.mrf.mxu0
        %v2060 = vadd.f32 %v1971, %v2059
        %2061 = vmatmul.bf16.gmra.mxu0 %v1729
        %v2062 = vpop.f32.mrf.mxu0
        %v2063 = vadd.f32 %v1974, %v2062
        %v2064 = vpop.f32.mrf.mxu0
        %v2065 = vadd.f32 %v1976, %v2064
        %2066 = vmatmul.bf16.gmra.mxu0 %v1731
        %v2067 = vpop.f32.mrf.mxu0
        %v2068 = vadd.f32 %v1979, %v2067
        %v2069 = vpop.f32.mrf.mxu0
        %v2070 = vadd.f32 %v1981, %v2069
        %2071 = vmatmul.bf16.gmra.mxu0 %v1733
        %v2072 = vpop.f32.mrf.mxu0
        %v2073 = vadd.f32 %v1984, %v2072
        %v2074 = vpop.f32.mrf.mxu0
        %v2075 = vadd.f32 %v1986, %v2074
        %2076 = vmatmul.bf16.gmra.mxu0 %v1735
        %v2077 = vpop.f32.mrf.mxu0
        %v2078 = vadd.f32 %v1989, %v2077
        %v2079 = vpop.f32.mrf.mxu0
        %v2080 = vadd.f32 %v1991, %v2079
        %2081 = vmatmul.bf16.gmra.mxu0 %v1737
        %v2082 = vpop.f32.mrf.mxu0
        %v2083 = vadd.f32 %v1994, %v2082
        %v2084 = vpop.f32.mrf.mxu0
        %v2085 = vadd.f32 %v1996, %v2084
        %2086 = vmatmul.bf16.gmra.mxu0 %v1739
        %v2087 = vpop.f32.mrf.mxu0
        %v2088 = vadd.f32 %v1999, %v2087
        %v2089 = vpop.f32.mrf.mxu0
        %v2090 = vadd.f32 %v2001, %v2089
        %2091 = vmatmul.bf16.gmra.mxu0 %v1741
        %v2092 = vpop.f32.mrf.mxu0
        %v2093 = vadd.f32 %v2004, %v2092
        %v2094 = vpop.f32.mrf.mxu0
        %v2095 = vadd.f32 %v2006, %v2094
        %2096 = vmatmul.bf16.gmra.mxu0 %v1743
        %v2097 = vpop.f32.mrf.mxu0
        %v2098 = vadd.f32 %v2009, %v2097
        %v2099 = vpop.f32.mrf.mxu0
        %v2100 = vadd.f32 %v2011, %v2099
        %2101 = vmatmul.bf16.gmra.mxu0 %v1745
        %v2102 = vpop.f32.mrf.mxu0
        %v2103 = vadd.f32 %v2014, %v2102
        %v2104 = vpop.f32.mrf.mxu0
        %v2105 = vadd.f32 %v2016, %v2104
        %2106 = vmatmul.bf16.gmra.mxu0 %v1747
        %v2107 = vpop.f32.mrf.mxu0
        %v2108 = vadd.f32 %v2019, %v2107
        %v2109 = vpop.f32.mrf.mxu0
        %v2110 = vadd.f32 %v2021, %v2109
        %2111 = vmatmul.bf16.gmra.mxu0 %v1749
        %v2112 = vpop.f32.mrf.mxu0
        %v2113 = vadd.f32 %v2024, %v2112
        %v2114 = vpop.f32.mrf.mxu0
        %v2115 = vadd.f32 %v2026, %v2114
        %2116 = vmatmul.bf16.gmra.mxu0 %v1751
        %v2117 = vpop.f32.mrf.mxu0
        %v2118 = vadd.f32 %v2029, %v2117
        %v2119 = vpop.f32.mrf.mxu0
        %v2120 = vadd.f32 %v2031, %v2119
        %2121 = vmatmul.bf16.gmra.mxu0 %v1753
        %v2122 = vpop.f32.mrf.mxu0
        %v2123 = vadd.f32 %v2034, %v2122
        %v2124 = vpop.f32.mrf.mxu0
        %v2125 = vadd.f32 %v2036, %v2124
        %2126 = vmatmul.bf16.gmra.mxu0 %v1755
        %v2127 = vpop.f32.mrf.mxu0
        %v2128 = vadd.f32 %v2039, %v2127
        %v2129 = vpop.f32.mrf.mxu0
        %v2130 = vadd.f32 %v2041, %v2129
        %2131 = vdwg.mxu0
        %2132 = vmatpush.bf16.msra.mxu0 %v1905
        %2133 = vmatpush.bf16.msra.mxu0 %v1903
        %2134 = vmatpush.bf16.msra.mxu0 %v1901
        %2135 = vmatpush.bf16.msra.mxu0 %v1899
        %2136 = vmatpush.bf16.msra.mxu0 %v1897
        %2137 = vmatpush.bf16.msra.mxu0 %v1895
        %2138 = vmatpush.bf16.msra.mxu0 %v1893
        %2139 = vmatpush.bf16.msra.mxu0 %v1891
        %2140 = vmatmul.bf16.gmra.mxu0 %v1724
        %v2141 = vpop.f32.mrf.mxu0
        %v2142 = vadd.f32 %v1791, %v2141
        %v2143 = vpop.f32.mrf.mxu0
        %v2144 = vadd.f32 %v1791, %v2143
        %2145 = vmatmul.bf16.gmra.mxu0 %v1726
        %v2146 = vpop.f32.mrf.mxu0
        %v2147 = vadd.f32 %v1791, %v2146
        %v2148 = vpop.f32.mrf.mxu0
        %v2149 = vadd.f32 %v1791, %v2148
        %2150 = vmatmul.bf16.gmra.mxu0 %v1728
        %v2151 = vpop.f32.mrf.mxu0
        %v2152 = vadd.f32 %v1791, %v2151
        %v2153 = vpop.f32.mrf.mxu0
        %v2154 = vadd.f32 %v1791, %v2153
        %2155 = vmatmul.bf16.gmra.mxu0 %v1730
        %v2156 = vpop.f32.mrf.mxu0
        %v2157 = vadd.f32 %v1791, %v2156
        %v2158 = vpop.f32.mrf.mxu0
        %v2159 = vadd.f32 %v1791, %v2158
        %2160 = vmatmul.bf16.gmra.mxu0 %v1732
        %v2161 = vpop.f32.mrf.mxu0
        %v2162 = vadd.f32 %v1791, %v2161
        %v2163 = vpop.f32.mrf.mxu0
        %v2164 = vadd.f32 %v1791, %v2163
        %2165 = vmatmul.bf16.gmra.mxu0 %v1734
        %v2166 = vpop.f32.mrf.mxu0
        %v2167 = vadd.f32 %v1791, %v2166
        %v2168 = vpop.f32.mrf.mxu0
        %v2169 = vadd.f32 %v1791, %v2168
        %2170 = vmatmul.bf16.gmra.mxu0 %v1736
        %v2171 = vpop.f32.mrf.mxu0
        %v2172 = vadd.f32 %v1791, %v2171
        %v2173 = vpop.f32.mrf.mxu0
        %v2174 = vadd.f32 %v1791, %v2173
        %2175 = vmatmul.bf16.gmra.mxu0 %v1738
        %v2176 = vpop.f32.mrf.mxu0
        %v2177 = vadd.f32 %v1791, %v2176
        %v2178 = vpop.f32.mrf.mxu0
        %v2179 = vadd.f32 %v1791, %v2178
        %2180 = vmatmul.bf16.gmra.mxu0 %v1740
        %v2181 = vpop.f32.mrf.mxu0
        %v2182 = vadd.f32 %v1791, %v2181
        %v2183 = vpop.f32.mrf.mxu0
        %v2184 = vadd.f32 %v1791, %v2183
        %2185 = vmatmul.bf16.gmra.mxu0 %v1742
        %v2186 = vpop.f32.mrf.mxu0
        %v2187 = vadd.f32 %v1791, %v2186
        %v2188 = vpop.f32.mrf.mxu0
        %v2189 = vadd.f32 %v1791, %v2188
        %2190 = vmatmul.bf16.gmra.mxu0 %v1744
        %v2191 = vpop.f32.mrf.mxu0
        %v2192 = vadd.f32 %v1791, %v2191
        %v2193 = vpop.f32.mrf.mxu0
        %v2194 = vadd.f32 %v1791, %v2193
        %2195 = vmatmul.bf16.gmra.mxu0 %v1746
        %v2196 = vpop.f32.mrf.mxu0
        %v2197 = vadd.f32 %v1791, %v2196
        %v2198 = vpop.f32.mrf.mxu0
        %v2199 = vadd.f32 %v1791, %v2198
        %2200 = vmatmul.bf16.gmra.mxu0 %v1748
        %v2201 = vpop.f32.mrf.mxu0
        %v2202 = vadd.f32 %v1791, %v2201
        %v2203 = vpop.f32.mrf.mxu0
        %v2204 = vadd.f32 %v1791, %v2203
        %2205 = vmatmul.bf16.gmra.mxu0 %v1750
        %v2206 = vpop.f32.mrf.mxu0
        %v2207 = vadd.f32 %v1791, %v2206
        %v2208 = vpop.f32.mrf.mxu0
        %v2209 = vadd.f32 %v1791, %v2208
        %2210 = vmatmul.bf16.gmra.mxu0 %v1752
        %v2211 = vpop.f32.mrf.mxu0
        %v2212 = vadd.f32 %v1791, %v2211
        %v2213 = vpop.f32.mrf.mxu0
        %v2214 = vadd.f32 %v1791, %v2213
        %2215 = vmatmul.bf16.gmra.mxu0 %v1754
        %v2216 = vpop.f32.mrf.mxu0
        %v2217 = vadd.f32 %v1791, %v2216
        %v2218 = vpop.f32.mrf.mxu0
        %v2219 = vadd.f32 %v1791, %v2218
        %2220 = vdwg.mxu0
        %2221 = vmatpush.bf16.msra.mxu0 %v1921
        %2222 = vmatpush.bf16.msra.mxu0 %v1919
        %2223 = vmatpush.bf16.msra.mxu0 %v1917
        %2224 = vmatpush.bf16.msra.mxu0 %v1915
        %2225 = vmatpush.bf16.msra.mxu0 %v1913
        %2226 = vmatpush.bf16.msra.mxu0 %v1911
        %2227 = vmatpush.bf16.msra.mxu0 %v1909
        %2228 = vmatpush.bf16.msra.mxu0 %v1907
        %2229 = vmatmul.bf16.gmra.mxu0 %v1725
        %v2230 = vpop.f32.mrf.mxu0
        %v2231 = vadd.f32 %v2142, %v2230
        %v2232 = vpop.f32.mrf.mxu0
        %v2233 = vadd.f32 %v2144, %v2232
        %2234 = vmatmul.bf16.gmra.mxu0 %v1727
        %v2235 = vpop.f32.mrf.mxu0
        %v2236 = vadd.f32 %v2147, %v2235
        %v2237 = vpop.f32.mrf.mxu0
        %v2238 = vadd.f32 %v2149, %v2237
        %2239 = vmatmul.bf16.gmra.mxu0 %v1729
        %v2240 = vpop.f32.mrf.mxu0
        %v2241 = vadd.f32 %v2152, %v2240
        %v2242 = vpop.f32.mrf.mxu0
        %v2243 = vadd.f32 %v2154, %v2242
        %2244 = vmatmul.bf16.gmra.mxu0 %v1731
        %v2245 = vpop.f32.mrf.mxu0
        %v2246 = vadd.f32 %v2157, %v2245
        %v2247 = vpop.f32.mrf.mxu0
        %v2248 = vadd.f32 %v2159, %v2247
        %2249 = vmatmul.bf16.gmra.mxu0 %v1733
        %v2250 = vpop.f32.mrf.mxu0
        %v2251 = vadd.f32 %v2162, %v2250
        %v2252 = vpop.f32.mrf.mxu0
        %v2253 = vadd.f32 %v2164, %v2252
        %2254 = vmatmul.bf16.gmra.mxu0 %v1735
        %v2255 = vpop.f32.mrf.mxu0
        %v2256 = vadd.f32 %v2167, %v2255
        %v2257 = vpop.f32.mrf.mxu0
        %v2258 = vadd.f32 %v2169, %v2257
        %2259 = vmatmul.bf16.gmra.mxu0 %v1737
        %v2260 = vpop.f32.mrf.mxu0
        %v2261 = vadd.f32 %v2172, %v2260
        %v2262 = vpop.f32.mrf.mxu0
        %v2263 = vadd.f32 %v2174, %v2262
        %2264 = vmatmul.bf16.gmra.mxu0 %v1739
        %v2265 = vpop.f32.mrf.mxu0
        %v2266 = vadd.f32 %v2177, %v2265
        %v2267 = vpop.f32.mrf.mxu0
        %v2268 = vadd.f32 %v2179, %v2267
        %2269 = vmatmul.bf16.gmra.mxu0 %v1741
        %v2270 = vpop.f32.mrf.mxu0
        %v2271 = vadd.f32 %v2182, %v2270
        %v2272 = vpop.f32.mrf.mxu0
        %v2273 = vadd.f32 %v2184, %v2272
        %2274 = vmatmul.bf16.gmra.mxu0 %v1743
        %v2275 = vpop.f32.mrf.mxu0
        %v2276 = vadd.f32 %v2187, %v2275
        %v2277 = vpop.f32.mrf.mxu0
        %v2278 = vadd.f32 %v2189, %v2277
        %2279 = vmatmul.bf16.gmra.mxu0 %v1745
        %v2280 = vpop.f32.mrf.mxu0
        %v2281 = vadd.f32 %v2192, %v2280
        %v2282 = vpop.f32.mrf.mxu0
        %v2283 = vadd.f32 %v2194, %v2282
        %2284 = vmatmul.bf16.gmra.mxu0 %v1747
        %v2285 = vpop.f32.mrf.mxu0
        %v2286 = vadd.f32 %v2197, %v2285
        %v2287 = vpop.f32.mrf.mxu0
        %v2288 = vadd.f32 %v2199, %v2287
        %2289 = vmatmul.bf16.gmra.mxu0 %v1749
        %v2290 = vpop.f32.mrf.mxu0
        %v2291 = vadd.f32 %v2202, %v2290
        %v2292 = vpop.f32.mrf.mxu0
        %v2293 = vadd.f32 %v2204, %v2292
        %2294 = vmatmul.bf16.gmra.mxu0 %v1751
        %v2295 = vpop.f32.mrf.mxu0
        %v2296 = vadd.f32 %v2207, %v2295
        %v2297 = vpop.f32.mrf.mxu0
        %v2298 = vadd.f32 %v2209, %v2297
        %2299 = vmatmul.bf16.gmra.mxu0 %v1753
        %v2300 = vpop.f32.mrf.mxu0
        %v2301 = vadd.f32 %v2212, %v2300
        %v2302 = vpop.f32.mrf.mxu0
        %v2303 = vadd.f32 %v2214, %v2302
        %2304 = vmatmul.bf16.gmra.mxu0 %v1755
        %v2305 = vpop.f32.mrf.mxu0
        %v2306 = vadd.f32 %v2217, %v2305
        %v2307 = vpop.f32.mrf.mxu0
        %v2308 = vadd.f32 %v2219, %v2307
        %2309 = vdwg.mxu0
        %v2310 = vmax.f32 %v2053, 0.0
        %v2311 = vmax.f32 %v2231, 0.0
        %v2312 = vmax.f32 %v2055, 0.0
        %v2313 = vmax.f32 %v2233, 0.0
        %v2314 = vmax.f32 %v2058, 0.0
        %v2315 = vmax.f32 %v2236, 0.0
        %v2316 = vmax.f32 %v2060, 0.0
        %v2317 = vmax.f32 %v2238, 0.0
        %v2318 = vmax.f32 %v2063, 0.0
        %v2319 = vmax.f32 %v2241, 0.0
        %v2320 = vmax.f32 %v2065, 0.0
        %v2321 = vmax.f32 %v2243, 0.0
        %v2322 = vmax.f32 %v2068, 0.0
        %v2323 = vmax.f32 %v2246, 0.0
        %v2324 = vmax.f32 %v2070, 0.0
        %v2325 = vmax.f32 %v2248, 0.0
        %v2326 = vmax.f32 %v2073, 0.0
        %v2327 = vmax.f32 %v2251, 0.0
        %v2328 = vmax.f32 %v2075, 0.0
        %v2329 = vmax.f32 %v2253, 0.0
        %v2330 = vmax.f32 %v2078, 0.0
        %v2331 = vmax.f32 %v2256, 0.0
        %v2332 = vmax.f32 %v2080, 0.0
        %v2333 = vmax.f32 %v2258, 0.0
        %v2334 = vmax.f32 %v2083, 0.0
        %v2335 = vmax.f32 %v2261, 0.0
        %v2336 = vmax.f32 %v2085, 0.0
        %v2337 = vmax.f32 %v2263, 0.0
        %v2338 = vmax.f32 %v2088, 0.0
        %v2339 = vmax.f32 %v2266, 0.0
        %v2340 = vmax.f32 %v2090, 0.0
        %v2341 = vmax.f32 %v2268, 0.0
        %v2342 = vmax.f32 %v2093, 0.0
        %v2343 = vmax.f32 %v2271, 0.0
        %v2344 = vmax.f32 %v2095, 0.0
        %v2345 = vmax.f32 %v2273, 0.0
        %v2346 = vmax.f32 %v2098, 0.0
        %v2347 = vmax.f32 %v2276, 0.0
        %v2348 = vmax.f32 %v2100, 0.0
        %v2349 = vmax.f32 %v2278, 0.0
        %v2350 = vmax.f32 %v2103, 0.0
        %v2351 = vmax.f32 %v2281, 0.0
        %v2352 = vmax.f32 %v2105, 0.0
        %v2353 = vmax.f32 %v2283, 0.0
        %v2354 = vmax.f32 %v2108, 0.0
        %v2355 = vmax.f32 %v2286, 0.0
        %v2356 = vmax.f32 %v2110, 0.0
        %v2357 = vmax.f32 %v2288, 0.0
        %v2358 = vmax.f32 %v2113, 0.0
        %v2359 = vmax.f32 %v2291, 0.0
        %v2360 = vmax.f32 %v2115, 0.0
        %v2361 = vmax.f32 %v2293, 0.0
        %v2362 = vmax.f32 %v2118, 0.0
        %v2363 = vmax.f32 %v2296, 0.0
        %v2364 = vmax.f32 %v2120, 0.0
        %v2365 = vmax.f32 %v2298, 0.0
        %v2366 = vmax.f32 %v2123, 0.0
        %v2367 = vmax.f32 %v2301, 0.0
        %v2368 = vmax.f32 %v2125, 0.0
        %v2369 = vmax.f32 %v2303, 0.0
        %v2370 = vmax.f32 %v2128, 0.0
        %v2371 = vmax.f32 %v2306, 0.0
        %v2372 = vmax.f32 %v2130, 0.0
        %v2373 = vmax.f32 %v2308, 0.0
        %v2374 = vpack.c.bf16 %v2312, %v2310
        %v2375 = vpack.c.bf16 %v2313, %v2311
        %v2376 = vpack.c.bf16 %v2316, %v2314
        %v2377 = vpack.c.bf16 %v2317, %v2315
        %v2378 = vpack.c.bf16 %v2320, %v2318
        %v2379 = vpack.c.bf16 %v2321, %v2319
        %v2380 = vpack.c.bf16 %v2324, %v2322
        %v2381 = vpack.c.bf16 %v2325, %v2323
        %v2382 = vpack.c.bf16 %v2328, %v2326
        %v2383 = vpack.c.bf16 %v2329, %v2327
        %v2384 = vpack.c.bf16 %v2332, %v2330
        %v2385 = vpack.c.bf16 %v2333, %v2331
        %v2386 = vpack.c.bf16 %v2336, %v2334
        %v2387 = vpack.c.bf16 %v2337, %v2335
        %v2388 = vpack.c.bf16 %v2340, %v2338
        %v2389 = vpack.c.bf16 %v2341, %v2339
        %v2390 = vpack.c.bf16 %v2344, %v2342
        %v2391 = vpack.c.bf16 %v2345, %v2343
        %v2392 = vpack.c.bf16 %v2348, %v2346
        %v2393 = vpack.c.bf16 %v2349, %v2347
        %v2394 = vpack.c.bf16 %v2352, %v2350
        %v2395 = vpack.c.bf16 %v2353, %v2351
        %v2396 = vpack.c.bf16 %v2356, %v2354
        %v2397 = vpack.c.bf16 %v2357, %v2355
        %v2398 = vpack.c.bf16 %v2360, %v2358
        %v2399 = vpack.c.bf16 %v2361, %v2359
        %v2400 = vpack.c.bf16 %v2364, %v2362
        %v2401 = vpack.c.bf16 %v2365, %v2363
        %v2402 = vpack.c.bf16 %v2368, %v2366
        %v2403 = vpack.c.bf16 %v2369, %v2367
        %v2404 = vpack.c.bf16 %v2372, %v2370
        %v2405 = vpack.c.bf16 %v2373, %v2371
        %v2406 = vld [vmem:[#allocation10] sm:$0xff]
        %v2407 = vld [vmem:[#allocation10 + $0x8] sm:$0xff]
        %v2408 = vld [vmem:[#allocation10 + $0x10] sm:$0xff]
        %v2409 = vld [vmem:[#allocation10 + $0x18] sm:$0xff]
        %v2410 = vld [vmem:[#allocation10 + $0x20] sm:$0xff]
        %v2411 = vld [vmem:[#allocation10 + $0x28] sm:$0xff]
        %v2412 = vld [vmem:[#allocation10 + $0x30] sm:$0xff]
        %v2413 = vld [vmem:[#allocation10 + $0x38] sm:$0xff]
        %v2414 = vld [vmem:[#allocation10 + $0x40] sm:$0xff]
        %v2415 = vld [vmem:[#allocation10 + $0x48] sm:$0xff]
        %v2416 = vld [vmem:[#allocation10 + $0x50] sm:$0xff]
        %v2417 = vld [vmem:[#allocation10 + $0x58] sm:$0xff]
        %v2418 = vld [vmem:[#allocation10 + $0x60] sm:$0xff]
        %v2419 = vld [vmem:[#allocation10 + $0x68] sm:$0xff]
        %v2420 = vld [vmem:[#allocation10 + $0x70] sm:$0xff]
        %v2421 = vld [vmem:[#allocation10 + $0x78] sm:$0xff]
        %v2422 = vld [vmem:[#allocation10 + $0x80] sm:$0xff]
        %v2423 = vld [vmem:[#allocation10 + $0x88] sm:$0xff]
        %v2424 = vld [vmem:[#allocation10 + $0x90] sm:$0xff]
        %v2425 = vld [vmem:[#allocation10 + $0x98] sm:$0xff]
        %v2426 = vld [vmem:[#allocation10 + $0xa0] sm:$0xff]
        %v2427 = vld [vmem:[#allocation10 + $0xa8] sm:$0xff]
        %v2428 = vld [vmem:[#allocation10 + $0xb0] sm:$0xff]
        %v2429 = vld [vmem:[#allocation10 + $0xb8] sm:$0xff]
        %v2430 = vld [vmem:[#allocation10 + $0xc0] sm:$0xff]
        %v2431 = vld [vmem:[#allocation10 + $0xc8] sm:$0xff]
        %v2432 = vld [vmem:[#allocation10 + $0xd0] sm:$0xff]
        %v2433 = vld [vmem:[#allocation10 + $0xd8] sm:$0xff]
        %v2434 = vld [vmem:[#allocation10 + $0xe0] sm:$0xff]
        %v2435 = vld [vmem:[#allocation10 + $0xe8] sm:$0xff]
        %v2436 = vld [vmem:[#allocation10 + $0xf0] sm:$0xff]
        %v2437 = vld [vmem:[#allocation10 + $0xf8] sm:$0xff]
        %v2438 = vld [vmem:[%s6] sm:$0x3]
        %v2440 = vperm.slane %v2438, 0
        %v2441 = vperm.slane %v2438, 1
        %v2476 = vunpack.c.l.b16 %v2406
        %v2477 = vunpack.c.h.b16 %v2406
        %v2478 = vunpack.c.l.b16 %v2407
        %v2479 = vunpack.c.h.b16 %v2407
        %v2480 = vunpack.c.l.b16 %v2408
        %v2481 = vunpack.c.h.b16 %v2408
        %v2482 = vunpack.c.l.b16 %v2409
        %v2483 = vunpack.c.h.b16 %v2409
        %v2484 = vunpack.c.l.b16 %v2410
        %v2485 = vunpack.c.h.b16 %v2410
        %v2486 = vunpack.c.l.b16 %v2411
        %v2487 = vunpack.c.h.b16 %v2411
        %v2488 = vunpack.c.l.b16 %v2412
        %v2489 = vunpack.c.h.b16 %v2412
        %v2490 = vunpack.c.l.b16 %v2413
        %v2491 = vunpack.c.h.b16 %v2413
        %v2492 = vunpack.c.l.b16 %v2414
        %v2493 = vunpack.c.h.b16 %v2414
        %v2494 = vunpack.c.l.b16 %v2415
        %v2495 = vunpack.c.h.b16 %v2415
        %v2496 = vunpack.c.l.b16 %v2416
        %v2497 = vunpack.c.h.b16 %v2416
        %v2498 = vunpack.c.l.b16 %v2417
        %v2499 = vunpack.c.h.b16 %v2417
        %v2500 = vunpack.c.l.b16 %v2418
        %v2501 = vunpack.c.h.b16 %v2418
        %v2502 = vunpack.c.l.b16 %v2419
        %v2503 = vunpack.c.h.b16 %v2419
        %v2504 = vunpack.c.l.b16 %v2420
        %v2505 = vunpack.c.h.b16 %v2420
        %v2506 = vunpack.c.l.b16 %v2421
        %v2507 = vunpack.c.h.b16 %v2421
        %v2508 = vunpack.c.l.b16 %v2422
        %v2509 = vunpack.c.h.b16 %v2422
        %v2510 = vunpack.c.l.b16 %v2423
        %v2511 = vunpack.c.h.b16 %v2423
        %v2512 = vunpack.c.l.b16 %v2424
        %v2513 = vunpack.c.h.b16 %v2424
        %v2514 = vunpack.c.l.b16 %v2425
        %v2515 = vunpack.c.h.b16 %v2425
        %v2516 = vunpack.c.l.b16 %v2426
        %v2517 = vunpack.c.h.b16 %v2426
        %v2518 = vunpack.c.l.b16 %v2427
        %v2519 = vunpack.c.h.b16 %v2427
        %v2520 = vunpack.c.l.b16 %v2428
        %v2521 = vunpack.c.h.b16 %v2428
        %v2522 = vunpack.c.l.b16 %v2429
        %v2523 = vunpack.c.h.b16 %v2429
        %v2524 = vunpack.c.l.b16 %v2430
        %v2525 = vunpack.c.h.b16 %v2430
        %v2526 = vunpack.c.l.b16 %v2431
        %v2527 = vunpack.c.h.b16 %v2431
        %v2528 = vunpack.c.l.b16 %v2432
        %v2529 = vunpack.c.h.b16 %v2432
        %v2530 = vunpack.c.l.b16 %v2433
        %v2531 = vunpack.c.h.b16 %v2433
        %v2532 = vunpack.c.l.b16 %v2434
        %v2533 = vunpack.c.h.b16 %v2434
        %v2534 = vunpack.c.l.b16 %v2435
        %v2535 = vunpack.c.h.b16 %v2435
        %v2536 = vunpack.c.l.b16 %v2436
        %v2537 = vunpack.c.h.b16 %v2436
        %v2538 = vunpack.c.l.b16 %v2437
        %v2539 = vunpack.c.h.b16 %v2437
        %v2540 = vpack.c.b16 %v2478, %v2476
        %v2541 = vpack.c.b16 %v2479, %v2477
        %v2542 = vpack.c.b16 %v2482, %v2480
        %v2543 = vpack.c.b16 %v2483, %v2481
        %v2544 = vpack.c.b16 %v2486, %v2484
        %v2545 = vpack.c.b16 %v2487, %v2485
        %v2546 = vpack.c.b16 %v2490, %v2488
        %v2547 = vpack.c.b16 %v2491, %v2489
        %v2548 = vpack.c.b16 %v2494, %v2492
        %v2549 = vpack.c.b16 %v2495, %v2493
        %v2550 = vpack.c.b16 %v2498, %v2496
        %v2551 = vpack.c.b16 %v2499, %v2497
        %v2552 = vpack.c.b16 %v2502, %v2500
        %v2553 = vpack.c.b16 %v2503, %v2501
        %v2554 = vpack.c.b16 %v2506, %v2504
        %v2555 = vpack.c.b16 %v2507, %v2505
        %v2556 = vpack.c.b16 %v2510, %v2508
        %v2557 = vpack.c.b16 %v2511, %v2509
        %v2558 = vpack.c.b16 %v2514, %v2512
        %v2559 = vpack.c.b16 %v2515, %v2513
        %v2560 = vpack.c.b16 %v2518, %v2516
        %v2561 = vpack.c.b16 %v2519, %v2517
        %v2562 = vpack.c.b16 %v2522, %v2520
        %v2563 = vpack.c.b16 %v2523, %v2521
        %v2564 = vpack.c.b16 %v2526, %v2524
        %v2565 = vpack.c.b16 %v2527, %v2525
        %v2566 = vpack.c.b16 %v2530, %v2528
        %v2567 = vpack.c.b16 %v2531, %v2529
        %v2568 = vpack.c.b16 %v2534, %v2532
        %v2569 = vpack.c.b16 %v2535, %v2533
        %v2570 = vpack.c.b16 %v2538, %v2536
        %v2571 = vpack.c.b16 %v2539, %v2537
        %2604 = vmatpush.bf16.msra.mxu0 %v2554
        %2605 = vmatpush.bf16.msra.mxu0 %v2552
        %2606 = vmatpush.bf16.msra.mxu0 %v2550
        %2607 = vmatpush.bf16.msra.mxu0 %v2548
        %2608 = vmatpush.bf16.msra.mxu0 %v2546
        %2609 = vmatpush.bf16.msra.mxu0 %v2544
        %2610 = vmatpush.bf16.msra.mxu0 %v2542
        %2611 = vmatpush.bf16.msra.mxu0 %v2540
        %2612 = vmatmul.bf16.gmra.mxu0 %v2374
        %v2613 = vpop.f32.mrf.mxu0
        %v2614 = vadd.f32 %v2440, %v2613
        %v2615 = vpop.f32.mrf.mxu0
        %v2616 = vadd.f32 %v2440, %v2615
        %2617 = vmatmul.bf16.gmra.mxu0 %v2376
        %v2618 = vpop.f32.mrf.mxu0
        %v2619 = vadd.f32 %v2440, %v2618
        %v2620 = vpop.f32.mrf.mxu0
        %v2621 = vadd.f32 %v2440, %v2620
        %2622 = vmatmul.bf16.gmra.mxu0 %v2378
        %v2623 = vpop.f32.mrf.mxu0
        %v2624 = vadd.f32 %v2440, %v2623
        %v2625 = vpop.f32.mrf.mxu0
        %v2626 = vadd.f32 %v2440, %v2625
        %2627 = vmatmul.bf16.gmra.mxu0 %v2380
        %v2628 = vpop.f32.mrf.mxu0
        %v2629 = vadd.f32 %v2440, %v2628
        %v2630 = vpop.f32.mrf.mxu0
        %v2631 = vadd.f32 %v2440, %v2630
        %2632 = vmatmul.bf16.gmra.mxu0 %v2382
        %v2633 = vpop.f32.mrf.mxu0
        %v2634 = vadd.f32 %v2440, %v2633
        %v2635 = vpop.f32.mrf.mxu0
        %v2636 = vadd.f32 %v2440, %v2635
        %2637 = vmatmul.bf16.gmra.mxu0 %v2384
        %v2638 = vpop.f32.mrf.mxu0
        %v2639 = vadd.f32 %v2440, %v2638
        %v2640 = vpop.f32.mrf.mxu0
        %v2641 = vadd.f32 %v2440, %v2640
        %2642 = vmatmul.bf16.gmra.mxu0 %v2386
        %v2643 = vpop.f32.mrf.mxu0
        %v2644 = vadd.f32 %v2440, %v2643
        %v2645 = vpop.f32.mrf.mxu0
        %v2646 = vadd.f32 %v2440, %v2645
        %2647 = vmatmul.bf16.gmra.mxu0 %v2388
        %v2648 = vpop.f32.mrf.mxu0
        %v2649 = vadd.f32 %v2440, %v2648
        %v2650 = vpop.f32.mrf.mxu0
        %v2651 = vadd.f32 %v2440, %v2650
        %2652 = vmatmul.bf16.gmra.mxu0 %v2390
        %v2653 = vpop.f32.mrf.mxu0
        %v2654 = vadd.f32 %v2440, %v2653
        %v2655 = vpop.f32.mrf.mxu0
        %v2656 = vadd.f32 %v2440, %v2655
        %2657 = vmatmul.bf16.gmra.mxu0 %v2392
        %v2658 = vpop.f32.mrf.mxu0
        %v2659 = vadd.f32 %v2440, %v2658
        %v2660 = vpop.f32.mrf.mxu0
        %v2661 = vadd.f32 %v2440, %v2660
        %2662 = vmatmul.bf16.gmra.mxu0 %v2394
        %v2663 = vpop.f32.mrf.mxu0
        %v2664 = vadd.f32 %v2440, %v2663
        %v2665 = vpop.f32.mrf.mxu0
        %v2666 = vadd.f32 %v2440, %v2665
        %2667 = vmatmul.bf16.gmra.mxu0 %v2396
        %v2668 = vpop.f32.mrf.mxu0
        %v2669 = vadd.f32 %v2440, %v2668
        %v2670 = vpop.f32.mrf.mxu0
        %v2671 = vadd.f32 %v2440, %v2670
        %2672 = vmatmul.bf16.gmra.mxu0 %v2398
        %v2673 = vpop.f32.mrf.mxu0
        %v2674 = vadd.f32 %v2440, %v2673
        %v2675 = vpop.f32.mrf.mxu0
        %v2676 = vadd.f32 %v2440, %v2675
        %2677 = vmatmul.bf16.gmra.mxu0 %v2400
        %v2678 = vpop.f32.mrf.mxu0
        %v2679 = vadd.f32 %v2440, %v2678
        %v2680 = vpop.f32.mrf.mxu0
        %v2681 = vadd.f32 %v2440, %v2680
        %2682 = vmatmul.bf16.gmra.mxu0 %v2402
        %v2683 = vpop.f32.mrf.mxu0
        %v2684 = vadd.f32 %v2440, %v2683
        %v2685 = vpop.f32.mrf.mxu0
        %v2686 = vadd.f32 %v2440, %v2685
        %2687 = vmatmul.bf16.gmra.mxu0 %v2404
        %v2688 = vpop.f32.mrf.mxu0
        %v2689 = vadd.f32 %v2440, %v2688
        %v2690 = vpop.f32.mrf.mxu0
        %v2691 = vadd.f32 %v2440, %v2690
        %2692 = vdwg.mxu0
        %2693 = vmatpush.bf16.msra.mxu0 %v2570
        %2694 = vmatpush.bf16.msra.mxu0 %v2568
        %2695 = vmatpush.bf16.msra.mxu0 %v2566
        %2696 = vmatpush.bf16.msra.mxu0 %v2564
        %2697 = vmatpush.bf16.msra.mxu0 %v2562
        %2698 = vmatpush.bf16.msra.mxu0 %v2560
        %2699 = vmatpush.bf16.msra.mxu0 %v2558
        %2700 = vmatpush.bf16.msra.mxu0 %v2556
        %2701 = vmatmul.bf16.gmra.mxu0 %v2375
        %v2702 = vpop.f32.mrf.mxu0
        %v2703 = vadd.f32 %v2614, %v2702
        %v2704 = vpop.f32.mrf.mxu0
        %v2705 = vadd.f32 %v2616, %v2704
        %2706 = vmatmul.bf16.gmra.mxu0 %v2377
        %v2707 = vpop.f32.mrf.mxu0
        %v2708 = vadd.f32 %v2619, %v2707
        %v2709 = vpop.f32.mrf.mxu0
        %v2710 = vadd.f32 %v2621, %v2709
        %2711 = vmatmul.bf16.gmra.mxu0 %v2379
        %v2712 = vpop.f32.mrf.mxu0
        %v2713 = vadd.f32 %v2624, %v2712
        %v2714 = vpop.f32.mrf.mxu0
        %v2715 = vadd.f32 %v2626, %v2714
        %2716 = vmatmul.bf16.gmra.mxu0 %v2381
        %v2717 = vpop.f32.mrf.mxu0
        %v2718 = vadd.f32 %v2629, %v2717
        %v2719 = vpop.f32.mrf.mxu0
        %v2720 = vadd.f32 %v2631, %v2719
        %2721 = vmatmul.bf16.gmra.mxu0 %v2383
        %v2722 = vpop.f32.mrf.mxu0
        %v2723 = vadd.f32 %v2634, %v2722
        %v2724 = vpop.f32.mrf.mxu0
        %v2725 = vadd.f32 %v2636, %v2724
        %2726 = vmatmul.bf16.gmra.mxu0 %v2385
        %v2727 = vpop.f32.mrf.mxu0
        %v2728 = vadd.f32 %v2639, %v2727
        %v2729 = vpop.f32.mrf.mxu0
        %v2730 = vadd.f32 %v2641, %v2729
        %2731 = vmatmul.bf16.gmra.mxu0 %v2387
        %v2732 = vpop.f32.mrf.mxu0
        %v2733 = vadd.f32 %v2644, %v2732
        %v2734 = vpop.f32.mrf.mxu0
        %v2735 = vadd.f32 %v2646, %v2734
        %2736 = vmatmul.bf16.gmra.mxu0 %v2389
        %v2737 = vpop.f32.mrf.mxu0
        %v2738 = vadd.f32 %v2649, %v2737
        %v2739 = vpop.f32.mrf.mxu0
        %v2740 = vadd.f32 %v2651, %v2739
        %2741 = vmatmul.bf16.gmra.mxu0 %v2391
        %v2742 = vpop.f32.mrf.mxu0
        %v2743 = vadd.f32 %v2654, %v2742
        %v2744 = vpop.f32.mrf.mxu0
        %v2745 = vadd.f32 %v2656, %v2744
        %2746 = vmatmul.bf16.gmra.mxu0 %v2393
        %v2747 = vpop.f32.mrf.mxu0
        %v2748 = vadd.f32 %v2659, %v2747
        %v2749 = vpop.f32.mrf.mxu0
        %v2750 = vadd.f32 %v2661, %v2749
        %2751 = vmatmul.bf16.gmra.mxu0 %v2395
        %v2752 = vpop.f32.mrf.mxu0
        %v2753 = vadd.f32 %v2664, %v2752
        %v2754 = vpop.f32.mrf.mxu0
        %v2755 = vadd.f32 %v2666, %v2754
        %2756 = vmatmul.bf16.gmra.mxu0 %v2397
        %v2757 = vpop.f32.mrf.mxu0
        %v2758 = vadd.f32 %v2669, %v2757
        %v2759 = vpop.f32.mrf.mxu0
        %v2760 = vadd.f32 %v2671, %v2759
        %2761 = vmatmul.bf16.gmra.mxu0 %v2399
        %v2762 = vpop.f32.mrf.mxu0
        %v2763 = vadd.f32 %v2674, %v2762
        %v2764 = vpop.f32.mrf.mxu0
        %v2765 = vadd.f32 %v2676, %v2764
        %2766 = vmatmul.bf16.gmra.mxu0 %v2401
        %v2767 = vpop.f32.mrf.mxu0
        %v2768 = vadd.f32 %v2679, %v2767
        %v2769 = vpop.f32.mrf.mxu0
        %v2770 = vadd.f32 %v2681, %v2769
        %2771 = vmatmul.bf16.gmra.mxu0 %v2403
        %v2772 = vpop.f32.mrf.mxu0
        %v2773 = vadd.f32 %v2684, %v2772
        %v2774 = vpop.f32.mrf.mxu0
        %v2775 = vadd.f32 %v2686, %v2774
        %2776 = vmatmul.bf16.gmra.mxu0 %v2405
        %v2777 = vpop.f32.mrf.mxu0
        %v2778 = vadd.f32 %v2689, %v2777
        %v2779 = vpop.f32.mrf.mxu0
        %v2780 = vadd.f32 %v2691, %v2779
        %2781 = vdwg.mxu0
        %2782 = vmatpush.bf16.msra.mxu0 %v2555
        %2783 = vmatpush.bf16.msra.mxu0 %v2553
        %2784 = vmatpush.bf16.msra.mxu0 %v2551
        %2785 = vmatpush.bf16.msra.mxu0 %v2549
        %2786 = vmatpush.bf16.msra.mxu0 %v2547
        %2787 = vmatpush.bf16.msra.mxu0 %v2545
        %2788 = vmatpush.bf16.msra.mxu0 %v2543
        %2789 = vmatpush.bf16.msra.mxu0 %v2541
        %2790 = vmatmul.bf16.gmra.mxu0 %v2374
        %v2791 = vpop.f32.mrf.mxu0
        %v2792 = vadd.f32 %v2441, %v2791
        %v2793 = vpop.f32.mrf.mxu0
        %v2794 = vadd.f32 %v2441, %v2793
        %2795 = vmatmul.bf16.gmra.mxu0 %v2376
        %v2796 = vpop.f32.mrf.mxu0
        %v2797 = vadd.f32 %v2441, %v2796
        %v2798 = vpop.f32.mrf.mxu0
        %v2799 = vadd.f32 %v2441, %v2798
        %2800 = vmatmul.bf16.gmra.mxu0 %v2378
        %v2801 = vpop.f32.mrf.mxu0
        %v2802 = vadd.f32 %v2441, %v2801
        %v2803 = vpop.f32.mrf.mxu0
        %v2804 = vadd.f32 %v2441, %v2803
        %2805 = vmatmul.bf16.gmra.mxu0 %v2380
        %v2806 = vpop.f32.mrf.mxu0
        %v2807 = vadd.f32 %v2441, %v2806
        %v2808 = vpop.f32.mrf.mxu0
        %v2809 = vadd.f32 %v2441, %v2808
        %2810 = vmatmul.bf16.gmra.mxu0 %v2382
        %v2811 = vpop.f32.mrf.mxu0
        %v2812 = vadd.f32 %v2441, %v2811
        %v2813 = vpop.f32.mrf.mxu0
        %v2814 = vadd.f32 %v2441, %v2813
        %2815 = vmatmul.bf16.gmra.mxu0 %v2384
        %v2816 = vpop.f32.mrf.mxu0
        %v2817 = vadd.f32 %v2441, %v2816
        %v2818 = vpop.f32.mrf.mxu0
        %v2819 = vadd.f32 %v2441, %v2818
        %2820 = vmatmul.bf16.gmra.mxu0 %v2386
        %v2821 = vpop.f32.mrf.mxu0
        %v2822 = vadd.f32 %v2441, %v2821
        %v2823 = vpop.f32.mrf.mxu0
        %v2824 = vadd.f32 %v2441, %v2823
        %2825 = vmatmul.bf16.gmra.mxu0 %v2388
        %v2826 = vpop.f32.mrf.mxu0
        %v2827 = vadd.f32 %v2441, %v2826
        %v2828 = vpop.f32.mrf.mxu0
        %v2829 = vadd.f32 %v2441, %v2828
        %2830 = vmatmul.bf16.gmra.mxu0 %v2390
        %v2831 = vpop.f32.mrf.mxu0
        %v2832 = vadd.f32 %v2441, %v2831
        %v2833 = vpop.f32.mrf.mxu0
        %v2834 = vadd.f32 %v2441, %v2833
        %2835 = vmatmul.bf16.gmra.mxu0 %v2392
        %v2836 = vpop.f32.mrf.mxu0
        %v2837 = vadd.f32 %v2441, %v2836
        %v2838 = vpop.f32.mrf.mxu0
        %v2839 = vadd.f32 %v2441, %v2838
        %2840 = vmatmul.bf16.gmra.mxu0 %v2394
        %v2841 = vpop.f32.mrf.mxu0
        %v2842 = vadd.f32 %v2441, %v2841
        %v2843 = vpop.f32.mrf.mxu0
        %v2844 = vadd.f32 %v2441, %v2843
        %2845 = vmatmul.bf16.gmra.mxu0 %v2396
        %v2846 = vpop.f32.mrf.mxu0
        %v2847 = vadd.f32 %v2441, %v2846
        %v2848 = vpop.f32.mrf.mxu0
        %v2849 = vadd.f32 %v2441, %v2848
        %2850 = vmatmul.bf16.gmra.mxu0 %v2398
        %v2851 = vpop.f32.mrf.mxu0
        %v2852 = vadd.f32 %v2441, %v2851
        %v2853 = vpop.f32.mrf.mxu0
        %v2854 = vadd.f32 %v2441, %v2853
        %2855 = vmatmul.bf16.gmra.mxu0 %v2400
        %v2856 = vpop.f32.mrf.mxu0
        %v2857 = vadd.f32 %v2441, %v2856
        %v2858 = vpop.f32.mrf.mxu0
        %v2859 = vadd.f32 %v2441, %v2858
        %2860 = vmatmul.bf16.gmra.mxu0 %v2402
        %v2861 = vpop.f32.mrf.mxu0
        %v2862 = vadd.f32 %v2441, %v2861
        %v2863 = vpop.f32.mrf.mxu0
        %v2864 = vadd.f32 %v2441, %v2863
        %2865 = vmatmul.bf16.gmra.mxu0 %v2404
        %v2866 = vpop.f32.mrf.mxu0
        %v2867 = vadd.f32 %v2441, %v2866
        %v2868 = vpop.f32.mrf.mxu0
        %v2869 = vadd.f32 %v2441, %v2868
        %2870 = vdwg.mxu0
        %2871 = vmatpush.bf16.msra.mxu0 %v2571
        %2872 = vmatpush.bf16.msra.mxu0 %v2569
        %2873 = vmatpush.bf16.msra.mxu0 %v2567
        %2874 = vmatpush.bf16.msra.mxu0 %v2565
        %2875 = vmatpush.bf16.msra.mxu0 %v2563
        %2876 = vmatpush.bf16.msra.mxu0 %v2561
        %2877 = vmatpush.bf16.msra.mxu0 %v2559
        %2878 = vmatpush.bf16.msra.mxu0 %v2557
        %2879 = vmatmul.bf16.gmra.mxu0 %v2375
        %v2880 = vpop.f32.mrf.mxu0
        %v2881 = vadd.f32 %v2792, %v2880
        %v2882 = vpop.f32.mrf.mxu0
        %v2883 = vadd.f32 %v2794, %v2882
        %2884 = vmatmul.bf16.gmra.mxu0 %v2377
        %v2885 = vpop.f32.mrf.mxu0
        %v2886 = vadd.f32 %v2797, %v2885
        %v2887 = vpop.f32.mrf.mxu0
        %v2888 = vadd.f32 %v2799, %v2887
        %2889 = vmatmul.bf16.gmra.mxu0 %v2379
        %v2890 = vpop.f32.mrf.mxu0
        %v2891 = vadd.f32 %v2802, %v2890
        %v2892 = vpop.f32.mrf.mxu0
        %v2893 = vadd.f32 %v2804, %v2892
        %2894 = vmatmul.bf16.gmra.mxu0 %v2381
        %v2895 = vpop.f32.mrf.mxu0
        %v2896 = vadd.f32 %v2807, %v2895
        %v2897 = vpop.f32.mrf.mxu0
        %v2898 = vadd.f32 %v2809, %v2897
        %2899 = vmatmul.bf16.gmra.mxu0 %v2383
        %v2900 = vpop.f32.mrf.mxu0
        %v2901 = vadd.f32 %v2812, %v2900
        %v2902 = vpop.f32.mrf.mxu0
        %v2903 = vadd.f32 %v2814, %v2902
        %2904 = vmatmul.bf16.gmra.mxu0 %v2385
        %v2905 = vpop.f32.mrf.mxu0
        %v2906 = vadd.f32 %v2817, %v2905
        %v2907 = vpop.f32.mrf.mxu0
        %v2908 = vadd.f32 %v2819, %v2907
        %2909 = vmatmul.bf16.gmra.mxu0 %v2387
        %v2910 = vpop.f32.mrf.mxu0
        %v2911 = vadd.f32 %v2822, %v2910
        %v2912 = vpop.f32.mrf.mxu0
        %v2913 = vadd.f32 %v2824, %v2912
        %2914 = vmatmul.bf16.gmra.mxu0 %v2389
        %v2915 = vpop.f32.mrf.mxu0
        %v2916 = vadd.f32 %v2827, %v2915
        %v2917 = vpop.f32.mrf.mxu0
        %v2918 = vadd.f32 %v2829, %v2917
        %2919 = vmatmul.bf16.gmra.mxu0 %v2391
        %v2920 = vpop.f32.mrf.mxu0
        %v2921 = vadd.f32 %v2832, %v2920
        %v2922 = vpop.f32.mrf.mxu0
        %v2923 = vadd.f32 %v2834, %v2922
        %2924 = vmatmul.bf16.gmra.mxu0 %v2393
        %v2925 = vpop.f32.mrf.mxu0
        %v2926 = vadd.f32 %v2837, %v2925
        %v2927 = vpop.f32.mrf.mxu0
        %v2928 = vadd.f32 %v2839, %v2927
        %2929 = vmatmul.bf16.gmra.mxu0 %v2395
        %v2930 = vpop.f32.mrf.mxu0
        %v2931 = vadd.f32 %v2842, %v2930
        %v2932 = vpop.f32.mrf.mxu0
        %v2933 = vadd.f32 %v2844, %v2932
        %2934 = vmatmul.bf16.gmra.mxu0 %v2397
        %v2935 = vpop.f32.mrf.mxu0
        %v2936 = vadd.f32 %v2847, %v2935
        %v2937 = vpop.f32.mrf.mxu0
        %v2938 = vadd.f32 %v2849, %v2937
        %2939 = vmatmul.bf16.gmra.mxu0 %v2399
        %v2940 = vpop.f32.mrf.mxu0
        %v2941 = vadd.f32 %v2852, %v2940
        %v2942 = vpop.f32.mrf.mxu0
        %v2943 = vadd.f32 %v2854, %v2942
        %2944 = vmatmul.bf16.gmra.mxu0 %v2401
        %v2945 = vpop.f32.mrf.mxu0
        %v2946 = vadd.f32 %v2857, %v2945
        %v2947 = vpop.f32.mrf.mxu0
        %v2948 = vadd.f32 %v2859, %v2947
        %2949 = vmatmul.bf16.gmra.mxu0 %v2403
        %v2950 = vpop.f32.mrf.mxu0
        %v2951 = vadd.f32 %v2862, %v2950
        %v2952 = vpop.f32.mrf.mxu0
        %v2953 = vadd.f32 %v2864, %v2952
        %2954 = vmatmul.bf16.gmra.mxu0 %v2405
        %v2955 = vpop.f32.mrf.mxu0
        %v2956 = vadd.f32 %v2867, %v2955
        %v2957 = vpop.f32.mrf.mxu0
        %v2958 = vadd.f32 %v2869, %v2957
        %2959 = vdwg.mxu0
        %v2960 = vmax.f32 %v2703, %v2881
        %2961 = vmax.xlane.f32.xlu0 %v2960
        %v2962 = vpop.xlane.xlu0 %2961
        %v2963 = vmax.f32 %v2705, %v2883
        %2964 = vmax.xlane.f32.xlu0 %v2963
        %v2965 = vpop.xlane.xlu0 %2964
        %v2966 = vmax.f32 %v2708, %v2886
        %2967 = vmax.xlane.f32.xlu0 %v2966
        %v2968 = vpop.xlane.xlu0 %2967
        %v2969 = vmax.f32 %v2710, %v2888
        %2970 = vmax.xlane.f32.xlu0 %v2969
        %v2971 = vpop.xlane.xlu0 %2970
        %v2972 = vmax.f32 %v2713, %v2891
        %2973 = vmax.xlane.f32.xlu0 %v2972
        %v2974 = vpop.xlane.xlu0 %2973
        %v2975 = vmax.f32 %v2715, %v2893
        %2976 = vmax.xlane.f32.xlu0 %v2975
        %v2977 = vpop.xlane.xlu0 %2976
        %v2978 = vmax.f32 %v2718, %v2896
        %2979 = vmax.xlane.f32.xlu0 %v2978
        %v2980 = vpop.xlane.xlu0 %2979
        %v2981 = vmax.f32 %v2720, %v2898
        %2982 = vmax.xlane.f32.xlu0 %v2981
        %v2983 = vpop.xlane.xlu0 %2982
        %v2984 = vmax.f32 %v2723, %v2901
        %2985 = vmax.xlane.f32.xlu0 %v2984
        %v2986 = vpop.xlane.xlu0 %2985
        %v2987 = vmax.f32 %v2725, %v2903
        %2988 = vmax.xlane.f32.xlu0 %v2987
        %v2989 = vpop.xlane.xlu0 %2988
        %v2990 = vmax.f32 %v2728, %v2906
        %2991 = vmax.xlane.f32.xlu0 %v2990
        %v2992 = vpop.xlane.xlu0 %2991
        %v2993 = vmax.f32 %v2730, %v2908
        %2994 = vmax.xlane.f32.xlu0 %v2993
        %v2995 = vpop.xlane.xlu0 %2994
        %v2996 = vmax.f32 %v2733, %v2911
        %2997 = vmax.xlane.f32.xlu0 %v2996
        %v2998 = vpop.xlane.xlu0 %2997
        %v2999 = vmax.f32 %v2735, %v2913
        %3000 = vmax.xlane.f32.xlu0 %v2999
        %v3001 = vpop.xlane.xlu0 %3000
        %v3002 = vmax.f32 %v2738, %v2916
        %3003 = vmax.xlane.f32.xlu0 %v3002
        %v3004 = vpop.xlane.xlu0 %3003
        %v3005 = vmax.f32 %v2740, %v2918
        %3006 = vmax.xlane.f32.xlu0 %v3005
        %v3007 = vpop.xlane.xlu0 %3006
        %v3008 = vmax.f32 %v2743, %v2921
        %3009 = vmax.xlane.f32.xlu0 %v3008
        %v3010 = vpop.xlane.xlu0 %3009
        %v3011 = vmax.f32 %v2745, %v2923
        %3012 = vmax.xlane.f32.xlu0 %v3011
        %v3013 = vpop.xlane.xlu0 %3012
        %v3014 = vmax.f32 %v2748, %v2926
        %3015 = vmax.xlane.f32.xlu0 %v3014
        %v3016 = vpop.xlane.xlu0 %3015
        %v3017 = vmax.f32 %v2750, %v2928
        %3018 = vmax.xlane.f32.xlu0 %v3017
        %v3019 = vpop.xlane.xlu0 %3018
        %v3020 = vmax.f32 %v2753, %v2931
        %3021 = vmax.xlane.f32.xlu0 %v3020
        %v3022 = vpop.xlane.xlu0 %3021
        %v3023 = vmax.f32 %v2755, %v2933
        %3024 = vmax.xlane.f32.xlu0 %v3023
        %v3025 = vpop.xlane.xlu0 %3024
        %v3026 = vmax.f32 %v2758, %v2936
        %3027 = vmax.xlane.f32.xlu0 %v3026
        %v3028 = vpop.xlane.xlu0 %3027
        %v3029 = vmax.f32 %v2760, %v2938
        %3030 = vmax.xlane.f32.xlu0 %v3029
        %v3031 = vpop.xlane.xlu0 %3030
        %v3032 = vmax.f32 %v2763, %v2941
        %3033 = vmax.xlane.f32.xlu0 %v3032
        %v3034 = vpop.xlane.xlu0 %3033
        %v3035 = vmax.f32 %v2765, %v2943
        %3036 = vmax.xlane.f32.xlu0 %v3035
        %v3037 = vpop.xlane.xlu0 %3036
        %v3038 = vmax.f32 %v2768, %v2946
        %3039 = vmax.xlane.f32.xlu0 %v3038
        %v3040 = vpop.xlane.xlu0 %3039
        %v3041 = vmax.f32 %v2770, %v2948
        %3042 = vmax.xlane.f32.xlu0 %v3041
        %v3043 = vpop.xlane.xlu0 %3042
        %v3044 = vmax.f32 %v2773, %v2951
        %3045 = vmax.xlane.f32.xlu0 %v3044
        %v3046 = vpop.xlane.xlu0 %3045
        %v3047 = vmax.f32 %v2775, %v2953
        %3048 = vmax.xlane.f32.xlu0 %v3047
        %v3049 = vpop.xlane.xlu0 %3048
        %v3050 = vmax.f32 %v2778, %v2956
        %3051 = vmax.xlane.f32.xlu0 %v3050
        %v3052 = vpop.xlane.xlu0 %3051
        %v3053 = vmax.f32 %v2780, %v2958
        %3054 = vmax.xlane.f32.xlu0 %v3053
        %v3055 = vpop.xlane.xlu0 %3054
        %v3056 = vsub.f32 %v2703, %v2962
        %v3057 = vsub.f32 %v2881, %v2962
        %v3058 = vsub.f32 %v2705, %v2965
        %v3059 = vsub.f32 %v2883, %v2965
        %v3060 = vsub.f32 %v2708, %v2968
        %v3061 = vsub.f32 %v2886, %v2968
        %v3062 = vsub.f32 %v2710, %v2971
        %v3063 = vsub.f32 %v2888, %v2971
        %v3064 = vsub.f32 %v2713, %v2974
        %v3065 = vsub.f32 %v2891, %v2974
        %v3066 = vsub.f32 %v2715, %v2977
        %v3067 = vsub.f32 %v2893, %v2977
        %v3068 = vsub.f32 %v2718, %v2980
        %v3069 = vsub.f32 %v2896, %v2980
        %v3070 = vsub.f32 %v2720, %v2983
        %v3071 = vsub.f32 %v2898, %v2983
        %v3072 = vsub.f32 %v2723, %v2986
        %v3073 = vsub.f32 %v2901, %v2986
        %v3074 = vsub.f32 %v2725, %v2989
        %v3075 = vsub.f32 %v2903, %v2989
        %v3076 = vsub.f32 %v2728, %v2992
        %v3077 = vsub.f32 %v2906, %v2992
        %v3078 = vsub.f32 %v2730, %v2995
        %v3079 = vsub.f32 %v2908, %v2995
        %v3080 = vsub.f32 %v2733, %v2998
        %v3081 = vsub.f32 %v2911, %v2998
        %v3082 = vsub.f32 %v2735, %v3001
        %v3083 = vsub.f32 %v2913, %v3001
        %v3084 = vsub.f32 %v2738, %v3004
        %v3085 = vsub.f32 %v2916, %v3004
        %v3086 = vsub.f32 %v2740, %v3007
        %v3087 = vsub.f32 %v2918, %v3007
        %v3088 = vsub.f32 %v2743, %v3010
        %v3089 = vsub.f32 %v2921, %v3010
        %v3090 = vsub.f32 %v2745, %v3013
        %v3091 = vsub.f32 %v2923, %v3013
        %v3092 = vsub.f32 %v2748, %v3016
        %v3093 = vsub.f32 %v2926, %v3016
        %v3094 = vsub.f32 %v2750, %v3019
        %v3095 = vsub.f32 %v2928, %v3019
        %v3096 = vsub.f32 %v2753, %v3022
        %v3097 = vsub.f32 %v2931, %v3022
        %v3098 = vsub.f32 %v2755, %v3025
        %v3099 = vsub.f32 %v2933, %v3025
        %v3100 = vsub.f32 %v2758, %v3028
        %v3101 = vsub.f32 %v2936, %v3028
        %v3102 = vsub.f32 %v2760, %v3031
        %v3103 = vsub.f32 %v2938, %v3031
        %v3104 = vsub.f32 %v2763, %v3034
        %v3105 = vsub.f32 %v2941, %v3034
        %v3106 = vsub.f32 %v2765, %v3037
        %v3107 = vsub.f32 %v2943, %v3037
        %v3108 = vsub.f32 %v2768, %v3040
        %v3109 = vsub.f32 %v2946, %v3040
        %v3110 = vsub.f32 %v2770, %v3043
        %v3111 = vsub.f32 %v2948, %v3043
        %v3112 = vsub.f32 %v2773, %v3046
        %v3113 = vsub.f32 %v2951, %v3046
        %v3114 = vsub.f32 %v2775, %v3049
        %v3115 = vsub.f32 %v2953, %v3049
        %v3116 = vsub.f32 %v2778, %v3052
        %v3117 = vsub.f32 %v2956, %v3052
        %v3118 = vsub.f32 %v2780, %v3055
        %v3119 = vsub.f32 %v2958, %v3055
        %v3120 = vmul.f32 %v3056, 1.442695
        %v3121 = vpow.pop %v3120
        %v3122 = vmul.f32 %v3057, 1.442695
        %v3123 = vpow.pop %v3122
        %v3124 = vmul.f32 %v3058, 1.442695
        %v3125 = vpow.pop %v3124
        %v3126 = vmul.f32 %v3059, 1.442695
        %v3127 = vpow.pop %v3126
        %v3128 = vmul.f32 %v3060, 1.442695
        %v3129 = vpow.pop %v3128
        %v3130 = vmul.f32 %v3061, 1.442695
        %v3131 = vpow.pop %v3130
        %v3132 = vmul.f32 %v3062, 1.442695
        %v3133 = vpow.pop %v3132
        %v3134 = vmul.f32 %v3063, 1.442695
        %v3135 = vpow.pop %v3134
        %v3136 = vmul.f32 %v3064, 1.442695
        %v3137 = vpow.pop %v3136
        %v3138 = vmul.f32 %v3065, 1.442695
        %v3139 = vpow.pop %v3138
        %v3140 = vmul.f32 %v3066, 1.442695
        %v3141 = vpow.pop %v3140
        %v3142 = vmul.f32 %v3067, 1.442695
        %v3143 = vpow.pop %v3142
        %v3144 = vmul.f32 %v3068, 1.442695
        %v3145 = vpow.pop %v3144
        %v3146 = vmul.f32 %v3069, 1.442695
        %v3147 = vpow.pop %v3146
        %v3148 = vmul.f32 %v3070, 1.442695
        %v3149 = vpow.pop %v3148
        %v3150 = vmul.f32 %v3071, 1.442695
        %v3151 = vpow.pop %v3150
        %v3152 = vmul.f32 %v3072, 1.442695
        %v3153 = vpow.pop %v3152
        %v3154 = vmul.f32 %v3073, 1.442695
        %v3155 = vpow.pop %v3154
        %v3156 = vmul.f32 %v3074, 1.442695
        %v3157 = vpow.pop %v3156
        %v3158 = vmul.f32 %v3075, 1.442695
        %v3159 = vpow.pop %v3158
        %v3160 = vmul.f32 %v3076, 1.442695
        %v3161 = vpow.pop %v3160
        %v3162 = vmul.f32 %v3077, 1.442695
        %v3163 = vpow.pop %v3162
        %v3164 = vmul.f32 %v3078, 1.442695
        %v3165 = vpow.pop %v3164
        %v3166 = vmul.f32 %v3079, 1.442695
        %v3167 = vpow.pop %v3166
        %v3168 = vmul.f32 %v3080, 1.442695
        %v3169 = vpow.pop %v3168
        %v3170 = vmul.f32 %v3081, 1.442695
        %v3171 = vpow.pop %v3170
        %v3172 = vmul.f32 %v3082, 1.442695
        %v3173 = vpow.pop %v3172
        %v3174 = vmul.f32 %v3083, 1.442695
        %v3175 = vpow.pop %v3174
        %v3176 = vmul.f32 %v3084, 1.442695
        %v3177 = vpow.pop %v3176
        %v3178 = vmul.f32 %v3085, 1.442695
        %v3179 = vpow.pop %v3178
        %v3180 = vmul.f32 %v3086, 1.442695
        %v3181 = vpow.pop %v3180
        %v3182 = vmul.f32 %v3087, 1.442695
        %v3183 = vpow.pop %v3182
        %v3184 = vmul.f32 %v3088, 1.442695
        %v3185 = vpow.pop %v3184
        %v3186 = vmul.f32 %v3089, 1.442695
        %v3187 = vpow.pop %v3186
        %v3188 = vmul.f32 %v3090, 1.442695
        %v3189 = vpow.pop %v3188
        %v3190 = vmul.f32 %v3091, 1.442695
        %v3191 = vpow.pop %v3190
        %v3192 = vmul.f32 %v3092, 1.442695
        %v3193 = vpow.pop %v3192
        %v3194 = vmul.f32 %v3093, 1.442695
        %v3195 = vpow.pop %v3194
        %v3196 = vmul.f32 %v3094, 1.442695
        %v3197 = vpow.pop %v3196
        %v3198 = vmul.f32 %v3095, 1.442695
        %v3199 = vpow.pop %v3198
        %v3200 = vmul.f32 %v3096, 1.442695
        %v3201 = vpow.pop %v3200
        %v3202 = vmul.f32 %v3097, 1.442695
        %v3203 = vpow.pop %v3202
        %v3204 = vmul.f32 %v3098, 1.442695
        %v3205 = vpow.pop %v3204
        %v3206 = vmul.f32 %v3099, 1.442695
        %v3207 = vpow.pop %v3206
        %v3208 = vmul.f32 %v3100, 1.442695
        %v3209 = vpow.pop %v3208
        %v3210 = vmul.f32 %v3101, 1.442695
        %v3211 = vpow.pop %v3210
        %v3212 = vmul.f32 %v3102, 1.442695
        %v3213 = vpow.pop %v3212
        %v3214 = vmul.f32 %v3103, 1.442695
        %v3215 = vpow.pop %v3214
        %v3216 = vmul.f32 %v3104, 1.442695
        %v3217 = vpow.pop %v3216
        %v3218 = vmul.f32 %v3105, 1.442695
        %v3219 = vpow.pop %v3218
        %v3220 = vmul.f32 %v3106, 1.442695
        %v3221 = vpow.pop %v3220
        %v3222 = vmul.f32 %v3107, 1.442695
        %v3223 = vpow.pop %v3222
        %v3224 = vmul.f32 %v3108, 1.442695
        %v3225 = vpow.pop %v3224
        %v3226 = vmul.f32 %v3109, 1.442695
        %v3227 = vpow.pop %v3226
        %v3228 = vmul.f32 %v3110, 1.442695
        %v3229 = vpow.pop %v3228
        %v3230 = vmul.f32 %v3111, 1.442695
        %v3231 = vpow.pop %v3230
        %v3232 = vmul.f32 %v3112, 1.442695
        %v3233 = vpow.pop %v3232
        %v3234 = vmul.f32 %v3113, 1.442695
        %v3235 = vpow.pop %v3234
        %v3236 = vmul.f32 %v3114, 1.442695
        %v3237 = vpow.pop %v3236
        %v3238 = vmul.f32 %v3115, 1.442695
        %v3239 = vpow.pop %v3238
        %v3240 = vmul.f32 %v3116, 1.442695
        %v3241 = vpow.pop %v3240
        %v3242 = vmul.f32 %v3117, 1.442695
        %v3243 = vpow.pop %v3242
        %v3244 = vmul.f32 %v3118, 1.442695
        %v3245 = vpow.pop %v3244
        %v3246 = vmul.f32 %v3119, 1.442695
        %v3247 = vpow.pop %v3246
        %v3248 = vadd.f32 %v3121, %v3123
        %3249 = vadd.xlane.f32.xlu0 %v3248
        %v3250 = vpop.xlane.xlu0 %3249
        %v3251 = vadd.f32 %v3125, %v3127
        %3252 = vadd.xlane.f32.xlu0 %v3251
        %v3253 = vpop.xlane.xlu0 %3252
        %v3254 = vadd.f32 %v3129, %v3131
        %3255 = vadd.xlane.f32.xlu0 %v3254
        %v3256 = vpop.xlane.xlu0 %3255
        %v3257 = vadd.f32 %v3133, %v3135
        %3258 = vadd.xlane.f32.xlu0 %v3257
        %v3259 = vpop.xlane.xlu0 %3258
        %v3260 = vadd.f32 %v3137, %v3139
        %3261 = vadd.xlane.f32.xlu0 %v3260
        %v3262 = vpop.xlane.xlu0 %3261
        %v3263 = vadd.f32 %v3141, %v3143
        %3264 = vadd.xlane.f32.xlu0 %v3263
        %v3265 = vpop.xlane.xlu0 %3264
        %v3266 = vadd.f32 %v3145, %v3147
        %3267 = vadd.xlane.f32.xlu0 %v3266
        %v3268 = vpop.xlane.xlu0 %3267
        %v3269 = vadd.f32 %v3149, %v3151
        %3270 = vadd.xlane.f32.xlu0 %v3269
        %v3271 = vpop.xlane.xlu0 %3270
        %v3272 = vadd.f32 %v3153, %v3155
        %3273 = vadd.xlane.f32.xlu0 %v3272
        %v3274 = vpop.xlane.xlu0 %3273
        %v3275 = vadd.f32 %v3157, %v3159
        %3276 = vadd.xlane.f32.xlu0 %v3275
        %v3277 = vpop.xlane.xlu0 %3276
        %v3278 = vadd.f32 %v3161, %v3163
        %3279 = vadd.xlane.f32.xlu0 %v3278
        %v3280 = vpop.xlane.xlu0 %3279
        %v3281 = vadd.f32 %v3165, %v3167
        %3282 = vadd.xlane.f32.xlu0 %v3281
        %v3283 = vpop.xlane.xlu0 %3282
        %v3284 = vadd.f32 %v3169, %v3171
        %3285 = vadd.xlane.f32.xlu0 %v3284
        %v3286 = vpop.xlane.xlu0 %3285
        %v3287 = vadd.f32 %v3173, %v3175
        %3288 = vadd.xlane.f32.xlu0 %v3287
        %v3289 = vpop.xlane.xlu0 %3288
        %v3290 = vadd.f32 %v3177, %v3179
        %3291 = vadd.xlane.f32.xlu0 %v3290
        %v3292 = vpop.xlane.xlu0 %3291
        %v3293 = vadd.f32 %v3181, %v3183
        %3294 = vadd.xlane.f32.xlu0 %v3293
        %v3295 = vpop.xlane.xlu0 %3294
        %v3296 = vadd.f32 %v3185, %v3187
        %3297 = vadd.xlane.f32.xlu0 %v3296
        %v3298 = vpop.xlane.xlu0 %3297
        %v3299 = vadd.f32 %v3189, %v3191
        %3300 = vadd.xlane.f32.xlu0 %v3299
        %v3301 = vpop.xlane.xlu0 %3300
        %v3302 = vadd.f32 %v3193, %v3195
        %3303 = vadd.xlane.f32.xlu0 %v3302
        %v3304 = vpop.xlane.xlu0 %3303
        %v3305 = vadd.f32 %v3197, %v3199
        %3306 = vadd.xlane.f32.xlu0 %v3305
        %v3307 = vpop.xlane.xlu0 %3306
        %v3308 = vadd.f32 %v3201, %v3203
        %3309 = vadd.xlane.f32.xlu0 %v3308
        %v3310 = vpop.xlane.xlu0 %3309
        %v3311 = vadd.f32 %v3205, %v3207
        %3312 = vadd.xlane.f32.xlu0 %v3311
        %v3313 = vpop.xlane.xlu0 %3312
        %v3314 = vadd.f32 %v3209, %v3211
        %3315 = vadd.xlane.f32.xlu0 %v3314
        %v3316 = vpop.xlane.xlu0 %3315
        %v3317 = vadd.f32 %v3213, %v3215
        %3318 = vadd.xlane.f32.xlu0 %v3317
        %v3319 = vpop.xlane.xlu0 %3318
        %v3320 = vadd.f32 %v3217, %v3219
        %3321 = vadd.xlane.f32.xlu0 %v3320
        %v3322 = vpop.xlane.xlu0 %3321
        %v3323 = vadd.f32 %v3221, %v3223
        %3324 = vadd.xlane.f32.xlu0 %v3323
        %v3325 = vpop.xlane.xlu0 %3324
        %v3326 = vadd.f32 %v3225, %v3227
        %3327 = vadd.xlane.f32.xlu0 %v3326
        %v3328 = vpop.xlane.xlu0 %3327
        %v3329 = vadd.f32 %v3229, %v3231
        %3330 = vadd.xlane.f32.xlu0 %v3329
        %v3331 = vpop.xlane.xlu0 %3330
        %v3332 = vadd.f32 %v3233, %v3235
        %3333 = vadd.xlane.f32.xlu0 %v3332
        %v3334 = vpop.xlane.xlu0 %3333
        %v3335 = vadd.f32 %v3237, %v3239
        %3336 = vadd.xlane.f32.xlu0 %v3335
        %v3337 = vpop.xlane.xlu0 %3336
        %v3338 = vadd.f32 %v3241, %v3243
        %3339 = vadd.xlane.f32.xlu0 %v3338
        %v3340 = vpop.xlane.xlu0 %3339
        %v3341 = vadd.f32 %v3245, %v3247
        %3342 = vadd.xlane.f32.xlu0 %v3341
        %v3343 = vpop.xlane.xlu0 %3342
        %v3344 = vrcp.pop %v3250
        %v3345 = vrcp.pop %v3253
        %v3346 = vrcp.pop %v3256
        %v3347 = vrcp.pop %v3259
        %v3348 = vrcp.pop %v3262
        %v3349 = vrcp.pop %v3265
        %v3350 = vrcp.pop %v3268
        %v3351 = vrcp.pop %v3271
        %v3352 = vrcp.pop %v3274
        %v3353 = vrcp.pop %v3277
        %v3354 = vrcp.pop %v3280
        %v3355 = vrcp.pop %v3283
        %v3356 = vrcp.pop %v3286
        %v3357 = vrcp.pop %v3289
        %v3358 = vrcp.pop %v3292
        %v3359 = vrcp.pop %v3295
        %v3360 = vrcp.pop %v3298
        %v3361 = vrcp.pop %v3301
        %v3362 = vrcp.pop %v3304
        %v3363 = vrcp.pop %v3307
        %v3364 = vrcp.pop %v3310
        %v3365 = vrcp.pop %v3313
        %v3366 = vrcp.pop %v3316
        %v3367 = vrcp.pop %v3319
        %v3368 = vrcp.pop %v3322
        %v3369 = vrcp.pop %v3325
        %v3370 = vrcp.pop %v3328
        %v3371 = vrcp.pop %v3331
        %v3372 = vrcp.pop %v3334
        %v3373 = vrcp.pop %v3337
        %v3374 = vrcp.pop %v3340
        %v3375 = vrcp.pop %v3343
        %v3376 = vmul.f32 %v3121, %v3344
        %v3377 = vmul.f32 %v3123, %v3344
        %v3378 = vmul.f32 %v3125, %v3345
        %v3379 = vmul.f32 %v3127, %v3345
        %v3380 = vmul.f32 %v3129, %v3346
        %v3381 = vmul.f32 %v3131, %v3346
        %v3382 = vmul.f32 %v3133, %v3347
        %v3383 = vmul.f32 %v3135, %v3347
        %v3384 = vmul.f32 %v3137, %v3348
        %v3385 = vmul.f32 %v3139, %v3348
        %v3386 = vmul.f32 %v3141, %v3349
        %v3387 = vmul.f32 %v3143, %v3349
        %v3388 = vmul.f32 %v3145, %v3350
        %v3389 = vmul.f32 %v3147, %v3350
        %v3390 = vmul.f32 %v3149, %v3351
        %v3391 = vmul.f32 %v3151, %v3351
        %v3392 = vmul.f32 %v3153, %v3352
        %v3393 = vmul.f32 %v3155, %v3352
        %v3394 = vmul.f32 %v3157, %v3353
        %v3395 = vmul.f32 %v3159, %v3353
        %v3396 = vmul.f32 %v3161, %v3354
        %v3397 = vmul.f32 %v3163, %v3354
        %v3398 = vmul.f32 %v3165, %v3355
        %v3399 = vmul.f32 %v3167, %v3355
        %v3400 = vmul.f32 %v3169, %v3356
        %v3401 = vmul.f32 %v3171, %v3356
        %v3402 = vmul.f32 %v3173, %v3357
        %v3403 = vmul.f32 %v3175, %v3357
        %v3404 = vmul.f32 %v3177, %v3358
        %v3405 = vmul.f32 %v3179, %v3358
        %v3406 = vmul.f32 %v3181, %v3359
        %v3407 = vmul.f32 %v3183, %v3359
        %v3408 = vmul.f32 %v3185, %v3360
        %v3409 = vmul.f32 %v3187, %v3360
        %v3410 = vmul.f32 %v3189, %v3361
        %v3411 = vmul.f32 %v3191, %v3361
        %v3412 = vmul.f32 %v3193, %v3362
        %v3413 = vmul.f32 %v3195, %v3362
        %v3414 = vmul.f32 %v3197, %v3363
        %v3415 = vmul.f32 %v3199, %v3363
        %v3416 = vmul.f32 %v3201, %v3364
        %v3417 = vmul.f32 %v3203, %v3364
        %v3418 = vmul.f32 %v3205, %v3365
        %v3419 = vmul.f32 %v3207, %v3365
        %v3420 = vmul.f32 %v3209, %v3366
        %v3421 = vmul.f32 %v3211, %v3366
        %v3422 = vmul.f32 %v3213, %v3367
        %v3423 = vmul.f32 %v3215, %v3367
        %v3424 = vmul.f32 %v3217, %v3368
        %v3425 = vmul.f32 %v3219, %v3368
        %v3426 = vmul.f32 %v3221, %v3369
        %v3427 = vmul.f32 %v3223, %v3369
        %v3428 = vmul.f32 %v3225, %v3370
        %v3429 = vmul.f32 %v3227, %v3370
        %v3430 = vmul.f32 %v3229, %v3371
        %v3431 = vmul.f32 %v3231, %v3371
        %v3432 = vmul.f32 %v3233, %v3372
        %v3433 = vmul.f32 %v3235, %v3372
        %v3434 = vmul.f32 %v3237, %v3373
        %v3435 = vmul.f32 %v3239, %v3373
        %v3436 = vmul.f32 %v3241, %v3374
        %v3437 = vmul.f32 %v3243, %v3374
        %v3438 = vmul.f32 %v3245, %v3375
        %v3439 = vmul.f32 %v3247, %v3375
        %3440 = vst [vmem:[%s363] sm:$0xff] %v3376
        %3441 = vst [vmem:[%s363 + $0x8] sm:$0xff] %v3377
        %3442 = vst [vmem:[%s363 + $0x10] sm:$0xff] %v3378
        %3443 = vst [vmem:[%s363 + $0x18] sm:$0xff] %v3379
        %3444 = vst [vmem:[%s363 + $0x20] sm:$0xff] %v3380
        %3445 = vst [vmem:[%s363 + $0x28] sm:$0xff] %v3381
        %3446 = vst [vmem:[%s363 + $0x30] sm:$0xff] %v3382
        %3447 = vst [vmem:[%s363 + $0x38] sm:$0xff] %v3383
        %3448 = vst [vmem:[%s363 + $0x40] sm:$0xff] %v3384
        %3449 = vst [vmem:[%s363 + $0x48] sm:$0xff] %v3385
        %3450 = vst [vmem:[%s363 + $0x50] sm:$0xff] %v3386
        %3451 = vst [vmem:[%s363 + $0x58] sm:$0xff] %v3387
        %3452 = vst [vmem:[%s363 + $0x60] sm:$0xff] %v3388
        %3453 = vst [vmem:[%s363 + $0x68] sm:$0xff] %v3389
        %3454 = vst [vmem:[%s363 + $0x70] sm:$0xff] %v3390
        %3455 = vst [vmem:[%s363 + $0x78] sm:$0xff] %v3391
        %3456 = vst [vmem:[%s363 + $0x80] sm:$0xff] %v3392
        %3457 = vst [vmem:[%s363 + $0x88] sm:$0xff] %v3393
        %3458 = vst [vmem:[%s363 + $0x90] sm:$0xff] %v3394
        %3459 = vst [vmem:[%s363 + $0x98] sm:$0xff] %v3395
        %3460 = vst [vmem:[%s363 + $0xa0] sm:$0xff] %v3396
        %3461 = vst [vmem:[%s363 + $0xa8] sm:$0xff] %v3397
        %3462 = vst [vmem:[%s363 + $0xb0] sm:$0xff] %v3398
        %3463 = vst [vmem:[%s363 + $0xb8] sm:$0xff] %v3399
        %3464 = vst [vmem:[%s363 + $0xc0] sm:$0xff] %v3400
        %3465 = vst [vmem:[%s363 + $0xc8] sm:$0xff] %v3401
        %3466 = vst [vmem:[%s363 + $0xd0] sm:$0xff] %v3402
        %3467 = vst [vmem:[%s363 + $0xd8] sm:$0xff] %v3403
        %3468 = vst [vmem:[%s363 + $0xe0] sm:$0xff] %v3404
        %3469 = vst [vmem:[%s363 + $0xe8] sm:$0xff] %v3405
        %3470 = vst [vmem:[%s363 + $0xf0] sm:$0xff] %v3406
        %3471 = vst [vmem:[%s363 + $0xf8] sm:$0xff] %v3407
        %3472 = vst [vmem:[%s363 + $0x100] sm:$0xff] %v3408
        %3473 = vst [vmem:[%s363 + $0x108] sm:$0xff] %v3409
        %3474 = vst [vmem:[%s363 + $0x110] sm:$0xff] %v3410
        %3475 = vst [vmem:[%s363 + $0x118] sm:$0xff] %v3411
        %3476 = vst [vmem:[%s363 + $0x120] sm:$0xff] %v3412
        %3477 = vst [vmem:[%s363 + $0x128] sm:$0xff] %v3413
        %3478 = vst [vmem:[%s363 + $0x130] sm:$0xff] %v3414
        %3479 = vst [vmem:[%s363 + $0x138] sm:$0xff] %v3415
        %3480 = vst [vmem:[%s363 + $0x140] sm:$0xff] %v3416
        %3481 = vst [vmem:[%s363 + $0x148] sm:$0xff] %v3417
        %3482 = vst [vmem:[%s363 + $0x150] sm:$0xff] %v3418
        %3483 = vst [vmem:[%s363 + $0x158] sm:$0xff] %v3419
        %3484 = vst [vmem:[%s363 + $0x160] sm:$0xff] %v3420
        %3485 = vst [vmem:[%s363 + $0x168] sm:$0xff] %v3421
        %3486 = vst [vmem:[%s363 + $0x170] sm:$0xff] %v3422
        %3487 = vst [vmem:[%s363 + $0x178] sm:$0xff] %v3423
        %3488 = vst [vmem:[%s363 + $0x180] sm:$0xff] %v3424
        %3489 = vst [vmem:[%s363 + $0x188] sm:$0xff] %v3425
        %3490 = vst [vmem:[%s363 + $0x190] sm:$0xff] %v3426
        %3491 = vst [vmem:[%s363 + $0x198] sm:$0xff] %v3427
        %3492 = vst [vmem:[%s363 + $0x1a0] sm:$0xff] %v3428
        %3493 = vst [vmem:[%s363 + $0x1a8] sm:$0xff] %v3429
        %3494 = vst [vmem:[%s363 + $0x1b0] sm:$0xff] %v3430
        %3495 = vst [vmem:[%s363 + $0x1b8] sm:$0xff] %v3431
        %3496 = vst [vmem:[%s363 + $0x1c0] sm:$0xff] %v3432
        %3497 = vst [vmem:[%s363 + $0x1c8] sm:$0xff] %v3433
        %3498 = vst [vmem:[%s363 + $0x1d0] sm:$0xff] %v3434
        %3499 = vst [vmem:[%s363 + $0x1d8] sm:$0xff] %v3435
        %3500 = vst [vmem:[%s363 + $0x1e0] sm:$0xff] %v3436
        %3501 = vst [vmem:[%s363 + $0x1e8] sm:$0xff] %v3437
        %3502 = vst [vmem:[%s363 + $0x1f0] sm:$0xff] %v3438
        %3503 = vst [vmem:[%s363 + $0x1f8] sm:$0xff] %v3439
        %s3504 = sand.u32 %s186, 1
        %s3505 = scalar_lea.sflag [#allocation4], %s3504
        %s3506 = sand.u32 %s186, 1
        %s3507 = smul.addr %s3506, 512
        %s3508 = scalar_lea.vmem [#allocation11], %s3507
        // Predicated region
        $region69: #{tpu_custom_call.1} parent=47 // pred_check
          %p3509 = pneg %p196
        $region70: #{tpu_custom_call.1} parent=47 // pred_check_branch
          %3511 = sbr.rel (%p3509) target = $region72
        $region71: #{tpu_custom_call.1} parent=47 // pred_region
          %s3512 = smul.u32 32, %s26
          %3514 = vsyncadd %s3505, 0
          %s3515 = smul.addr %s3512, 2
          %s3516 = smul.addr %s3515, 8
          %s3517 = scalar_lea.hbm %s7, %s3516
          %s3518 = sshll.u32 %s3508, 4
          %s3519 = int_to_ptr.vmem [resolvable:$true] %s3518
          %s3520 = sshll.u32 %s3517, 4
          %s3521 = int_to_ptr.hbm [resolvable:$true] %s3520
          %3526 = dma.vmem_to_hbm [thread:$0]  %s3519, 8192, %s3521, %s3505, 256, 256, 16
        $region72: #{tpu_custom_call.1} parent=47 // pred_fallthru
          _
      $region48: #{tpu_custom_call.1} parent=5 // pred_fallthru
        _
      %p3527 = scmp.le.s32.totalorder 2, %s21
      // Predicated region
      $region73: #{tpu_custom_call.1} parent=5 // pred_check
        %p3528 = pneg %p3527
      $region74: #{tpu_custom_call.1} parent=5 // pred_check_branch
        %3530 = sbr.rel (%p3528) target = $region76
      $region75: #{tpu_custom_call.1} parent=5 // pred_region
        %s3531 = ssub.s32 %s21, 2
        // Predicated region
        $region77: #{tpu_custom_call.1} parent=75 // pred_check
          %p3532 = pneg %p202
        $region78: #{tpu_custom_call.1} parent=75 // pred_check_branch
          %3534 = sbr.rel (%p3532) target = $region80
        $region79: #{tpu_custom_call.1} parent=75 // pred_region
          %s3535 = sand.u32 %s187, 1
          %s3536 = scalar_lea.sflag [#allocation4], %s3535
          %s3537 = sand.u32 %s187, 1
          %s3538 = smul.addr %s3537, 512
          %s3539 = scalar_lea.vmem [#allocation11], %s3538
          %3541 = dma.done %s3536, 8192
        $region80: #{tpu_custom_call.1} parent=75 // pred_fallthru
          _
      $region76: #{tpu_custom_call.1} parent=5 // pred_fallthru
        _
    $region6: #{tpu_custom_call.1} parent=1 // loop_footer
      %s25 = sadd.s32 1, %s21
    $region7: #{tpu_custom_call.1} parent=1 // loop_footer_branch
      %20 = sbr.rel target = $region3
    $region8: #{tpu_custom_call.1} parent=1 // loop_exit
      _
    %3542 = vsyncpa [#allocation3], 1
    %s3543 = scalar_lea.sflag [#allocation3], 1
    %3544 = vsyncpa %s3543, 1
    %3545 = vsyncpa [#allocation6], 1
    %3546 = vsyncpa [#allocation9], 1
    %3547 = vsyncpa [#allocation4], 1
    %s3548 = scalar_lea.sflag [#allocation4], 1
    %3549 = vsyncpa %s3548, 1

// kernel: tpu_custom_call.1
$region0: #{tpu_custom_call.1}
  #allocation0 [shape = 'u32[]', space=smem, size = 0x4, offset = 0x4, fixed_abs, tag = 'smem constant byte address 0x4 - core index']
  #allocation1 [shape = 'u32[72,128]{1,0:T(1,128)}', space=vmem, size = 0x9000, scoped, tag = 'internal scratch']
  %s0 = inlined_call_operand.hbm [shape: f32[512,512], index: 0, kind: input, shape index: {}]
  %s1 = inlined_call_operand.hbm [shape: bf16[512,256], index: 1, kind: input, shape index: {}]
  %s2 = inlined_call_operand.hbm [shape: f32[1,256], index: 2, kind: input, shape index: {}]
  %s3 = inlined_call_operand.hbm [shape: bf16[256,256], index: 3, kind: input, shape index: {}]
  %s4 = inlined_call_operand.vmem [shape: f32[1,256], index: 4, kind: input, shape index: {}]
  %s5 = inlined_call_operand.hbm [shape: bf16[256,256], index: 5, kind: input, shape index: {}]
  %s6 = inlined_call_operand.vmem [shape: f32[1,256], index: 6, kind: input, shape index: {}]
  %s7 = inlined_call_operand.hbm [shape: f32[512,256], index: 7, kind: output, shape index: {}]
  %s8 = sld [smem:[#allocation0]]
  $region81: #{tpu_custom_call.1} parent=0
    _
  %s10 = ssub.s32 1, %s8
  %s11 = scalar_select 0, %s10, %s8
  $region1: #{tpu_custom_call.1} parent=0
    #allocation2 [shape = 'u8[1048576]{0}', space=vmem, size = 0x100000, scoped, tag = 'input window, operand 0']
    #allocation3 [shape = 's32[2]{0}', space=sflag, size = 0x8, scoped, tag = 'scoped memory for tpu_custom_call.1']
    #allocation4 [shape = 's32[2]{0}', space=sflag, size = 0x8, scoped, tag = 'scoped memory for tpu_custom_call.1']
    #allocation5 [shape = 'u8[262144]{0}', space=vmem, size = 0x40000, scoped, tag = 'input window, operand 1, single buffered']
    #allocation6 [shape = 's32[1]{0}', space=sflag, size = 0x4, scoped, tag = 'scoped memory for tpu_custom_call.1']
    #allocation7 [shape = 'u8[1024]{0}', space=vmem, size = 0x400, scoped, tag = 'input window, operand 2, single buffered']
    #allocation8 [shape = 'u8[131072]{0}', space=vmem, size = 0x20000, scoped, tag = 'input window, operand 3, single buffered']
    #allocation9 [shape = 's32[1]{0}', space=sflag, size = 0x4, scoped, tag = 'scoped memory for tpu_custom_call.1']
    #allocation10 [shape = 'u8[131072]{0}', space=vmem, size = 0x20000, scoped, tag = 'input window, operand 5, single buffered']
    #allocation11 [shape = 'u8[524288]{0}', space=vmem, size = 0x80000, scoped, tag = 'output window, operand 0']
    %12 = vsyncpa [#allocation3], 0
    %s13 = scalar_lea.sflag [#allocation3], 1
    %14 = vsyncpa %s13, 0
    %15 = vsyncpa [#allocation6], 0
    %16 = vsyncpa [#allocation9], 0
    %17 = vsyncpa [#allocation4], 0
    %s18 = scalar_lea.sflag [#allocation4], 1
    %19 = vsyncpa %s18, 0
    loop: start=0, step=1, limit=4
    $region2: #{tpu_custom_call.1} parent=1 // loop_pre_header
      _
    $region3: #{tpu_custom_call.1} parent=1 // loop_header
      %s21 = sphi 0, %s25
      %p22 = scmp.ge.s32.totalorder %s21, 4
      %s31 = sphi 0, %s33
      %s34 = sphi 0, %s31
      %s35 = sphi 0, %s34
      %s51 = sphi 0, %s35
      %s55 = sphi 0, %s55
      %s57 = sphi 0, %s55
      %s58 = sphi 0, %s57
      %s72 = sphi 0, %s58
      %s76 = sphi 0, %s76
      %s78 = sphi 0, %s76
      %s79 = sphi 0, %s78
      %s93 = sphi 0, %s79
      %s97 = sphi 0, %s97
      %s99 = sphi 0, %s97
      %s100 = sphi 0, %s99
      %s114 = sphi 0, %s100
      %s118 = sphi 0, %s118
      %s120 = sphi 0, %s118
      %s121 = sphi 0, %s120
      %s135 = sphi 0, %s121
      %s139 = sphi 0, %s139
      %s141 = sphi 0, %s139
      %s142 = sphi 0, %s141
      %s156 = sphi 0, %s142
      %s160 = sphi 0, %s160
      %s162 = sphi 0, %s160
      %s163 = sphi 0, %s162
      %s177 = sphi 0, %s163
      %s183 = sphi 0, %s185
      %s186 = sphi 0, %s183
      %s187 = sphi 0, %s186
      %s203 = sphi 0, %s187
    $region4: #{tpu_custom_call.1} parent=1 // loop_header_branch
      %24 = sbr.rel (%p22) target = $region8
    $region5: #{tpu_custom_call.1} parent=1 // loop_body
      %s26 = ssub.s32 %s21, 1
      %s27 = ssub.s32 %s21, 2
      %s28 = sadd.s32 %s21, 1
      %s29 = ssub.s32 %s21, %s28
      %p30 = scmp.eq.s32.totalorder %s29, 0
      %s32 = sadd.s32 %s31, 1
      %s33 = scalar_select %p30, %s31, %s32
      %p36 = pneg %p30
      %p37 = scmp.eq.s32.totalorder %s21, 1
      %p38 = por %p36, %p37
      %p39 = scmp.ne.s32.totalorder %s31, %s34
      %p40 = scmp.eq.s32.totalorder %s21, 0
      %p41 = por %p39, %p40
      %p42 = scmp.ne.s32.totalorder %s31, %s34
      %p43 = scmp.eq.s32.totalorder %s26, 1
      %p44 = por %p42, %p43
      %p45 = scmp.ne.s32.totalorder %s34, %s35
      %p46 = scmp.eq.s32.totalorder %s26, 0
      %p47 = por %p45, %p46
      %p48 = scmp.ne.s32.totalorder %s34, %s35
      %p49 = scmp.eq.s32.totalorder %s27, 1
      %p50 = por %p48, %p49
      %p52 = scmp.ne.s32.totalorder %s35, %s51
      %p53 = scmp.eq.s32.totalorder %s27, 0
      %p54 = por %p52, %p53
      %s56 = sadd.s32 %s55, 1
      %p59 = scmp.eq.s32.totalorder %s21, 1
      %p60 = scmp.ne.s32.totalorder %s55, %s57
      %p61 = scmp.eq.s32.totalorder %s21, 0
      %p62 = por %p60, %p61
      %p63 = scmp.ne.s32.totalorder %s55, %s57
      %p64 = scmp.eq.s32.totalorder %s26, 1
      %p65 = por %p63, %p64
      %p66 = scmp.ne.s32.totalorder %s57, %s58
      %p67 = scmp.eq.s32.totalorder %s26, 0
      %p68 = por %p66, %p67
      %p69 = scmp.ne.s32.totalorder %s57, %s58
      %p70 = scmp.eq.s32.totalorder %s27, 1
      %p71 = por %p69, %p70
      %p73 = scmp.ne.s32.totalorder %s58, %s72
      %p74 = scmp.eq.s32.totalorder %s27, 0
      %p75 = por %p73, %p74
      %s77 = sadd.s32 %s76, 1
      %p80 = scmp.eq.s32.totalorder %s21, 1
      %p81 = scmp.ne.s32.totalorder %s76, %s78
      %p82 = scmp.eq.s32.totalorder %s21, 0
      %p83 = por %p81, %p82
      %p84 = scmp.ne.s32.totalorder %s76, %s78
      %p85 = scmp.eq.s32.totalorder %s26, 1
      %p86 = por %p84, %p85
      %p87 = scmp.ne.s32.totalorder %s78, %s79
      %p88 = scmp.eq.s32.totalorder %s26, 0
      %p89 = por %p87, %p88
      %p90 = scmp.ne.s32.totalorder %s78, %s79
      %p91 = scmp.eq.s32.totalorder %s27, 1
      %p92 = por %p90, %p91
      %p94 = scmp.ne.s32.totalorder %s79, %s93
      %p95 = scmp.eq.s32.totalorder %s27, 0
      %p96 = por %p94, %p95
      %s98 = sadd.s32 %s97, 1
      %p101 = scmp.eq.s32.totalorder %s21, 1
      %p102 = scmp.ne.s32.totalorder %s97, %s99
      %p103 = scmp.eq.s32.totalorder %s21, 0
      %p104 = por %p102, %p103
      %p105 = scmp.ne.s32.totalorder %s97, %s99
      %p106 = scmp.eq.s32.totalorder %s26, 1
      %p107 = por %p105, %p106
      %p108 = scmp.ne.s32.totalorder %s99, %s100
      %p109 = scmp.eq.s32.totalorder %s26, 0
      %p110 = por %p108, %p109
      %p111 = scmp.ne.s32.totalorder %s99, %s100
      %p112 = scmp.eq.s32.totalorder %s27, 1
      %p113 = por %p111, %p112
      %p115 = scmp.ne.s32.totalorder %s100, %s114
      %p116 = scmp.eq.s32.totalorder %s27, 0
      %p117 = por %p115, %p116
      %s119 = sadd.s32 %s118, 1
      %p122 = scmp.eq.s32.totalorder %s21, 1
      %p123 = scmp.ne.s32.totalorder %s118, %s120
      %p124 = scmp.eq.s32.totalorder %s21, 0
      %p125 = por %p123, %p124
      %p126 = scmp.ne.s32.totalorder %s118, %s120
      %p127 = scmp.eq.s32.totalorder %s26, 1
      %p128 = por %p126, %p127
      %p129 = scmp.ne.s32.totalorder %s120, %s121
      %p130 = scmp.eq.s32.totalorder %s26, 0
      %p131 = por %p129, %p130
      %p132 = scmp.ne.s32.totalorder %s120, %s121
      %p133 = scmp.eq.s32.totalorder %s27, 1
      %p134 = por %p132, %p133
      %p136 = scmp.ne.s32.totalorder %s121, %s135
      %p137 = scmp.eq.s32.totalorder %s27, 0
      %p138 = por %p136, %p137
      %s140 = sadd.s32 %s139, 1
      %p143 = scmp.eq.s32.totalorder %s21, 1
      %p144 = scmp.ne.s32.totalorder %s139, %s141
      %p145 = scmp.eq.s32.totalorder %s21, 0
      %p146 = por %p144, %p145
      %p147 = scmp.ne.s32.totalorder %s139, %s141
      %p148 = scmp.eq.s32.totalorder %s26, 1
      %p149 = por %p147, %p148
      %p150 = scmp.ne.s32.totalorder %s141, %s142
      %p151 = scmp.eq.s32.totalorder %s26, 0
      %p152 = por %p150, %p151
      %p153 = scmp.ne.s32.totalorder %s141, %s142
      %p154 = scmp.eq.s32.totalorder %s27, 1
      %p155 = por %p153, %p154
      %p157 = scmp.ne.s32.totalorder %s142, %s156
      %p158 = scmp.eq.s32.totalorder %s27, 0
      %p159 = por %p157, %p158
      %s161 = sadd.s32 %s160, 1
      %p164 = scmp.eq.s32.totalorder %s21, 1
      %p165 = scmp.ne.s32.totalorder %s160, %s162
      %p166 = scmp.eq.s32.totalorder %s21, 0
      %p167 = por %p165, %p166
      %p168 = scmp.ne.s32.totalorder %s160, %s162
      %p169 = scmp.eq.s32.totalorder %s26, 1
      %p170 = por %p168, %p169
      %p171 = scmp.ne.s32.totalorder %s162, %s163
      %p172 = scmp.eq.s32.totalorder %s26, 0
      %p173 = por %p171, %p172
      %p174 = scmp.ne.s32.totalorder %s162, %s163
      %p175 = scmp.eq.s32.totalorder %s27, 1
      %p176 = por %p174, %p175
      %p178 = scmp.ne.s32.totalorder %s163, %s177
      %p179 = scmp.eq.s32.totalorder %s27, 0
      %p180 = por %p178, %p179
      %s181 = ssub.s32 %s21, %s28
      %p182 = scmp.eq.s32.totalorder %s181, 0
      %s184 = sadd.s32 %s183, 1
      %s185 = scalar_select %p182, %s183, %s184
      %p188 = pneg %p182
      %p189 = scmp.eq.s32.totalorder %s21, 1
      %p190 = por %p188, %p189
      %p191 = scmp.ne.s32.totalorder %s183, %s186
      %p192 = scmp.eq.s32.totalorder %s21, 0
      %p193 = por %p191, %p192
      %p194 = scmp.ne.s32.totalorder %s183, %s186
      %p195 = scmp.eq.s32.totalorder %s26, 1
      %p196 = por %p194, %p195
      %p197 = scmp.ne.s32.totalorder %s186, %s187
      %p198 = scmp.eq.s32.totalorder %s26, 0
      %p199 = por %p197, %p198
      %p200 = scmp.ne.s32.totalorder %s186, %s187
      %p201 = scmp.eq.s32.totalorder %s27, 1
      %p202 = por %p200, %p201
      %p204 = scmp.ne.s32.totalorder %s187, %s203
      %p205 = scmp.eq.s32.totalorder %s27, 0
      %p206 = por %p204, %p205
      %p207 = scmp.le.s32.totalorder 1, %s21
      %p208 = scmp.lt.s32.totalorder %s21, 3
      %p209 = pnand %p207, %p208
      %p210 = pneg %p209
      // Predicated region
      $region9: #{tpu_custom_call.1} parent=5 // pred_check
        _
      $region10: #{tpu_custom_call.1} parent=5 // pred_check_branch
        %212 = sbr.rel (%p209) target = $region12
      $region11: #{tpu_custom_call.1} parent=5 // pred_region
        %s213 = ssub.s32 %s21, 1
        // Predicated region
        $region13: #{tpu_custom_call.1} parent=11 // pred_check
          %p214 = pneg %p68
        $region14: #{tpu_custom_call.1} parent=11 // pred_check_branch
          %216 = sbr.rel (%p214) target = $region16
        $region15: #{tpu_custom_call.1} parent=11 // pred_region
          %218 = vsyncadd [#allocation6], 0
          %s219 = sshll.u32 %s1, 4
          %s220 = int_to_ptr.hbm [resolvable:$true] %s219
          %s221 = sshll.u32 [#allocation5], 4
          %s222 = int_to_ptr.vmem [resolvable:$true] %s221
          %227 = dma.hbm_to_vmem [thread:$0]  %s220, 8192, %s222, [#allocation6], 128, 128, 8
        $region16: #{tpu_custom_call.1} parent=11 // pred_fallthru
          _
        // Predicated region
        $region17: #{tpu_custom_call.1} parent=11 // pred_check
          %p228 = pneg %p89
        $region18: #{tpu_custom_call.1} parent=11 // pred_check_branch
          %230 = sbr.rel (%p228) target = $region20
        $region19: #{tpu_custom_call.1} parent=11 // pred_region
          %232 = vsyncadd [#allocation6], 0
          %s234 = sshll.u32 %s2, 4
          %s235 = int_to_ptr.hbm [resolvable:$true] %s234
          %s236 = sshll.u32 [#allocation7], 4
          %s237 = int_to_ptr.vmem [resolvable:$true] %s236
          %239 = dma.hbm_to_vmem [thread:$0]  %s235, 32, %s237, [#allocation6]
        $region20: #{tpu_custom_call.1} parent=11 // pred_fallthru
          _
        // Predicated region
        $region21: #{tpu_custom_call.1} parent=11 // pred_check
          %p240 = pneg %p110
        $region22: #{tpu_custom_call.1} parent=11 // pred_check_branch
          %242 = sbr.rel (%p240) target = $region24
        $region23: #{tpu_custom_call.1} parent=11 // pred_region
          %244 = vsyncadd [#allocation9], 0
          %s245 = sshll.u32 %s3, 4
          %s246 = int_to_ptr.hbm [resolvable:$true] %s245
          %s247 = sshll.u32 [#allocation8], 4
          %s248 = int_to_ptr.vmem [resolvable:$true] %s247
          %253 = dma.hbm_to_vmem [thread:$0]  %s246, 4096, %s248, [#allocation9], 128, 128, 8
        $region24: #{tpu_custom_call.1} parent=11 // pred_fallthru
          _
        // Predicated region
        $region25: #{tpu_custom_call.1} parent=11 // pred_check
          %p254 = pneg %p131
        $region26: #{tpu_custom_call.1} parent=11 // pred_check_branch
          %256 = sbr.rel (%p254) target = $region28
        $region27: #{tpu_custom_call.1} parent=11 // pred_region
          _
        $region28: #{tpu_custom_call.1} parent=11 // pred_fallthru
          _
        // Predicated region
        $region29: #{tpu_custom_call.1} parent=11 // pred_check
          %p257 = pneg %p152
        $region30: #{tpu_custom_call.1} parent=11 // pred_check_branch
          %259 = sbr.rel (%p257) target = $region32
        $region31: #{tpu_custom_call.1} parent=11 // pred_region
          %261 = vsyncadd [#allocation9], 0
          %s262 = sshll.u32 %s5, 4
          %s263 = int_to_ptr.hbm [resolvable:$true] %s262
          %s264 = sshll.u32 [#allocation10], 4
          %s265 = int_to_ptr.vmem [resolvable:$true] %s264
          %270 = dma.hbm_to_vmem [thread:$0]  %s263, 4096, %s265, [#allocation9], 128, 128, 8
        $region32: #{tpu_custom_call.1} parent=11 // pred_fallthru
          _
        // Predicated region
        $region33: #{tpu_custom_call.1} parent=11 // pred_check
          %p271 = pneg %p173
        $region34: #{tpu_custom_call.1} parent=11 // pred_check_branch
          %273 = sbr.rel (%p271) target = $region36
        $region35: #{tpu_custom_call.1} parent=11 // pred_region
          _
        $region36: #{tpu_custom_call.1} parent=11 // pred_fallthru
          _
      $region12: #{tpu_custom_call.1} parent=5 // pred_fallthru
        _
      %p274 = scmp.lt.s32.totalorder %s21, 2
      // Predicated region
      $region37: #{tpu_custom_call.1} parent=5 // pred_check
        %p275 = pneg %p274
      $region38: #{tpu_custom_call.1} parent=5 // pred_check_branch
        %277 = sbr.rel (%p275) target = $region40
      $region39: #{tpu_custom_call.1} parent=5 // pred_region
        // Predicated region
        $region41: #{tpu_custom_call.1} parent=39 // pred_check
          %p278 = pneg %p41
        $region42: #{tpu_custom_call.1} parent=39 // pred_check_branch
          %280 = sbr.rel (%p278) target = $region44
        $region43: #{tpu_custom_call.1} parent=39 // pred_region
          %s281 = sand.u32 %s31, 1
          %s282 = scalar_lea.sflag [#allocation3], %s281
          %s283 = sand.u32 %s31, 1
          %s284 = smul.addr %s283, 1024
          %s285 = scalar_lea.vmem [#allocation2], %s284
          %s286 = smul.u32 32, %s21
          %288 = vsyncadd %s282, 0
          %s289 = smul.addr %s286, 4
          %s290 = smul.addr %s289, 8
          %s291 = scalar_lea.hbm %s0, %s290
          %s292 = sshll.u32 %s291, 4
          %s293 = int_to_ptr.hbm [resolvable:$true] %s292
          %s294 = sshll.u32 %s285, 4
          %s295 = int_to_ptr.vmem [resolvable:$true] %s294
          %300 = dma.hbm_to_vmem [thread:$0]  %s293, 16384, %s295, %s282, 512, 512, 32
        $region44: #{tpu_custom_call.1} parent=39 // pred_fallthru
          _
      $region40: #{tpu_custom_call.1} parent=5 // pred_fallthru
        _
      %p301 = scmp.le.s32.totalorder 1, %s21
      %p302 = scmp.lt.s32.totalorder %s21, 3
      %p303 = pnand %p301, %p302
      %p304 = pneg %p303
      // Predicated region
      $region45: #{tpu_custom_call.1} parent=5 // pred_check
        _
      $region46: #{tpu_custom_call.1} parent=5 // pred_check_branch
        %306 = sbr.rel (%p303) target = $region48
      $region47: #{tpu_custom_call.1} parent=5 // pred_region
        %s307 = ssub.s32 %s21, 1
        %s308 = sand.u32 %s34, 1
        %s309 = scalar_lea.sflag [#allocation3], %s308
        %s310 = sand.u32 %s34, 1
        %s311 = smul.addr %s310, 1024
        %s312 = scalar_lea.vmem [#allocation2], %s311
        // Predicated region
        $region49: #{tpu_custom_call.1} parent=47 // pred_check
          %p313 = pneg %p47
        $region50: #{tpu_custom_call.1} parent=47 // pred_check_branch
          %315 = sbr.rel (%p313) target = $region52
        $region51: #{tpu_custom_call.1} parent=47 // pred_region
          %317 = dma.done %s309, 16384
        $region52: #{tpu_custom_call.1} parent=47 // pred_fallthru
          _
        // Predicated region
        $region53: #{tpu_custom_call.1} parent=47 // pred_check
          %p318 = pneg %p68
        $region54: #{tpu_custom_call.1} parent=47 // pred_check_branch
          %320 = sbr.rel (%p318) target = $region56
        $region55: #{tpu_custom_call.1} parent=47 // pred_region
          %322 = dma.done [#allocation6], 8192
        $region56: #{tpu_custom_call.1} parent=47 // pred_fallthru
          _
        // Predicated region
        $region57: #{tpu_custom_call.1} parent=47 // pred_check
          %p323 = pneg %p89
        $region58: #{tpu_custom_call.1} parent=47 // pred_check_branch
          %325 = sbr.rel (%p323) target = $region60
        $region59: #{tpu_custom_call.1} parent=47 // pred_region
          %327 = dma.done [#allocation6], 32
        $region60: #{tpu_custom_call.1} parent=47 // pred_fallthru
          _
        // Predicated region
        $region61: #{tpu_custom_call.1} parent=47 // pred_check
          %p328 = pneg %p110
        $region62: #{tpu_custom_call.1} parent=47 // pred_check_branch
          %330 = sbr.rel (%p328) target = $region64
        $region63: #{tpu_custom_call.1} parent=47 // pred_region
          %332 = dma.done [#allocation9], 4096
        $region64: #{tpu_custom_call.1} parent=47 // pred_fallthru
          _
        // Predicated region
        $region65: #{tpu_custom_call.1} parent=47 // pred_check
          %p333 = pneg %p152
        $region66: #{tpu_custom_call.1} parent=47 // pred_check_branch
          %335 = sbr.rel (%p333) target = $region68
        $region67: #{tpu_custom_call.1} parent=47 // pred_region
          %337 = dma.done [#allocation9], 4096
        $region68: #{tpu_custom_call.1} parent=47 // pred_fallthru
          _
        %s338 = sand.u32 %s34, 1
        %s339 = scalar_lea.sflag [#allocation3], %s338
        %s340 = sand.u32 %s34, 1
        %s341 = smul.addr %s340, 1024
        %s342 = scalar_lea.vmem [#allocation2], %s341
        %p343 = pneg %p47
        %p344 = pneg %p44
        %p345 = pneg %p68
        %p346 = pneg %p65
        %p347 = pneg %p89
        %p348 = pneg %p86
        %p349 = pneg %p110
        %p350 = pneg %p107
        %p351 = pneg %p131
        %p352 = pneg %p128
        %p353 = pneg %p152
        %p354 = pneg %p149
        %p355 = pneg %p173
        %p356 = pneg %p170
        %p357 = pneg %p199
        %p358 = pneg %p196
        %s359 = sand.u32 %s186, 1
        %s360 = scalar_lea.sflag [#allocation4], %s359
        %s361 = sand.u32 %s186, 1
        %s362 = smul.addr %s361, 512
        %s363 = scalar_lea.vmem [#allocation11], %s362
        %s364 = smul.u32 32, %s26
        %s365 = smul.u32 32, %s26
        %v366 = vld [vmem:[%s312] sm:$0xff]
        %v367 = vld [vmem:[%s312 + $0x8] sm:$0xff]
        %v368 = vld [vmem:[%s312 + $0x10] sm:$0xff]
        %v369 = vld [vmem:[%s312 + $0x18] sm:$0xff]
        %v370 = vld [vmem:[%s312 + $0x20] sm:$0xff]
        %v371 = vld [vmem:[%s312 + $0x28] sm:$0xff]
        %v372 = vld [vmem:[%s312 + $0x30] sm:$0xff]
        %v373 = vld [vmem:[%s312 + $0x38] sm:$0xff]
        %v374 = vld [vmem:[%s312 + $0x40] sm:$0xff]
        %v375 = vld [vmem:[%s312 + $0x48] sm:$0xff]
        %v376 = vld [vmem:[%s312 + $0x50] sm:$0xff]
        %v377 = vld [vmem:[%s312 + $0x58] sm:$0xff]
        %v378 = vld [vmem:[%s312 + $0x60] sm:$0xff]
        %v379 = vld [vmem:[%s312 + $0x68] sm:$0xff]
        %v380 = vld [vmem:[%s312 + $0x70] sm:$0xff]
        %v381 = vld [vmem:[%s312 + $0x78] sm:$0xff]
        %v382 = vld [vmem:[%s312 + $0x80] sm:$0xff]
        %v383 = vld [vmem:[%s312 + $0x88] sm:$0xff]
        %v384 = vld [vmem:[%s312 + $0x90] sm:$0xff]
        %v385 = vld [vmem:[%s312 + $0x98] sm:$0xff]
        %v386 = vld [vmem:[%s312 + $0xa0] sm:$0xff]
        %v387 = vld [vmem:[%s312 + $0xa8] sm:$0xff]
        %v388 = vld [vmem:[%s312 + $0xb0] sm:$0xff]
        %v389 = vld [vmem:[%s312 + $0xb8] sm:$0xff]
        %v390 = vld [vmem:[%s312 + $0xc0] sm:$0xff]
        %v391 = vld [vmem:[%s312 + $0xc8] sm:$0xff]
        %v392 = vld [vmem:[%s312 + $0xd0] sm:$0xff]
        %v393 = vld [vmem:[%s312 + $0xd8] sm:$0xff]
        %v394 = vld [vmem:[%s312 + $0xe0] sm:$0xff]
        %v395 = vld [vmem:[%s312 + $0xe8] sm:$0xff]
        %v396 = vld [vmem:[%s312 + $0xf0] sm:$0xff]
        %v397 = vld [vmem:[%s312 + $0xf8] sm:$0xff]
        %v398 = vld [vmem:[%s312 + $0x100] sm:$0xff]
        %v399 = vld [vmem:[%s312 + $0x108] sm:$0xff]
        %v400 = vld [vmem:[%s312 + $0x110] sm:$0xff]
        %v401 = vld [vmem:[%s312 + $0x118] sm:$0xff]
        %v402 = vld [vmem:[%s312 + $0x120] sm:$0xff]
        %v403 = vld [vmem:[%s312 + $0x128] sm:$0xff]
        %v404 = vld [vmem:[%s312 + $0x130] sm:$0xff]
        %v405 = vld [vmem:[%s312 + $0x138] sm:$0xff]
        %v406 = vld [vmem:[%s312 + $0x140] sm:$0xff]
        %v407 = vld [vmem:[%s312 + $0x148] sm:$0xff]
        %v408 = vld [vmem:[%s312 + $0x150] sm:$0xff]
        %v409 = vld [vmem:[%s312 + $0x158] sm:$0xff]
        %v410 = vld [vmem:[%s312 + $0x160] sm:$0xff]
        %v411 = vld [vmem:[%s312 + $0x168] sm:$0xff]
        %v412 = vld [vmem:[%s312 + $0x170] sm:$0xff]
        %v413 = vld [vmem:[%s312 + $0x178] sm:$0xff]
        %v414 = vld [vmem:[%s312 + $0x180] sm:$0xff]
        %v415 = vld [vmem:[%s312 + $0x188] sm:$0xff]
        %v416 = vld [vmem:[%s312 + $0x190] sm:$0xff]
        %v417 = vld [vmem:[%s312 + $0x198] sm:$0xff]
        %v418 = vld [vmem:[%s312 + $0x1a0] sm:$0xff]
        %v419 = vld [vmem:[%s312 + $0x1a8] sm:$0xff]
        %v420 = vld [vmem:[%s312 + $0x1b0] sm:$0xff]
        %v421 = vld [vmem:[%s312 + $0x1b8] sm:$0xff]
        %v422 = vld [vmem:[%s312 + $0x1c0] sm:$0xff]
        %v423 = vld [vmem:[%s312 + $0x1c8] sm:$0xff]
        %v424 = vld [vmem:[%s312 + $0x1d0] sm:$0xff]
        %v425 = vld [vmem:[%s312 + $0x1d8] sm:$0xff]
        %v426 = vld [vmem:[%s312 + $0x1e0] sm:$0xff]
        %v427 = vld [vmem:[%s312 + $0x1e8] sm:$0xff]
        %v428 = vld [vmem:[%s312 + $0x1f0] sm:$0xff]
        %v429 = vld [vmem:[%s312 + $0x1f8] sm:$0xff]
        %v430 = vld [vmem:[%s312 + $0x200] sm:$0xff]
        %v431 = vld [vmem:[%s312 + $0x208] sm:$0xff]
        %v432 = vld [vmem:[%s312 + $0x210] sm:$0xff]
        %v433 = vld [vmem:[%s312 + $0x218] sm:$0xff]
        %v434 = vld [vmem:[%s312 + $0x220] sm:$0xff]
        %v435 = vld [vmem:[%s312 + $0x228] sm:$0xff]
        %v436 = vld [vmem:[%s312 + $0x230] sm:$0xff]
        %v437 = vld [vmem:[%s312 + $0x238] sm:$0xff]
        %v438 = vld [vmem:[%s312 + $0x240] sm:$0xff]
        %v439 = vld [vmem:[%s312 + $0x248] sm:$0xff]
        %v440 = vld [vmem:[%s312 + $0x250] sm:$0xff]
        %v441 = vld [vmem:[%s312 + $0x258] sm:$0xff]
        %v442 = vld [vmem:[%s312 + $0x260] sm:$0xff]
        %v443 = vld [vmem:[%s312 + $0x268] sm:$0xff]
        %v444 = vld [vmem:[%s312 + $0x270] sm:$0xff]
        %v445 = vld [vmem:[%s312 + $0x278] sm:$0xff]
        %v446 = vld [vmem:[%s312 + $0x280] sm:$0xff]
        %v447 = vld [vmem:[%s312 + $0x288] sm:$0xff]
        %v448 = vld [vmem:[%s312 + $0x290] sm:$0xff]
        %v449 = vld [vmem:[%s312 + $0x298] sm:$0xff]
        %v450 = vld [vmem:[%s312 + $0x2a0] sm:$0xff]
        %v451 = vld [vmem:[%s312 + $0x2a8] sm:$0xff]
        %v452 = vld [vmem:[%s312 + $0x2b0] sm:$0xff]
        %v453 = vld [vmem:[%s312 + $0x2b8] sm:$0xff]
        %v454 = vld [vmem:[%s312 + $0x2c0] sm:$0xff]
        %v455 = vld [vmem:[%s312 + $0x2c8] sm:$0xff]
        %v456 = vld [vmem:[%s312 + $0x2d0] sm:$0xff]
        %v457 = vld [vmem:[%s312 + $0x2d8] sm:$0xff]
        %v458 = vld [vmem:[%s312 + $0x2e0] sm:$0xff]
        %v459 = vld [vmem:[%s312 + $0x2e8] sm:$0xff]
        %v460 = vld [vmem:[%s312 + $0x2f0] sm:$0xff]
        %v461 = vld [vmem:[%s312 + $0x2f8] sm:$0xff]
        %v462 = vld [vmem:[%s312 + $0x300] sm:$0xff]
        %v463 = vld [vmem:[%s312 + $0x308] sm:$0xff]
        %v464 = vld [vmem:[%s312 + $0x310] sm:$0xff]
        %v465 = vld [vmem:[%s312 + $0x318] sm:$0xff]
        %v466 = vld [vmem:[%s312 + $0x320] sm:$0xff]
        %v467 = vld [vmem:[%s312 + $0x328] sm:$0xff]
        %v468 = vld [vmem:[%s312 + $0x330] sm:$0xff]
        %v469 = vld [vmem:[%s312 + $0x338] sm:$0xff]
        %v470 = vld [vmem:[%s312 + $0x340] sm:$0xff]
        %v471 = vld [vmem:[%s312 + $0x348] sm:$0xff]
        %v472 = vld [vmem:[%s312 + $0x350] sm:$0xff]
        %v473 = vld [vmem:[%s312 + $0x358] sm:$0xff]
        %v474 = vld [vmem:[%s312 + $0x360] sm:$0xff]
        %v475 = vld [vmem:[%s312 + $0x368] sm:$0xff]
        %v476 = vld [vmem:[%s312 + $0x370] sm:$0xff]
        %v477 = vld [vmem:[%s312 + $0x378] sm:$0xff]
        %v478 = vld [vmem:[%s312 + $0x380] sm:$0xff]
        %v479 = vld [vmem:[%s312 + $0x388] sm:$0xff]
        %v480 = vld [vmem:[%s312 + $0x390] sm:$0xff]
        %v481 = vld [vmem:[%s312 + $0x398] sm:$0xff]
        %v482 = vld [vmem:[%s312 + $0x3a0] sm:$0xff]
        %v483 = vld [vmem:[%s312 + $0x3a8] sm:$0xff]
        %v484 = vld [vmem:[%s312 + $0x3b0] sm:$0xff]
        %v485 = vld [vmem:[%s312 + $0x3b8] sm:$0xff]
        %v486 = vld [vmem:[%s312 + $0x3c0] sm:$0xff]
        %v487 = vld [vmem:[%s312 + $0x3c8] sm:$0xff]
        %v488 = vld [vmem:[%s312 + $0x3d0] sm:$0xff]
        %v489 = vld [vmem:[%s312 + $0x3d8] sm:$0xff]
        %v490 = vld [vmem:[%s312 + $0x3e0] sm:$0xff]
        %v491 = vld [vmem:[%s312 + $0x3e8] sm:$0xff]
        %v492 = vld [vmem:[%s312 + $0x3f0] sm:$0xff]
        %v493 = vld [vmem:[%s312 + $0x3f8] sm:$0xff]
        %v494 = vpack.c.bf16 %v370, %v366
        %v495 = vpack.c.bf16 %v371, %v367
        %v496 = vpack.c.bf16 %v372, %v368
        %v497 = vpack.c.bf16 %v373, %v369
        %v498 = vpack.c.bf16 %v378, %v374
        %v499 = vpack.c.bf16 %v379, %v375
        %v500 = vpack.c.bf16 %v380, %v376
        %v501 = vpack.c.bf16 %v381, %v377
        %v502 = vpack.c.bf16 %v386, %v382
        %v503 = vpack.c.bf16 %v387, %v383
        %v504 = vpack.c.bf16 %v388, %v384
        %v505 = vpack.c.bf16 %v389, %v385
        %v506 = vpack.c.bf16 %v394, %v390
        %v507 = vpack.c.bf16 %v395, %v391
        %v508 = vpack.c.bf16 %v396, %v392
        %v509 = vpack.c.bf16 %v397, %v393
        %v510 = vpack.c.bf16 %v402, %v398
        %v511 = vpack.c.bf16 %v403, %v399
        %v512 = vpack.c.bf16 %v404, %v400
        %v513 = vpack.c.bf16 %v405, %v401
        %v514 = vpack.c.bf16 %v410, %v406
        %v515 = vpack.c.bf16 %v411, %v407
        %v516 = vpack.c.bf16 %v412, %v408
        %v517 = vpack.c.bf16 %v413, %v409
        %v518 = vpack.c.bf16 %v418, %v414
        %v519 = vpack.c.bf16 %v419, %v415
        %v520 = vpack.c.bf16 %v420, %v416
        %v521 = vpack.c.bf16 %v421, %v417
        %v522 = vpack.c.bf16 %v426, %v422
        %v523 = vpack.c.bf16 %v427, %v423
        %v524 = vpack.c.bf16 %v428, %v424
        %v525 = vpack.c.bf16 %v429, %v425
        %v526 = vpack.c.bf16 %v434, %v430
        %v527 = vpack.c.bf16 %v435, %v431
        %v528 = vpack.c.bf16 %v436, %v432
        %v529 = vpack.c.bf16 %v437, %v433
        %v530 = vpack.c.bf16 %v442, %v438
        %v531 = vpack.c.bf16 %v443, %v439
        %v532 = vpack.c.bf16 %v444, %v440
        %v533 = vpack.c.bf16 %v445, %v441
        %v534 = vpack.c.bf16 %v450, %v446
        %v535 = vpack.c.bf16 %v451, %v447
        %v536 = vpack.c.bf16 %v452, %v448
        %v537 = vpack.c.bf16 %v453, %v449
        %v538 = vpack.c.bf16 %v458, %v454
        %v539 = vpack.c.bf16 %v459, %v455
        %v540 = vpack.c.bf16 %v460, %v456
        %v541 = vpack.c.bf16 %v461, %v457
        %v542 = vpack.c.bf16 %v466, %v462
        %v543 = vpack.c.bf16 %v467, %v463
        %v544 = vpack.c.bf16 %v468, %v464
        %v545 = vpack.c.bf16 %v469, %v465
        %v546 = vpack.c.bf16 %v474, %v470
        %v547 = vpack.c.bf16 %v475, %v471
        %v548 = vpack.c.bf16 %v476, %v472
        %v549 = vpack.c.bf16 %v477, %v473
        %v550 = vpack.c.bf16 %v482, %v478
        %v551 = vpack.c.bf16 %v483, %v479
        %v552 = vpack.c.bf16 %v484, %v480
        %v553 = vpack.c.bf16 %v485, %v481
        %v554 = vpack.c.bf16 %v490, %v486
        %v555 = vpack.c.bf16 %v491, %v487
        %v556 = vpack.c.bf16 %v492, %v488
        %v557 = vpack.c.bf16 %v493, %v489
        %v558 = vld [vmem:[#allocation5] sm:$0xff]
        %v559 = vld [vmem:[#allocation5 + $0x8] sm:$0xff]
        %v560 = vld [vmem:[#allocation5 + $0x10] sm:$0xff]
        %v561 = vld [vmem:[#allocation5 + $0x18] sm:$0xff]
        %v562 = vld [vmem:[#allocation5 + $0x20] sm:$0xff]
        %v563 = vld [vmem:[#allocation5 + $0x28] sm:$0xff]
        %v564 = vld [vmem:[#allocation5 + $0x30] sm:$0xff]
        %v565 = vld [vmem:[#allocation5 + $0x38] sm:$0xff]
        %v566 = vld [vmem:[#allocation5 + $0x40] sm:$0xff]
        %v567 = vld [vmem:[#allocation5 + $0x48] sm:$0xff]
        %v568 = vld [vmem:[#allocation5 + $0x50] sm:$0xff]
        %v569 = vld [vmem:[#allocation5 + $0x58] sm:$0xff]
        %v570 = vld [vmem:[#allocation5 + $0x60] sm:$0xff]
        %v571 = vld [vmem:[#allocation5 + $0x68] sm:$0xff]
        %v572 = vld [vmem:[#allocation5 + $0x70] sm:$0xff]
        %v573 = vld [vmem:[#allocation5 + $0x78] sm:$0xff]
        %v574 = vld [vmem:[#allocation5 + $0x80] sm:$0xff]
        %v575 = vld [vmem:[#allocation5 + $0x88] sm:$0xff]
        %v576 = vld [vmem:[#allocation5 + $0x90] sm:$0xff]
        %v577 = vld [vmem:[#allocation5 + $0x98] sm:$0xff]
        %v578 = vld [vmem:[#allocation5 + $0xa0] sm:$0xff]
        %v579 = vld [vmem:[#allocation5 + $0xa8] sm:$0xff]
        %v580 = vld [vmem:[#allocation5 + $0xb0] sm:$0xff]
        %v581 = vld [vmem:[#allocation5 + $0xb8] sm:$0xff]
        %v582 = vld [vmem:[#allocation5 + $0xc0] sm:$0xff]
        %v583 = vld [vmem:[#allocation5 + $0xc8] sm:$0xff]
        %v584 = vld [vmem:[#allocation5 + $0xd0] sm:$0xff]
        %v585 = vld [vmem:[#allocation5 + $0xd8] sm:$0xff]
        %v586 = vld [vmem:[#allocation5 + $0xe0] sm:$0xff]
        %v587 = vld [vmem:[#allocation5 + $0xe8] sm:$0xff]
        %v588 = vld [vmem:[#allocation5 + $0xf0] sm:$0xff]
        %v589 = vld [vmem:[#allocation5 + $0xf8] sm:$0xff]
        %v590 = vld [vmem:[#allocation5 + $0x100] sm:$0xff]
        %v591 = vld [vmem:[#allocation5 + $0x108] sm:$0xff]
        %v592 = vld [vmem:[#allocation5 + $0x110] sm:$0xff]
        %v593 = vld [vmem:[#allocation5 + $0x118] sm:$0xff]
        %v594 = vld [vmem:[#allocation5 + $0x120] sm:$0xff]
        %v595 = vld [vmem:[#allocation5 + $0x128] sm:$0xff]
        %v596 = vld [vmem:[#allocation5 + $0x130] sm:$0xff]
        %v597 = vld [vmem:[#allocation5 + $0x138] sm:$0xff]
        %v598 = vld [vmem:[#allocation5 + $0x140] sm:$0xff]
        %v599 = vld [vmem:[#allocation5 + $0x148] sm:$0xff]
        %v600 = vld [vmem:[#allocation5 + $0x150] sm:$0xff]
        %v601 = vld [vmem:[#allocation5 + $0x158] sm:$0xff]
        %v602 = vld [vmem:[#allocation5 + $0x160] sm:$0xff]
        %v603 = vld [vmem:[#allocation5 + $0x168] sm:$0xff]
        %v604 = vld [vmem:[#allocation5 + $0x170] sm:$0xff]
        %v605 = vld [vmem:[#allocation5 + $0x178] sm:$0xff]
        %v606 = vld [vmem:[#allocation5 + $0x180] sm:$0xff]
        %v607 = vld [vmem:[#allocation5 + $0x188] sm:$0xff]
        %v608 = vld [vmem:[#allocation5 + $0x190] sm:$0xff]
        %v609 = vld [vmem:[#allocation5 + $0x198] sm:$0xff]
        %v610 = vld [vmem:[#allocation5 + $0x1a0] sm:$0xff]
        %v611 = vld [vmem:[#allocation5 + $0x1a8] sm:$0xff]
        %v612 = vld [vmem:[#allocation5 + $0x1b0] sm:$0xff]
        %v613 = vld [vmem:[#allocation5 + $0x1b8] sm:$0xff]
        %v614 = vld [vmem:[#allocation5 + $0x1c0] sm:$0xff]
        %v615 = vld [vmem:[#allocation5 + $0x1c8] sm:$0xff]
        %v616 = vld [vmem:[#allocation5 + $0x1d0] sm:$0xff]
        %v617 = vld [vmem:[#allocation5 + $0x1d8] sm:$0xff]
        %v618 = vld [vmem:[#allocation5 + $0x1e0] sm:$0xff]
        %v619 = vld [vmem:[#allocation5 + $0x1e8] sm:$0xff]
        %v620 = vld [vmem:[#allocation5 + $0x1f0] sm:$0xff]
        %v621 = vld [vmem:[#allocation5 + $0x1f8] sm:$0xff]
        %v622 = vld [vmem:[#allocation7] sm:$0x3]
        %v624 = vperm.slane %v622, 0
        %v625 = vperm.slane %v622, 1
        %v692 = vunpack.c.l.b16 %v558
        %v693 = vunpack.c.h.b16 %v558
        %v694 = vunpack.c.l.b16 %v559
        %v695 = vunpack.c.h.b16 %v559
        %v696 = vunpack.c.l.b16 %v560
        %v697 = vunpack.c.h.b16 %v560
        %v698 = vunpack.c.l.b16 %v561
        %v699 = vunpack.c.h.b16 %v561
        %v700 = vunpack.c.l.b16 %v562
        %v701 = vunpack.c.h.b16 %v562
        %v702 = vunpack.c.l.b16 %v563
        %v703 = vunpack.c.h.b16 %v563
        %v704 = vunpack.c.l.b16 %v564
        %v705 = vunpack.c.h.b16 %v564
        %v706 = vunpack.c.l.b16 %v565
        %v707 = vunpack.c.h.b16 %v565
        %v708 = vunpack.c.l.b16 %v566
        %v709 = vunpack.c.h.b16 %v566
        %v710 = vunpack.c.l.b16 %v567
        %v711 = vunpack.c.h.b16 %v567
        %v712 = vunpack.c.l.b16 %v568
        %v713 = vunpack.c.h.b16 %v568
        %v714 = vunpack.c.l.b16 %v569
        %v715 = vunpack.c.h.b16 %v569
        %v716 = vunpack.c.l.b16 %v570
        %v717 = vunpack.c.h.b16 %v570
        %v718 = vunpack.c.l.b16 %v571
        %v719 = vunpack.c.h.b16 %v571
        %v720 = vunpack.c.l.b16 %v572
        %v721 = vunpack.c.h.b16 %v572
        %v722 = vunpack.c.l.b16 %v573
        %v723 = vunpack.c.h.b16 %v573
        %v724 = vunpack.c.l.b16 %v574
        %v725 = vunpack.c.h.b16 %v574
        %v726 = vunpack.c.l.b16 %v575
        %v727 = vunpack.c.h.b16 %v575
        %v728 = vunpack.c.l.b16 %v576
        %v729 = vunpack.c.h.b16 %v576
        %v730 = vunpack.c.l.b16 %v577
        %v731 = vunpack.c.h.b16 %v577
        %v732 = vunpack.c.l.b16 %v578
        %v733 = vunpack.c.h.b16 %v578
        %v734 = vunpack.c.l.b16 %v579
        %v735 = vunpack.c.h.b16 %v579
        %v736 = vunpack.c.l.b16 %v580
        %v737 = vunpack.c.h.b16 %v580
        %v738 = vunpack.c.l.b16 %v581
        %v739 = vunpack.c.h.b16 %v581
        %v740 = vunpack.c.l.b16 %v582
        %v741 = vunpack.c.h.b16 %v582
        %v742 = vunpack.c.l.b16 %v583
        %v743 = vunpack.c.h.b16 %v583
        %v744 = vunpack.c.l.b16 %v584
        %v745 = vunpack.c.h.b16 %v584
        %v746 = vunpack.c.l.b16 %v585
        %v747 = vunpack.c.h.b16 %v585
        %v748 = vunpack.c.l.b16 %v586
        %v749 = vunpack.c.h.b16 %v586
        %v750 = vunpack.c.l.b16 %v587
        %v751 = vunpack.c.h.b16 %v587
        %v752 = vunpack.c.l.b16 %v588
        %v753 = vunpack.c.h.b16 %v588
        %v754 = vunpack.c.l.b16 %v589
        %v755 = vunpack.c.h.b16 %v589
        %v756 = vunpack.c.l.b16 %v590
        %v757 = vunpack.c.h.b16 %v590
        %v758 = vunpack.c.l.b16 %v591
        %v759 = vunpack.c.h.b16 %v591
        %v760 = vunpack.c.l.b16 %v592
        %v761 = vunpack.c.h.b16 %v592
        %v762 = vunpack.c.l.b16 %v593
        %v763 = vunpack.c.h.b16 %v593
        %v764 = vunpack.c.l.b16 %v594
        %v765 = vunpack.c.h.b16 %v594
        %v766 = vunpack.c.l.b16 %v595
        %v767 = vunpack.c.h.b16 %v595
        %v768 = vunpack.c.l.b16 %v596
        %v769 = vunpack.c.h.b16 %v596
        %v770 = vunpack.c.l.b16 %v597
        %v771 = vunpack.c.h.b16 %v597
        %v772 = vunpack.c.l.b16 %v598
        %v773 = vunpack.c.h.b16 %v598
        %v774 = vunpack.c.l.b16 %v599
        %v775 = vunpack.c.h.b16 %v599
        %v776 = vunpack.c.l.b16 %v600
        %v777 = vunpack.c.h.b16 %v600
        %v778 = vunpack.c.l.b16 %v601
        %v779 = vunpack.c.h.b16 %v601
        %v780 = vunpack.c.l.b16 %v602
        %v781 = vunpack.c.h.b16 %v602
        %v782 = vunpack.c.l.b16 %v603
        %v783 = vunpack.c.h.b16 %v603
        %v784 = vunpack.c.l.b16 %v604
        %v785 = vunpack.c.h.b16 %v604
        %v786 = vunpack.c.l.b16 %v605
        %v787 = vunpack.c.h.b16 %v605
        %v788 = vunpack.c.l.b16 %v606
        %v789 = vunpack.c.h.b16 %v606
        %v790 = vunpack.c.l.b16 %v607
        %v791 = vunpack.c.h.b16 %v607
        %v792 = vunpack.c.l.b16 %v608
        %v793 = vunpack.c.h.b16 %v608
        %v794 = vunpack.c.l.b16 %v609
        %v795 = vunpack.c.h.b16 %v609
        %v796 = vunpack.c.l.b16 %v610
        %v797 = vunpack.c.h.b16 %v610
        %v798 = vunpack.c.l.b16 %v611
        %v799 = vunpack.c.h.b16 %v611
        %v800 = vunpack.c.l.b16 %v612
        %v801 = vunpack.c.h.b16 %v612
        %v802 = vunpack.c.l.b16 %v613
        %v803 = vunpack.c.h.b16 %v613
        %v804 = vunpack.c.l.b16 %v614
        %v805 = vunpack.c.h.b16 %v614
        %v806 = vunpack.c.l.b16 %v615
        %v807 = vunpack.c.h.b16 %v615
        %v808 = vunpack.c.l.b16 %v616
        %v809 = vunpack.c.h.b16 %v616
        %v810 = vunpack.c.l.b16 %v617
        %v811 = vunpack.c.h.b16 %v617
        %v812 = vunpack.c.l.b16 %v618
        %v813 = vunpack.c.h.b16 %v618
        %v814 = vunpack.c.l.b16 %v619
        %v815 = vunpack.c.h.b16 %v619
        %v816 = vunpack.c.l.b16 %v620
        %v817 = vunpack.c.h.b16 %v620
        %v818 = vunpack.c.l.b16 %v621
        %v819 = vunpack.c.h.b16 %v621
        %v820 = vpack.c.b16 %v694, %v692
        %v821 = vpack.c.b16 %v695, %v693
        %v822 = vpack.c.b16 %v698, %v696
        %v823 = vpack.c.b16 %v699, %v697
        %v824 = vpack.c.b16 %v702, %v700
        %v825 = vpack.c.b16 %v703, %v701
        %v826 = vpack.c.b16 %v706, %v704
        %v827 = vpack.c.b16 %v707, %v705
        %v828 = vpack.c.b16 %v710, %v708
        %v829 = vpack.c.b16 %v711, %v709
        %v830 = vpack.c.b16 %v714, %v712
        %v831 = vpack.c.b16 %v715, %v713
        %v832 = vpack.c.b16 %v718, %v716
        %v833 = vpack.c.b16 %v719, %v717
        %v834 = vpack.c.b16 %v722, %v720
        %v835 = vpack.c.b16 %v723, %v721
        %v836 = vpack.c.b16 %v726, %v724
        %v837 = vpack.c.b16 %v727, %v725
        %v838 = vpack.c.b16 %v730, %v728
        %v839 = vpack.c.b16 %v731, %v729
        %v840 = vpack.c.b16 %v734, %v732
        %v841 = vpack.c.b16 %v735, %v733
        %v842 = vpack.c.b16 %v738, %v736
        %v843 = vpack.c.b16 %v739, %v737
        %v844 = vpack.c.b16 %v742, %v740
        %v845 = vpack.c.b16 %v743, %v741
        %v846 = vpack.c.b16 %v746, %v744
        %v847 = vpack.c.b16 %v747, %v745
        %v848 = vpack.c.b16 %v750, %v748
        %v849 = vpack.c.b16 %v751, %v749
        %v850 = vpack.c.b16 %v754, %v752
        %v851 = vpack.c.b16 %v755, %v753
        %v852 = vpack.c.b16 %v758, %v756
        %v853 = vpack.c.b16 %v759, %v757
        %v854 = vpack.c.b16 %v762, %v760
        %v855 = vpack.c.b16 %v763, %v761
        %v856 = vpack.c.b16 %v766, %v764
        %v857 = vpack.c.b16 %v767, %v765
        %v858 = vpack.c.b16 %v770, %v768
        %v859 = vpack.c.b16 %v771, %v769
        %v860 = vpack.c.b16 %v774, %v772
        %v861 = vpack.c.b16 %v775, %v773
        %v862 = vpack.c.b16 %v778, %v776
        %v863 = vpack.c.b16 %v779, %v777
        %v864 = vpack.c.b16 %v782, %v780
        %v865 = vpack.c.b16 %v783, %v781
        %v866 = vpack.c.b16 %v786, %v784
        %v867 = vpack.c.b16 %v787, %v785
        %v868 = vpack.c.b16 %v790, %v788
        %v869 = vpack.c.b16 %v791, %v789
        %v870 = vpack.c.b16 %v794, %v792
        %v871 = vpack.c.b16 %v795, %v793
        %v872 = vpack.c.b16 %v798, %v796
        %v873 = vpack.c.b16 %v799, %v797
        %v874 = vpack.c.b16 %v802, %v800
        %v875 = vpack.c.b16 %v803, %v801
        %v876 = vpack.c.b16 %v806, %v804
        %v877 = vpack.c.b16 %v807, %v805
        %v878 = vpack.c.b16 %v810, %v808
        %v879 = vpack.c.b16 %v811, %v809
        %v880 = vpack.c.b16 %v814, %v812
        %v881 = vpack.c.b16 %v815, %v813
        %v882 = vpack.c.b16 %v818, %v816
        %v883 = vpack.c.b16 %v819, %v817
        %948 = vmatpush.bf16.msra.mxu0 %v834
        %949 = vmatpush.bf16.msra.mxu0 %v832
        %950 = vmatpush.bf16.msra.mxu0 %v830
        %951 = vmatpush.bf16.msra.mxu0 %v828
        %952 = vmatpush.bf16.msra.mxu0 %v826
        %953 = vmatpush.bf16.msra.mxu0 %v824
        %954 = vmatpush.bf16.msra.mxu0 %v822
        %955 = vmatpush.bf16.msra.mxu0 %v820
        %956 = vmatmul.bf16.gmra.mxu0 %v494
        %v957 = vpop.f32.mrf.mxu0
        %v958 = vadd.f32 %v624, %v957
        %v959 = vpop.f32.mrf.mxu0
        %v960 = vadd.f32 %v624, %v959
        %961 = vmatmul.bf16.gmra.mxu0 %v498
        %v962 = vpop.f32.mrf.mxu0
        %v963 = vadd.f32 %v624, %v962
        %v964 = vpop.f32.mrf.mxu0
        %v965 = vadd.f32 %v624, %v964
        %966 = vmatmul.bf16.gmra.mxu0 %v502
        %v967 = vpop.f32.mrf.mxu0
        %v968 = vadd.f32 %v624, %v967
        %v969 = vpop.f32.mrf.mxu0
        %v970 = vadd.f32 %v624, %v969
        %971 = vmatmul.bf16.gmra.mxu0 %v506
        %v972 = vpop.f32.mrf.mxu0
        %v973 = vadd.f32 %v624, %v972
        %v974 = vpop.f32.mrf.mxu0
        %v975 = vadd.f32 %v624, %v974
        %976 = vmatmul.bf16.gmra.mxu0 %v510
        %v977 = vpop.f32.mrf.mxu0
        %v978 = vadd.f32 %v624, %v977
        %v979 = vpop.f32.mrf.mxu0
        %v980 = vadd.f32 %v624, %v979
        %981 = vmatmul.bf16.gmra.mxu0 %v514
        %v982 = vpop.f32.mrf.mxu0
        %v983 = vadd.f32 %v624, %v982
        %v984 = vpop.f32.mrf.mxu0
        %v985 = vadd.f32 %v624, %v984
        %986 = vmatmul.bf16.gmra.mxu0 %v518
        %v987 = vpop.f32.mrf.mxu0
        %v988 = vadd.f32 %v624, %v987
        %v989 = vpop.f32.mrf.mxu0
        %v990 = vadd.f32 %v624, %v989
        %991 = vmatmul.bf16.gmra.mxu0 %v522
        %v992 = vpop.f32.mrf.mxu0
        %v993 = vadd.f32 %v624, %v992
        %v994 = vpop.f32.mrf.mxu0
        %v995 = vadd.f32 %v624, %v994
        %996 = vmatmul.bf16.gmra.mxu0 %v526
        %v997 = vpop.f32.mrf.mxu0
        %v998 = vadd.f32 %v624, %v997
        %v999 = vpop.f32.mrf.mxu0
        %v1000 = vadd.f32 %v624, %v999
        %1001 = vmatmul.bf16.gmra.mxu0 %v530
        %v1002 = vpop.f32.mrf.mxu0
        %v1003 = vadd.f32 %v624, %v1002
        %v1004 = vpop.f32.mrf.mxu0
        %v1005 = vadd.f32 %v624, %v1004
        %1006 = vmatmul.bf16.gmra.mxu0 %v534
        %v1007 = vpop.f32.mrf.mxu0
        %v1008 = vadd.f32 %v624, %v1007
        %v1009 = vpop.f32.mrf.mxu0
        %v1010 = vadd.f32 %v624, %v1009
        %1011 = vmatmul.bf16.gmra.mxu0 %v538
        %v1012 = vpop.f32.mrf.mxu0
        %v1013 = vadd.f32 %v624, %v1012
        %v1014 = vpop.f32.mrf.mxu0
        %v1015 = vadd.f32 %v624, %v1014
        %1016 = vmatmul.bf16.gmra.mxu0 %v542
        %v1017 = vpop.f32.mrf.mxu0
        %v1018 = vadd.f32 %v624, %v1017
        %v1019 = vpop.f32.mrf.mxu0
        %v1020 = vadd.f32 %v624, %v1019
        %1021 = vmatmul.bf16.gmra.mxu0 %v546
        %v1022 = vpop.f32.mrf.mxu0
        %v1023 = vadd.f32 %v624, %v1022
        %v1024 = vpop.f32.mrf.mxu0
        %v1025 = vadd.f32 %v624, %v1024
        %1026 = vmatmul.bf16.gmra.mxu0 %v550
        %v1027 = vpop.f32.mrf.mxu0
        %v1028 = vadd.f32 %v624, %v1027
        %v1029 = vpop.f32.mrf.mxu0
        %v1030 = vadd.f32 %v624, %v1029
        %1031 = vmatmul.bf16.gmra.mxu0 %v554
        %v1032 = vpop.f32.mrf.mxu0
        %v1033 = vadd.f32 %v624, %v1032
        %v1034 = vpop.f32.mrf.mxu0
        %v1035 = vadd.f32 %v624, %v1034
        %1036 = vdwg.mxu0
        %1037 = vmatpush.bf16.msra.mxu0 %v850
        %1038 = vmatpush.bf16.msra.mxu0 %v848
        %1039 = vmatpush.bf16.msra.mxu0 %v846
        %1040 = vmatpush.bf16.msra.mxu0 %v844
        %1041 = vmatpush.bf16.msra.mxu0 %v842
        %1042 = vmatpush.bf16.msra.mxu0 %v840
        %1043 = vmatpush.bf16.msra.mxu0 %v838
        %1044 = vmatpush.bf16.msra.mxu0 %v836
        %1045 = vmatmul.bf16.gmra.mxu0 %v495
        %v1046 = vpop.f32.mrf.mxu0
        %v1047 = vadd.f32 %v958, %v1046
        %v1048 = vpop.f32.mrf.mxu0
        %v1049 = vadd.f32 %v960, %v1048
        %1050 = vmatmul.bf16.gmra.mxu0 %v499
        %v1051 = vpop.f32.mrf.mxu0
        %v1052 = vadd.f32 %v963, %v1051
        %v1053 = vpop.f32.mrf.mxu0
        %v1054 = vadd.f32 %v965, %v1053
        %1055 = vmatmul.bf16.gmra.mxu0 %v503
        %v1056 = vpop.f32.mrf.mxu0
        %v1057 = vadd.f32 %v968, %v1056
        %v1058 = vpop.f32.mrf.mxu0
        %v1059 = vadd.f32 %v970, %v1058
        %1060 = vmatmul.bf16.gmra.mxu0 %v507
        %v1061 = vpop.f32.mrf.mxu0
        %v1062 = vadd.f32 %v973, %v1061
        %v1063 = vpop.f32.mrf.mxu0
        %v1064 = vadd.f32 %v975, %v1063
        %1065 = vmatmul.bf16.gmra.mxu0 %v511
        %v1066 = vpop.f32.mrf.mxu0
        %v1067 = vadd.f32 %v978, %v1066
        %v1068 = vpop.f32.mrf.mxu0
        %v1069 = vadd.f32 %v980, %v1068
        %1070 = vmatmul.bf16.gmra.mxu0 %v515
        %v1071 = vpop.f32.mrf.mxu0
        %v1072 = vadd.f32 %v983, %v1071
        %v1073 = vpop.f32.mrf.mxu0
        %v1074 = vadd.f32 %v985, %v1073
        %1075 = vmatmul.bf16.gmra.mxu0 %v519
        %v1076 = vpop.f32.mrf.mxu0
        %v1077 = vadd.f32 %v988, %v1076
        %v1078 = vpop.f32.mrf.mxu0
        %v1079 = vadd.f32 %v990, %v1078
        %1080 = vmatmul.bf16.gmra.mxu0 %v523
        %v1081 = vpop.f32.mrf.mxu0
        %v1082 = vadd.f32 %v993, %v1081
        %v1083 = vpop.f32.mrf.mxu0
        %v1084 = vadd.f32 %v995, %v1083
        %1085 = vmatmul.bf16.gmra.mxu0 %v527
        %v1086 = vpop.f32.mrf.mxu0
        %v1087 = vadd.f32 %v998, %v1086
        %v1088 = vpop.f32.mrf.mxu0
        %v1089 = vadd.f32 %v1000, %v1088
        %1090 = vmatmul.bf16.gmra.mxu0 %v531
        %v1091 = vpop.f32.mrf.mxu0
        %v1092 = vadd.f32 %v1003, %v1091
        %v1093 = vpop.f32.mrf.mxu0
        %v1094 = vadd.f32 %v1005, %v1093
        %1095 = vmatmul.bf16.gmra.mxu0 %v535
        %v1096 = vpop.f32.mrf.mxu0
        %v1097 = vadd.f32 %v1008, %v1096
        %v1098 = vpop.f32.mrf.mxu0
        %v1099 = vadd.f32 %v1010, %v1098
        %1100 = vmatmul.bf16.gmra.mxu0 %v539
        %v1101 = vpop.f32.mrf.mxu0
        %v1102 = vadd.f32 %v1013, %v1101
        %v1103 = vpop.f32.mrf.mxu0
        %v1104 = vadd.f32 %v1015, %v1103
        %1105 = vmatmul.bf16.gmra.mxu0 %v543
        %v1106 = vpop.f32.mrf.mxu0
        %v1107 = vadd.f32 %v1018, %v1106
        %v1108 = vpop.f32.mrf.mxu0
        %v1109 = vadd.f32 %v1020, %v1108
        %1110 = vmatmul.bf16.gmra.mxu0 %v547
        %v1111 = vpop.f32.mrf.mxu0
        %v1112 = vadd.f32 %v1023, %v1111
        %v1113 = vpop.f32.mrf.mxu0
        %v1114 = vadd.f32 %v1025, %v1113
        %1115 = vmatmul.bf16.gmra.mxu0 %v551
        %v1116 = vpop.f32.mrf.mxu0
        %v1117 = vadd.f32 %v1028, %v1116
        %v1118 = vpop.f32.mrf.mxu0
        %v1119 = vadd.f32 %v1030, %v1118
        %1120 = vmatmul.bf16.gmra.mxu0 %v555
        %v1121 = vpop.f32.mrf.mxu0
        %v1122 = vadd.f32 %v1033, %v1121
        %v1123 = vpop.f32.mrf.mxu0
        %v1124 = vadd.f32 %v1035, %v1123
        %1125 = vdwg.mxu0
        %1126 = vmatpush.bf16.msra.mxu0 %v866
        %1127 = vmatpush.bf16.msra.mxu0 %v864
        %1128 = vmatpush.bf16.msra.mxu0 %v862
        %1129 = vmatpush.bf16.msra.mxu0 %v860
        %1130 = vmatpush.bf16.msra.mxu0 %v858
        %1131 = vmatpush.bf16.msra.mxu0 %v856
        %1132 = vmatpush.bf16.msra.mxu0 %v854
        %1133 = vmatpush.bf16.msra.mxu0 %v852
        %1134 = vmatmul.bf16.gmra.mxu0 %v496
        %v1135 = vpop.f32.mrf.mxu0
        %v1136 = vadd.f32 %v1047, %v1135
        %v1137 = vpop.f32.mrf.mxu0
        %v1138 = vadd.f32 %v1049, %v1137
        %1139 = vmatmul.bf16.gmra.mxu0 %v500
        %v1140 = vpop.f32.mrf.mxu0
        %v1141 = vadd.f32 %v1052, %v1140
        %v1142 = vpop.f32.mrf.mxu0
        %v1143 = vadd.f32 %v1054, %v1142
        %1144 = vmatmul.bf16.gmra.mxu0 %v504
        %v1145 = vpop.f32.mrf.mxu0
        %v1146 = vadd.f32 %v1057, %v1145
        %v1147 = vpop.f32.mrf.mxu0
        %v1148 = vadd.f32 %v1059, %v1147
        %1149 = vmatmul.bf16.gmra.mxu0 %v508
        %v1150 = vpop.f32.mrf.mxu0
        %v1151 = vadd.f32 %v1062, %v1150
        %v1152 = vpop.f32.mrf.mxu0
        %v1153 = vadd.f32 %v1064, %v1152
        %1154 = vmatmul.bf16.gmra.mxu0 %v512
        %v1155 = vpop.f32.mrf.mxu0
        %v1156 = vadd.f32 %v1067, %v1155
        %v1157 = vpop.f32.mrf.mxu0
        %v1158 = vadd.f32 %v1069, %v1157
        %1159 = vmatmul.bf16.gmra.mxu0 %v516
        %v1160 = vpop.f32.mrf.mxu0
        %v1161 = vadd.f32 %v1072, %v1160
        %v1162 = vpop.f32.mrf.mxu0
        %v1163 = vadd.f32 %v1074, %v1162
        %1164 = vmatmul.bf16.gmra.mxu0 %v520
        %v1165 = vpop.f32.mrf.mxu0
        %v1166 = vadd.f32 %v1077, %v1165
        %v1167 = vpop.f32.mrf.mxu0
        %v1168 = vadd.f32 %v1079, %v1167
        %1169 = vmatmul.bf16.gmra.mxu0 %v524
        %v1170 = vpop.f32.mrf.mxu0
        %v1171 = vadd.f32 %v1082, %v1170
        %v1172 = vpop.f32.mrf.mxu0
        %v1173 = vadd.f32 %v1084, %v1172
        %1174 = vmatmul.bf16.gmra.mxu0 %v528
        %v1175 = vpop.f32.mrf.mxu0
        %v1176 = vadd.f32 %v1087, %v1175
        %v1177 = vpop.f32.mrf.mxu0
        %v1178 = vadd.f32 %v1089, %v1177
        %1179 = vmatmul.bf16.gmra.mxu0 %v532
        %v1180 = vpop.f32.mrf.mxu0
        %v1181 = vadd.f32 %v1092, %v1180
        %v1182 = vpop.f32.mrf.mxu0
        %v1183 = vadd.f32 %v1094, %v1182
        %1184 = vmatmul.bf16.gmra.mxu0 %v536
        %v1185 = vpop.f32.mrf.mxu0
        %v1186 = vadd.f32 %v1097, %v1185
        %v1187 = vpop.f32.mrf.mxu0
        %v1188 = vadd.f32 %v1099, %v1187
        %1189 = vmatmul.bf16.gmra.mxu0 %v540
        %v1190 = vpop.f32.mrf.mxu0
        %v1191 = vadd.f32 %v1102, %v1190
        %v1192 = vpop.f32.mrf.mxu0
        %v1193 = vadd.f32 %v1104, %v1192
        %1194 = vmatmul.bf16.gmra.mxu0 %v544
        %v1195 = vpop.f32.mrf.mxu0
        %v1196 = vadd.f32 %v1107, %v1195
        %v1197 = vpop.f32.mrf.mxu0
        %v1198 = vadd.f32 %v1109, %v1197
        %1199 = vmatmul.bf16.gmra.mxu0 %v548
        %v1200 = vpop.f32.mrf.mxu0
        %v1201 = vadd.f32 %v1112, %v1200
        %v1202 = vpop.f32.mrf.mxu0
        %v1203 = vadd.f32 %v1114, %v1202
        %1204 = vmatmul.bf16.gmra.mxu0 %v552
        %v1205 = vpop.f32.mrf.mxu0
        %v1206 = vadd.f32 %v1117, %v1205
        %v1207 = vpop.f32.mrf.mxu0
        %v1208 = vadd.f32 %v1119, %v1207
        %1209 = vmatmul.bf16.gmra.mxu0 %v556
        %v1210 = vpop.f32.mrf.mxu0
        %v1211 = vadd.f32 %v1122, %v1210
        %v1212 = vpop.f32.mrf.mxu0
        %v1213 = vadd.f32 %v1124, %v1212
        %1214 = vdwg.mxu0
        %1215 = vmatpush.bf16.msra.mxu0 %v882
        %1216 = vmatpush.bf16.msra.mxu0 %v880
        %1217 = vmatpush.bf16.msra.mxu0 %v878
        %1218 = vmatpush.bf16.msra.mxu0 %v876
        %1219 = vmatpush.bf16.msra.mxu0 %v874
        %1220 = vmatpush.bf16.msra.mxu0 %v872
        %1221 = vmatpush.bf16.msra.mxu0 %v870
        %1222 = vmatpush.bf16.msra.mxu0 %v868
        %1223 = vmatmul.bf16.gmra.mxu0 %v497
        %v1224 = vpop.f32.mrf.mxu0
        %v1225 = vadd.f32 %v1136, %v1224
        %v1226 = vpop.f32.mrf.mxu0
        %v1227 = vadd.f32 %v1138, %v1226
        %1228 = vmatmul.bf16.gmra.mxu0 %v501
        %v1229 = vpop.f32.mrf.mxu0
        %v1230 = vadd.f32 %v1141, %v1229
        %v1231 = vpop.f32.mrf.mxu0
        %v1232 = vadd.f32 %v1143, %v1231
        %1233 = vmatmul.bf16.gmra.mxu0 %v505
        %v1234 = vpop.f32.mrf.mxu0
        %v1235 = vadd.f32 %v1146, %v1234
        %v1236 = vpop.f32.mrf.mxu0
        %v1237 = vadd.f32 %v1148, %v1236
        %1238 = vmatmul.bf16.gmra.mxu0 %v509
        %v1239 = vpop.f32.mrf.mxu0
        %v1240 = vadd.f32 %v1151, %v1239
        %v1241 = vpop.f32.mrf.mxu0
        %v1242 = vadd.f32 %v1153, %v1241
        %1243 = vmatmul.bf16.gmra.mxu0 %v513
        %v1244 = vpop.f32.mrf.mxu0
        %v1245 = vadd.f32 %v1156, %v1244
        %v1246 = vpop.f32.mrf.mxu0
        %v1247 = vadd.f32 %v1158, %v1246
        %1248 = vmatmul.bf16.gmra.mxu0 %v517
        %v1249 = vpop.f32.mrf.mxu0
        %v1250 = vadd.f32 %v1161, %v1249
        %v1251 = vpop.f32.mrf.mxu0
        %v1252 = vadd.f32 %v1163, %v1251
        %1253 = vmatmul.bf16.gmra.mxu0 %v521
        %v1254 = vpop.f32.mrf.mxu0
        %v1255 = vadd.f32 %v1166, %v1254
        %v1256 = vpop.f32.mrf.mxu0
        %v1257 = vadd.f32 %v1168, %v1256
        %1258 = vmatmul.bf16.gmra.mxu0 %v525
        %v1259 = vpop.f32.mrf.mxu0
        %v1260 = vadd.f32 %v1171, %v1259
        %v1261 = vpop.f32.mrf.mxu0
        %v1262 = vadd.f32 %v1173, %v1261
        %1263 = vmatmul.bf16.gmra.mxu0 %v529
        %v1264 = vpop.f32.mrf.mxu0
        %v1265 = vadd.f32 %v1176, %v1264
        %v1266 = vpop.f32.mrf.mxu0
        %v1267 = vadd.f32 %v1178, %v1266
        %1268 = vmatmul.bf16.gmra.mxu0 %v533
        %v1269 = vpop.f32.mrf.mxu0
        %v1270 = vadd.f32 %v1181, %v1269
        %v1271 = vpop.f32.mrf.mxu0
        %v1272 = vadd.f32 %v1183, %v1271
        %1273 = vmatmul.bf16.gmra.mxu0 %v537
        %v1274 = vpop.f32.mrf.mxu0
        %v1275 = vadd.f32 %v1186, %v1274
        %v1276 = vpop.f32.mrf.mxu0
        %v1277 = vadd.f32 %v1188, %v1276
        %1278 = vmatmul.bf16.gmra.mxu0 %v541
        %v1279 = vpop.f32.mrf.mxu0
        %v1280 = vadd.f32 %v1191, %v1279
        %v1281 = vpop.f32.mrf.mxu0
        %v1282 = vadd.f32 %v1193, %v1281
        %1283 = vmatmul.bf16.gmra.mxu0 %v545
        %v1284 = vpop.f32.mrf.mxu0
        %v1285 = vadd.f32 %v1196, %v1284
        %v1286 = vpop.f32.mrf.mxu0
        %v1287 = vadd.f32 %v1198, %v1286
        %1288 = vmatmul.bf16.gmra.mxu0 %v549
        %v1289 = vpop.f32.mrf.mxu0
        %v1290 = vadd.f32 %v1201, %v1289
        %v1291 = vpop.f32.mrf.mxu0
        %v1292 = vadd.f32 %v1203, %v1291
        %1293 = vmatmul.bf16.gmra.mxu0 %v553
        %v1294 = vpop.f32.mrf.mxu0
        %v1295 = vadd.f32 %v1206, %v1294
        %v1296 = vpop.f32.mrf.mxu0
        %v1297 = vadd.f32 %v1208, %v1296
        %1298 = vmatmul.bf16.gmra.mxu0 %v557
        %v1299 = vpop.f32.mrf.mxu0
        %v1300 = vadd.f32 %v1211, %v1299
        %v1301 = vpop.f32.mrf.mxu0
        %v1302 = vadd.f32 %v1213, %v1301
        %1303 = vdwg.mxu0
        %1304 = vmatpush.bf16.msra.mxu0 %v835
        %1305 = vmatpush.bf16.msra.mxu0 %v833
        %1306 = vmatpush.bf16.msra.mxu0 %v831
        %1307 = vmatpush.bf16.msra.mxu0 %v829
        %1308 = vmatpush.bf16.msra.mxu0 %v827
        %1309 = vmatpush.bf16.msra.mxu0 %v825
        %1310 = vmatpush.bf16.msra.mxu0 %v823
        %1311 = vmatpush.bf16.msra.mxu0 %v821
        %1312 = vmatmul.bf16.gmra.mxu0 %v494
        %v1313 = vpop.f32.mrf.mxu0
        %v1314 = vadd.f32 %v625, %v1313
        %v1315 = vpop.f32.mrf.mxu0
        %v1316 = vadd.f32 %v625, %v1315
        %1317 = vmatmul.bf16.gmra.mxu0 %v498
        %v1318 = vpop.f32.mrf.mxu0
        %v1319 = vadd.f32 %v625, %v1318
        %v1320 = vpop.f32.mrf.mxu0
        %v1321 = vadd.f32 %v625, %v1320
        %1322 = vmatmul.bf16.gmra.mxu0 %v502
        %v1323 = vpop.f32.mrf.mxu0
        %v1324 = vadd.f32 %v625, %v1323
        %v1325 = vpop.f32.mrf.mxu0
        %v1326 = vadd.f32 %v625, %v1325
        %1327 = vmatmul.bf16.gmra.mxu0 %v506
        %v1328 = vpop.f32.mrf.mxu0
        %v1329 = vadd.f32 %v625, %v1328
        %v1330 = vpop.f32.mrf.mxu0
        %v1331 = vadd.f32 %v625, %v1330
        %1332 = vmatmul.bf16.gmra.mxu0 %v510
        %v1333 = vpop.f32.mrf.mxu0
        %v1334 = vadd.f32 %v625, %v1333
        %v1335 = vpop.f32.mrf.mxu0
        %v1336 = vadd.f32 %v625, %v1335
        %1337 = vmatmul.bf16.gmra.mxu0 %v514
        %v1338 = vpop.f32.mrf.mxu0
        %v1339 = vadd.f32 %v625, %v1338
        %v1340 = vpop.f32.mrf.mxu0
        %v1341 = vadd.f32 %v625, %v1340
        %1342 = vmatmul.bf16.gmra.mxu0 %v518
        %v1343 = vpop.f32.mrf.mxu0
        %v1344 = vadd.f32 %v625, %v1343
        %v1345 = vpop.f32.mrf.mxu0
        %v1346 = vadd.f32 %v625, %v1345
        %1347 = vmatmul.bf16.gmra.mxu0 %v522
        %v1348 = vpop.f32.mrf.mxu0
        %v1349 = vadd.f32 %v625, %v1348
        %v1350 = vpop.f32.mrf.mxu0
        %v1351 = vadd.f32 %v625, %v1350
        %1352 = vmatmul.bf16.gmra.mxu0 %v526
        %v1353 = vpop.f32.mrf.mxu0
        %v1354 = vadd.f32 %v625, %v1353
        %v1355 = vpop.f32.mrf.mxu0
        %v1356 = vadd.f32 %v625, %v1355
        %1357 = vmatmul.bf16.gmra.mxu0 %v530
        %v1358 = vpop.f32.mrf.mxu0
        %v1359 = vadd.f32 %v625, %v1358
        %v1360 = vpop.f32.mrf.mxu0
        %v1361 = vadd.f32 %v625, %v1360
        %1362 = vmatmul.bf16.gmra.mxu0 %v534
        %v1363 = vpop.f32.mrf.mxu0
        %v1364 = vadd.f32 %v625, %v1363
        %v1365 = vpop.f32.mrf.mxu0
        %v1366 = vadd.f32 %v625, %v1365
        %1367 = vmatmul.bf16.gmra.mxu0 %v538
        %v1368 = vpop.f32.mrf.mxu0
        %v1369 = vadd.f32 %v625, %v1368
        %v1370 = vpop.f32.mrf.mxu0
        %v1371 = vadd.f32 %v625, %v1370
        %1372 = vmatmul.bf16.gmra.mxu0 %v542
        %v1373 = vpop.f32.mrf.mxu0
        %v1374 = vadd.f32 %v625, %v1373
        %v1375 = vpop.f32.mrf.mxu0
        %v1376 = vadd.f32 %v625, %v1375
        %1377 = vmatmul.bf16.gmra.mxu0 %v546
        %v1378 = vpop.f32.mrf.mxu0
        %v1379 = vadd.f32 %v625, %v1378
        %v1380 = vpop.f32.mrf.mxu0
        %v1381 = vadd.f32 %v625, %v1380
        %1382 = vmatmul.bf16.gmra.mxu0 %v550
        %v1383 = vpop.f32.mrf.mxu0
        %v1384 = vadd.f32 %v625, %v1383
        %v1385 = vpop.f32.mrf.mxu0
        %v1386 = vadd.f32 %v625, %v1385
        %1387 = vmatmul.bf16.gmra.mxu0 %v554
        %v1388 = vpop.f32.mrf.mxu0
        %v1389 = vadd.f32 %v625, %v1388
        %v1390 = vpop.f32.mrf.mxu0
        %v1391 = vadd.f32 %v625, %v1390
        %1392 = vdwg.mxu0
        %1393 = vmatpush.bf16.msra.mxu0 %v851
        %1394 = vmatpush.bf16.msra.mxu0 %v849
        %1395 = vmatpush.bf16.msra.mxu0 %v847
        %1396 = vmatpush.bf16.msra.mxu0 %v845
        %1397 = vmatpush.bf16.msra.mxu0 %v843
        %1398 = vmatpush.bf16.msra.mxu0 %v841
        %1399 = vmatpush.bf16.msra.mxu0 %v839
        %1400 = vmatpush.bf16.msra.mxu0 %v837
        %1401 = vmatmul.bf16.gmra.mxu0 %v495
        %v1402 = vpop.f32.mrf.mxu0
        %v1403 = vadd.f32 %v1314, %v1402
        %v1404 = vpop.f32.mrf.mxu0
        %v1405 = vadd.f32 %v1316, %v1404
        %1406 = vmatmul.bf16.gmra.mxu0 %v499
        %v1407 = vpop.f32.mrf.mxu0
        %v1408 = vadd.f32 %v1319, %v1407
        %v1409 = vpop.f32.mrf.mxu0
        %v1410 = vadd.f32 %v1321, %v1409
        %1411 = vmatmul.bf16.gmra.mxu0 %v503
        %v1412 = vpop.f32.mrf.mxu0
        %v1413 = vadd.f32 %v1324, %v1412
        %v1414 = vpop.f32.mrf.mxu0
        %v1415 = vadd.f32 %v1326, %v1414
        %1416 = vmatmul.bf16.gmra.mxu0 %v507
        %v1417 = vpop.f32.mrf.mxu0
        %v1418 = vadd.f32 %v1329, %v1417
        %v1419 = vpop.f32.mrf.mxu0
        %v1420 = vadd.f32 %v1331, %v1419
        %1421 = vmatmul.bf16.gmra.mxu0 %v511
        %v1422 = vpop.f32.mrf.mxu0
        %v1423 = vadd.f32 %v1334, %v1422
        %v1424 = vpop.f32.mrf.mxu0
        %v1425 = vadd.f32 %v1336, %v1424
        %1426 = vmatmul.bf16.gmra.mxu0 %v515
        %v1427 = vpop.f32.mrf.mxu0
        %v1428 = vadd.f32 %v1339, %v1427
        %v1429 = vpop.f32.mrf.mxu0
        %v1430 = vadd.f32 %v1341, %v1429
        %1431 = vmatmul.bf16.gmra.mxu0 %v519
        %v1432 = vpop.f32.mrf.mxu0
        %v1433 = vadd.f32 %v1344, %v1432
        %v1434 = vpop.f32.mrf.mxu0
        %v1435 = vadd.f32 %v1346, %v1434
        %1436 = vmatmul.bf16.gmra.mxu0 %v523
        %v1437 = vpop.f32.mrf.mxu0
        %v1438 = vadd.f32 %v1349, %v1437
        %v1439 = vpop.f32.mrf.mxu0
        %v1440 = vadd.f32 %v1351, %v1439
        %1441 = vmatmul.bf16.gmra.mxu0 %v527
        %v1442 = vpop.f32.mrf.mxu0
        %v1443 = vadd.f32 %v1354, %v1442
        %v1444 = vpop.f32.mrf.mxu0
        %v1445 = vadd.f32 %v1356, %v1444
        %1446 = vmatmul.bf16.gmra.mxu0 %v531
        %v1447 = vpop.f32.mrf.mxu0
        %v1448 = vadd.f32 %v1359, %v1447
        %v1449 = vpop.f32.mrf.mxu0
        %v1450 = vadd.f32 %v1361, %v1449
        %1451 = vmatmul.bf16.gmra.mxu0 %v535
        %v1452 = vpop.f32.mrf.mxu0
        %v1453 = vadd.f32 %v1364, %v1452
        %v1454 = vpop.f32.mrf.mxu0
        %v1455 = vadd.f32 %v1366, %v1454
        %1456 = vmatmul.bf16.gmra.mxu0 %v539
        %v1457 = vpop.f32.mrf.mxu0
        %v1458 = vadd.f32 %v1369, %v1457
        %v1459 = vpop.f32.mrf.mxu0
        %v1460 = vadd.f32 %v1371, %v1459
        %1461 = vmatmul.bf16.gmra.mxu0 %v543
        %v1462 = vpop.f32.mrf.mxu0
        %v1463 = vadd.f32 %v1374, %v1462
        %v1464 = vpop.f32.mrf.mxu0
        %v1465 = vadd.f32 %v1376, %v1464
        %1466 = vmatmul.bf16.gmra.mxu0 %v547
        %v1467 = vpop.f32.mrf.mxu0
        %v1468 = vadd.f32 %v1379, %v1467
        %v1469 = vpop.f32.mrf.mxu0
        %v1470 = vadd.f32 %v1381, %v1469
        %1471 = vmatmul.bf16.gmra.mxu0 %v551
        %v1472 = vpop.f32.mrf.mxu0
        %v1473 = vadd.f32 %v1384, %v1472
        %v1474 = vpop.f32.mrf.mxu0
        %v1475 = vadd.f32 %v1386, %v1474
        %1476 = vmatmul.bf16.gmra.mxu0 %v555
        %v1477 = vpop.f32.mrf.mxu0
        %v1478 = vadd.f32 %v1389, %v1477
        %v1479 = vpop.f32.mrf.mxu0
        %v1480 = vadd.f32 %v1391, %v1479
        %1481 = vdwg.mxu0
        %1482 = vmatpush.bf16.msra.mxu0 %v867
        %1483 = vmatpush.bf16.msra.mxu0 %v865
        %1484 = vmatpush.bf16.msra.mxu0 %v863
        %1485 = vmatpush.bf16.msra.mxu0 %v861
        %1486 = vmatpush.bf16.msra.mxu0 %v859
        %1487 = vmatpush.bf16.msra.mxu0 %v857
        %1488 = vmatpush.bf16.msra.mxu0 %v855
        %1489 = vmatpush.bf16.msra.mxu0 %v853
        %1490 = vmatmul.bf16.gmra.mxu0 %v496
        %v1491 = vpop.f32.mrf.mxu0
        %v1492 = vadd.f32 %v1403, %v1491
        %v1493 = vpop.f32.mrf.mxu0
        %v1494 = vadd.f32 %v1405, %v1493
        %1495 = vmatmul.bf16.gmra.mxu0 %v500
        %v1496 = vpop.f32.mrf.mxu0
        %v1497 = vadd.f32 %v1408, %v1496
        %v1498 = vpop.f32.mrf.mxu0
        %v1499 = vadd.f32 %v1410, %v1498
        %1500 = vmatmul.bf16.gmra.mxu0 %v504
        %v1501 = vpop.f32.mrf.mxu0
        %v1502 = vadd.f32 %v1413, %v1501
        %v1503 = vpop.f32.mrf.mxu0
        %v1504 = vadd.f32 %v1415, %v1503
        %1505 = vmatmul.bf16.gmra.mxu0 %v508
        %v1506 = vpop.f32.mrf.mxu0
        %v1507 = vadd.f32 %v1418, %v1506
        %v1508 = vpop.f32.mrf.mxu0
        %v1509 = vadd.f32 %v1420, %v1508
        %1510 = vmatmul.bf16.gmra.mxu0 %v512
        %v1511 = vpop.f32.mrf.mxu0
        %v1512 = vadd.f32 %v1423, %v1511
        %v1513 = vpop.f32.mrf.mxu0
        %v1514 = vadd.f32 %v1425, %v1513
        %1515 = vmatmul.bf16.gmra.mxu0 %v516
        %v1516 = vpop.f32.mrf.mxu0
        %v1517 = vadd.f32 %v1428, %v1516
        %v1518 = vpop.f32.mrf.mxu0
        %v1519 = vadd.f32 %v1430, %v1518
        %1520 = vmatmul.bf16.gmra.mxu0 %v520
        %v1521 = vpop.f32.mrf.mxu0
        %v1522 = vadd.f32 %v1433, %v1521
        %v1523 = vpop.f32.mrf.mxu0
        %v1524 = vadd.f32 %v1435, %v1523
        %1525 = vmatmul.bf16.gmra.mxu0 %v524
        %v1526 = vpop.f32.mrf.mxu0
        %v1527 = vadd.f32 %v1438, %v1526
        %v1528 = vpop.f32.mrf.mxu0
        %v1529 = vadd.f32 %v1440, %v1528
        %1530 = vmatmul.bf16.gmra.mxu0 %v528
        %v1531 = vpop.f32.mrf.mxu0
        %v1532 = vadd.f32 %v1443, %v1531
        %v1533 = vpop.f32.mrf.mxu0
        %v1534 = vadd.f32 %v1445, %v1533
        %1535 = vmatmul.bf16.gmra.mxu0 %v532
        %v1536 = vpop.f32.mrf.mxu0
        %v1537 = vadd.f32 %v1448, %v1536
        %v1538 = vpop.f32.mrf.mxu0
        %v1539 = vadd.f32 %v1450, %v1538
        %1540 = vmatmul.bf16.gmra.mxu0 %v536
        %v1541 = vpop.f32.mrf.mxu0
        %v1542 = vadd.f32 %v1453, %v1541
        %v1543 = vpop.f32.mrf.mxu0
        %v1544 = vadd.f32 %v1455, %v1543
        %1545 = vmatmul.bf16.gmra.mxu0 %v540
        %v1546 = vpop.f32.mrf.mxu0
        %v1547 = vadd.f32 %v1458, %v1546
        %v1548 = vpop.f32.mrf.mxu0
        %v1549 = vadd.f32 %v1460, %v1548
        %1550 = vmatmul.bf16.gmra.mxu0 %v544
        %v1551 = vpop.f32.mrf.mxu0
        %v1552 = vadd.f32 %v1463, %v1551
        %v1553 = vpop.f32.mrf.mxu0
        %v1554 = vadd.f32 %v1465, %v1553
        %1555 = vmatmul.bf16.gmra.mxu0 %v548
        %v1556 = vpop.f32.mrf.mxu0
        %v1557 = vadd.f32 %v1468, %v1556
        %v1558 = vpop.f32.mrf.mxu0
        %v1559 = vadd.f32 %v1470, %v1558
        %1560 = vmatmul.bf16.gmra.mxu0 %v552
        %v1561 = vpop.f32.mrf.mxu0
        %v1562 = vadd.f32 %v1473, %v1561
        %v1563 = vpop.f32.mrf.mxu0
        %v1564 = vadd.f32 %v1475, %v1563
        %1565 = vmatmul.bf16.gmra.mxu0 %v556
        %v1566 = vpop.f32.mrf.mxu0
        %v1567 = vadd.f32 %v1478, %v1566
        %v1568 = vpop.f32.mrf.mxu0
        %v1569 = vadd.f32 %v1480, %v1568
        %1570 = vdwg.mxu0
        %1571 = vmatpush.bf16.msra.mxu0 %v883
        %1572 = vmatpush.bf16.msra.mxu0 %v881
        %1573 = vmatpush.bf16.msra.mxu0 %v879
        %1574 = vmatpush.bf16.msra.mxu0 %v877
        %1575 = vmatpush.bf16.msra.mxu0 %v875
        %1576 = vmatpush.bf16.msra.mxu0 %v873
        %1577 = vmatpush.bf16.msra.mxu0 %v871
        %1578 = vmatpush.bf16.msra.mxu0 %v869
        %1579 = vmatmul.bf16.gmra.mxu0 %v497
        %v1580 = vpop.f32.mrf.mxu0
        %v1581 = vadd.f32 %v1492, %v1580
        %v1582 = vpop.f32.mrf.mxu0
        %v1583 = vadd.f32 %v1494, %v1582
        %1584 = vmatmul.bf16.gmra.mxu0 %v501
        %v1585 = vpop.f32.mrf.mxu0
        %v1586 = vadd.f32 %v1497, %v1585
        %v1587 = vpop.f32.mrf.mxu0
        %v1588 = vadd.f32 %v1499, %v1587
        %1589 = vmatmul.bf16.gmra.mxu0 %v505
        %v1590 = vpop.f32.mrf.mxu0
        %v1591 = vadd.f32 %v1502, %v1590
        %v1592 = vpop.f32.mrf.mxu0
        %v1593 = vadd.f32 %v1504, %v1592
        %1594 = vmatmul.bf16.gmra.mxu0 %v509
        %v1595 = vpop.f32.mrf.mxu0
        %v1596 = vadd.f32 %v1507, %v1595
        %v1597 = vpop.f32.mrf.mxu0
        %v1598 = vadd.f32 %v1509, %v1597
        %1599 = vmatmul.bf16.gmra.mxu0 %v513
        %v1600 = vpop.f32.mrf.mxu0
        %v1601 = vadd.f32 %v1512, %v1600
        %v1602 = vpop.f32.mrf.mxu0
        %v1603 = vadd.f32 %v1514, %v1602
        %1604 = vmatmul.bf16.gmra.mxu0 %v517
        %v1605 = vpop.f32.mrf.mxu0
        %v1606 = vadd.f32 %v1517, %v1605
        %v1607 = vpop.f32.mrf.mxu0
        %v1608 = vadd.f32 %v1519, %v1607
        %1609 = vmatmul.bf16.gmra.mxu0 %v521
        %v1610 = vpop.f32.mrf.mxu0
        %v1611 = vadd.f32 %v1522, %v1610
        %v1612 = vpop.f32.mrf.mxu0
        %v1613 = vadd.f32 %v1524, %v1612
        %1614 = vmatmul.bf16.gmra.mxu0 %v525
        %v1615 = vpop.f32.mrf.mxu0
        %v1616 = vadd.f32 %v1527, %v1615
        %v1617 = vpop.f32.mrf.mxu0
        %v1618 = vadd.f32 %v1529, %v1617
        %1619 = vmatmul.bf16.gmra.mxu0 %v529
        %v1620 = vpop.f32.mrf.mxu0
        %v1621 = vadd.f32 %v1532, %v1620
        %v1622 = vpop.f32.mrf.mxu0
        %v1623 = vadd.f32 %v1534, %v1622
        %1624 = vmatmul.bf16.gmra.mxu0 %v533
        %v1625 = vpop.f32.mrf.mxu0
        %v1626 = vadd.f32 %v1537, %v1625
        %v1627 = vpop.f32.mrf.mxu0
        %v1628 = vadd.f32 %v1539, %v1627
        %1629 = vmatmul.bf16.gmra.mxu0 %v537
        %v1630 = vpop.f32.mrf.mxu0
        %v1631 = vadd.f32 %v1542, %v1630
        %v1632 = vpop.f32.mrf.mxu0
        %v1633 = vadd.f32 %v1544, %v1632
        %1634 = vmatmul.bf16.gmra.mxu0 %v541
        %v1635 = vpop.f32.mrf.mxu0
        %v1636 = vadd.f32 %v1547, %v1635
        %v1637 = vpop.f32.mrf.mxu0
        %v1638 = vadd.f32 %v1549, %v1637
        %1639 = vmatmul.bf16.gmra.mxu0 %v545
        %v1640 = vpop.f32.mrf.mxu0
        %v1641 = vadd.f32 %v1552, %v1640
        %v1642 = vpop.f32.mrf.mxu0
        %v1643 = vadd.f32 %v1554, %v1642
        %1644 = vmatmul.bf16.gmra.mxu0 %v549
        %v1645 = vpop.f32.mrf.mxu0
        %v1646 = vadd.f32 %v1557, %v1645
        %v1647 = vpop.f32.mrf.mxu0
        %v1648 = vadd.f32 %v1559, %v1647
        %1649 = vmatmul.bf16.gmra.mxu0 %v553
        %v1650 = vpop.f32.mrf.mxu0
        %v1651 = vadd.f32 %v1562, %v1650
        %v1652 = vpop.f32.mrf.mxu0
        %v1653 = vadd.f32 %v1564, %v1652
        %1654 = vmatmul.bf16.gmra.mxu0 %v557
        %v1655 = vpop.f32.mrf.mxu0
        %v1656 = vadd.f32 %v1567, %v1655
        %v1657 = vpop.f32.mrf.mxu0
        %v1658 = vadd.f32 %v1569, %v1657
        %1659 = vdwg.mxu0
        %v1660 = vmax.f32 %v1225, 0.0
        %v1661 = vmax.f32 %v1581, 0.0
        %v1662 = vmax.f32 %v1227, 0.0
        %v1663 = vmax.f32 %v1583, 0.0
        %v1664 = vmax.f32 %v1230, 0.0
        %v1665 = vmax.f32 %v1586, 0.0
        %v1666 = vmax.f32 %v1232, 0.0
        %v1667 = vmax.f32 %v1588, 0.0
        %v1668 = vmax.f32 %v1235, 0.0
        %v1669 = vmax.f32 %v1591, 0.0
        %v1670 = vmax.f32 %v1237, 0.0
        %v1671 = vmax.f32 %v1593, 0.0
        %v1672 = vmax.f32 %v1240, 0.0
        %v1673 = vmax.f32 %v1596, 0.0
        %v1674 = vmax.f32 %v1242, 0.0
        %v1675 = vmax.f32 %v1598, 0.0
        %v1676 = vmax.f32 %v1245, 0.0
        %v1677 = vmax.f32 %v1601, 0.0
        %v1678 = vmax.f32 %v1247, 0.0
        %v1679 = vmax.f32 %v1603, 0.0
        %v1680 = vmax.f32 %v1250, 0.0
        %v1681 = vmax.f32 %v1606, 0.0
        %v1682 = vmax.f32 %v1252, 0.0
        %v1683 = vmax.f32 %v1608, 0.0
        %v1684 = vmax.f32 %v1255, 0.0
        %v1685 = vmax.f32 %v1611, 0.0
        %v1686 = vmax.f32 %v1257, 0.0
        %v1687 = vmax.f32 %v1613, 0.0
        %v1688 = vmax.f32 %v1260, 0.0
        %v1689 = vmax.f32 %v1616, 0.0
        %v1690 = vmax.f32 %v1262, 0.0
        %v1691 = vmax.f32 %v1618, 0.0
        %v1692 = vmax.f32 %v1265, 0.0
        %v1693 = vmax.f32 %v1621, 0.0
        %v1694 = vmax.f32 %v1267, 0.0
        %v1695 = vmax.f32 %v1623, 0.0
        %v1696 = vmax.f32 %v1270, 0.0
        %v1697 = vmax.f32 %v1626, 0.0
        %v1698 = vmax.f32 %v1272, 0.0
        %v1699 = vmax.f32 %v1628, 0.0
        %v1700 = vmax.f32 %v1275, 0.0
        %v1701 = vmax.f32 %v1631, 0.0
        %v1702 = vmax.f32 %v1277, 0.0
        %v1703 = vmax.f32 %v1633, 0.0
        %v1704 = vmax.f32 %v1280, 0.0
        %v1705 = vmax.f32 %v1636, 0.0
        %v1706 = vmax.f32 %v1282, 0.0
        %v1707 = vmax.f32 %v1638, 0.0
        %v1708 = vmax.f32 %v1285, 0.0
        %v1709 = vmax.f32 %v1641, 0.0
        %v1710 = vmax.f32 %v1287, 0.0
        %v1711 = vmax.f32 %v1643, 0.0
        %v1712 = vmax.f32 %v1290, 0.0
        %v1713 = vmax.f32 %v1646, 0.0
        %v1714 = vmax.f32 %v1292, 0.0
        %v1715 = vmax.f32 %v1648, 0.0
        %v1716 = vmax.f32 %v1295, 0.0
        %v1717 = vmax.f32 %v1651, 0.0
        %v1718 = vmax.f32 %v1297, 0.0
        %v1719 = vmax.f32 %v1653, 0.0
        %v1720 = vmax.f32 %v1300, 0.0
        %v1721 = vmax.f32 %v1656, 0.0
        %v1722 = vmax.f32 %v1302, 0.0
        %v1723 = vmax.f32 %v1658, 0.0
        %v1724 = vpack.c.bf16 %v1662, %v1660
        %v1725 = vpack.c.bf16 %v1663, %v1661
        %v1726 = vpack.c.bf16 %v1666, %v1664
        %v1727 = vpack.c.bf16 %v1667, %v1665
        %v1728 = vpack.c.bf16 %v1670, %v1668
        %v1729 = vpack.c.bf16 %v1671, %v1669
        %v1730 = vpack.c.bf16 %v1674, %v1672
        %v1731 = vpack.c.bf16 %v1675, %v1673
        %v1732 = vpack.c.bf16 %v1678, %v1676
        %v1733 = vpack.c.bf16 %v1679, %v1677
        %v1734 = vpack.c.bf16 %v1682, %v1680
        %v1735 = vpack.c.bf16 %v1683, %v1681
        %v1736 = vpack.c.bf16 %v1686, %v1684
        %v1737 = vpack.c.bf16 %v1687, %v1685
        %v1738 = vpack.c.bf16 %v1690, %v1688
        %v1739 = vpack.c.bf16 %v1691, %v1689
        %v1740 = vpack.c.bf16 %v1694, %v1692
        %v1741 = vpack.c.bf16 %v1695, %v1693
        %v1742 = vpack.c.bf16 %v1698, %v1696
        %v1743 = vpack.c.bf16 %v1699, %v1697
        %v1744 = vpack.c.bf16 %v1702, %v1700
        %v1745 = vpack.c.bf16 %v1703, %v1701
        %v1746 = vpack.c.bf16 %v1706, %v1704
        %v1747 = vpack.c.bf16 %v1707, %v1705
        %v1748 = vpack.c.bf16 %v1710, %v1708
        %v1749 = vpack.c.bf16 %v1711, %v1709
        %v1750 = vpack.c.bf16 %v1714, %v1712
        %v1751 = vpack.c.bf16 %v1715, %v1713
        %v1752 = vpack.c.bf16 %v1718, %v1716
        %v1753 = vpack.c.bf16 %v1719, %v1717
        %v1754 = vpack.c.bf16 %v1722, %v1720
        %v1755 = vpack.c.bf16 %v1723, %v1721
        %v1756 = vld [vmem:[#allocation8] sm:$0xff]
        %v1757 = vld [vmem:[#allocation8 + $0x8] sm:$0xff]
        %v1758 = vld [vmem:[#allocation8 + $0x10] sm:$0xff]
        %v1759 = vld [vmem:[#allocation8 + $0x18] sm:$0xff]
        %v1760 = vld [vmem:[#allocation8 + $0x20] sm:$0xff]
        %v1761 = vld [vmem:[#allocation8 + $0x28] sm:$0xff]
        %v1762 = vld [vmem:[#allocation8 + $0x30] sm:$0xff]
        %v1763 = vld [vmem:[#allocation8 + $0x38] sm:$0xff]
        %v1764 = vld [vmem:[#allocation8 + $0x40] sm:$0xff]
        %v1765 = vld [vmem:[#allocation8 + $0x48] sm:$0xff]
        %v1766 = vld [vmem:[#allocation8 + $0x50] sm:$0xff]
        %v1767 = vld [vmem:[#allocation8 + $0x58] sm:$0xff]
        %v1768 = vld [vmem:[#allocation8 + $0x60] sm:$0xff]
        %v1769 = vld [vmem:[#allocation8 + $0x68] sm:$0xff]
        %v1770 = vld [vmem:[#allocation8 + $0x70] sm:$0xff]
        %v1771 = vld [vmem:[#allocation8 + $0x78] sm:$0xff]
        %v1772 = vld [vmem:[#allocation8 + $0x80] sm:$0xff]
        %v1773 = vld [vmem:[#allocation8 + $0x88] sm:$0xff]
        %v1774 = vld [vmem:[#allocation8 + $0x90] sm:$0xff]
        %v1775 = vld [vmem:[#allocation8 + $0x98] sm:$0xff]
        %v1776 = vld [vmem:[#allocation8 + $0xa0] sm:$0xff]
        %v1777 = vld [vmem:[#allocation8 + $0xa8] sm:$0xff]
        %v1778 = vld [vmem:[#allocation8 + $0xb0] sm:$0xff]
        %v1779 = vld [vmem:[#allocation8 + $0xb8] sm:$0xff]
        %v1780 = vld [vmem:[#allocation8 + $0xc0] sm:$0xff]
        %v1781 = vld [vmem:[#allocation8 + $0xc8] sm:$0xff]
        %v1782 = vld [vmem:[#allocation8 + $0xd0] sm:$0xff]
        %v1783 = vld [vmem:[#allocation8 + $0xd8] sm:$0xff]
        %v1784 = vld [vmem:[#allocation8 + $0xe0] sm:$0xff]
        %v1785 = vld [vmem:[#allocation8 + $0xe8] sm:$0xff]
        %v1786 = vld [vmem:[#allocation8 + $0xf0] sm:$0xff]
        %v1787 = vld [vmem:[#allocation8 + $0xf8] sm:$0xff]
        %v1788 = vld [vmem:[%s4] sm:$0x3]
        %v1790 = vperm.slane %v1788, 0
        %v1791 = vperm.slane %v1788, 1
        %v1826 = vunpack.c.l.b16 %v1756
        %v1827 = vunpack.c.h.b16 %v1756
        %v1828 = vunpack.c.l.b16 %v1757
        %v1829 = vunpack.c.h.b16 %v1757
        %v1830 = vunpack.c.l.b16 %v1758
        %v1831 = vunpack.c.h.b16 %v1758
        %v1832 = vunpack.c.l.b16 %v1759
        %v1833 = vunpack.c.h.b16 %v1759
        %v1834 = vunpack.c.l.b16 %v1760
        %v1835 = vunpack.c.h.b16 %v1760
        %v1836 = vunpack.c.l.b16 %v1761
        %v1837 = vunpack.c.h.b16 %v1761
        %v1838 = vunpack.c.l.b16 %v1762
        %v1839 = vunpack.c.h.b16 %v1762
        %v1840 = vunpack.c.l.b16 %v1763
        %v1841 = vunpack.c.h.b16 %v1763
        %v1842 = vunpack.c.l.b16 %v1764
        %v1843 = vunpack.c.h.b16 %v1764
        %v1844 = vunpack.c.l.b16 %v1765
        %v1845 = vunpack.c.h.b16 %v1765
        %v1846 = vunpack.c.l.b16 %v1766
        %v1847 = vunpack.c.h.b16 %v1766
        %v1848 = vunpack.c.l.b16 %v1767
        %v1849 = vunpack.c.h.b16 %v1767
        %v1850 = vunpack.c.l.b16 %v1768
        %v1851 = vunpack.c.h.b16 %v1768
        %v1852 = vunpack.c.l.b16 %v1769
        %v1853 = vunpack.c.h.b16 %v1769
        %v1854 = vunpack.c.l.b16 %v1770
        %v1855 = vunpack.c.h.b16 %v1770
        %v1856 = vunpack.c.l.b16 %v1771
        %v1857 = vunpack.c.h.b16 %v1771
        %v1858 = vunpack.c.l.b16 %v1772
        %v1859 = vunpack.c.h.b16 %v1772
        %v1860 = vunpack.c.l.b16 %v1773
        %v1861 = vunpack.c.h.b16 %v1773
        %v1862 = vunpack.c.l.b16 %v1774
        %v1863 = vunpack.c.h.b16 %v1774
        %v1864 = vunpack.c.l.b16 %v1775
        %v1865 = vunpack.c.h.b16 %v1775
        %v1866 = vunpack.c.l.b16 %v1776
        %v1867 = vunpack.c.h.b16 %v1776
        %v1868 = vunpack.c.l.b16 %v1777
        %v1869 = vunpack.c.h.b16 %v1777
        %v1870 = vunpack.c.l.b16 %v1778
        %v1871 = vunpack.c.h.b16 %v1778
        %v1872 = vunpack.c.l.b16 %v1779
        %v1873 = vunpack.c.h.b16 %v1779
        %v1874 = vunpack.c.l.b16 %v1780
        %v1875 = vunpack.c.h.b16 %v1780
        %v1876 = vunpack.c.l.b16 %v1781
        %v1877 = vunpack.c.h.b16 %v1781
        %v1878 = vunpack.c.l.b16 %v1782
        %v1879 = vunpack.c.h.b16 %v1782
        %v1880 = vunpack.c.l.b16 %v1783
        %v1881 = vunpack.c.h.b16 %v1783
        %v1882 = vunpack.c.l.b16 %v1784
        %v1883 = vunpack.c.h.b16 %v1784
        %v1884 = vunpack.c.l.b16 %v1785
        %v1885 = vunpack.c.h.b16 %v1785
        %v1886 = vunpack.c.l.b16 %v1786
        %v1887 = vunpack.c.h.b16 %v1786
        %v1888 = vunpack.c.l.b16 %v1787
        %v1889 = vunpack.c.h.b16 %v1787
        %v1890 = vpack.c.b16 %v1828, %v1826
        %v1891 = vpack.c.b16 %v1829, %v1827
        %v1892 = vpack.c.b16 %v1832, %v1830
        %v1893 = vpack.c.b16 %v1833, %v1831
        %v1894 = vpack.c.b16 %v1836, %v1834
        %v1895 = vpack.c.b16 %v1837, %v1835
        %v1896 = vpack.c.b16 %v1840, %v1838
        %v1897 = vpack.c.b16 %v1841, %v1839
        %v1898 = vpack.c.b16 %v1844, %v1842
        %v1899 = vpack.c.b16 %v1845, %v1843
        %v1900 = vpack.c.b16 %v1848, %v1846
        %v1901 = vpack.c.b16 %v1849, %v1847
        %v1902 = vpack.c.b16 %v1852, %v1850
        %v1903 = vpack.c.b16 %v1853, %v1851
        %v1904 = vpack.c.b16 %v1856, %v1854
        %v1905 = vpack.c.b16 %v1857, %v1855
        %v1906 = vpack.c.b16 %v1860, %v1858
        %v1907 = vpack.c.b16 %v1861, %v1859
        %v1908 = vpack.c.b16 %v1864, %v1862
        %v1909 = vpack.c.b16 %v1865, %v1863
        %v1910 = vpack.c.b16 %v1868, %v1866
        %v1911 = vpack.c.b16 %v1869, %v1867
        %v1912 = vpack.c.b16 %v1872, %v1870
        %v1913 = vpack.c.b16 %v1873, %v1871
        %v1914 = vpack.c.b16 %v1876, %v1874
        %v1915 = vpack.c.b16 %v1877, %v1875
        %v1916 = vpack.c.b16 %v1880, %v1878
        %v1917 = vpack.c.b16 %v1881, %v1879
        %v1918 = vpack.c.b16 %v1884, %v1882
        %v1919 = vpack.c.b16 %v1885, %v1883
        %v1920 = vpack.c.b16 %v1888, %v1886
        %v1921 = vpack.c.b16 %v1889, %v1887
        %1954 = vmatpush.bf16.msra.mxu0 %v1904
        %1955 = vmatpush.bf16.msra.mxu0 %v1902
        %1956 = vmatpush.bf16.msra.mxu0 %v1900
        %1957 = vmatpush.bf16.msra.mxu0 %v1898
        %1958 = vmatpush.bf16.msra.mxu0 %v1896
        %1959 = vmatpush.bf16.msra.mxu0 %v1894
        %1960 = vmatpush.bf16.msra.mxu0 %v1892
        %1961 = vmatpush.bf16.msra.mxu0 %v1890
        %1962 = vmatmul.bf16.gmra.mxu0 %v1724
        %v1963 = vpop.f32.mrf.mxu0
        %v1964 = vadd.f32 %v1790, %v1963
        %v1965 = vpop.f32.mrf.mxu0
        %v1966 = vadd.f32 %v1790, %v1965
        %1967 = vmatmul.bf16.gmra.mxu0 %v1726
        %v1968 = vpop.f32.mrf.mxu0
        %v1969 = vadd.f32 %v1790, %v1968
        %v1970 = vpop.f32.mrf.mxu0
        %v1971 = vadd.f32 %v1790, %v1970
        %1972 = vmatmul.bf16.gmra.mxu0 %v1728
        %v1973 = vpop.f32.mrf.mxu0
        %v1974 = vadd.f32 %v1790, %v1973
        %v1975 = vpop.f32.mrf.mxu0
        %v1976 = vadd.f32 %v1790, %v1975
        %1977 = vmatmul.bf16.gmra.mxu0 %v1730
        %v1978 = vpop.f32.mrf.mxu0
        %v1979 = vadd.f32 %v1790, %v1978
        %v1980 = vpop.f32.mrf.mxu0
        %v1981 = vadd.f32 %v1790, %v1980
        %1982 = vmatmul.bf16.gmra.mxu0 %v1732
        %v1983 = vpop.f32.mrf.mxu0
        %v1984 = vadd.f32 %v1790, %v1983
        %v1985 = vpop.f32.mrf.mxu0
        %v1986 = vadd.f32 %v1790, %v1985
        %1987 = vmatmul.bf16.gmra.mxu0 %v1734
        %v1988 = vpop.f32.mrf.mxu0
        %v1989 = vadd.f32 %v1790, %v1988
        %v1990 = vpop.f32.mrf.mxu0
        %v1991 = vadd.f32 %v1790, %v1990
        %1992 = vmatmul.bf16.gmra.mxu0 %v1736
        %v1993 = vpop.f32.mrf.mxu0
        %v1994 = vadd.f32 %v1790, %v1993
        %v1995 = vpop.f32.mrf.mxu0
        %v1996 = vadd.f32 %v1790, %v1995
        %1997 = vmatmul.bf16.gmra.mxu0 %v1738
        %v1998 = vpop.f32.mrf.mxu0
        %v1999 = vadd.f32 %v1790, %v1998
        %v2000 = vpop.f32.mrf.mxu0
        %v2001 = vadd.f32 %v1790, %v2000
        %2002 = vmatmul.bf16.gmra.mxu0 %v1740
        %v2003 = vpop.f32.mrf.mxu0
        %v2004 = vadd.f32 %v1790, %v2003
        %v2005 = vpop.f32.mrf.mxu0
        %v2006 = vadd.f32 %v1790, %v2005
        %2007 = vmatmul.bf16.gmra.mxu0 %v1742
        %v2008 = vpop.f32.mrf.mxu0
        %v2009 = vadd.f32 %v1790, %v2008
        %v2010 = vpop.f32.mrf.mxu0
        %v2011 = vadd.f32 %v1790, %v2010
        %2012 = vmatmul.bf16.gmra.mxu0 %v1744
        %v2013 = vpop.f32.mrf.mxu0
        %v2014 = vadd.f32 %v1790, %v2013
        %v2015 = vpop.f32.mrf.mxu0
        %v2016 = vadd.f32 %v1790, %v2015
        %2017 = vmatmul.bf16.gmra.mxu0 %v1746
        %v2018 = vpop.f32.mrf.mxu0
        %v2019 = vadd.f32 %v1790, %v2018
        %v2020 = vpop.f32.mrf.mxu0
        %v2021 = vadd.f32 %v1790, %v2020
        %2022 = vmatmul.bf16.gmra.mxu0 %v1748
        %v2023 = vpop.f32.mrf.mxu0
        %v2024 = vadd.f32 %v1790, %v2023
        %v2025 = vpop.f32.mrf.mxu0
        %v2026 = vadd.f32 %v1790, %v2025
        %2027 = vmatmul.bf16.gmra.mxu0 %v1750
        %v2028 = vpop.f32.mrf.mxu0
        %v2029 = vadd.f32 %v1790, %v2028
        %v2030 = vpop.f32.mrf.mxu0
        %v2031 = vadd.f32 %v1790, %v2030
        %2032 = vmatmul.bf16.gmra.mxu0 %v1752
        %v2033 = vpop.f32.mrf.mxu0
        %v2034 = vadd.f32 %v1790, %v2033
        %v2035 = vpop.f32.mrf.mxu0
        %v2036 = vadd.f32 %v1790, %v2035
        %2037 = vmatmul.bf16.gmra.mxu0 %v1754
        %v2038 = vpop.f32.mrf.mxu0
        %v2039 = vadd.f32 %v1790, %v2038
        %v2040 = vpop.f32.mrf.mxu0
        %v2041 = vadd.f32 %v1790, %v2040
        %2042 = vdwg.mxu0
        %2043 = vmatpush.bf16.msra.mxu0 %v1920
        %2044 = vmatpush.bf16.msra.mxu0 %v1918
        %2045 = vmatpush.bf16.msra.mxu0 %v1916
        %2046 = vmatpush.bf16.msra.mxu0 %v1914
        %2047 = vmatpush.bf16.msra.mxu0 %v1912
        %2048 = vmatpush.bf16.msra.mxu0 %v1910
        %2049 = vmatpush.bf16.msra.mxu0 %v1908
        %2050 = vmatpush.bf16.msra.mxu0 %v1906
        %2051 = vmatmul.bf16.gmra.mxu0 %v1725
        %v2052 = vpop.f32.mrf.mxu0
        %v2053 = vadd.f32 %v1964, %v2052
        %v2054 = vpop.f32.mrf.mxu0
        %v2055 = vadd.f32 %v1966, %v2054
        %2056 = vmatmul.bf16.gmra.mxu0 %v1727
        %v2057 = vpop.f32.mrf.mxu0
        %v2058 = vadd.f32 %v1969, %v2057
        %v2059 = vpop.f32.mrf.mxu0
        %v2060 = vadd.f32 %v1971, %v2059
        %2061 = vmatmul.bf16.gmra.mxu0 %v1729
        %v2062 = vpop.f32.mrf.mxu0
        %v2063 = vadd.f32 %v1974, %v2062
        %v2064 = vpop.f32.mrf.mxu0
        %v2065 = vadd.f32 %v1976, %v2064
        %2066 = vmatmul.bf16.gmra.mxu0 %v1731
        %v2067 = vpop.f32.mrf.mxu0
        %v2068 = vadd.f32 %v1979, %v2067
        %v2069 = vpop.f32.mrf.mxu0
        %v2070 = vadd.f32 %v1981, %v2069
        %2071 = vmatmul.bf16.gmra.mxu0 %v1733
        %v2072 = vpop.f32.mrf.mxu0
        %v2073 = vadd.f32 %v1984, %v2072
        %v2074 = vpop.f32.mrf.mxu0
        %v2075 = vadd.f32 %v1986, %v2074
        %2076 = vmatmul.bf16.gmra.mxu0 %v1735
        %v2077 = vpop.f32.mrf.mxu0
        %v2078 = vadd.f32 %v1989, %v2077
        %v2079 = vpop.f32.mrf.mxu0
        %v2080 = vadd.f32 %v1991, %v2079
        %2081 = vmatmul.bf16.gmra.mxu0 %v1737
        %v2082 = vpop.f32.mrf.mxu0
        %v2083 = vadd.f32 %v1994, %v2082
        %v2084 = vpop.f32.mrf.mxu0
        %v2085 = vadd.f32 %v1996, %v2084
        %2086 = vmatmul.bf16.gmra.mxu0 %v1739
        %v2087 = vpop.f32.mrf.mxu0
        %v2088 = vadd.f32 %v1999, %v2087
        %v2089 = vpop.f32.mrf.mxu0
        %v2090 = vadd.f32 %v2001, %v2089
        %2091 = vmatmul.bf16.gmra.mxu0 %v1741
        %v2092 = vpop.f32.mrf.mxu0
        %v2093 = vadd.f32 %v2004, %v2092
        %v2094 = vpop.f32.mrf.mxu0
        %v2095 = vadd.f32 %v2006, %v2094
        %2096 = vmatmul.bf16.gmra.mxu0 %v1743
        %v2097 = vpop.f32.mrf.mxu0
        %v2098 = vadd.f32 %v2009, %v2097
        %v2099 = vpop.f32.mrf.mxu0
        %v2100 = vadd.f32 %v2011, %v2099
        %2101 = vmatmul.bf16.gmra.mxu0 %v1745
        %v2102 = vpop.f32.mrf.mxu0
        %v2103 = vadd.f32 %v2014, %v2102
        %v2104 = vpop.f32.mrf.mxu0
        %v2105 = vadd.f32 %v2016, %v2104
        %2106 = vmatmul.bf16.gmra.mxu0 %v1747
        %v2107 = vpop.f32.mrf.mxu0
        %v2108 = vadd.f32 %v2019, %v2107
        %v2109 = vpop.f32.mrf.mxu0
        %v2110 = vadd.f32 %v2021, %v2109
        %2111 = vmatmul.bf16.gmra.mxu0 %v1749
        %v2112 = vpop.f32.mrf.mxu0
        %v2113 = vadd.f32 %v2024, %v2112
        %v2114 = vpop.f32.mrf.mxu0
        %v2115 = vadd.f32 %v2026, %v2114
        %2116 = vmatmul.bf16.gmra.mxu0 %v1751
        %v2117 = vpop.f32.mrf.mxu0
        %v2118 = vadd.f32 %v2029, %v2117
        %v2119 = vpop.f32.mrf.mxu0
        %v2120 = vadd.f32 %v2031, %v2119
        %2121 = vmatmul.bf16.gmra.mxu0 %v1753
        %v2122 = vpop.f32.mrf.mxu0
        %v2123 = vadd.f32 %v2034, %v2122
        %v2124 = vpop.f32.mrf.mxu0
        %v2125 = vadd.f32 %v2036, %v2124
        %2126 = vmatmul.bf16.gmra.mxu0 %v1755
        %v2127 = vpop.f32.mrf.mxu0
        %v2128 = vadd.f32 %v2039, %v2127
        %v2129 = vpop.f32.mrf.mxu0
        %v2130 = vadd.f32 %v2041, %v2129
        %2131 = vdwg.mxu0
        %2132 = vmatpush.bf16.msra.mxu0 %v1905
        %2133 = vmatpush.bf16.msra.mxu0 %v1903
        %2134 = vmatpush.bf16.msra.mxu0 %v1901
        %2135 = vmatpush.bf16.msra.mxu0 %v1899
        %2136 = vmatpush.bf16.msra.mxu0 %v1897
        %2137 = vmatpush.bf16.msra.mxu0 %v1895
        %2138 = vmatpush.bf16.msra.mxu0 %v1893
        %2139 = vmatpush.bf16.msra.mxu0 %v1891
        %2140 = vmatmul.bf16.gmra.mxu0 %v1724
        %v2141 = vpop.f32.mrf.mxu0
        %v2142 = vadd.f32 %v1791, %v2141
        %v2143 = vpop.f32.mrf.mxu0
        %v2144 = vadd.f32 %v1791, %v2143
        %2145 = vmatmul.bf16.gmra.mxu0 %v1726
        %v2146 = vpop.f32.mrf.mxu0
        %v2147 = vadd.f32 %v1791, %v2146
        %v2148 = vpop.f32.mrf.mxu0
        %v2149 = vadd.f32 %v1791, %v2148
        %2150 = vmatmul.bf16.gmra.mxu0 %v1728
        %v2151 = vpop.f32.mrf.mxu0
        %v2152 = vadd.f32 %v1791, %v2151
        %v2153 = vpop.f32.mrf.mxu0
        %v2154 = vadd.f32 %v1791, %v2153
        %2155 = vmatmul.bf16.gmra.mxu0 %v1730
        %v2156 = vpop.f32.mrf.mxu0
        %v2157 = vadd.f32 %v1791, %v2156
        %v2158 = vpop.f32.mrf.mxu0
        %v2159 = vadd.f32 %v1791, %v2158
        %2160 = vmatmul.bf16.gmra.mxu0 %v1732
        %v2161 = vpop.f32.mrf.mxu0
        %v2162 = vadd.f32 %v1791, %v2161
        %v2163 = vpop.f32.mrf.mxu0
        %v2164 = vadd.f32 %v1791, %v2163
        %2165 = vmatmul.bf16.gmra.mxu0 %v1734
        %v2166 = vpop.f32.mrf.mxu0
        %v2167 = vadd.f32 %v1791, %v2166
        %v2168 = vpop.f32.mrf.mxu0
        %v2169 = vadd.f32 %v1791, %v2168
        %2170 = vmatmul.bf16.gmra.mxu0 %v1736
        %v2171 = vpop.f32.mrf.mxu0
        %v2172 = vadd.f32 %v1791, %v2171
        %v2173 = vpop.f32.mrf.mxu0
        %v2174 = vadd.f32 %v1791, %v2173
        %2175 = vmatmul.bf16.gmra.mxu0 %v1738
        %v2176 = vpop.f32.mrf.mxu0
        %v2177 = vadd.f32 %v1791, %v2176
        %v2178 = vpop.f32.mrf.mxu0
        %v2179 = vadd.f32 %v1791, %v2178
        %2180 = vmatmul.bf16.gmra.mxu0 %v1740
        %v2181 = vpop.f32.mrf.mxu0
        %v2182 = vadd.f32 %v1791, %v2181
        %v2183 = vpop.f32.mrf.mxu0
        %v2184 = vadd.f32 %v1791, %v2183
        %2185 = vmatmul.bf16.gmra.mxu0 %v1742
        %v2186 = vpop.f32.mrf.mxu0
        %v2187 = vadd.f32 %v1791, %v2186
        %v2188 = vpop.f32.mrf.mxu0
        %v2189 = vadd.f32 %v1791, %v2188
        %2190 = vmatmul.bf16.gmra.mxu0 %v1744
        %v2191 = vpop.f32.mrf.mxu0
        %v2192 = vadd.f32 %v1791, %v2191
        %v2193 = vpop.f32.mrf.mxu0
        %v2194 = vadd.f32 %v1791, %v2193
        %2195 = vmatmul.bf16.gmra.mxu0 %v1746
        %v2196 = vpop.f32.mrf.mxu0
        %v2197 = vadd.f32 %v1791, %v2196
        %v2198 = vpop.f32.mrf.mxu0
        %v2199 = vadd.f32 %v1791, %v2198
        %2200 = vmatmul.bf16.gmra.mxu0 %v1748
        %v2201 = vpop.f32.mrf.mxu0
        %v2202 = vadd.f32 %v1791, %v2201
        %v2203 = vpop.f32.mrf.mxu0
        %v2204 = vadd.f32 %v1791, %v2203
        %2205 = vmatmul.bf16.gmra.mxu0 %v1750
        %v2206 = vpop.f32.mrf.mxu0
        %v2207 = vadd.f32 %v1791, %v2206
        %v2208 = vpop.f32.mrf.mxu0
        %v2209 = vadd.f32 %v1791, %v2208
        %2210 = vmatmul.bf16.gmra.mxu0 %v1752
        %v2211 = vpop.f32.mrf.mxu0
        %v2212 = vadd.f32 %v1791, %v2211
        %v2213 = vpop.f32.mrf.mxu0
        %v2214 = vadd.f32 %v1791, %v2213
        %2215 = vmatmul.bf16.gmra.mxu0 %v1754
        %v2216 = vpop.f32.mrf.mxu0
        %v2217 = vadd.f32 %v1791, %v2216
        %v2218 = vpop.f32.mrf.mxu0
        %v2219 = vadd.f32 %v1791, %v2218
        %2220 = vdwg.mxu0
        %2221 = vmatpush.bf16.msra.mxu0 %v1921
        %2222 = vmatpush.bf16.msra.mxu0 %v1919
        %2223 = vmatpush.bf16.msra.mxu0 %v1917
        %2224 = vmatpush.bf16.msra.mxu0 %v1915
        %2225 = vmatpush.bf16.msra.mxu0 %v1913
        %2226 = vmatpush.bf16.msra.mxu0 %v1911
        %2227 = vmatpush.bf16.msra.mxu0 %v1909
        %2228 = vmatpush.bf16.msra.mxu0 %v1907
        %2229 = vmatmul.bf16.gmra.mxu0 %v1725
        %v2230 = vpop.f32.mrf.mxu0
        %v2231 = vadd.f32 %v2142, %v2230
        %v2232 = vpop.f32.mrf.mxu0
        %v2233 = vadd.f32 %v2144, %v2232
        %2234 = vmatmul.bf16.gmra.mxu0 %v1727
        %v2235 = vpop.f32.mrf.mxu0
        %v2236 = vadd.f32 %v2147, %v2235
        %v2237 = vpop.f32.mrf.mxu0
        %v2238 = vadd.f32 %v2149, %v2237
        %2239 = vmatmul.bf16.gmra.mxu0 %v1729
        %v2240 = vpop.f32.mrf.mxu0
        %v2241 = vadd.f32 %v2152, %v2240
        %v2242 = vpop.f32.mrf.mxu0
        %v2243 = vadd.f32 %v2154, %v2242
        %2244 = vmatmul.bf16.gmra.mxu0 %v1731
        %v2245 = vpop.f32.mrf.mxu0
        %v2246 = vadd.f32 %v2157, %v2245
        %v2247 = vpop.f32.mrf.mxu0
        %v2248 = vadd.f32 %v2159, %v2247
        %2249 = vmatmul.bf16.gmra.mxu0 %v1733
        %v2250 = vpop.f32.mrf.mxu0
        %v2251 = vadd.f32 %v2162, %v2250
        %v2252 = vpop.f32.mrf.mxu0
        %v2253 = vadd.f32 %v2164, %v2252
        %2254 = vmatmul.bf16.gmra.mxu0 %v1735
        %v2255 = vpop.f32.mrf.mxu0
        %v2256 = vadd.f32 %v2167, %v2255
        %v2257 = vpop.f32.mrf.mxu0
        %v2258 = vadd.f32 %v2169, %v2257
        %2259 = vmatmul.bf16.gmra.mxu0 %v1737
        %v2260 = vpop.f32.mrf.mxu0
        %v2261 = vadd.f32 %v2172, %v2260
        %v2262 = vpop.f32.mrf.mxu0
        %v2263 = vadd.f32 %v2174, %v2262
        %2264 = vmatmul.bf16.gmra.mxu0 %v1739
        %v2265 = vpop.f32.mrf.mxu0
        %v2266 = vadd.f32 %v2177, %v2265
        %v2267 = vpop.f32.mrf.mxu0
        %v2268 = vadd.f32 %v2179, %v2267
        %2269 = vmatmul.bf16.gmra.mxu0 %v1741
        %v2270 = vpop.f32.mrf.mxu0
        %v2271 = vadd.f32 %v2182, %v2270
        %v2272 = vpop.f32.mrf.mxu0
        %v2273 = vadd.f32 %v2184, %v2272
        %2274 = vmatmul.bf16.gmra.mxu0 %v1743
        %v2275 = vpop.f32.mrf.mxu0
        %v2276 = vadd.f32 %v2187, %v2275
        %v2277 = vpop.f32.mrf.mxu0
        %v2278 = vadd.f32 %v2189, %v2277
        %2279 = vmatmul.bf16.gmra.mxu0 %v1745
        %v2280 = vpop.f32.mrf.mxu0
        %v2281 = vadd.f32 %v2192, %v2280
        %v2282 = vpop.f32.mrf.mxu0
        %v2283 = vadd.f32 %v2194, %v2282
        %2284 = vmatmul.bf16.gmra.mxu0 %v1747
        %v2285 = vpop.f32.mrf.mxu0
        %v2286 = vadd.f32 %v2197, %v2285
        %v2287 = vpop.f32.mrf.mxu0
        %v2288 = vadd.f32 %v2199, %v2287
        %2289 = vmatmul.bf16.gmra.mxu0 %v1749
        %v2290 = vpop.f32.mrf.mxu0
        %v2291 = vadd.f32 %v2202, %v2290
        %v2292 = vpop.f32.mrf.mxu0
        %v2293 = vadd.f32 %v2204, %v2292
        %2294 = vmatmul.bf16.gmra.mxu0 %v1751
        %v2295 = vpop.f32.mrf.mxu0
        %v2296 = vadd.f32 %v2207, %v2295
        %v2297 = vpop.f32.mrf.mxu0
        %v2298 = vadd.f32 %v2209, %v2297
        %2299 = vmatmul.bf16.gmra.mxu0 %v1753
        %v2300 = vpop.f32.mrf.mxu0
        %v2301 = vadd.f32 %v2212, %v2300
        %v2302 = vpop.f32.mrf.mxu0
        %v2303 = vadd.f32 %v2214, %v2302
        %2304 = vmatmul.bf16.gmra.mxu0 %v1755
        %v2305 = vpop.f32.mrf.mxu0
        %v2306 = vadd.f32 %v2217, %v2305
        %v2307 = vpop.f32.mrf.mxu0
        %v2308 = vadd.f32 %v2219, %v2307
        %2309 = vdwg.mxu0
        %v2310 = vmax.f32 %v2053, 0.0
        %v2311 = vmax.f32 %v2231, 0.0
        %v2312 = vmax.f32 %v2055, 0.0
        %v2313 = vmax.f32 %v2233, 0.0
        %v2314 = vmax.f32 %v2058, 0.0
        %v2315 = vmax.f32 %v2236, 0.0
        %v2316 = vmax.f32 %v2060, 0.0
        %v2317 = vmax.f32 %v2238, 0.0
        %v2318 = vmax.f32 %v2063, 0.0
        %v2319 = vmax.f32 %v2241, 0.0
        %v2320 = vmax.f32 %v2065, 0.0
        %v2321 = vmax.f32 %v2243, 0.0
        %v2322 = vmax.f32 %v2068, 0.0
        %v2323 = vmax.f32 %v2246, 0.0
        %v2324 = vmax.f32 %v2070, 0.0
        %v2325 = vmax.f32 %v2248, 0.0
        %v2326 = vmax.f32 %v2073, 0.0
        %v2327 = vmax.f32 %v2251, 0.0
        %v2328 = vmax.f32 %v2075, 0.0
        %v2329 = vmax.f32 %v2253, 0.0
        %v2330 = vmax.f32 %v2078, 0.0
        %v2331 = vmax.f32 %v2256, 0.0
        %v2332 = vmax.f32 %v2080, 0.0
        %v2333 = vmax.f32 %v2258, 0.0
        %v2334 = vmax.f32 %v2083, 0.0
        %v2335 = vmax.f32 %v2261, 0.0
        %v2336 = vmax.f32 %v2085, 0.0
        %v2337 = vmax.f32 %v2263, 0.0
        %v2338 = vmax.f32 %v2088, 0.0
        %v2339 = vmax.f32 %v2266, 0.0
        %v2340 = vmax.f32 %v2090, 0.0
        %v2341 = vmax.f32 %v2268, 0.0
        %v2342 = vmax.f32 %v2093, 0.0
        %v2343 = vmax.f32 %v2271, 0.0
        %v2344 = vmax.f32 %v2095, 0.0
        %v2345 = vmax.f32 %v2273, 0.0
        %v2346 = vmax.f32 %v2098, 0.0
        %v2347 = vmax.f32 %v2276, 0.0
        %v2348 = vmax.f32 %v2100, 0.0
        %v2349 = vmax.f32 %v2278, 0.0
        %v2350 = vmax.f32 %v2103, 0.0
        %v2351 = vmax.f32 %v2281, 0.0
        %v2352 = vmax.f32 %v2105, 0.0
        %v2353 = vmax.f32 %v2283, 0.0
        %v2354 = vmax.f32 %v2108, 0.0
        %v2355 = vmax.f32 %v2286, 0.0
        %v2356 = vmax.f32 %v2110, 0.0
        %v2357 = vmax.f32 %v2288, 0.0
        %v2358 = vmax.f32 %v2113, 0.0
        %v2359 = vmax.f32 %v2291, 0.0
        %v2360 = vmax.f32 %v2115, 0.0
        %v2361 = vmax.f32 %v2293, 0.0
        %v2362 = vmax.f32 %v2118, 0.0
        %v2363 = vmax.f32 %v2296, 0.0
        %v2364 = vmax.f32 %v2120, 0.0
        %v2365 = vmax.f32 %v2298, 0.0
        %v2366 = vmax.f32 %v2123, 0.0
        %v2367 = vmax.f32 %v2301, 0.0
        %v2368 = vmax.f32 %v2125, 0.0
        %v2369 = vmax.f32 %v2303, 0.0
        %v2370 = vmax.f32 %v2128, 0.0
        %v2371 = vmax.f32 %v2306, 0.0
        %v2372 = vmax.f32 %v2130, 0.0
        %v2373 = vmax.f32 %v2308, 0.0
        %v2374 = vpack.c.bf16 %v2312, %v2310
        %v2375 = vpack.c.bf16 %v2313, %v2311
        %v2376 = vpack.c.bf16 %v2316, %v2314
        %v2377 = vpack.c.bf16 %v2317, %v2315
        %v2378 = vpack.c.bf16 %v2320, %v2318
        %v2379 = vpack.c.bf16 %v2321, %v2319
        %v2380 = vpack.c.bf16 %v2324, %v2322
        %v2381 = vpack.c.bf16 %v2325, %v2323
        %v2382 = vpack.c.bf16 %v2328, %v2326
        %v2383 = vpack.c.bf16 %v2329, %v2327
        %v2384 = vpack.c.bf16 %v2332, %v2330
        %v2385 = vpack.c.bf16 %v2333, %v2331
        %v2386 = vpack.c.bf16 %v2336, %v2334
        %v2387 = vpack.c.bf16 %v2337, %v2335
        %v2388 = vpack.c.bf16 %v2340, %v2338
        %v2389 = vpack.c.bf16 %v2341, %v2339
        %v2390 = vpack.c.bf16 %v2344, %v2342
        %v2391 = vpack.c.bf16 %v2345, %v2343
        %v2392 = vpack.c.bf16 %v2348, %v2346
        %v2393 = vpack.c.bf16 %v2349, %v2347
        %v2394 = vpack.c.bf16 %v2352, %v2350
        %v2395 = vpack.c.bf16 %v2353, %v2351
        %v2396 = vpack.c.bf16 %v2356, %v2354
        %v2397 = vpack.c.bf16 %v2357, %v2355
        %v2398 = vpack.c.bf16 %v2360, %v2358
        %v2399 = vpack.c.bf16 %v2361, %v2359
        %v2400 = vpack.c.bf16 %v2364, %v2362
        %v2401 = vpack.c.bf16 %v2365, %v2363
        %v2402 = vpack.c.bf16 %v2368, %v2366
        %v2403 = vpack.c.bf16 %v2369, %v2367
        %v2404 = vpack.c.bf16 %v2372, %v2370
        %v2405 = vpack.c.bf16 %v2373, %v2371
        %v2406 = vld [vmem:[#allocation10] sm:$0xff]
        %v2407 = vld [vmem:[#allocation10 + $0x8] sm:$0xff]
        %v2408 = vld [vmem:[#allocation10 + $0x10] sm:$0xff]
        %v2409 = vld [vmem:[#allocation10 + $0x18] sm:$0xff]
        %v2410 = vld [vmem:[#allocation10 + $0x20] sm:$0xff]
        %v2411 = vld [vmem:[#allocation10 + $0x28] sm:$0xff]
        %v2412 = vld [vmem:[#allocation10 + $0x30] sm:$0xff]
        %v2413 = vld [vmem:[#allocation10 + $0x38] sm:$0xff]
        %v2414 = vld [vmem:[#allocation10 + $0x40] sm:$0xff]
        %v2415 = vld [vmem:[#allocation10 + $0x48] sm:$0xff]
        %v2416 = vld [vmem:[#allocation10 + $0x50] sm:$0xff]
        %v2417 = vld [vmem:[#allocation10 + $0x58] sm:$0xff]
        %v2418 = vld [vmem:[#allocation10 + $0x60] sm:$0xff]
        %v2419 = vld [vmem:[#allocation10 + $0x68] sm:$0xff]
        %v2420 = vld [vmem:[#allocation10 + $0x70] sm:$0xff]
        %v2421 = vld [vmem:[#allocation10 + $0x78] sm:$0xff]
        %v2422 = vld [vmem:[#allocation10 + $0x80] sm:$0xff]
        %v2423 = vld [vmem:[#allocation10 + $0x88] sm:$0xff]
        %v2424 = vld [vmem:[#allocation10 + $0x90] sm:$0xff]
        %v2425 = vld [vmem:[#allocation10 + $0x98] sm:$0xff]
        %v2426 = vld [vmem:[#allocation10 + $0xa0] sm:$0xff]
        %v2427 = vld [vmem:[#allocation10 + $0xa8] sm:$0xff]
        %v2428 = vld [vmem:[#allocation10 + $0xb0] sm:$0xff]
        %v2429 = vld [vmem:[#allocation10 + $0xb8] sm:$0xff]
        %v2430 = vld [vmem:[#allocation10 + $0xc0] sm:$0xff]
        %v2431 = vld [vmem:[#allocation10 + $0xc8] sm:$0xff]
        %v2432 = vld [vmem:[#allocation10 + $0xd0] sm:$0xff]
        %v2433 = vld [vmem:[#allocation10 + $0xd8] sm:$0xff]
        %v2434 = vld [vmem:[#allocation10 + $0xe0] sm:$0xff]
        %v2435 = vld [vmem:[#allocation10 + $0xe8] sm:$0xff]
        %v2436 = vld [vmem:[#allocation10 + $0xf0] sm:$0xff]
        %v2437 = vld [vmem:[#allocation10 + $0xf8] sm:$0xff]
        %v2438 = vld [vmem:[%s6] sm:$0x3]
        %v2440 = vperm.slane %v2438, 0
        %v2441 = vperm.slane %v2438, 1
        %v2476 = vunpack.c.l.b16 %v2406
        %v2477 = vunpack.c.h.b16 %v2406
        %v2478 = vunpack.c.l.b16 %v2407
        %v2479 = vunpack.c.h.b16 %v2407
        %v2480 = vunpack.c.l.b16 %v2408
        %v2481 = vunpack.c.h.b16 %v2408
        %v2482 = vunpack.c.l.b16 %v2409
        %v2483 = vunpack.c.h.b16 %v2409
        %v2484 = vunpack.c.l.b16 %v2410
        %v2485 = vunpack.c.h.b16 %v2410
        %v2486 = vunpack.c.l.b16 %v2411
        %v2487 = vunpack.c.h.b16 %v2411
        %v2488 = vunpack.c.l.b16 %v2412
        %v2489 = vunpack.c.h.b16 %v2412
        %v2490 = vunpack.c.l.b16 %v2413
        %v2491 = vunpack.c.h.b16 %v2413
        %v2492 = vunpack.c.l.b16 %v2414
        %v2493 = vunpack.c.h.b16 %v2414
        %v2494 = vunpack.c.l.b16 %v2415
        %v2495 = vunpack.c.h.b16 %v2415
        %v2496 = vunpack.c.l.b16 %v2416
        %v2497 = vunpack.c.h.b16 %v2416
        %v2498 = vunpack.c.l.b16 %v2417
        %v2499 = vunpack.c.h.b16 %v2417
        %v2500 = vunpack.c.l.b16 %v2418
        %v2501 = vunpack.c.h.b16 %v2418
        %v2502 = vunpack.c.l.b16 %v2419
        %v2503 = vunpack.c.h.b16 %v2419
        %v2504 = vunpack.c.l.b16 %v2420
        %v2505 = vunpack.c.h.b16 %v2420
        %v2506 = vunpack.c.l.b16 %v2421
        %v2507 = vunpack.c.h.b16 %v2421
        %v2508 = vunpack.c.l.b16 %v2422
        %v2509 = vunpack.c.h.b16 %v2422
        %v2510 = vunpack.c.l.b16 %v2423
        %v2511 = vunpack.c.h.b16 %v2423
        %v2512 = vunpack.c.l.b16 %v2424
        %v2513 = vunpack.c.h.b16 %v2424
        %v2514 = vunpack.c.l.b16 %v2425
        %v2515 = vunpack.c.h.b16 %v2425
        %v2516 = vunpack.c.l.b16 %v2426
        %v2517 = vunpack.c.h.b16 %v2426
        %v2518 = vunpack.c.l.b16 %v2427
        %v2519 = vunpack.c.h.b16 %v2427
        %v2520 = vunpack.c.l.b16 %v2428
        %v2521 = vunpack.c.h.b16 %v2428
        %v2522 = vunpack.c.l.b16 %v2429
        %v2523 = vunpack.c.h.b16 %v2429
        %v2524 = vunpack.c.l.b16 %v2430
        %v2525 = vunpack.c.h.b16 %v2430
        %v2526 = vunpack.c.l.b16 %v2431
        %v2527 = vunpack.c.h.b16 %v2431
        %v2528 = vunpack.c.l.b16 %v2432
        %v2529 = vunpack.c.h.b16 %v2432
        %v2530 = vunpack.c.l.b16 %v2433
        %v2531 = vunpack.c.h.b16 %v2433
        %v2532 = vunpack.c.l.b16 %v2434
        %v2533 = vunpack.c.h.b16 %v2434
        %v2534 = vunpack.c.l.b16 %v2435
        %v2535 = vunpack.c.h.b16 %v2435
        %v2536 = vunpack.c.l.b16 %v2436
        %v2537 = vunpack.c.h.b16 %v2436
        %v2538 = vunpack.c.l.b16 %v2437
        %v2539 = vunpack.c.h.b16 %v2437
        %v2540 = vpack.c.b16 %v2478, %v2476
        %v2541 = vpack.c.b16 %v2479, %v2477
        %v2542 = vpack.c.b16 %v2482, %v2480
        %v2543 = vpack.c.b16 %v2483, %v2481
        %v2544 = vpack.c.b16 %v2486, %v2484
        %v2545 = vpack.c.b16 %v2487, %v2485
        %v2546 = vpack.c.b16 %v2490, %v2488
        %v2547 = vpack.c.b16 %v2491, %v2489
        %v2548 = vpack.c.b16 %v2494, %v2492
        %v2549 = vpack.c.b16 %v2495, %v2493
        %v2550 = vpack.c.b16 %v2498, %v2496
        %v2551 = vpack.c.b16 %v2499, %v2497
        %v2552 = vpack.c.b16 %v2502, %v2500
        %v2553 = vpack.c.b16 %v2503, %v2501
        %v2554 = vpack.c.b16 %v2506, %v2504
        %v2555 = vpack.c.b16 %v2507, %v2505
        %v2556 = vpack.c.b16 %v2510, %v2508
        %v2557 = vpack.c.b16 %v2511, %v2509
        %v2558 = vpack.c.b16 %v2514, %v2512
        %v2559 = vpack.c.b16 %v2515, %v2513
        %v2560 = vpack.c.b16 %v2518, %v2516
        %v2561 = vpack.c.b16 %v2519, %v2517
        %v2562 = vpack.c.b16 %v2522, %v2520
        %v2563 = vpack.c.b16 %v2523, %v2521
        %v2564 = vpack.c.b16 %v2526, %v2524
        %v2565 = vpack.c.b16 %v2527, %v2525
        %v2566 = vpack.c.b16 %v2530, %v2528
        %v2567 = vpack.c.b16 %v2531, %v2529
        %v2568 = vpack.c.b16 %v2534, %v2532
        %v2569 = vpack.c.b16 %v2535, %v2533
        %v2570 = vpack.c.b16 %v2538, %v2536
        %v2571 = vpack.c.b16 %v2539, %v2537
        %2604 = vmatpush.bf16.msra.mxu0 %v2554
        %2605 = vmatpush.bf16.msra.mxu0 %v2552
        %2606 = vmatpush.bf16.msra.mxu0 %v2550
        %2607 = vmatpush.bf16.msra.mxu0 %v2548
        %2608 = vmatpush.bf16.msra.mxu0 %v2546
        %2609 = vmatpush.bf16.msra.mxu0 %v2544
        %2610 = vmatpush.bf16.msra.mxu0 %v2542
        %2611 = vmatpush.bf16.msra.mxu0 %v2540
        %2612 = vmatmul.bf16.gmra.mxu0 %v2374
        %v2613 = vpop.f32.mrf.mxu0
        %v2614 = vadd.f32 %v2440, %v2613
        %v2615 = vpop.f32.mrf.mxu0
        %v2616 = vadd.f32 %v2440, %v2615
        %2617 = vmatmul.bf16.gmra.mxu0 %v2376
        %v2618 = vpop.f32.mrf.mxu0
        %v2619 = vadd.f32 %v2440, %v2618
        %v2620 = vpop.f32.mrf.mxu0
        %v2621 = vadd.f32 %v2440, %v2620
        %2622 = vmatmul.bf16.gmra.mxu0 %v2378
        %v2623 = vpop.f32.mrf.mxu0
        %v2624 = vadd.f32 %v2440, %v2623
        %v2625 = vpop.f32.mrf.mxu0
        %v2626 = vadd.f32 %v2440, %v2625
        %2627 = vmatmul.bf16.gmra.mxu0 %v2380
        %v2628 = vpop.f32.mrf.mxu0
        %v2629 = vadd.f32 %v2440, %v2628
        %v2630 = vpop.f32.mrf.mxu0
        %v2631 = vadd.f32 %v2440, %v2630
        %2632 = vmatmul.bf16.gmra.mxu0 %v2382
        %v2633 = vpop.f32.mrf.mxu0
        %v2634 = vadd.f32 %v2440, %v2633
        %v2635 = vpop.f32.mrf.mxu0
        %v2636 = vadd.f32 %v2440, %v2635
        %2637 = vmatmul.bf16.gmra.mxu0 %v2384
        %v2638 = vpop.f32.mrf.mxu0
        %v2639 = vadd.f32 %v2440, %v2638
        %v2640 = vpop.f32.mrf.mxu0
        %v2641 = vadd.f32 %v2440, %v2640
        %2642 = vmatmul.bf16.gmra.mxu0 %v2386
        %v2643 = vpop.f32.mrf.mxu0
        %v2644 = vadd.f32 %v2440, %v2643
        %v2645 = vpop.f32.mrf.mxu0
        %v2646 = vadd.f32 %v2440, %v2645
        %2647 = vmatmul.bf16.gmra.mxu0 %v2388
        %v2648 = vpop.f32.mrf.mxu0
        %v2649 = vadd.f32 %v2440, %v2648
        %v2650 = vpop.f32.mrf.mxu0
        %v2651 = vadd.f32 %v2440, %v2650
        %2652 = vmatmul.bf16.gmra.mxu0 %v2390
        %v2653 = vpop.f32.mrf.mxu0
        %v2654 = vadd.f32 %v2440, %v2653
        %v2655 = vpop.f32.mrf.mxu0
        %v2656 = vadd.f32 %v2440, %v2655
        %2657 = vmatmul.bf16.gmra.mxu0 %v2392
        %v2658 = vpop.f32.mrf.mxu0
        %v2659 = vadd.f32 %v2440, %v2658
        %v2660 = vpop.f32.mrf.mxu0
        %v2661 = vadd.f32 %v2440, %v2660
        %2662 = vmatmul.bf16.gmra.mxu0 %v2394
        %v2663 = vpop.f32.mrf.mxu0
        %v2664 = vadd.f32 %v2440, %v2663
        %v2665 = vpop.f32.mrf.mxu0
        %v2666 = vadd.f32 %v2440, %v2665
        %2667 = vmatmul.bf16.gmra.mxu0 %v2396
        %v2668 = vpop.f32.mrf.mxu0
        %v2669 = vadd.f32 %v2440, %v2668
        %v2670 = vpop.f32.mrf.mxu0
        %v2671 = vadd.f32 %v2440, %v2670
        %2672 = vmatmul.bf16.gmra.mxu0 %v2398
        %v2673 = vpop.f32.mrf.mxu0
        %v2674 = vadd.f32 %v2440, %v2673
        %v2675 = vpop.f32.mrf.mxu0
        %v2676 = vadd.f32 %v2440, %v2675
        %2677 = vmatmul.bf16.gmra.mxu0 %v2400
        %v2678 = vpop.f32.mrf.mxu0
        %v2679 = vadd.f32 %v2440, %v2678
        %v2680 = vpop.f32.mrf.mxu0
        %v2681 = vadd.f32 %v2440, %v2680
        %2682 = vmatmul.bf16.gmra.mxu0 %v2402
        %v2683 = vpop.f32.mrf.mxu0
        %v2684 = vadd.f32 %v2440, %v2683
        %v2685 = vpop.f32.mrf.mxu0
        %v2686 = vadd.f32 %v2440, %v2685
        %2687 = vmatmul.bf16.gmra.mxu0 %v2404
        %v2688 = vpop.f32.mrf.mxu0
        %v2689 = vadd.f32 %v2440, %v2688
        %v2690 = vpop.f32.mrf.mxu0
        %v2691 = vadd.f32 %v2440, %v2690
        %2692 = vdwg.mxu0
        %2693 = vmatpush.bf16.msra.mxu0 %v2570
        %2694 = vmatpush.bf16.msra.mxu0 %v2568
        %2695 = vmatpush.bf16.msra.mxu0 %v2566
        %2696 = vmatpush.bf16.msra.mxu0 %v2564
        %2697 = vmatpush.bf16.msra.mxu0 %v2562
        %2698 = vmatpush.bf16.msra.mxu0 %v2560
        %2699 = vmatpush.bf16.msra.mxu0 %v2558
        %2700 = vmatpush.bf16.msra.mxu0 %v2556
        %2701 = vmatmul.bf16.gmra.mxu0 %v2375
        %v2702 = vpop.f32.mrf.mxu0
        %v2703 = vadd.f32 %v2614, %v2702
        %v2704 = vpop.f32.mrf.mxu0
        %v2705 = vadd.f32 %v2616, %v2704
        %2706 = vmatmul.bf16.gmra.mxu0 %v2377
        %v2707 = vpop.f32.mrf.mxu0
        %v2708 = vadd.f32 %v2619, %v2707
        %v2709 = vpop.f32.mrf.mxu0
        %v2710 = vadd.f32 %v2621, %v2709
        %2711 = vmatmul.bf16.gmra.mxu0 %v2379
        %v2712 = vpop.f32.mrf.mxu0
        %v2713 = vadd.f32 %v2624, %v2712
        %v2714 = vpop.f32.mrf.mxu0
        %v2715 = vadd.f32 %v2626, %v2714
        %2716 = vmatmul.bf16.gmra.mxu0 %v2381
        %v2717 = vpop.f32.mrf.mxu0
        %v2718 = vadd.f32 %v2629, %v2717
        %v2719 = vpop.f32.mrf.mxu0
        %v2720 = vadd.f32 %v2631, %v2719
        %2721 = vmatmul.bf16.gmra.mxu0 %v2383
        %v2722 = vpop.f32.mrf.mxu0
        %v2723 = vadd.f32 %v2634, %v2722
        %v2724 = vpop.f32.mrf.mxu0
        %v2725 = vadd.f32 %v2636, %v2724
        %2726 = vmatmul.bf16.gmra.mxu0 %v2385
        %v2727 = vpop.f32.mrf.mxu0
        %v2728 = vadd.f32 %v2639, %v2727
        %v2729 = vpop.f32.mrf.mxu0
        %v2730 = vadd.f32 %v2641, %v2729
        %2731 = vmatmul.bf16.gmra.mxu0 %v2387
        %v2732 = vpop.f32.mrf.mxu0
        %v2733 = vadd.f32 %v2644, %v2732
        %v2734 = vpop.f32.mrf.mxu0
        %v2735 = vadd.f32 %v2646, %v2734
        %2736 = vmatmul.bf16.gmra.mxu0 %v2389
        %v2737 = vpop.f32.mrf.mxu0
        %v2738 = vadd.f32 %v2649, %v2737
        %v2739 = vpop.f32.mrf.mxu0
        %v2740 = vadd.f32 %v2651, %v2739
        %2741 = vmatmul.bf16.gmra.mxu0 %v2391
        %v2742 = vpop.f32.mrf.mxu0
        %v2743 = vadd.f32 %v2654, %v2742
        %v2744 = vpop.f32.mrf.mxu0
        %v2745 = vadd.f32 %v2656, %v2744
        %2746 = vmatmul.bf16.gmra.mxu0 %v2393
        %v2747 = vpop.f32.mrf.mxu0
        %v2748 = vadd.f32 %v2659, %v2747
        %v2749 = vpop.f32.mrf.mxu0
        %v2750 = vadd.f32 %v2661, %v2749
        %2751 = vmatmul.bf16.gmra.mxu0 %v2395
        %v2752 = vpop.f32.mrf.mxu0
        %v2753 = vadd.f32 %v2664, %v2752
        %v2754 = vpop.f32.mrf.mxu0
        %v2755 = vadd.f32 %v2666, %v2754
        %2756 = vmatmul.bf16.gmra.mxu0 %v2397
        %v2757 = vpop.f32.mrf.mxu0
        %v2758 = vadd.f32 %v2669, %v2757
        %v2759 = vpop.f32.mrf.mxu0
        %v2760 = vadd.f32 %v2671, %v2759
        %2761 = vmatmul.bf16.gmra.mxu0 %v2399
        %v2762 = vpop.f32.mrf.mxu0
        %v2763 = vadd.f32 %v2674, %v2762
        %v2764 = vpop.f32.mrf.mxu0
        %v2765 = vadd.f32 %v2676, %v2764
        %2766 = vmatmul.bf16.gmra.mxu0 %v2401
        %v2767 = vpop.f32.mrf.mxu0
        %v2768 = vadd.f32 %v2679, %v2767
        %v2769 = vpop.f32.mrf.mxu0
        %v2770 = vadd.f32 %v2681, %v2769
        %2771 = vmatmul.bf16.gmra.mxu0 %v2403
        %v2772 = vpop.f32.mrf.mxu0
        %v2773 = vadd.f32 %v2684, %v2772
        %v2774 = vpop.f32.mrf.mxu0
        %v2775 = vadd.f32 %v2686, %v2774
        %2776 = vmatmul.bf16.gmra.mxu0 %v2405
        %v2777 = vpop.f32.mrf.mxu0
        %v2778 = vadd.f32 %v2689, %v2777
        %v2779 = vpop.f32.mrf.mxu0
        %v2780 = vadd.f32 %v2691, %v2779
        %2781 = vdwg.mxu0
        %2782 = vmatpush.bf16.msra.mxu0 %v2555
        %2783 = vmatpush.bf16.msra.mxu0 %v2553
        %2784 = vmatpush.bf16.msra.mxu0 %v2551
        %2785 = vmatpush.bf16.msra.mxu0 %v2549
        %2786 = vmatpush.bf16.msra.mxu0 %v2547
        %2787 = vmatpush.bf16.msra.mxu0 %v2545
        %2788 = vmatpush.bf16.msra.mxu0 %v2543
        %2789 = vmatpush.bf16.msra.mxu0 %v2541
        %2790 = vmatmul.bf16.gmra.mxu0 %v2374
        %v2791 = vpop.f32.mrf.mxu0
        %v2792 = vadd.f32 %v2441, %v2791
        %v2793 = vpop.f32.mrf.mxu0
        %v2794 = vadd.f32 %v2441, %v2793
        %2795 = vmatmul.bf16.gmra.mxu0 %v2376
        %v2796 = vpop.f32.mrf.mxu0
        %v2797 = vadd.f32 %v2441, %v2796
        %v2798 = vpop.f32.mrf.mxu0
        %v2799 = vadd.f32 %v2441, %v2798
        %2800 = vmatmul.bf16.gmra.mxu0 %v2378
        %v2801 = vpop.f32.mrf.mxu0
        %v2802 = vadd.f32 %v2441, %v2801
        %v2803 = vpop.f32.mrf.mxu0
        %v2804 = vadd.f32 %v2441, %v2803
        %2805 = vmatmul.bf16.gmra.mxu0 %v2380
        %v2806 = vpop.f32.mrf.mxu0
        %v2807 = vadd.f32 %v2441, %v2806
        %v2808 = vpop.f32.mrf.mxu0
        %v2809 = vadd.f32 %v2441, %v2808
        %2810 = vmatmul.bf16.gmra.mxu0 %v2382
        %v2811 = vpop.f32.mrf.mxu0
        %v2812 = vadd.f32 %v2441, %v2811
        %v2813 = vpop.f32.mrf.mxu0
        %v2814 = vadd.f32 %v2441, %v2813
        %2815 = vmatmul.bf16.gmra.mxu0 %v2384
        %v2816 = vpop.f32.mrf.mxu0
        %v2817 = vadd.f32 %v2441, %v2816
        %v2818 = vpop.f32.mrf.mxu0
        %v2819 = vadd.f32 %v2441, %v2818
        %2820 = vmatmul.bf16.gmra.mxu0 %v2386
        %v2821 = vpop.f32.mrf.mxu0
        %v2822 = vadd.f32 %v2441, %v2821
        %v2823 = vpop.f32.mrf.mxu0
        %v2824 = vadd.f32 %v2441, %v2823
        %2825 = vmatmul.bf16.gmra.mxu0 %v2388
        %v2826 = vpop.f32.mrf.mxu0
        %v2827 = vadd.f32 %v2441, %v2826
        %v2828 = vpop.f32.mrf.mxu0
        %v2829 = vadd.f32 %v2441, %v2828
        %2830 = vmatmul.bf16.gmra.mxu0 %v2390
        %v2831 = vpop.f32.mrf.mxu0
        %v2832 = vadd.f32 %v2441, %v2831
        %v2833 = vpop.f32.mrf.mxu0
        %v2834 = vadd.f32 %v2441, %v2833
        %2835 = vmatmul.bf16.gmra.mxu0 %v2392
        %v2836 = vpop.f32.mrf.mxu0
        %v2837 = vadd.f32 %v2441, %v2836
        %v2838 = vpop.f32.mrf.mxu0
        %v2839 = vadd.f32 %v2441, %v2838
        %2840 = vmatmul.bf16.gmra.mxu0 %v2394
        %v2841 = vpop.f32.mrf.mxu0
        %v2842 = vadd.f32 %v2441, %v2841
        %v2843 = vpop.f32.mrf.mxu0
        %v2844 = vadd.f32 %v2441, %v2843
        %2845 = vmatmul.bf16.gmra.mxu0 %v2396
        %v2846 = vpop.f32.mrf.mxu0
        %v2847 = vadd.f32 %v2441, %v2846
        %v2848 = vpop.f32.mrf.mxu0
        %v2849 = vadd.f32 %v2441, %v2848
        %2850 = vmatmul.bf16.gmra.mxu0 %v2398
        %v2851 = vpop.f32.mrf.mxu0
        %v2852 = vadd.f32 %v2441, %v2851
        %v2853 = vpop.f32.mrf.mxu0
        %v2854 = vadd.f32 %v2441, %v2853
        %2855 = vmatmul.bf16.gmra.mxu0 %v2400
        %v2856 = vpop.f32.mrf.mxu0
        %v2857 = vadd.f32 %v2441, %v2856
        %v2858 = vpop.f32.mrf.mxu0
        %v2859 = vadd.f32 %v2441, %v2858
        %2860 = vmatmul.bf16.gmra.mxu0 %v2402
        %v2861 = vpop.f32.mrf.mxu0
        %v2862 = vadd.f32 %v2441, %v2861
        %v2863 = vpop.f32.mrf.mxu0
        %v2864 = vadd.f32 %v2441, %v2863
        %2865 = vmatmul.bf16.gmra.mxu0 %v2404
        %v2866 = vpop.f32.mrf.mxu0
        %v2867 = vadd.f32 %v2441, %v2866
        %v2868 = vpop.f32.mrf.mxu0
        %v2869 = vadd.f32 %v2441, %v2868
        %2870 = vdwg.mxu0
        %2871 = vmatpush.bf16.msra.mxu0 %v2571
        %2872 = vmatpush.bf16.msra.mxu0 %v2569
        %2873 = vmatpush.bf16.msra.mxu0 %v2567
        %2874 = vmatpush.bf16.msra.mxu0 %v2565
        %2875 = vmatpush.bf16.msra.mxu0 %v2563
        %2876 = vmatpush.bf16.msra.mxu0 %v2561
        %2877 = vmatpush.bf16.msra.mxu0 %v2559
        %2878 = vmatpush.bf16.msra.mxu0 %v2557
        %2879 = vmatmul.bf16.gmra.mxu0 %v2375
        %v2880 = vpop.f32.mrf.mxu0
        %v2881 = vadd.f32 %v2792, %v2880
        %v2882 = vpop.f32.mrf.mxu0
        %v2883 = vadd.f32 %v2794, %v2882
        %2884 = vmatmul.bf16.gmra.mxu0 %v2377
        %v2885 = vpop.f32.mrf.mxu0
        %v2886 = vadd.f32 %v2797, %v2885
        %v2887 = vpop.f32.mrf.mxu0
        %v2888 = vadd.f32 %v2799, %v2887
        %2889 = vmatmul.bf16.gmra.mxu0 %v2379
        %v2890 = vpop.f32.mrf.mxu0
        %v2891 = vadd.f32 %v2802, %v2890
        %v2892 = vpop.f32.mrf.mxu0
        %v2893 = vadd.f32 %v2804, %v2892
        %2894 = vmatmul.bf16.gmra.mxu0 %v2381
        %v2895 = vpop.f32.mrf.mxu0
        %v2896 = vadd.f32 %v2807, %v2895
        %v2897 = vpop.f32.mrf.mxu0
        %v2898 = vadd.f32 %v2809, %v2897
        %2899 = vmatmul.bf16.gmra.mxu0 %v2383
        %v2900 = vpop.f32.mrf.mxu0
        %v2901 = vadd.f32 %v2812, %v2900
        %v2902 = vpop.f32.mrf.mxu0
        %v2903 = vadd.f32 %v2814, %v2902
        %2904 = vmatmul.bf16.gmra.mxu0 %v2385
        %v2905 = vpop.f32.mrf.mxu0
        %v2906 = vadd.f32 %v2817, %v2905
        %v2907 = vpop.f32.mrf.mxu0
        %v2908 = vadd.f32 %v2819, %v2907
        %2909 = vmatmul.bf16.gmra.mxu0 %v2387
        %v2910 = vpop.f32.mrf.mxu0
        %v2911 = vadd.f32 %v2822, %v2910
        %v2912 = vpop.f32.mrf.mxu0
        %v2913 = vadd.f32 %v2824, %v2912
        %2914 = vmatmul.bf16.gmra.mxu0 %v2389
        %v2915 = vpop.f32.mrf.mxu0
        %v2916 = vadd.f32 %v2827, %v2915
        %v2917 = vpop.f32.mrf.mxu0
        %v2918 = vadd.f32 %v2829, %v2917
        %2919 = vmatmul.bf16.gmra.mxu0 %v2391
        %v2920 = vpop.f32.mrf.mxu0
        %v2921 = vadd.f32 %v2832, %v2920
        %v2922 = vpop.f32.mrf.mxu0
        %v2923 = vadd.f32 %v2834, %v2922
        %2924 = vmatmul.bf16.gmra.mxu0 %v2393
        %v2925 = vpop.f32.mrf.mxu0
        %v2926 = vadd.f32 %v2837, %v2925
        %v2927 = vpop.f32.mrf.mxu0
        %v2928 = vadd.f32 %v2839, %v2927
        %2929 = vmatmul.bf16.gmra.mxu0 %v2395
        %v2930 = vpop.f32.mrf.mxu0
        %v2931 = vadd.f32 %v2842, %v2930
        %v2932 = vpop.f32.mrf.mxu0
        %v2933 = vadd.f32 %v2844, %v2932
        %2934 = vmatmul.bf16.gmra.mxu0 %v2397
        %v2935 = vpop.f32.mrf.mxu0
        %v2936 = vadd.f32 %v2847, %v2935
        %v2937 = vpop.f32.mrf.mxu0
        %v2938 = vadd.f32 %v2849, %v2937
        %2939 = vmatmul.bf16.gmra.mxu0 %v2399
        %v2940 = vpop.f32.mrf.mxu0
        %v2941 = vadd.f32 %v2852, %v2940
        %v2942 = vpop.f32.mrf.mxu0
        %v2943 = vadd.f32 %v2854, %v2942
        %2944 = vmatmul.bf16.gmra.mxu0 %v2401
        %v2945 = vpop.f32.mrf.mxu0
        %v2946 = vadd.f32 %v2857, %v2945
        %v2947 = vpop.f32.mrf.mxu0
        %v2948 = vadd.f32 %v2859, %v2947
        %2949 = vmatmul.bf16.gmra.mxu0 %v2403
        %v2950 = vpop.f32.mrf.mxu0
        %v2951 = vadd.f32 %v2862, %v2950
        %v2952 = vpop.f32.mrf.mxu0
        %v2953 = vadd.f32 %v2864, %v2952
        %2954 = vmatmul.bf16.gmra.mxu0 %v2405
        %v2955 = vpop.f32.mrf.mxu0
        %v2956 = vadd.f32 %v2867, %v2955
        %v2957 = vpop.f32.mrf.mxu0
        %v2958 = vadd.f32 %v2869, %v2957
        %2959 = vdwg.mxu0
        %v2960 = vmax.f32 %v2703, %v2881
        %2961 = vmax.xlane.f32.xlu0 %v2960
        %v2962 = vpop.xlane.xlu0 %2961
        %v2963 = vmax.f32 %v2705, %v2883
        %2964 = vmax.xlane.f32.xlu0 %v2963
        %v2965 = vpop.xlane.xlu0 %2964
        %v2966 = vmax.f32 %v2708, %v2886
        %2967 = vmax.xlane.f32.xlu0 %v2966
        %v2968 = vpop.xlane.xlu0 %2967
        %v2969 = vmax.f32 %v2710, %v2888
        %2970 = vmax.xlane.f32.xlu0 %v2969
        %v2971 = vpop.xlane.xlu0 %2970
        %v2972 = vmax.f32 %v2713, %v2891
        %2973 = vmax.xlane.f32.xlu0 %v2972
        %v2974 = vpop.xlane.xlu0 %2973
        %v2975 = vmax.f32 %v2715, %v2893
        %2976 = vmax.xlane.f32.xlu0 %v2975
        %v2977 = vpop.xlane.xlu0 %2976
        %v2978 = vmax.f32 %v2718, %v2896
        %2979 = vmax.xlane.f32.xlu0 %v2978
        %v2980 = vpop.xlane.xlu0 %2979
        %v2981 = vmax.f32 %v2720, %v2898
        %2982 = vmax.xlane.f32.xlu0 %v2981
        %v2983 = vpop.xlane.xlu0 %2982
        %v2984 = vmax.f32 %v2723, %v2901
        %2985 = vmax.xlane.f32.xlu0 %v2984
        %v2986 = vpop.xlane.xlu0 %2985
        %v2987 = vmax.f32 %v2725, %v2903
        %2988 = vmax.xlane.f32.xlu0 %v2987
        %v2989 = vpop.xlane.xlu0 %2988
        %v2990 = vmax.f32 %v2728, %v2906
        %2991 = vmax.xlane.f32.xlu0 %v2990
        %v2992 = vpop.xlane.xlu0 %2991
        %v2993 = vmax.f32 %v2730, %v2908
        %2994 = vmax.xlane.f32.xlu0 %v2993
        %v2995 = vpop.xlane.xlu0 %2994
        %v2996 = vmax.f32 %v2733, %v2911
        %2997 = vmax.xlane.f32.xlu0 %v2996
        %v2998 = vpop.xlane.xlu0 %2997
        %v2999 = vmax.f32 %v2735, %v2913
        %3000 = vmax.xlane.f32.xlu0 %v2999
        %v3001 = vpop.xlane.xlu0 %3000
        %v3002 = vmax.f32 %v2738, %v2916
        %3003 = vmax.xlane.f32.xlu0 %v3002
        %v3004 = vpop.xlane.xlu0 %3003
        %v3005 = vmax.f32 %v2740, %v2918
        %3006 = vmax.xlane.f32.xlu0 %v3005
        %v3007 = vpop.xlane.xlu0 %3006
        %v3008 = vmax.f32 %v2743, %v2921
        %3009 = vmax.xlane.f32.xlu0 %v3008
        %v3010 = vpop.xlane.xlu0 %3009
        %v3011 = vmax.f32 %v2745, %v2923
        %3012 = vmax.xlane.f32.xlu0 %v3011
        %v3013 = vpop.xlane.xlu0 %3012
        %v3014 = vmax.f32 %v2748, %v2926
        %3015 = vmax.xlane.f32.xlu0 %v3014
        %v3016 = vpop.xlane.xlu0 %3015
        %v3017 = vmax.f32 %v2750, %v2928
        %3018 = vmax.xlane.f32.xlu0 %v3017
        %v3019 = vpop.xlane.xlu0 %3018
        %v3020 = vmax.f32 %v2753, %v2931
        %3021 = vmax.xlane.f32.xlu0 %v3020
        %v3022 = vpop.xlane.xlu0 %3021
        %v3023 = vmax.f32 %v2755, %v2933
        %3024 = vmax.xlane.f32.xlu0 %v3023
        %v3025 = vpop.xlane.xlu0 %3024
        %v3026 = vmax.f32 %v2758, %v2936
        %3027 = vmax.xlane.f32.xlu0 %v3026
        %v3028 = vpop.xlane.xlu0 %3027
        %v3029 = vmax.f32 %v2760, %v2938
        %3030 = vmax.xlane.f32.xlu0 %v3029
        %v3031 = vpop.xlane.xlu0 %3030
        %v3032 = vmax.f32 %v2763, %v2941
        %3033 = vmax.xlane.f32.xlu0 %v3032
        %v3034 = vpop.xlane.xlu0 %3033
        %v3035 = vmax.f32 %v2765, %v2943
        %3036 = vmax.xlane.f32.xlu0 %v3035
        %v3037 = vpop.xlane.xlu0 %3036
        %v3038 = vmax.f32 %v2768, %v2946
        %3039 = vmax.xlane.f32.xlu0 %v3038
        %v3040 = vpop.xlane.xlu0 %3039
        %v3041 = vmax.f32 %v2770, %v2948
        %3042 = vmax.xlane.f32.xlu0 %v3041
        %v3043 = vpop.xlane.xlu0 %3042
        %v3044 = vmax.f32 %v2773, %v2951
        %3045 = vmax.xlane.f32.xlu0 %v3044
        %v3046 = vpop.xlane.xlu0 %3045
        %v3047 = vmax.f32 %v2775, %v2953
        %3048 = vmax.xlane.f32.xlu0 %v3047
        %v3049 = vpop.xlane.xlu0 %3048
        %v3050 = vmax.f32 %v2778, %v2956
        %3051 = vmax.xlane.f32.xlu0 %v3050
        %v3052 = vpop.xlane.xlu0 %3051
        %v3053 = vmax.f32 %v2780, %v2958
        %3054 = vmax.xlane.f32.xlu0 %v3053
        %v3055 = vpop.xlane.xlu0 %3054
        %v3056 = vsub.f32 %v2703, %v2962
        %v3057 = vsub.f32 %v2881, %v2962
        %v3058 = vsub.f32 %v2705, %v2965
        %v3059 = vsub.f32 %v2883, %v2965
        %v3060 = vsub.f32 %v2708, %v2968
        %v3061 = vsub.f32 %v2886, %v2968
        %v3062 = vsub.f32 %v2710, %v2971
        %v3063 = vsub.f32 %v2888, %v2971
        %v3064 = vsub.f32 %v2713, %v2974
        %v3065 = vsub.f32 %v2891, %v2974
        %v3066 = vsub.f32 %v2715, %v2977
        %v3067 = vsub.f32 %v2893, %v2977
        %v3068 = vsub.f32 %v2718, %v2980
        %v3069 = vsub.f32 %v2896, %v2980
        %v3070 = vsub.f32 %v2720, %v2983
        %v3071 = vsub.f32 %v2898, %v2983
        %v3072 = vsub.f32 %v2723, %v2986
        %v3073 = vsub.f32 %v2901, %v2986
        %v3074 = vsub.f32 %v2725, %v2989
        %v3075 = vsub.f32 %v2903, %v2989
        %v3076 = vsub.f32 %v2728, %v2992
        %v3077 = vsub.f32 %v2906, %v2992
        %v3078 = vsub.f32 %v2730, %v2995
        %v3079 = vsub.f32 %v2908, %v2995
        %v3080 = vsub.f32 %v2733, %v2998
        %v3081 = vsub.f32 %v2911, %v2998
        %v3082 = vsub.f32 %v2735, %v3001
        %v3083 = vsub.f32 %v2913, %v3001
        %v3084 = vsub.f32 %v2738, %v3004
        %v3085 = vsub.f32 %v2916, %v3004
        %v3086 = vsub.f32 %v2740, %v3007
        %v3087 = vsub.f32 %v2918, %v3007
        %v3088 = vsub.f32 %v2743, %v3010
        %v3089 = vsub.f32 %v2921, %v3010
        %v3090 = vsub.f32 %v2745, %v3013
        %v3091 = vsub.f32 %v2923, %v3013
        %v3092 = vsub.f32 %v2748, %v3016
        %v3093 = vsub.f32 %v2926, %v3016
        %v3094 = vsub.f32 %v2750, %v3019
        %v3095 = vsub.f32 %v2928, %v3019
        %v3096 = vsub.f32 %v2753, %v3022
        %v3097 = vsub.f32 %v2931, %v3022
        %v3098 = vsub.f32 %v2755, %v3025
        %v3099 = vsub.f32 %v2933, %v3025
        %v3100 = vsub.f32 %v2758, %v3028
        %v3101 = vsub.f32 %v2936, %v3028
        %v3102 = vsub.f32 %v2760, %v3031
        %v3103 = vsub.f32 %v2938, %v3031
        %v3104 = vsub.f32 %v2763, %v3034
        %v3105 = vsub.f32 %v2941, %v3034
        %v3106 = vsub.f32 %v2765, %v3037
        %v3107 = vsub.f32 %v2943, %v3037
        %v3108 = vsub.f32 %v2768, %v3040
        %v3109 = vsub.f32 %v2946, %v3040
        %v3110 = vsub.f32 %v2770, %v3043
        %v3111 = vsub.f32 %v2948, %v3043
        %v3112 = vsub.f32 %v2773, %v3046
        %v3113 = vsub.f32 %v2951, %v3046
        %v3114 = vsub.f32 %v2775, %v3049
        %v3115 = vsub.f32 %v2953, %v3049
        %v3116 = vsub.f32 %v2778, %v3052
        %v3117 = vsub.f32 %v2956, %v3052
        %v3118 = vsub.f32 %v2780, %v3055
        %v3119 = vsub.f32 %v2958, %v3055
        %v3120 = vmul.f32 %v3056, 1.442695
        %v3121 = vpow.pop %v3120
        %v3122 = vmul.f32 %v3057, 1.442695
        %v3123 = vpow.pop %v3122
        %v3124 = vmul.f32 %v3058, 1.442695
        %v3125 = vpow.pop %v3124
        %v3126 = vmul.f32 %v3059, 1.442695
        %v3127 = vpow.pop %v3126
        %v3128 = vmul.f32 %v3060, 1.442695
        %v3129 = vpow.pop %v3128
        %v3130 = vmul.f32 %v3061, 1.442695
        %v3131 = vpow.pop %v3130
        %v3132 = vmul.f32 %v3062, 1.442695
        %v3133 = vpow.pop %v3132
        %v3134 = vmul.f32 %v3063, 1.442695
        %v3135 = vpow.pop %v3134
        %v3136 = vmul.f32 %v3064, 1.442695
        %v3137 = vpow.pop %v3136
        %v3138 = vmul.f32 %v3065, 1.442695
        %v3139 = vpow.pop %v3138
        %v3140 = vmul.f32 %v3066, 1.442695
        %v3141 = vpow.pop %v3140
        %v3142 = vmul.f32 %v3067, 1.442695
        %v3143 = vpow.pop %v3142
        %v3144 = vmul.f32 %v3068, 1.442695
        %v3145 = vpow.pop %v3144
        %v3146 = vmul.f32 %v3069, 1.442695
        %v3147 = vpow.pop %v3146
        %v3148 = vmul.f32 %v3070, 1.442695
        %v3149 = vpow.pop %v3148
        %v3150 = vmul.f32 %v3071, 1.442695
        %v3151 = vpow.pop %v3150
        %v3152 = vmul.f32 %v3072, 1.442695
        %v3153 = vpow.pop %v3152
        %v3154 = vmul.f32 %v3073, 1.442695
        %v3155 = vpow.pop %v3154
        %v3156 = vmul.f32 %v3074, 1.442695
        %v3157 = vpow.pop %v3156
        %v3158 = vmul.f32 %v3075, 1.442695
        %v3159 = vpow.pop %v3158
        %v3160 = vmul.f32 %v3076, 1.442695
        %v3161 = vpow.pop %v3160
        %v3162 = vmul.f32 %v3077, 1.442695
        %v3163 = vpow.pop %v3162
        %v3164 = vmul.f32 %v3078, 1.442695
        %v3165 = vpow.pop %v3164
        %v3166 = vmul.f32 %v3079, 1.442695
        %v3167 = vpow.pop %v3166
        %v3168 = vmul.f32 %v3080, 1.442695
        %v3169 = vpow.pop %v3168
        %v3170 = vmul.f32 %v3081, 1.442695
        %v3171 = vpow.pop %v3170
        %v3172 = vmul.f32 %v3082, 1.442695
        %v3173 = vpow.pop %v3172
        %v3174 = vmul.f32 %v3083, 1.442695
        %v3175 = vpow.pop %v3174
        %v3176 = vmul.f32 %v3084, 1.442695
        %v3177 = vpow.pop %v3176
        %v3178 = vmul.f32 %v3085, 1.442695
        %v3179 = vpow.pop %v3178
        %v3180 = vmul.f32 %v3086, 1.442695
        %v3181 = vpow.pop %v3180
        %v3182 = vmul.f32 %v3087, 1.442695
        %v3183 = vpow.pop %v3182
        %v3184 = vmul.f32 %v3088, 1.442695
        %v3185 = vpow.pop %v3184
        %v3186 = vmul.f32 %v3089, 1.442695
        %v3187 = vpow.pop %v3186
        %v3188 = vmul.f32 %v3090, 1.442695
        %v3189 = vpow.pop %v3188
        %v3190 = vmul.f32 %v3091, 1.442695
        %v3191 = vpow.pop %v3190
        %v3192 = vmul.f32 %v3092, 1.442695
        %v3193 = vpow.pop %v3192
        %v3194 = vmul.f32 %v3093, 1.442695
        %v3195 = vpow.pop %v3194
        %v3196 = vmul.f32 %v3094, 1.442695
        %v3197 = vpow.pop %v3196
        %v3198 = vmul.f32 %v3095, 1.442695
        %v3199 = vpow.pop %v3198
        %v3200 = vmul.f32 %v3096, 1.442695
        %v3201 = vpow.pop %v3200
        %v3202 = vmul.f32 %v3097, 1.442695
        %v3203 = vpow.pop %v3202
        %v3204 = vmul.f32 %v3098, 1.442695
        %v3205 = vpow.pop %v3204
        %v3206 = vmul.f32 %v3099, 1.442695
        %v3207 = vpow.pop %v3206
        %v3208 = vmul.f32 %v3100, 1.442695
        %v3209 = vpow.pop %v3208
        %v3210 = vmul.f32 %v3101, 1.442695
        %v3211 = vpow.pop %v3210
        %v3212 = vmul.f32 %v3102, 1.442695
        %v3213 = vpow.pop %v3212
        %v3214 = vmul.f32 %v3103, 1.442695
        %v3215 = vpow.pop %v3214
        %v3216 = vmul.f32 %v3104, 1.442695
        %v3217 = vpow.pop %v3216
        %v3218 = vmul.f32 %v3105, 1.442695
        %v3219 = vpow.pop %v3218
        %v3220 = vmul.f32 %v3106, 1.442695
        %v3221 = vpow.pop %v3220
        %v3222 = vmul.f32 %v3107, 1.442695
        %v3223 = vpow.pop %v3222
        %v3224 = vmul.f32 %v3108, 1.442695
        %v3225 = vpow.pop %v3224
        %v3226 = vmul.f32 %v3109, 1.442695
        %v3227 = vpow.pop %v3226
        %v3228 = vmul.f32 %v3110, 1.442695
        %v3229 = vpow.pop %v3228
        %v3230 = vmul.f32 %v3111, 1.442695
        %v3231 = vpow.pop %v3230
        %v3232 = vmul.f32 %v3112, 1.442695
        %v3233 = vpow.pop %v3232
        %v3234 = vmul.f32 %v3113, 1.442695
        %v3235 = vpow.pop %v3234
        %v3236 = vmul.f32 %v3114, 1.442695
        %v3237 = vpow.pop %v3236
        %v3238 = vmul.f32 %v3115, 1.442695
        %v3239 = vpow.pop %v3238
        %v3240 = vmul.f32 %v3116, 1.442695
        %v3241 = vpow.pop %v3240
        %v3242 = vmul.f32 %v3117, 1.442695
        %v3243 = vpow.pop %v3242
        %v3244 = vmul.f32 %v3118, 1.442695
        %v3245 = vpow.pop %v3244
        %v3246 = vmul.f32 %v3119, 1.442695
        %v3247 = vpow.pop %v3246
        %v3248 = vadd.f32 %v3121, %v3123
        %3249 = vadd.xlane.f32.xlu0 %v3248
        %v3250 = vpop.xlane.xlu0 %3249
        %v3251 = vadd.f32 %v3125, %v3127
        %3252 = vadd.xlane.f32.xlu0 %v3251
        %v3253 = vpop.xlane.xlu0 %3252
        %v3254 = vadd.f32 %v3129, %v3131
        %3255 = vadd.xlane.f32.xlu0 %v3254
        %v3256 = vpop.xlane.xlu0 %3255
        %v3257 = vadd.f32 %v3133, %v3135
        %3258 = vadd.xlane.f32.xlu0 %v3257
        %v3259 = vpop.xlane.xlu0 %3258
        %v3260 = vadd.f32 %v3137, %v3139
        %3261 = vadd.xlane.f32.xlu0 %v3260
        %v3262 = vpop.xlane.xlu0 %3261
        %v3263 = vadd.f32 %v3141, %v3143
        %3264 = vadd.xlane.f32.xlu0 %v3263
        %v3265 = vpop.xlane.xlu0 %3264
        %v3266 = vadd.f32 %v3145, %v3147
        %3267 = vadd.xlane.f32.xlu0 %v3266
        %v3268 = vpop.xlane.xlu0 %3267
        %v3269 = vadd.f32 %v3149, %v3151
        %3270 = vadd.xlane.f32.xlu0 %v3269
        %v3271 = vpop.xlane.xlu0 %3270
        %v3272 = vadd.f32 %v3153, %v3155
        %3273 = vadd.xlane.f32.xlu0 %v3272
        %v3274 = vpop.xlane.xlu0 %3273
        %v3275 = vadd.f32 %v3157, %v3159
        %3276 = vadd.xlane.f32.xlu0 %v3275
        %v3277 = vpop.xlane.xlu0 %3276
        %v3278 = vadd.f32 %v3161, %v3163
        %3279 = vadd.xlane.f32.xlu0 %v3278
        %v3280 = vpop.xlane.xlu0 %3279
        %v3281 = vadd.f32 %v3165, %v3167
        %3282 = vadd.xlane.f32.xlu0 %v3281
        %v3283 = vpop.xlane.xlu0 %3282
        %v3284 = vadd.f32 %v3169, %v3171
        %3285 = vadd.xlane.f32.xlu0 %v3284
        %v3286 = vpop.xlane.xlu0 %3285
        %v3287 = vadd.f32 %v3173, %v3175
        %3288 = vadd.xlane.f32.xlu0 %v3287
        %v3289 = vpop.xlane.xlu0 %3288
        %v3290 = vadd.f32 %v3177, %v3179
        %3291 = vadd.xlane.f32.xlu0 %v3290
        %v3292 = vpop.xlane.xlu0 %3291
        %v3293 = vadd.f32 %v3181, %v3183
        %3294 = vadd.xlane.f32.xlu0 %v3293
        %v3295 = vpop.xlane.xlu0 %3294
        %v3296 = vadd.f32 %v3185, %v3187
        %3297 = vadd.xlane.f32.xlu0 %v3296
        %v3298 = vpop.xlane.xlu0 %3297
        %v3299 = vadd.f32 %v3189, %v3191
        %3300 = vadd.xlane.f32.xlu0 %v3299
        %v3301 = vpop.xlane.xlu0 %3300
        %v3302 = vadd.f32 %v3193, %v3195
        %3303 = vadd.xlane.f32.xlu0 %v3302
        %v3304 = vpop.xlane.xlu0 %3303
        %v3305 = vadd.f32 %v3197, %v3199
        %3306 = vadd.xlane.f32.xlu0 %v3305
        %v3307 = vpop.xlane.xlu0 %3306
        %v3308 = vadd.f32 %v3201, %v3203
        %3309 = vadd.xlane.f32.xlu0 %v3308
        %v3310 = vpop.xlane.xlu0 %3309
        %v3311 = vadd.f32 %v3205, %v3207
        %3312 = vadd.xlane.f32.xlu0 %v3311
        %v3313 = vpop.xlane.xlu0 %3312
        %v3314 = vadd.f32 %v3209, %v3211
        %3315 = vadd.xlane.f32.xlu0 %v3314
        %v3316 = vpop.xlane.xlu0 %3315
        %v3317 = vadd.f32 %v3213, %v3215
        %3318 = vadd.xlane.f32.xlu0 %v3317
        %v3319 = vpop.xlane.xlu0 %3318
        %v3320 = vadd.f32 %v3217, %v3219
        %3321 = vadd.xlane.f32.xlu0 %v3320
        %v3322 = vpop.xlane.xlu0 %3321
        %v3323 = vadd.f32 %v3221, %v3223
        %3324 = vadd.xlane.f32.xlu0 %v3323
        %v3325 = vpop.xlane.xlu0 %3324
        %v3326 = vadd.f32 %v3225, %v3227
        %3327 = vadd.xlane.f32.xlu0 %v3326
        %v3328 = vpop.xlane.xlu0 %3327
        %v3329 = vadd.f32 %v3229, %v3231
        %3330 = vadd.xlane.f32.xlu0 %v3329
        %v3331 = vpop.xlane.xlu0 %3330
        %v3332 = vadd.f32 %v3233, %v3235
        %3333 = vadd.xlane.f32.xlu0 %v3332
        %v3334 = vpop.xlane.xlu0 %3333
        %v3335 = vadd.f32 %v3237, %v3239
        %3336 = vadd.xlane.f32.xlu0 %v3335
        %v3337 = vpop.xlane.xlu0 %3336
        %v3338 = vadd.f32 %v3241, %v3243
        %3339 = vadd.xlane.f32.xlu0 %v3338
        %v3340 = vpop.xlane.xlu0 %3339
        %v3341 = vadd.f32 %v3245, %v3247
        %3342 = vadd.xlane.f32.xlu0 %v3341
        %v3343 = vpop.xlane.xlu0 %3342
        %v3344 = vrcp.pop %v3250
        %v3345 = vrcp.pop %v3253
        %v3346 = vrcp.pop %v3256
        %v3347 = vrcp.pop %v3259
        %v3348 = vrcp.pop %v3262
        %v3349 = vrcp.pop %v3265
        %v3350 = vrcp.pop %v3268
        %v3351 = vrcp.pop %v3271
        %v3352 = vrcp.pop %v3274
        %v3353 = vrcp.pop %v3277
        %v3354 = vrcp.pop %v3280
        %v3355 = vrcp.pop %v3283
        %v3356 = vrcp.pop %v3286
        %v3357 = vrcp.pop %v3289
        %v3358 = vrcp.pop %v3292
        %v3359 = vrcp.pop %v3295
        %v3360 = vrcp.pop %v3298
        %v3361 = vrcp.pop %v3301
        %v3362 = vrcp.pop %v3304
        %v3363 = vrcp.pop %v3307
        %v3364 = vrcp.pop %v3310
        %v3365 = vrcp.pop %v3313
        %v3366 = vrcp.pop %v3316
        %v3367 = vrcp.pop %v3319
        %v3368 = vrcp.pop %v3322
        %v3369 = vrcp.pop %v3325
        %v3370 = vrcp.pop %v3328
        %v3371 = vrcp.pop %v3331
        %v3372 = vrcp.pop %v3334
        %v3373 = vrcp.pop %v3337
        %v3374 = vrcp.pop %v3340
        %v3375 = vrcp.pop %v3343
        %v3376 = vmul.f32 %v3121, %v3344
        %v3377 = vmul.f32 %v3123, %v3344
        %v3378 = vmul.f32 %v3125, %v3345
        %v3379 = vmul.f32 %v3127, %v3345
        %v3380 = vmul.f32 %v3129, %v3346
        %v3381 = vmul.f32 %v3131, %v3346
        %v3382 = vmul.f32 %v3133, %v3347
        %v3383 = vmul.f32 %v3135, %v3347
        %v3384 = vmul.f32 %v3137, %v3348
        %v3385 = vmul.f32 %v3139, %v3348
        %v3386 = vmul.f32 %v3141, %v3349
        %v3387 = vmul.f32 %v3143, %v3349
        %v3388 = vmul.f32 %v3145, %v3350
        %v3389 = vmul.f32 %v3147, %v3350
        %v3390 = vmul.f32 %v3149, %v3351
        %v3391 = vmul.f32 %v3151, %v3351
        %v3392 = vmul.f32 %v3153, %v3352
        %v3393 = vmul.f32 %v3155, %v3352
        %v3394 = vmul.f32 %v3157, %v3353
        %v3395 = vmul.f32 %v3159, %v3353
        %v3396 = vmul.f32 %v3161, %v3354
        %v3397 = vmul.f32 %v3163, %v3354
        %v3398 = vmul.f32 %v3165, %v3355
        %v3399 = vmul.f32 %v3167, %v3355
        %v3400 = vmul.f32 %v3169, %v3356
        %v3401 = vmul.f32 %v3171, %v3356
        %v3402 = vmul.f32 %v3173, %v3357
        %v3403 = vmul.f32 %v3175, %v3357
        %v3404 = vmul.f32 %v3177, %v3358
        %v3405 = vmul.f32 %v3179, %v3358
        %v3406 = vmul.f32 %v3181, %v3359
        %v3407 = vmul.f32 %v3183, %v3359
        %v3408 = vmul.f32 %v3185, %v3360
        %v3409 = vmul.f32 %v3187, %v3360
        %v3410 = vmul.f32 %v3189, %v3361
        %v3411 = vmul.f32 %v3191, %v3361
        %v3412 = vmul.f32 %v3193, %v3362
        %v3413 = vmul.f32 %v3195, %v3362
        %v3414 = vmul.f32 %v3197, %v3363
        %v3415 = vmul.f32 %v3199, %v3363
        %v3416 = vmul.f32 %v3201, %v3364
        %v3417 = vmul.f32 %v3203, %v3364
        %v3418 = vmul.f32 %v3205, %v3365
        %v3419 = vmul.f32 %v3207, %v3365
        %v3420 = vmul.f32 %v3209, %v3366
        %v3421 = vmul.f32 %v3211, %v3366
        %v3422 = vmul.f32 %v3213, %v3367
        %v3423 = vmul.f32 %v3215, %v3367
        %v3424 = vmul.f32 %v3217, %v3368
        %v3425 = vmul.f32 %v3219, %v3368
        %v3426 = vmul.f32 %v3221, %v3369
        %v3427 = vmul.f32 %v3223, %v3369
        %v3428 = vmul.f32 %v3225, %v3370
        %v3429 = vmul.f32 %v3227, %v3370
        %v3430 = vmul.f32 %v3229, %v3371
        %v3431 = vmul.f32 %v3231, %v3371
        %v3432 = vmul.f32 %v3233, %v3372
        %v3433 = vmul.f32 %v3235, %v3372
        %v3434 = vmul.f32 %v3237, %v3373
        %v3435 = vmul.f32 %v3239, %v3373
        %v3436 = vmul.f32 %v3241, %v3374
        %v3437 = vmul.f32 %v3243, %v3374
        %v3438 = vmul.f32 %v3245, %v3375
        %v3439 = vmul.f32 %v3247, %v3375
        %3440 = vst [vmem:[%s363] sm:$0xff] %v3376
        %3441 = vst [vmem:[%s363 + $0x8] sm:$0xff] %v3377
        %3442 = vst [vmem:[%s363 + $0x10] sm:$0xff] %v3378
        %3443 = vst [vmem:[%s363 + $0x18] sm:$0xff] %v3379
        %3444 = vst [vmem:[%s363 + $0x20] sm:$0xff] %v3380
        %3445 = vst [vmem:[%s363 + $0x28] sm:$0xff] %v3381
        %3446 = vst [vmem:[%s363 + $0x30] sm:$0xff] %v3382
        %3447 = vst [vmem:[%s363 + $0x38] sm:$0xff] %v3383
        %3448 = vst [vmem:[%s363 + $0x40] sm:$0xff] %v3384
        %3449 = vst [vmem:[%s363 + $0x48] sm:$0xff] %v3385
        %3450 = vst [vmem:[%s363 + $0x50] sm:$0xff] %v3386
        %3451 = vst [vmem:[%s363 + $0x58] sm:$0xff] %v3387
        %3452 = vst [vmem:[%s363 + $0x60] sm:$0xff] %v3388
        %3453 = vst [vmem:[%s363 + $0x68] sm:$0xff] %v3389
        %3454 = vst [vmem:[%s363 + $0x70] sm:$0xff] %v3390
        %3455 = vst [vmem:[%s363 + $0x78] sm:$0xff] %v3391
        %3456 = vst [vmem:[%s363 + $0x80] sm:$0xff] %v3392
        %3457 = vst [vmem:[%s363 + $0x88] sm:$0xff] %v3393
        %3458 = vst [vmem:[%s363 + $0x90] sm:$0xff] %v3394
        %3459 = vst [vmem:[%s363 + $0x98] sm:$0xff] %v3395
        %3460 = vst [vmem:[%s363 + $0xa0] sm:$0xff] %v3396
        %3461 = vst [vmem:[%s363 + $0xa8] sm:$0xff] %v3397
        %3462 = vst [vmem:[%s363 + $0xb0] sm:$0xff] %v3398
        %3463 = vst [vmem:[%s363 + $0xb8] sm:$0xff] %v3399
        %3464 = vst [vmem:[%s363 + $0xc0] sm:$0xff] %v3400
        %3465 = vst [vmem:[%s363 + $0xc8] sm:$0xff] %v3401
        %3466 = vst [vmem:[%s363 + $0xd0] sm:$0xff] %v3402
        %3467 = vst [vmem:[%s363 + $0xd8] sm:$0xff] %v3403
        %3468 = vst [vmem:[%s363 + $0xe0] sm:$0xff] %v3404
        %3469 = vst [vmem:[%s363 + $0xe8] sm:$0xff] %v3405
        %3470 = vst [vmem:[%s363 + $0xf0] sm:$0xff] %v3406
        %3471 = vst [vmem:[%s363 + $0xf8] sm:$0xff] %v3407
        %3472 = vst [vmem:[%s363 + $0x100] sm:$0xff] %v3408
        %3473 = vst [vmem:[%s363 + $0x108] sm:$0xff] %v3409
        %3474 = vst [vmem:[%s363 + $0x110] sm:$0xff] %v3410
        %3475 = vst [vmem:[%s363 + $0x118] sm:$0xff] %v3411
        %3476 = vst [vmem:[%s363 + $0x120] sm:$0xff] %v3412
        %3477 = vst [vmem:[%s363 + $0x128] sm:$0xff] %v3413
        %3478 = vst [vmem:[%s363 + $0x130] sm:$0xff] %v3414
        %3479 = vst [vmem:[%s363 + $0x138] sm:$0xff] %v3415
        %3480 = vst [vmem:[%s363 + $0x140] sm:$0xff] %v3416
        %3481 = vst [vmem:[%s363 + $0x148] sm:$0xff] %v3417
        %3482 = vst [vmem:[%s363 + $0x150] sm:$0xff] %v3418
        %3483 = vst [vmem:[%s363 + $0x158] sm:$0xff] %v3419
        %3484 = vst [vmem:[%s363 + $0x160] sm:$0xff] %v3420
        %3485 = vst [vmem:[%s363 + $0x168] sm:$0xff] %v3421
        %3486 = vst [vmem:[%s363 + $0x170] sm:$0xff] %v3422
        %3487 = vst [vmem:[%s363 + $0x178] sm:$0xff] %v3423
        %3488 = vst [vmem:[%s363 + $0x180] sm:$0xff] %v3424
        %3489 = vst [vmem:[%s363 + $0x188] sm:$0xff] %v3425
        %3490 = vst [vmem:[%s363 + $0x190] sm:$0xff] %v3426
        %3491 = vst [vmem:[%s363 + $0x198] sm:$0xff] %v3427
        %3492 = vst [vmem:[%s363 + $0x1a0] sm:$0xff] %v3428
        %3493 = vst [vmem:[%s363 + $0x1a8] sm:$0xff] %v3429
        %3494 = vst [vmem:[%s363 + $0x1b0] sm:$0xff] %v3430
        %3495 = vst [vmem:[%s363 + $0x1b8] sm:$0xff] %v3431
        %3496 = vst [vmem:[%s363 + $0x1c0] sm:$0xff] %v3432
        %3497 = vst [vmem:[%s363 + $0x1c8] sm:$0xff] %v3433
        %3498 = vst [vmem:[%s363 + $0x1d0] sm:$0xff] %v3434
        %3499 = vst [vmem:[%s363 + $0x1d8] sm:$0xff] %v3435
        %3500 = vst [vmem:[%s363 + $0x1e0] sm:$0xff] %v3436
        %3501 = vst [vmem:[%s363 + $0x1e8] sm:$0xff] %v3437
        %3502 = vst [vmem:[%s363 + $0x1f0] sm:$0xff] %v3438
        %3503 = vst [vmem:[%s363 + $0x1f8] sm:$0xff] %v3439
        %s3504 = sand.u32 %s186, 1
        %s3505 = scalar_lea.sflag [#allocation4], %s3504
        %s3506 = sand.u32 %s186, 1
        %s3507 = smul.addr %s3506, 512
        %s3508 = scalar_lea.vmem [#allocation11], %s3507
        // Predicated region
        $region69: #{tpu_custom_call.1} parent=47 // pred_check
          %p3509 = pneg %p196
        $region70: #{tpu_custom_call.1} parent=47 // pred_check_branch
          %3511 = sbr.rel (%p3509) target = $region72
        $region71: #{tpu_custom_call.1} parent=47 // pred_region
          %s3512 = smul.u32 32, %s26
          %3514 = vsyncadd %s3505, 0
          %s3515 = smul.addr %s3512, 2
          %s3516 = smul.addr %s3515, 8
          %s3517 = scalar_lea.hbm %s7, %s3516
          %s3518 = sshll.u32 %s3508, 4
          %s3519 = int_to_ptr.vmem [resolvable:$true] %s3518
          %s3520 = sshll.u32 %s3517, 4
          %s3521 = int_to_ptr.hbm [resolvable:$true] %s3520
          %3526 = dma.vmem_to_hbm [thread:$0]  %s3519, 8192, %s3521, %s3505, 256, 256, 16
        $region72: #{tpu_custom_call.1} parent=47 // pred_fallthru
          _
      $region48: #{tpu_custom_call.1} parent=5 // pred_fallthru
        _
      %p3527 = scmp.le.s32.totalorder 2, %s21
      // Predicated region
      $region73: #{tpu_custom_call.1} parent=5 // pred_check
        %p3528 = pneg %p3527
      $region74: #{tpu_custom_call.1} parent=5 // pred_check_branch
        %3530 = sbr.rel (%p3528) target = $region76
      $region75: #{tpu_custom_call.1} parent=5 // pred_region
        %s3531 = ssub.s32 %s21, 2
        // Predicated region
        $region77: #{tpu_custom_call.1} parent=75 // pred_check
          %p3532 = pneg %p202
        $region78: #{tpu_custom_call.1} parent=75 // pred_check_branch
          %3534 = sbr.rel (%p3532) target = $region80
        $region79: #{tpu_custom_call.1} parent=75 // pred_region
          %s3535 = sand.u32 %s187, 1
          %s3536 = scalar_lea.sflag [#allocation4], %s3535
          %s3537 = sand.u32 %s187, 1
          %s3538 = smul.addr %s3537, 512
          %s3539 = scalar_lea.vmem [#allocation11], %s3538
          %3541 = dma.done %s3536, 8192
        $region80: #{tpu_custom_call.1} parent=75 // pred_fallthru
          _
      $region76: #{tpu_custom_call.1} parent=5 // pred_fallthru
        _
    $region6: #{tpu_custom_call.1} parent=1 // loop_footer
      %s25 = sadd.s32 1, %s21
    $region7: #{tpu_custom_call.1} parent=1 // loop_footer_branch
      %20 = sbr.rel target = $region3
    $region8: #{tpu_custom_call.1} parent=1 // loop_exit
      _
    %3542 = vsyncpa [#allocation3], 1
    %s3543 = scalar_lea.sflag [#allocation3], 1
    %3544 = vsyncpa %s3543, 1
    %3545 = vsyncpa [#allocation6], 1
    %3546 = vsyncpa [#allocation9], 1
    %3547 = vsyncpa [#allocation4], 1
    %s3548 = scalar_lea.sflag [#allocation4], 1
    %3549 = vsyncpa %s3548, 1

</llo_original>
